<compile_context>
chip_gen: v7x
topology: tpu7x:2x2x1
jax: 0.10.0
libtpu: 0.0.40
codegen_flags: <defaults>
</compile_context>

<pallas_src>
import functools

import jax
import jax.numpy as jnp
from jax.experimental import pallas as pl
from jax.experimental.pallas import tpu as pltpu


def _round_up(x, m):
    return ((x + m - 1) // m) * m


# ------------------------------- fused kernel --------------------------------
def wavenet_kernel(a_l_ref, a_c_ref, a_r_ref,        # (1, Cin, Tb) f32  (left / center / right blocks)
                   s_l_ref, s_c_ref, s_r_ref,        # (1, mel, Tb) bf16
                   start_w_ref, start_b_ref,         # (C, Cin) bf16 , (C, 1) f32
                   bz_ref,                           # (L, 2C, 1) f32   (in_b + cond_b)
                   in_w_ref,                         # (L, 2C, 3C+mel) bf16 (taps + cond on K)
                   rs_w_ref, rs_b_ref,               # (L, 2C, C) bf16 , (L, 2C, 1) f32
                   end_w_ref, end_b_ref,             # (2*Cin, C) bf16 , (2*Cin, 1) f32
                   inv_w_ref, inv_b_ref,             # (Cin, Cin) bf16 , (Cin, 1) f32
                   out_ref,                          # (1, Cin, Tb) f32
                   *, n_layers, n_channels, n_half, t_block, halo, seq_len):
    C = n_channels
    Tb = t_block
    H = halo
    Text = Tb + 2 * H
    t_idx = pl.program_id(1)

    # --- assemble the haloed (extended) window from the 3 neighbouring blocks
    a_c = a_c_ref[0]                                                  # (Cin, Tb) f32
    a_ext = jnp.concatenate(
        [a_l_ref[0, :, Tb - H:], a_c, a_r_ref[0, :, :H]],
        axis=1).astype(jnp.bfloat16)                                  # (Cin, Text)
    sp_ext = jnp.concatenate(
        [s_l_ref[0, :, Tb - H:], s_c_ref[0], s_r_ref[0, :, :H]],
        axis=1)                                                       # (mel, Text) bf16

    # --- validity masks: only true sequence positions [0, seq_len) are real;
    #     everything else must behave like the module's zero padding.
    col = jax.lax.broadcasted_iota(jnp.int32, (1, Text), 1)
    pos = col + (t_idx * Tb - H)
    valid = jnp.logical_and(pos >= 0, pos < seq_len)                  # (1, Text)
    col_c = jax.lax.broadcasted_iota(jnp.int32, (1, Tb), 1)
    valid_c = (col_c + t_idx * Tb) < seq_len                          # (1, Tb)

    # start 1x1 conv over the extended window
    h = jnp.dot(start_w_ref[...], a_ext,
                preferred_element_type=jnp.float32) + start_b_ref[...]   # (C, Text) f32
    out = jnp.zeros_like(h)

    # unrolled layer loop (weights statically indexed; h / out stay in VMEM)
    for i in range(n_layers):
        d = 2 ** i
        # zero out-of-sequence columns so edge taps match Conv1d zero padding
        xm = jnp.where(valid, h, 0.0).astype(jnp.bfloat16)            # (C, Text)
        zpad = jnp.zeros((C, d), jnp.bfloat16)
        x_left = jnp.concatenate([zpad, xm[:, :Text - d]], axis=1)    # x[t - d]
        x_right = jnp.concatenate([xm[:, d:], zpad], axis=1)          # x[t + d]
        # 3 dilated taps + conditioning stacked on K -> one MXU matmul per layer
        xin = jnp.concatenate([x_left, xm, x_right, sp_ext], axis=0)  # (3C+mel, Text)
        z = (jnp.dot(in_w_ref[i], xin, preferred_element_type=jnp.float32)
             + bz_ref[i])                                             # (2C, Text)

        acts = (jnp.tanh(z[:C]) * jax.nn.sigmoid(z[C:])).astype(jnp.bfloat16)

        if i < n_layers - 1:
            rs = jnp.dot(rs_w_ref[i], acts,
                         preferred_element_type=jnp.float32) + rs_b_ref[i]
            h = h + rs[:C]
            out = out + rs[C:]
        else:
            # last layer: skip-only conv (real weights live in rows [C:2C])
            rs = jnp.dot(rs_w_ref[i][C:], acts,
                         preferred_element_type=jnp.float32) + rs_b_ref[i][C:]
            out = out + rs

    # end 1x1 conv / affine / invertible 1x1 conv over interior columns only
    out_c = out[:, H:H + Tb].astype(jnp.bfloat16)                     # (C, Tb)
    wn_out = jnp.dot(end_w_ref[...], out_c,
                     preferred_element_type=jnp.float32) + end_b_ref[...]  # (2*Cin, Tb)
    b_aff = wn_out[:n_half]
    s_aff = wn_out[n_half:]
    z_aff = ((a_c - b_aff) * jnp.exp(-s_aff)).astype(jnp.bfloat16)

    res = (jnp.dot(inv_w_ref[...], z_aff,
                   preferred_element_type=jnp.float32) + inv_b_ref[...])
    # zero the length-padding tail so it stays exact zero for the next wavenet
    out_ref[0] = jnp.where(valid_c, res, 0.0)


def wavenet_step(audio, spect_pad, p, inv, *, t_block, halo_pad, seq_len,
                 single_buffer_weights):
    B, Cin, T_in = audio.shape
    mel = spect_pad.shape[1]
    T_pad = spect_pad.shape[2]
    T_r = T_pad - 2 * t_block
    nb = T_r // t_block
    L, twoC, _ = p['in_w'].shape
    C = twoC // 2

    # halo-pad the running audio (one zero block each side + length round-up)
    audio_pad = jnp.pad(audio, ((0, 0), (0, 0),
                                (t_block, T_pad - t_block - T_in)))

    kernel = functools.partial(
        wavenet_kernel, n_layers=L, n_channels=C, n_half=Cin,
        t_block=t_block, halo=halo_pad, seq_len=seq_len)

    def nbr_spec(ch, off):
        # left (off=0) / center (off=1) / right (off=2) neighbour blocks
        return pl.BlockSpec((1, ch, t_block),
                            lambda b, t, off=off: (b, 0, t + off))

    def w_spec(shape):
        nd = len(shape)
        idx = lambda b, t, nd=nd: (0,) * nd
        if single_buffer_weights:
            # constant block index -> no need for a second (double) buffer
            return pl.BlockSpec(tuple(shape), idx, pipeline_mode=pl.Buffered(1))
        return pl.BlockSpec(tuple(shape), idx)

    weights = [p['start_w'], p['start_b'], p['bz'], p['in_w'],
               p['rs_w'], p['rs_b'], p['end_w'], p['end_b'],
               inv['w'], inv['b']]

    in_specs = ([nbr_spec(Cin, 0), nbr_spec(Cin, 1), nbr_spec(Cin, 2),
                 nbr_spec(mel, 0), nbr_spec(mel, 1), nbr_spec(mel, 2)]
                + [w_spec(w.shape) for w in weights])

    return pl.pallas_call(
        kernel,
        out_shape=jax.ShapeDtypeStruct((B, Cin, T_r), jnp.float32),
        grid=(B, nb),
        in_specs=in_specs,
        out_specs=pl.BlockSpec((1, Cin, t_block), lambda b, t: (b, 0, t)),
        compiler_params=pltpu.CompilerParams(
            # both axes independent -> both TensorCores get work even at B=1
            dimension_semantics=("parallel", "parallel"),
            vmem_limit_bytes=64 * 1024 * 1024),
    )(audio_pad, audio_pad, audio_pad, spect_pad, spect_pad, spect_pad, *weights)


# --------------------------- model forward (Pallas) ---------------------------
def affine_student_forward(audio, spect, prepped, *, t_block=None,
                           single_buffer_weights=True):
    B, Cin, T = audio.shape
    L = prepped['wn'][0]['in_w'].shape[0]
    halo = 2 ** L - 1                      # receptive field of the dilated stack
    H = _round_up(halo, 128)               # lane-aligned halo per side
    if t_block is None:
        # biggest T block that keeps the per-step working set modest (v7x 64 MiB)
        t_block = max(H, min(1024, _round_up(T, 128)))
    t_block = _round_up(t_block, 128)
    assert H <= t_block, "t_block must cover the dilated receptive field"
    nb = pl.cdiv(T, t_block)
    T_r = nb * t_block
    T_pad = T_r + 2 * t_block

    # spect: cast to bf16 and halo-pad ONCE; reused by every wavenet call.
    spect_pad = jnp.pad(spect.astype(jnp.bfloat16),
                        ((0, 0), (0, 0), (t_block, T_pad - t_block - T)))

    x = audio
    for wn_p, inv_p in zip(prepped['wn'], prepped['convinv']):
        x = wavenet_step(x, spect_pad, wn_p, inv_p,
                         t_block=t_block, halo_pad=H, seq_len=T,
                         single_buffer_weights=single_buffer_weights)
    return x[:, :, :T]


# ----------------------- one-time parameter preparation ------------------------
def prepare_params(params):
    """Hoist all re-layouts out of the hot path: tap stacking, cond fusion onto
    the conv K dim, bias fusion, reshapes and bf16 casts are done once here."""
    L = params['n_layers']
    prepped = dict(wn=[], convinv=[])
    for p in params['wn']:
        C = p['start_w'].shape[0]
        cond_w = p['cond_w'].reshape(L, 2 * C, -1)
        in_w, in_b = [], []
        for i in range(L):
            w = p['in_w'][i]                                   # (2C, C, 3)
            # [tap t-d | tap t | tap t+d | cond] stacked along K
            in_w.append(jnp.concatenate(
                [w[:, :, 0], w[:, :, 1], w[:, :, 2], cond_w[i]], axis=1))
            in_b.append(p['in_b'][i])
        in_w = jnp.stack(in_w)                                  # (L, 2C, 3C+mel)
        bz = (jnp.stack(in_b) + p['cond_b'].reshape(L, 2 * C)).reshape(L, 2 * C, 1)
        # res/skip weights: last layer (skip-only, C rows) placed in rows [C:2C]
        rs_w, rs_b = [], []
        for i in range(L):
            w, b = p['rs_w'][i], p['rs_b'][i]
            if i == L - 1:
                w = jnp.concatenate([jnp.zeros((C, C), w.dtype), w], axis=0)
                b = jnp.concatenate([jnp.zeros((C,), b.dtype), b], axis=0)
            rs_w.append(w)
            rs_b.append(b)
        prepped['wn'].append(dict(
            start_w=p['start_w'].astype(jnp.bfloat16),
            start_b=p['start_b'].reshape(-1, 1),
            bz=bz,
            in_w=in_w.astype(jnp.bfloat16),
            rs_w=jnp.stack(rs_w).astype(jnp.bfloat16),
            rs_b=jnp.stack(rs_b)[..., None],
            end_w=p['end_w'].astype(jnp.bfloat16),
            end_b=p['end_b'].reshape(-1, 1)))
    for k in range(len(params['convinv_w'])):
        prepped['convinv'].append(dict(
            w=params['convinv_w'][k].astype(jnp.bfloat16),
            b=params['convinv_b'][k].reshape(-1, 1)))
    return prepped


# --------------------------- pure-JAX reference check --------------------------
# Mirrors the module math via lax.conv_general_dilated, casting matmul operands
# to bf16 (f32 accumulation) exactly like the kernel so a tight tolerance holds.
def _ref_conv1d(x, w, b, dilation=1, padding=0):
    out = jax.lax.conv_general_dilated(
        x.astype(jnp.bfloat16), w.astype(jnp.bfloat16),
        window_strides=(1,), padding=[(padding, padding)],
        rhs_dilation=(dilation,), dimension_numbers=('NCH', 'OIH', 'NCH'),
        preferred_element_type=jnp.float32)
    return out + b[None, :, None]


def _ref_wn(audio, spect, p, n_layers):
    C = p['start_w'].shape[0]
    h = _ref_conv1d(audio, p['start_w'][..., None], p['start_b'])
    cond = _ref_conv1d(spect, p['cond_w'][..., None], p['cond_b'])
    out = jnp.zeros_like(h)
    for i in range(n_layers):
        dil = 2 ** i
        z = _ref_conv1d(h, p['in_w'][i], p['in_b'][i], dilation=dil, padding=dil)
        z = z + cond[:, 2 * C * i:2 * C * (i + 1), :]
        acts = jnp.tanh(z[:, :C, :]) * jax.nn.sigmoid(z[:, C:, :])
        rs = _ref_conv1d(acts, p['rs_w'][i][..., None], p['rs_b'][i])
        if i < n_layers - 1:
            h = h + rs[:, :C, :]
            out = out + rs[:, C:, :]
        else:
            out = out + rs
    return _ref_conv1d(out, p['end_w'][..., None], p['end_b'])


def _ref_forward(audio, spect, params):
    n_half = audio.shape[1]
    for k in range(len(params['wn'])):
        o = _ref_wn(audio, spect, params['wn'][k], params['n_layers'])
        s = o[:, n_half:, :]
        b = o[:, :n_half, :]
        audio = (audio - b) * jnp.exp(-s)   # == (audio - b) / exp(s)
        audio = _ref_conv1d(audio, params['convinv_w'][k][..., None],
                            params['convinv_b'][k])
    return audio


# ------------------------------ parameter init --------------------------------
def init_params(key, in_channels, mel_channels, n_channels, n_wavenets, n_layers):
    keys = iter(jax.random.split(key, 4096))

    def nrm(shape, scale=0.1):
        return scale * jax.random.normal(next(keys), shape, jnp.float32)

    wn = []
    for _ in range(n_wavenets):
        p = dict(
            start_w=nrm((n_channels, in_channels)), start_b=nrm((n_channels,)),
            end_w=nrm((2 * in_channels, n_channels), 0.05),
            end_b=nrm((2 * in_channels,), 0.05),
            cond_w=nrm((2 * n_channels * n_layers, mel_channels)),
            cond_b=nrm((2 * n_channels * n_layers,)),
            in_w=[], in_b=[], rs_w=[], rs_b=[])
        for i in range(n_layers):
            p['in_w'].append(nrm((2 * n_channels, n_channels, 3)))
            p['in_b'].append(nrm((2 * n_channels,)))
            rs_ch = 2 * n_channels if i < n_layers - 1 else n_channels
            p['rs_w'].append(nrm((rs_ch, n_channels)))
            p['rs_b'].append(nrm((rs_ch,)))
        wn.append(p)
    convinv_w = [nrm((in_channels, in_channels)) for _ in range(n_wavenets)]
    convinv_b = [nrm((in_channels,)) for _ in range(n_wavenets)]
    return dict(wn=wn, convinv_w=convinv_w, convinv_b=convinv_b, n_layers=n_layers)


# ------------------------------------ main -------------------------------------
if __name__ == "__main__":
    B, in_channels, mel_channels, T = 2, 4, 8, 16
    hid_channels = 32          # wavenet_channels defaults to hid_channels
    n_wavenets, wavenet_layers = 2, 3

    key = jax.random.PRNGKey(0)
    k_a, k_s, k_p = jax.random.split(key, 3)
    audio = jax.random.normal(k_a, (B, in_channels, T), jnp.float32)
    spect = jax.random.normal(k_s, (B, mel_channels, T), jnp.float32)
    params = init_params(k_p, in_channels, mel_channels, hid_channels,
                         n_wavenets, wavenet_layers)
    prepped = prepare_params(params)      # one-time re-layout / bf16 cast

    # Preferred config: single-buffered constant weights.  If this JAX build
    # rejects pl.Buffered(1), fall back to the default double-buffered specs.
    try:
        fwd = jax.jit(functools.partial(affine_student_forward,
                                        single_buffer_weights=True))
        out = jax.block_until_ready(fwd(audio, spect, prepped))
    except Exception:
        fwd = jax.jit(functools.partial(affine_student_forward,
                                        single_buffer_weights=False))
        out = jax.block_until_ready(fwd(audio, spect, prepped))

    ref = jax.block_until_ready(_ref_forward(audio, spect, params))
    err = float(jnp.max(jnp.abs(out - ref)))
    assert out.shape == (B, in_channels, T)
    assert err < 1e-3, f"mismatch vs reference: {err}"

    print("KERNEL_OK")
</pallas_src>

<mosaic_0001>
module attributes {stable_mosaic.version = 11 : i64} {
  func.func @wavenet_kernel(%arg0: i32, %arg1: i32, %arg2: memref<1x4x128xf32, #tpu.memory_space<vmem>>, %arg3: memref<1x4x128xf32, #tpu.memory_space<vmem>>, %arg4: memref<1x4x128xf32, #tpu.memory_space<vmem>>, %arg5: memref<1x8x128xbf16, #tpu.memory_space<vmem>>, %arg6: memref<1x8x128xbf16, #tpu.memory_space<vmem>>, %arg7: memref<1x8x128xbf16, #tpu.memory_space<vmem>>, %arg8: memref<32x4xbf16, #tpu.memory_space<vmem>>, %arg9: memref<32x1xf32, #tpu.memory_space<vmem>>, %arg10: memref<3x64x1xf32, #tpu.memory_space<vmem>>, %arg11: memref<3x64x104xbf16, #tpu.memory_space<vmem>>, %arg12: memref<3x64x32xbf16, #tpu.memory_space<vmem>>, %arg13: memref<3x64x1xf32, #tpu.memory_space<vmem>>, %arg14: memref<8x32xbf16, #tpu.memory_space<vmem>>, %arg15: memref<8x1xf32, #tpu.memory_space<vmem>>, %arg16: memref<4x4xbf16, #tpu.memory_space<vmem>>, %arg17: memref<4x1xf32, #tpu.memory_space<vmem>>, %arg18: memref<1x4x128xf32, #tpu.memory_space<vmem>>) attributes {dimension_semantics = [#tpu.dimension_semantics<parallel>, #tpu.dimension_semantics<parallel>], iteration_bounds = array<i64: 2, 1>, scalar_prefetch = 0 : i64, scratch_operands = 0 : i64, tpu.core_type = #tpu.core_type<tc>, window_params = [{transform_indices = @transform_0, window_bounds = array<i64: 1, 4, 128>}, {transform_indices = @transform_1, window_bounds = array<i64: 1, 4, 128>}, {transform_indices = @transform_2, window_bounds = array<i64: 1, 4, 128>}, {transform_indices = @transform_3, window_bounds = array<i64: 1, 8, 128>}, {transform_indices = @transform_4, window_bounds = array<i64: 1, 8, 128>}, {transform_indices = @transform_5, window_bounds = array<i64: 1, 8, 128>}, {pipeline_mode = #tpu.pipeline_mode<synchronous>, transform_indices = @transform_6, window_bounds = array<i64: 32, 4>}, {pipeline_mode = #tpu.pipeline_mode<synchronous>, transform_indices = @transform_7, window_bounds = array<i64: 32, 1>}, {pipeline_mode = #tpu.pipeline_mode<synchronous>, transform_indices = @transform_8, window_bounds = array<i64: 3, 64, 1>}, {pipeline_mode = #tpu.pipeline_mode<synchronous>, transform_indices = @transform_9, window_bounds = array<i64: 3, 64, 104>}, {pipeline_mode = #tpu.pipeline_mode<synchronous>, transform_indices = @transform_10, window_bounds = array<i64: 3, 64, 32>}, {pipeline_mode = #tpu.pipeline_mode<synchronous>, transform_indices = @transform_11, window_bounds = array<i64: 3, 64, 1>}, {pipeline_mode = #tpu.pipeline_mode<synchronous>, transform_indices = @transform_12, window_bounds = array<i64: 8, 32>}, {pipeline_mode = #tpu.pipeline_mode<synchronous>, transform_indices = @transform_13, window_bounds = array<i64: 8, 1>}, {pipeline_mode = #tpu.pipeline_mode<synchronous>, transform_indices = @transform_14, window_bounds = array<i64: 4, 4>}, {pipeline_mode = #tpu.pipeline_mode<synchronous>, transform_indices = @transform_15, window_bounds = array<i64: 4, 1>}, {transform_indices = @transform_16, window_bounds = array<i64: 1, 4, 128>}]} {
    %c0 = arith.constant 0 : index
    %c0_0 = arith.constant 0 : index
    %c0_1 = arith.constant 0 : index
    %0 = vector.load %arg3[%c0, %c0_0, %c0_1] : memref<1x4x128xf32, #tpu.memory_space<vmem>>, vector<1x4x128xf32>
    %1 = vector.shape_cast %0 : vector<1x4x128xf32> to vector<4x128xf32>
    %c0_2 = arith.constant 0 : index
    %c0_3 = arith.constant 0 : index
    %c0_4 = arith.constant 0 : index
    %2 = vector.load %arg2[%c0_2, %c0_3, %c0_4] : memref<1x4x128xf32, #tpu.memory_space<vmem>>, vector<1x4x128xf32>
    %3 = vector.shape_cast %2 : vector<1x4x128xf32> to vector<4x128xf32>
    %c0_5 = arith.constant 0 : index
    %c0_6 = arith.constant 0 : index
    %c0_7 = arith.constant 0 : index
    %4 = vector.load %arg4[%c0_5, %c0_6, %c0_7] : memref<1x4x128xf32, #tpu.memory_space<vmem>>, vector<1x4x128xf32>
    %5 = vector.shape_cast %4 : vector<1x4x128xf32> to vector<4x128xf32>
    %6 = tpu.concatenate %3, %1, %5 in 1 : vector<4x128xf32>, vector<4x128xf32>, vector<4x128xf32> -> vector<4x384xf32>
    %7 = arith.truncf %6 : vector<4x384xf32> to vector<4x384xbf16>
    %c0_8 = arith.constant 0 : index
    %c0_9 = arith.constant 0 : index
    %c0_10 = arith.constant 0 : index
    %8 = vector.load %arg5[%c0_8, %c0_9, %c0_10] : memref<1x8x128xbf16, #tpu.memory_space<vmem>>, vector<1x8x128xbf16>
    %9 = vector.shape_cast %8 : vector<1x8x128xbf16> to vector<8x128xbf16>
    %c0_11 = arith.constant 0 : index
    %c0_12 = arith.constant 0 : index
    %c0_13 = arith.constant 0 : index
    %10 = vector.load %arg6[%c0_11, %c0_12, %c0_13] : memref<1x8x128xbf16, #tpu.memory_space<vmem>>, vector<1x8x128xbf16>
    %11 = vector.shape_cast %10 : vector<1x8x128xbf16> to vector<8x128xbf16>
    %c0_14 = arith.constant 0 : index
    %c0_15 = arith.constant 0 : index
    %c0_16 = arith.constant 0 : index
    %12 = vector.load %arg7[%c0_14, %c0_15, %c0_16] : memref<1x8x128xbf16, #tpu.memory_space<vmem>>, vector<1x8x128xbf16>
    %13 = vector.shape_cast %12 : vector<1x8x128xbf16> to vector<8x128xbf16>
    %14 = tpu.concatenate %9, %11, %13 in 1 : vector<8x128xbf16>, vector<8x128xbf16>, vector<8x128xbf16> -> vector<8x384xbf16>
    %15 = tpu.iota {dimensions = array<i32: 1>} : vector<1x384xi32>
    %c128_i32 = arith.constant 128 : i32
    %16 = arith.muli %arg1, %c128_i32 : i32
    %c128_i32_17 = arith.constant 128 : i32
    %17 = arith.subi %16, %c128_i32_17 : i32
    %18 = vector.broadcast %17 : i32 to vector<1x384xi32>
    %19 = arith.addi %15, %18 : vector<1x384xi32>
    %c0_i32 = arith.constant 0 : i32
    %20 = vector.broadcast %c0_i32 : i32 to vector<1x384xi32>
    %21 = arith.cmpi sge, %19, %20 : vector<1x384xi32>
    %c16_i32 = arith.constant 16 : i32
    %22 = vector.broadcast %c16_i32 : i32 to vector<1x384xi32>
    %23 = arith.cmpi slt, %19, %22 : vector<1x384xi32>
    %24 = arith.andi %21, %23 : vector<1x384xi1>
    %25 = tpu.iota {dimensions = array<i32: 1>} : vector<1x128xi32>
    %c128_i32_18 = arith.constant 128 : i32
    %26 = arith.muli %arg1, %c128_i32_18 : i32
    %27 = vector.broadcast %26 : i32 to vector<1x128xi32>
    %28 = arith.addi %25, %27 : vector<1x128xi32>
    %c16_i32_19 = arith.constant 16 : i32
    %29 = vector.broadcast %c16_i32_19 : i32 to vector<1x128xi32>
    %30 = arith.cmpi slt, %28, %29 : vector<1x128xi32>
    %c0_20 = arith.constant 0 : index
    %c0_21 = arith.constant 0 : index
    %31 = vector.load %arg8[%c0_20, %c0_21] : memref<32x4xbf16, #tpu.memory_space<vmem>>, vector<32x4xbf16>
    %cst = arith.constant dense<0.000000e+00> : vector<32x384xf32>
    %32 = tpu.matmul %31, %7, %cst {dimension_numbers = #tpu.dot_dimension_numbers<[1], [0], [0], [1], [0, 0, 1, 1], [], []>} : vector<32x4xbf16>, vector<4x384xbf16>, vector<32x384xf32> -> vector<32x384xf32>
    %c0_22 = arith.constant 0 : index
    %c0_23 = arith.constant 0 : index
    %33 = vector.load %arg9[%c0_22, %c0_23] : memref<32x1xf32, #tpu.memory_space<vmem>>, vector<32x1xf32>
    %34 = vector.broadcast %33 : vector<32x1xf32> to vector<32x384xf32>
    %35 = arith.addf %32, %34 : vector<32x384xf32>
    %cst_24 = arith.constant 0.000000e+00 : f32
    %36 = vector.broadcast %cst_24 : f32 to vector<32x384xf32>
    %cst_25 = arith.constant 0.000000e+00 : f32
    %37 = vector.shape_cast %24 : vector<1x384xi1> to vector<1x384xi1>
    %38 = vector.broadcast %37 : vector<1x384xi1> to vector<32x384xi1>
    %39 = vector.broadcast %cst_25 : f32 to vector<32x384xf32>
    %40 = arith.select %38, %35, %39 : vector<32x384xi1>, vector<32x384xf32>
    %41 = arith.truncf %40 : vector<32x384xf32> to vector<32x384xbf16>
    %cst_26 = arith.constant 0.000000e+00 : bf16
    %42 = vector.broadcast %cst_26 : bf16 to vector<32x1xbf16>
    %43 = vector.extract_strided_slice %41 {offsets = [0, 0], sizes = [32, 383], strides = [1, 1]} : vector<32x384xbf16> to vector<32x383xbf16>
    %44 = tpu.concatenate %42, %43 in 1 : vector<32x1xbf16>, vector<32x383xbf16> -> vector<32x384xbf16>
    %45 = vector.extract_strided_slice %41 {offsets = [0, 1], sizes = [32, 383], strides = [1, 1]} : vector<32x384xbf16> to vector<32x383xbf16>
    %46 = tpu.concatenate %45, %42 in 1 : vector<32x383xbf16>, vector<32x1xbf16> -> vector<32x384xbf16>
    %47 = tpu.concatenate %44, %41, %46, %14 in 0 : vector<32x384xbf16>, vector<32x384xbf16>, vector<32x384xbf16>, vector<8x384xbf16> -> vector<104x384xbf16>
    %c0_27 = arith.constant 0 : index
    %c0_28 = arith.constant 0 : index
    %c0_29 = arith.constant 0 : index
    %48 = vector.load %arg11[%c0_27, %c0_28, %c0_29] : memref<3x64x104xbf16, #tpu.memory_space<vmem>>, vector<1x64x104xbf16>
    %49 = vector.shape_cast %48 : vector<1x64x104xbf16> to vector<64x104xbf16>
    %cst_30 = arith.constant dense<0.000000e+00> : vector<64x384xf32>
    %50 = tpu.matmul %49, %47, %cst_30 {dimension_numbers = #tpu.dot_dimension_numbers<[1], [0], [0], [1], [0, 0, 1, 1], [], []>} : vector<64x104xbf16>, vector<104x384xbf16>, vector<64x384xf32> -> vector<64x384xf32>
    %c0_31 = arith.constant 0 : index
    %c0_32 = arith.constant 0 : index
    %c0_33 = arith.constant 0 : index
    %51 = vector.load %arg10[%c0_31, %c0_32, %c0_33] : memref<3x64x1xf32, #tpu.memory_space<vmem>>, vector<1x64x1xf32>
    %52 = vector.shape_cast %51 : vector<1x64x1xf32> to vector<64x1xf32>
    %53 = vector.broadcast %52 : vector<64x1xf32> to vector<64x384xf32>
    %54 = arith.addf %50, %53 : vector<64x384xf32>
    %55 = vector.extract_strided_slice %54 {offsets = [0, 0], sizes = [32, 384], strides = [1, 1]} : vector<64x384xf32> to vector<32x384xf32>
    %56 = math.tanh %55 : vector<32x384xf32>
    %57 = vector.extract_strided_slice %54 {offsets = [32, 0], sizes = [32, 384], strides = [1, 1]} : vector<64x384xf32> to vector<32x384xf32>
    %58 = arith.negf %57 : vector<32x384xf32>
    %59 = math.exp %58 : vector<32x384xf32>
    %cst_34 = arith.constant 1.000000e+00 : f32
    %60 = vector.broadcast %cst_34 : f32 to vector<32x384xf32>
    %61 = arith.addf %60, %59 : vector<32x384xf32>
    %62 = arith.divf %60, %61 : vector<32x384xf32>
    %63 = arith.mulf %56, %62 : vector<32x384xf32>
    %64 = arith.truncf %63 : vector<32x384xf32> to vector<32x384xbf16>
    %c0_35 = arith.constant 0 : index
    %c0_36 = arith.constant 0 : index
    %c0_37 = arith.constant 0 : index
    %65 = vector.load %arg12[%c0_35, %c0_36, %c0_37] : memref<3x64x32xbf16, #tpu.memory_space<vmem>>, vector<1x64x32xbf16>
    %66 = vector.shape_cast %65 : vector<1x64x32xbf16> to vector<64x32xbf16>
    %cst_38 = arith.constant dense<0.000000e+00> : vector<64x384xf32>
    %67 = tpu.matmul %66, %64, %cst_38 {dimension_numbers = #tpu.dot_dimension_numbers<[1], [0], [0], [1], [0, 0, 1, 1], [], []>} : vector<64x32xbf16>, vector<32x384xbf16>, vector<64x384xf32> -> vector<64x384xf32>
    %c0_39 = arith.constant 0 : index
    %c0_40 = arith.constant 0 : index
    %c0_41 = arith.constant 0 : index
    %68 = vector.load %arg13[%c0_39, %c0_40, %c0_41] : memref<3x64x1xf32, #tpu.memory_space<vmem>>, vector<1x64x1xf32>
    %69 = vector.shape_cast %68 : vector<1x64x1xf32> to vector<64x1xf32>
    %70 = vector.broadcast %69 : vector<64x1xf32> to vector<64x384xf32>
    %71 = arith.addf %67, %70 : vector<64x384xf32>
    %72 = vector.extract_strided_slice %71 {offsets = [0, 0], sizes = [32, 384], strides = [1, 1]} : vector<64x384xf32> to vector<32x384xf32>
    %73 = arith.addf %35, %72 : vector<32x384xf32>
    %74 = vector.extract_strided_slice %71 {offsets = [32, 0], sizes = [32, 384], strides = [1, 1]} : vector<64x384xf32> to vector<32x384xf32>
    %75 = arith.addf %36, %74 : vector<32x384xf32>
    %cst_42 = arith.constant 0.000000e+00 : f32
    %76 = vector.shape_cast %24 : vector<1x384xi1> to vector<1x384xi1>
    %77 = vector.broadcast %76 : vector<1x384xi1> to vector<32x384xi1>
    %78 = vector.broadcast %cst_42 : f32 to vector<32x384xf32>
    %79 = arith.select %77, %73, %78 : vector<32x384xi1>, vector<32x384xf32>
    %80 = arith.truncf %79 : vector<32x384xf32> to vector<32x384xbf16>
    %cst_43 = arith.constant 0.000000e+00 : bf16
    %81 = vector.broadcast %cst_43 : bf16 to vector<32x2xbf16>
    %82 = vector.extract_strided_slice %80 {offsets = [0, 0], sizes = [32, 382], strides = [1, 1]} : vector<32x384xbf16> to vector<32x382xbf16>
    %83 = tpu.concatenate %81, %82 in 1 : vector<32x2xbf16>, vector<32x382xbf16> -> vector<32x384xbf16>
    %84 = vector.extract_strided_slice %80 {offsets = [0, 2], sizes = [32, 382], strides = [1, 1]} : vector<32x384xbf16> to vector<32x382xbf16>
    %85 = tpu.concatenate %84, %81 in 1 : vector<32x382xbf16>, vector<32x2xbf16> -> vector<32x384xbf16>
    %86 = tpu.concatenate %83, %80, %85, %14 in 0 : vector<32x384xbf16>, vector<32x384xbf16>, vector<32x384xbf16>, vector<8x384xbf16> -> vector<104x384xbf16>
    %c1 = arith.constant 1 : index
    %c0_44 = arith.constant 0 : index
    %c0_45 = arith.constant 0 : index
    %87 = vector.load %arg11[%c1, %c0_44, %c0_45] : memref<3x64x104xbf16, #tpu.memory_space<vmem>>, vector<1x64x104xbf16>
    %88 = vector.shape_cast %87 : vector<1x64x104xbf16> to vector<64x104xbf16>
    %cst_46 = arith.constant dense<0.000000e+00> : vector<64x384xf32>
    %89 = tpu.matmul %88, %86, %cst_46 {dimension_numbers = #tpu.dot_dimension_numbers<[1], [0], [0], [1], [0, 0, 1, 1], [], []>} : vector<64x104xbf16>, vector<104x384xbf16>, vector<64x384xf32> -> vector<64x384xf32>
    %c1_47 = arith.constant 1 : index
    %c0_48 = arith.constant 0 : index
    %c0_49 = arith.constant 0 : index
    %90 = vector.load %arg10[%c1_47, %c0_48, %c0_49] : memref<3x64x1xf32, #tpu.memory_space<vmem>>, vector<1x64x1xf32>
    %91 = vector.shape_cast %90 : vector<1x64x1xf32> to vector<64x1xf32>
    %92 = vector.broadcast %91 : vector<64x1xf32> to vector<64x384xf32>
    %93 = arith.addf %89, %92 : vector<64x384xf32>
    %94 = vector.extract_strided_slice %93 {offsets = [0, 0], sizes = [32, 384], strides = [1, 1]} : vector<64x384xf32> to vector<32x384xf32>
    %95 = math.tanh %94 : vector<32x384xf32>
    %96 = vector.extract_strided_slice %93 {offsets = [32, 0], sizes = [32, 384], strides = [1, 1]} : vector<64x384xf32> to vector<32x384xf32>
    %97 = arith.negf %96 : vector<32x384xf32>
    %98 = math.exp %97 : vector<32x384xf32>
    %cst_50 = arith.constant 1.000000e+00 : f32
    %99 = vector.broadcast %cst_50 : f32 to vector<32x384xf32>
    %100 = arith.addf %99, %98 : vector<32x384xf32>
    %101 = arith.divf %99, %100 : vector<32x384xf32>
    %102 = arith.mulf %95, %101 : vector<32x384xf32>
    %103 = arith.truncf %102 : vector<32x384xf32> to vector<32x384xbf16>
    %c1_51 = arith.constant 1 : index
    %c0_52 = arith.constant 0 : index
    %c0_53 = arith.constant 0 : index
    %104 = vector.load %arg12[%c1_51, %c0_52, %c0_53] : memref<3x64x32xbf16, #tpu.memory_space<vmem>>, vector<1x64x32xbf16>
    %105 = vector.shape_cast %104 : vector<1x64x32xbf16> to vector<64x32xbf16>
    %cst_54 = arith.constant dense<0.000000e+00> : vector<64x384xf32>
    %106 = tpu.matmul %105, %103, %cst_54 {dimension_numbers = #tpu.dot_dimension_numbers<[1], [0], [0], [1], [0, 0, 1, 1], [], []>} : vector<64x32xbf16>, vector<32x384xbf16>, vector<64x384xf32> -> vector<64x384xf32>
    %c1_55 = arith.constant 1 : index
    %c0_56 = arith.constant 0 : index
    %c0_57 = arith.constant 0 : index
    %107 = vector.load %arg13[%c1_55, %c0_56, %c0_57] : memref<3x64x1xf32, #tpu.memory_space<vmem>>, vector<1x64x1xf32>
    %108 = vector.shape_cast %107 : vector<1x64x1xf32> to vector<64x1xf32>
    %109 = vector.broadcast %108 : vector<64x1xf32> to vector<64x384xf32>
    %110 = arith.addf %106, %109 : vector<64x384xf32>
    %111 = vector.extract_strided_slice %110 {offsets = [0, 0], sizes = [32, 384], strides = [1, 1]} : vector<64x384xf32> to vector<32x384xf32>
    %112 = arith.addf %73, %111 : vector<32x384xf32>
    %113 = vector.extract_strided_slice %110 {offsets = [32, 0], sizes = [32, 384], strides = [1, 1]} : vector<64x384xf32> to vector<32x384xf32>
    %114 = arith.addf %75, %113 : vector<32x384xf32>
    %cst_58 = arith.constant 0.000000e+00 : f32
    %115 = vector.shape_cast %24 : vector<1x384xi1> to vector<1x384xi1>
    %116 = vector.broadcast %115 : vector<1x384xi1> to vector<32x384xi1>
    %117 = vector.broadcast %cst_58 : f32 to vector<32x384xf32>
    %118 = arith.select %116, %112, %117 : vector<32x384xi1>, vector<32x384xf32>
    %119 = arith.truncf %118 : vector<32x384xf32> to vector<32x384xbf16>
    %cst_59 = arith.constant 0.000000e+00 : bf16
    %120 = vector.broadcast %cst_59 : bf16 to vector<32x4xbf16>
    %121 = vector.extract_strided_slice %119 {offsets = [0, 0], sizes = [32, 380], strides = [1, 1]} : vector<32x384xbf16> to vector<32x380xbf16>
    %122 = tpu.concatenate %120, %121 in 1 : vector<32x4xbf16>, vector<32x380xbf16> -> vector<32x384xbf16>
    %123 = vector.extract_strided_slice %119 {offsets = [0, 4], sizes = [32, 380], strides = [1, 1]} : vector<32x384xbf16> to vector<32x380xbf16>
    %124 = tpu.concatenate %123, %120 in 1 : vector<32x380xbf16>, vector<32x4xbf16> -> vector<32x384xbf16>
    %125 = tpu.concatenate %122, %119, %124, %14 in 0 : vector<32x384xbf16>, vector<32x384xbf16>, vector<32x384xbf16>, vector<8x384xbf16> -> vector<104x384xbf16>
    %c2 = arith.constant 2 : index
    %c0_60 = arith.constant 0 : index
    %c0_61 = arith.constant 0 : index
    %126 = vector.load %arg11[%c2, %c0_60, %c0_61] : memref<3x64x104xbf16, #tpu.memory_space<vmem>>, vector<1x64x104xbf16>
    %127 = vector.shape_cast %126 : vector<1x64x104xbf16> to vector<64x104xbf16>
    %cst_62 = arith.constant dense<0.000000e+00> : vector<64x384xf32>
    %128 = tpu.matmul %127, %125, %cst_62 {dimension_numbers = #tpu.dot_dimension_numbers<[1], [0], [0], [1], [0, 0, 1, 1], [], []>} : vector<64x104xbf16>, vector<104x384xbf16>, vector<64x384xf32> -> vector<64x384xf32>
    %c2_63 = arith.constant 2 : index
    %c0_64 = arith.constant 0 : index
    %c0_65 = arith.constant 0 : index
    %129 = vector.load %arg10[%c2_63, %c0_64, %c0_65] : memref<3x64x1xf32, #tpu.memory_space<vmem>>, vector<1x64x1xf32>
    %130 = vector.shape_cast %129 : vector<1x64x1xf32> to vector<64x1xf32>
    %131 = vector.broadcast %130 : vector<64x1xf32> to vector<64x384xf32>
    %132 = arith.addf %128, %131 : vector<64x384xf32>
    %133 = vector.extract_strided_slice %132 {offsets = [0, 0], sizes = [32, 384], strides = [1, 1]} : vector<64x384xf32> to vector<32x384xf32>
    %134 = math.tanh %133 : vector<32x384xf32>
    %135 = vector.extract_strided_slice %132 {offsets = [32, 0], sizes = [32, 384], strides = [1, 1]} : vector<64x384xf32> to vector<32x384xf32>
    %136 = arith.negf %135 : vector<32x384xf32>
    %137 = math.exp %136 : vector<32x384xf32>
    %cst_66 = arith.constant 1.000000e+00 : f32
    %138 = vector.broadcast %cst_66 : f32 to vector<32x384xf32>
    %139 = arith.addf %138, %137 : vector<32x384xf32>
    %140 = arith.divf %138, %139 : vector<32x384xf32>
    %141 = arith.mulf %134, %140 : vector<32x384xf32>
    %142 = arith.truncf %141 : vector<32x384xf32> to vector<32x384xbf16>
    %c2_67 = arith.constant 2 : index
    %c0_68 = arith.constant 0 : index
    %c0_69 = arith.constant 0 : index
    %143 = vector.load %arg12[%c2_67, %c0_68, %c0_69] : memref<3x64x32xbf16, #tpu.memory_space<vmem>>, vector<1x64x32xbf16>
    %144 = vector.shape_cast %143 : vector<1x64x32xbf16> to vector<64x32xbf16>
    %145 = vector.extract_strided_slice %144 {offsets = [32, 0], sizes = [32, 32], strides = [1, 1]} : vector<64x32xbf16> to vector<32x32xbf16>
    %cst_70 = arith.constant dense<0.000000e+00> : vector<32x384xf32>
    %146 = tpu.matmul %145, %142, %cst_70 {dimension_numbers = #tpu.dot_dimension_numbers<[1], [0], [0], [1], [0, 0, 1, 1], [], []>} : vector<32x32xbf16>, vector<32x384xbf16>, vector<32x384xf32> -> vector<32x384xf32>
    %c2_71 = arith.constant 2 : index
    %c0_72 = arith.constant 0 : index
    %c0_73 = arith.constant 0 : index
    %147 = vector.load %arg13[%c2_71, %c0_72, %c0_73] : memref<3x64x1xf32, #tpu.memory_space<vmem>>, vector<1x64x1xf32>
    %148 = vector.shape_cast %147 : vector<1x64x1xf32> to vector<64x1xf32>
    %149 = vector.extract_strided_slice %148 {offsets = [32, 0], sizes = [32, 1], strides = [1, 1]} : vector<64x1xf32> to vector<32x1xf32>
    %150 = vector.broadcast %149 : vector<32x1xf32> to vector<32x384xf32>
    %151 = arith.addf %146, %150 : vector<32x384xf32>
    %152 = arith.addf %114, %151 : vector<32x384xf32>
    %153 = vector.extract_strided_slice %152 {offsets = [0, 128], sizes = [32, 128], strides = [1, 1]} : vector<32x384xf32> to vector<32x128xf32>
    %154 = arith.truncf %153 : vector<32x128xf32> to vector<32x128xbf16>
    %c0_74 = arith.constant 0 : index
    %c0_75 = arith.constant 0 : index
    %155 = vector.load %arg14[%c0_74, %c0_75] : memref<8x32xbf16, #tpu.memory_space<vmem>>, vector<8x32xbf16>
    %cst_76 = arith.constant dense<0.000000e+00> : vector<8x128xf32>
    %156 = tpu.matmul %155, %154, %cst_76 {dimension_numbers = #tpu.dot_dimension_numbers<[1], [0], [0], [1], [0, 0, 1, 1], [], []>} : vector<8x32xbf16>, vector<32x128xbf16>, vector<8x128xf32> -> vector<8x128xf32>
    %c0_77 = arith.constant 0 : index
    %c0_78 = arith.constant 0 : index
    %157 = vector.load %arg15[%c0_77, %c0_78] : memref<8x1xf32, #tpu.memory_space<vmem>>, vector<8x1xf32>
    %158 = vector.broadcast %157 : vector<8x1xf32> to vector<8x128xf32>
    %159 = arith.addf %156, %158 : vector<8x128xf32>
    %160 = vector.extract_strided_slice %159 {offsets = [0, 0], sizes = [4, 128], strides = [1, 1]} : vector<8x128xf32> to vector<4x128xf32>
    %161 = vector.extract_strided_slice %159 {offsets = [4, 0], sizes = [4, 128], strides = [1, 1]} : vector<8x128xf32> to vector<4x128xf32>
    %162 = arith.subf %1, %160 : vector<4x128xf32>
    %cst_79 = arith.constant 0.000000e+00 : f32
    %163 = vector.broadcast %cst_79 : f32 to vector<4x128xf32>
    %164 = arith.subf %163, %161 : vector<4x128xf32>
    %165 = math.exp %164 : vector<4x128xf32>
    %166 = arith.mulf %162, %165 : vector<4x128xf32>
    %167 = arith.truncf %166 : vector<4x128xf32> to vector<4x128xbf16>
    %c0_80 = arith.constant 0 : index
    %c0_81 = arith.constant 0 : index
    %168 = vector.load %arg16[%c0_80, %c0_81] : memref<4x4xbf16, #tpu.memory_space<vmem>>, vector<4x4xbf16>
    %cst_82 = arith.constant dense<0.000000e+00> : vector<4x128xf32>
    %169 = tpu.matmul %168, %167, %cst_82 {dimension_numbers = #tpu.dot_dimension_numbers<[1], [0], [0], [1], [0, 0, 1, 1], [], []>} : vector<4x4xbf16>, vector<4x128xbf16>, vector<4x128xf32> -> vector<4x128xf32>
    %c0_83 = arith.constant 0 : index
    %c0_84 = arith.constant 0 : index
    %170 = vector.load %arg17[%c0_83, %c0_84] : memref<4x1xf32, #tpu.memory_space<vmem>>, vector<4x1xf32>
    %171 = vector.broadcast %170 : vector<4x1xf32> to vector<4x128xf32>
    %172 = arith.addf %169, %171 : vector<4x128xf32>
    %cst_85 = arith.constant 0.000000e+00 : f32
    %173 = vector.shape_cast %30 : vector<1x128xi1> to vector<1x128xi1>
    %174 = vector.broadcast %173 : vector<1x128xi1> to vector<4x128xi1>
    %175 = vector.broadcast %cst_85 : f32 to vector<4x128xf32>
    %176 = arith.select %174, %172, %175 : vector<4x128xi1>, vector<4x128xf32>
    %c0_86 = arith.constant 0 : index
    %c0_87 = arith.constant 0 : index
    %c0_88 = arith.constant 0 : index
    %177 = vector.load %arg18[%c0_86, %c0_87, %c0_88] : memref<1x4x128xf32, #tpu.memory_space<vmem>>, vector<1x4x128xf32>
    %178 = vector.shape_cast %177 : vector<1x4x128xf32> to vector<4x128xf32>
    %179 = vector.shape_cast %176 : vector<4x128xf32> to vector<1x4x128xf32>
    tpu.vector_store %arg18[%c0_86, %c0_87, %c0_88], %179 {strides = array<i32>} : memref<1x4x128xf32, #tpu.memory_space<vmem>>, vector<1x4x128xf32>,
    return
  }
  func.func @transform_0(%arg0: i32, %arg1: i32) -> (i32, i32, i32) {
    %c0_i32 = arith.constant 0 : i32
    %0 = arith.addi %arg1, %c0_i32 : i32
    %c0_i32_0 = arith.constant 0 : i32
    %c0_i32_1 = arith.constant 0 : i32
    return %arg0, %c0_i32_0, %0 : i32, i32, i32
  }
  func.func @transform_1(%arg0: i32, %arg1: i32) -> (i32, i32, i32) {
    %c1_i32 = arith.constant 1 : i32
    %0 = arith.addi %arg1, %c1_i32 : i32
    %c0_i32 = arith.constant 0 : i32
    %c0_i32_0 = arith.constant 0 : i32
    return %arg0, %c0_i32, %0 : i32, i32, i32
  }
  func.func @transform_2(%arg0: i32, %arg1: i32) -> (i32, i32, i32) {
    %c2_i32 = arith.constant 2 : i32
    %0 = arith.addi %arg1, %c2_i32 : i32
    %c0_i32 = arith.constant 0 : i32
    %c0_i32_0 = arith.constant 0 : i32
    return %arg0, %c0_i32, %0 : i32, i32, i32
  }
  func.func @transform_3(%arg0: i32, %arg1: i32) -> (i32, i32, i32) {
    %c0_i32 = arith.constant 0 : i32
    %0 = arith.addi %arg1, %c0_i32 : i32
    %c0_i32_0 = arith.constant 0 : i32
    %c0_i32_1 = arith.constant 0 : i32
    return %arg0, %c0_i32_0, %0 : i32, i32, i32
  }
  func.func @transform_4(%arg0: i32, %arg1: i32) -> (i32, i32, i32) {
    %c1_i32 = arith.constant 1 : i32
    %0 = arith.addi %arg1, %c1_i32 : i32
    %c0_i32 = arith.constant 0 : i32
    %c0_i32_0 = arith.constant 0 : i32
    return %arg0, %c0_i32, %0 : i32, i32, i32
  }
  func.func @transform_5(%arg0: i32, %arg1: i32) -> (i32, i32, i32) {
    %c2_i32 = arith.constant 2 : i32
    %0 = arith.addi %arg1, %c2_i32 : i32
    %c0_i32 = arith.constant 0 : i32
    %c0_i32_0 = arith.constant 0 : i32
    return %arg0, %c0_i32, %0 : i32, i32, i32
  }
  func.func @transform_6(%arg0: i32, %arg1: i32) -> (i32, i32) {
    %c0_i32 = arith.constant 0 : i32
    %c0_i32_0 = arith.constant 0 : i32
    %c0_i32_1 = arith.constant 0 : i32
    return %c0_i32, %c0_i32_0 : i32, i32
  }
  func.func @transform_7(%arg0: i32, %arg1: i32) -> (i32, i32) {
    %c0_i32 = arith.constant 0 : i32
    %c0_i32_0 = arith.constant 0 : i32
    %c0_i32_1 = arith.constant 0 : i32
    return %c0_i32, %c0_i32_0 : i32, i32
  }
  func.func @transform_8(%arg0: i32, %arg1: i32) -> (i32, i32, i32) {
    %c0_i32 = arith.constant 0 : i32
    %c0_i32_0 = arith.constant 0 : i32
    %c0_i32_1 = arith.constant 0 : i32
    %c0_i32_2 = arith.constant 0 : i32
    return %c0_i32, %c0_i32_0, %c0_i32_1 : i32, i32, i32
  }
  func.func @transform_9(%arg0: i32, %arg1: i32) -> (i32, i32, i32) {
    %c0_i32 = arith.constant 0 : i32
    %c0_i32_0 = arith.constant 0 : i32
    %c0_i32_1 = arith.constant 0 : i32
    %c0_i32_2 = arith.constant 0 : i32
    return %c0_i32, %c0_i32_0, %c0_i32_1 : i32, i32, i32
  }
  func.func @transform_10(%arg0: i32, %arg1: i32) -> (i32, i32, i32) {
    %c0_i32 = arith.constant 0 : i32
    %c0_i32_0 = arith.constant 0 : i32
    %c0_i32_1 = arith.constant 0 : i32
    %c0_i32_2 = arith.constant 0 : i32
    return %c0_i32, %c0_i32_0, %c0_i32_1 : i32, i32, i32
  }
  func.func @transform_11(%arg0: i32, %arg1: i32) -> (i32, i32, i32) {
    %c0_i32 = arith.constant 0 : i32
    %c0_i32_0 = arith.constant 0 : i32
    %c0_i32_1 = arith.constant 0 : i32
    %c0_i32_2 = arith.constant 0 : i32
    return %c0_i32, %c0_i32_0, %c0_i32_1 : i32, i32, i32
  }
  func.func @transform_12(%arg0: i32, %arg1: i32) -> (i32, i32) {
    %c0_i32 = arith.constant 0 : i32
    %c0_i32_0 = arith.constant 0 : i32
    %c0_i32_1 = arith.constant 0 : i32
    return %c0_i32, %c0_i32_0 : i32, i32
  }
  func.func @transform_13(%arg0: i32, %arg1: i32) -> (i32, i32) {
    %c0_i32 = arith.constant 0 : i32
    %c0_i32_0 = arith.constant 0 : i32
    %c0_i32_1 = arith.constant 0 : i32
    return %c0_i32, %c0_i32_0 : i32, i32
  }
  func.func @transform_14(%arg0: i32, %arg1: i32) -> (i32, i32) {
    %c0_i32 = arith.constant 0 : i32
    %c0_i32_0 = arith.constant 0 : i32
    %c0_i32_1 = arith.constant 0 : i32
    return %c0_i32, %c0_i32_0 : i32, i32
  }
  func.func @transform_15(%arg0: i32, %arg1: i32) -> (i32, i32) {
    %c0_i32 = arith.constant 0 : i32
    %c0_i32_0 = arith.constant 0 : i32
    %c0_i32_1 = arith.constant 0 : i32
    return %c0_i32, %c0_i32_0 : i32, i32
  }
  func.func @transform_16(%arg0: i32, %arg1: i32) -> (i32, i32, i32) {
    %c0_i32 = arith.constant 0 : i32
    %c0_i32_0 = arith.constant 0 : i32
    return %arg0, %c0_i32, %arg1 : i32, i32, i32
  }
}

module attributes {stable_mosaic.version = 11 : i64} {
  func.func @wavenet_kernel(%arg0: i32, %arg1: i32, %arg2: memref<1x4x128xf32, #tpu.memory_space<vmem>>, %arg3: memref<1x4x128xf32, #tpu.memory_space<vmem>>, %arg4: memref<1x4x128xf32, #tpu.memory_space<vmem>>, %arg5: memref<1x8x128xbf16, #tpu.memory_space<vmem>>, %arg6: memref<1x8x128xbf16, #tpu.memory_space<vmem>>, %arg7: memref<1x8x128xbf16, #tpu.memory_space<vmem>>, %arg8: memref<32x4xbf16, #tpu.memory_space<vmem>>, %arg9: memref<32x1xf32, #tpu.memory_space<vmem>>, %arg10: memref<3x64x1xf32, #tpu.memory_space<vmem>>, %arg11: memref<3x64x104xbf16, #tpu.memory_space<vmem>>, %arg12: memref<3x64x32xbf16, #tpu.memory_space<vmem>>, %arg13: memref<3x64x1xf32, #tpu.memory_space<vmem>>, %arg14: memref<8x32xbf16, #tpu.memory_space<vmem>>, %arg15: memref<8x1xf32, #tpu.memory_space<vmem>>, %arg16: memref<4x4xbf16, #tpu.memory_space<vmem>>, %arg17: memref<4x1xf32, #tpu.memory_space<vmem>>, %arg18: memref<1x4x128xf32, #tpu.memory_space<vmem>>) attributes {dimension_semantics = [#tpu.dimension_semantics<parallel>, #tpu.dimension_semantics<parallel>], iteration_bounds = array<i64: 2, 1>, scalar_prefetch = 0 : i64, scratch_operands = 0 : i64, tpu.core_type = #tpu.core_type<tc>, window_params = [{transform_indices = @transform_0, window_bounds = array<i64: 1, 4, 128>}, {transform_indices = @transform_1, window_bounds = array<i64: 1, 4, 128>}, {transform_indices = @transform_2, window_bounds = array<i64: 1, 4, 128>}, {transform_indices = @transform_3, window_bounds = array<i64: 1, 8, 128>}, {transform_indices = @transform_4, window_bounds = array<i64: 1, 8, 128>}, {transform_indices = @transform_5, window_bounds = array<i64: 1, 8, 128>}, {pipeline_mode = #tpu.pipeline_mode<synchronous>, transform_indices = @transform_6, window_bounds = array<i64: 32, 4>}, {pipeline_mode = #tpu.pipeline_mode<synchronous>, transform_indices = @transform_7, window_bounds = array<i64: 32, 1>}, {pipeline_mode = #tpu.pipeline_mode<synchronous>, transform_indices = @transform_8, window_bounds = array<i64: 3, 64, 1>}, {pipeline_mode = #tpu.pipeline_mode<synchronous>, transform_indices = @transform_9, window_bounds = array<i64: 3, 64, 104>}, {pipeline_mode = #tpu.pipeline_mode<synchronous>, transform_indices = @transform_10, window_bounds = array<i64: 3, 64, 32>}, {pipeline_mode = #tpu.pipeline_mode<synchronous>, transform_indices = @transform_11, window_bounds = array<i64: 3, 64, 1>}, {pipeline_mode = #tpu.pipeline_mode<synchronous>, transform_indices = @transform_12, window_bounds = array<i64: 8, 32>}, {pipeline_mode = #tpu.pipeline_mode<synchronous>, transform_indices = @transform_13, window_bounds = array<i64: 8, 1>}, {pipeline_mode = #tpu.pipeline_mode<synchronous>, transform_indices = @transform_14, window_bounds = array<i64: 4, 4>}, {pipeline_mode = #tpu.pipeline_mode<synchronous>, transform_indices = @transform_15, window_bounds = array<i64: 4, 1>}, {transform_indices = @transform_16, window_bounds = array<i64: 1, 4, 128>}]} {
    %c0 = arith.constant 0 : index
    %c0_0 = arith.constant 0 : index
    %c0_1 = arith.constant 0 : index
    %0 = vector.load %arg3[%c0, %c0_0, %c0_1] : memref<1x4x128xf32, #tpu.memory_space<vmem>>, vector<1x4x128xf32>
    %1 = vector.shape_cast %0 : vector<1x4x128xf32> to vector<4x128xf32>
    %c0_2 = arith.constant 0 : index
    %c0_3 = arith.constant 0 : index
    %c0_4 = arith.constant 0 : index
    %2 = vector.load %arg2[%c0_2, %c0_3, %c0_4] : memref<1x4x128xf32, #tpu.memory_space<vmem>>, vector<1x4x128xf32>
    %3 = vector.shape_cast %2 : vector<1x4x128xf32> to vector<4x128xf32>
    %c0_5 = arith.constant 0 : index
    %c0_6 = arith.constant 0 : index
    %c0_7 = arith.constant 0 : index
    %4 = vector.load %arg4[%c0_5, %c0_6, %c0_7] : memref<1x4x128xf32, #tpu.memory_space<vmem>>, vector<1x4x128xf32>
    %5 = vector.shape_cast %4 : vector<1x4x128xf32> to vector<4x128xf32>
    %6 = tpu.concatenate %3, %1, %5 in 1 : vector<4x128xf32>, vector<4x128xf32>, vector<4x128xf32> -> vector<4x384xf32>
    %7 = arith.truncf %6 : vector<4x384xf32> to vector<4x384xbf16>
    %c0_8 = arith.constant 0 : index
    %c0_9 = arith.constant 0 : index
    %c0_10 = arith.constant 0 : index
    %8 = vector.load %arg5[%c0_8, %c0_9, %c0_10] : memref<1x8x128xbf16, #tpu.memory_space<vmem>>, vector<1x8x128xbf16>
    %9 = vector.shape_cast %8 : vector<1x8x128xbf16> to vector<8x128xbf16>
    %c0_11 = arith.constant 0 : index
    %c0_12 = arith.constant 0 : index
    %c0_13 = arith.constant 0 : index
    %10 = vector.load %arg6[%c0_11, %c0_12, %c0_13] : memref<1x8x128xbf16, #tpu.memory_space<vmem>>, vector<1x8x128xbf16>
    %11 = vector.shape_cast %10 : vector<1x8x128xbf16> to vector<8x128xbf16>
    %c0_14 = arith.constant 0 : index
    %c0_15 = arith.constant 0 : index
    %c0_16 = arith.constant 0 : index
    %12 = vector.load %arg7[%c0_14, %c0_15, %c0_16] : memref<1x8x128xbf16, #tpu.memory_space<vmem>>, vector<1x8x128xbf16>
    %13 = vector.shape_cast %12 : vector<1x8x128xbf16> to vector<8x128xbf16>
    %14 = tpu.concatenate %9, %11, %13 in 1 : vector<8x128xbf16>, vector<8x128xbf16>, vector<8x128xbf16> -> vector<8x384xbf16>
    %15 = tpu.iota {dimensions = array<i32: 1>} : vector<1x384xi32>
    %c128_i32 = arith.constant 128 : i32
    %16 = arith.muli %arg1, %c128_i32 : i32
    %c128_i32_17 = arith.constant 128 : i32
    %17 = arith.subi %16, %c128_i32_17 : i32
    %18 = vector.broadcast %17 : i32 to vector<1x384xi32>
    %19 = arith.addi %15, %18 : vector<1x384xi32>
    %c0_i32 = arith.constant 0 : i32
    %20 = vector.broadcast %c0_i32 : i32 to vector<1x384xi32>
    %21 = arith.cmpi sge, %19, %20 : vector<1x384xi32>
    %c16_i32 = arith.constant 16 : i32
    %22 = vector.broadcast %c16_i32 : i32 to vector<1x384xi32>
    %23 = arith.cmpi slt, %19, %22 : vector<1x384xi32>
    %24 = arith.andi %21, %23 : vector<1x384xi1>
    %25 = tpu.iota {dimensions = array<i32: 1>} : vector<1x128xi32>
    %c128_i32_18 = arith.constant 128 : i32
    %26 = arith.muli %arg1, %c128_i32_18 : i32
    %27 = vector.broadcast %26 : i32 to vector<1x128xi32>
    %28 = arith.addi %25, %27 : vector<1x128xi32>
    %c16_i32_19 = arith.constant 16 : i32
    %29 = vector.broadcast %c16_i32_19 : i32 to vector<1x128xi32>
    %30 = arith.cmpi slt, %28, %29 : vector<1x128xi32>
    %c0_20 = arith.constant 0 : index
    %c0_21 = arith.constant 0 : index
    %31 = vector.load %arg8[%c0_20, %c0_21] : memref<32x4xbf16, #tpu.memory_space<vmem>>, vector<32x4xbf16>
    %cst = arith.constant dense<0.000000e+00> : vector<32x384xf32>
    %32 = tpu.matmul %31, %7, %cst {dimension_numbers = #tpu.dot_dimension_numbers<[1], [0], [0], [1], [0, 0, 1, 1], [], []>} : vector<32x4xbf16>, vector<4x384xbf16>, vector<32x384xf32> -> vector<32x384xf32>
    %c0_22 = arith.constant 0 : index
    %c0_23 = arith.constant 0 : index
    %33 = vector.load %arg9[%c0_22, %c0_23] : memref<32x1xf32, #tpu.memory_space<vmem>>, vector<32x1xf32>
    %34 = vector.broadcast %33 : vector<32x1xf32> to vector<32x384xf32>
    %35 = arith.addf %32, %34 : vector<32x384xf32>
    %cst_24 = arith.constant 0.000000e+00 : f32
    %36 = vector.broadcast %cst_24 : f32 to vector<32x384xf32>
    %cst_25 = arith.constant 0.000000e+00 : f32
    %37 = vector.shape_cast %24 : vector<1x384xi1> to vector<1x384xi1>
    %38 = vector.broadcast %37 : vector<1x384xi1> to vector<32x384xi1>
    %39 = vector.broadcast %cst_25 : f32 to vector<32x384xf32>
    %40 = arith.select %38, %35, %39 : vector<32x384xi1>, vector<32x384xf32>
    %41 = arith.truncf %40 : vector<32x384xf32> to vector<32x384xbf16>
    %cst_26 = arith.constant 0.000000e+00 : bf16
    %42 = vector.broadcast %cst_26 : bf16 to vector<32x1xbf16>
    %43 = vector.extract_strided_slice %41 {offsets = [0, 0], sizes = [32, 383], strides = [1, 1]} : vector<32x384xbf16> to vector<32x383xbf16>
    %44 = tpu.concatenate %42, %43 in 1 : vector<32x1xbf16>, vector<32x383xbf16> -> vector<32x384xbf16>
    %45 = vector.extract_strided_slice %41 {offsets = [0, 1], sizes = [32, 383], strides = [1, 1]} : vector<32x384xbf16> to vector<32x383xbf16>
    %46 = tpu.concatenate %45, %42 in 1 : vector<32x383xbf16>, vector<32x1xbf16> -> vector<32x384xbf16>
    %47 = tpu.concatenate %44, %41, %46, %14 in 0 : vector<32x384xbf16>, vector<32x384xbf16>, vector<32x384xbf16>, vector<8x384xbf16> -> vector<104x384xbf16>
    %c0_27 = arith.constant 0 : index
    %c0_28 = arith.constant 0 : index
    %c0_29 = arith.constant 0 : index
    %48 = vector.load %arg11[%c0_27, %c0_28, %c0_29] : memref<3x64x104xbf16, #tpu.memory_space<vmem>>, vector<1x64x104xbf16>
    %49 = vector.shape_cast %48 : vector<1x64x104xbf16> to vector<64x104xbf16>
    %cst_30 = arith.constant dense<0.000000e+00> : vector<64x384xf32>
    %50 = tpu.matmul %49, %47, %cst_30 {dimension_numbers = #tpu.dot_dimension_numbers<[1], [0], [0], [1], [0, 0, 1, 1], [], []>} : vector<64x104xbf16>, vector<104x384xbf16>, vector<64x384xf32> -> vector<64x384xf32>
    %c0_31 = arith.constant 0 : index
    %c0_32 = arith.constant 0 : index
    %c0_33 = arith.constant 0 : index
    %51 = vector.load %arg10[%c0_31, %c0_32, %c0_33] : memref<3x64x1xf32, #tpu.memory_space<vmem>>, vector<1x64x1xf32>
    %52 = vector.shape_cast %51 : vector<1x64x1xf32> to vector<64x1xf32>
    %53 = vector.broadcast %52 : vector<64x1xf32> to vector<64x384xf32>
    %54 = arith.addf %50, %53 : vector<64x384xf32>
    %55 = vector.extract_strided_slice %54 {offsets = [0, 0], sizes = [32, 384], strides = [1, 1]} : vector<64x384xf32> to vector<32x384xf32>
    %56 = math.tanh %55 : vector<32x384xf32>
    %57 = vector.extract_strided_slice %54 {offsets = [32, 0], sizes = [32, 384], strides = [1, 1]} : vector<64x384xf32> to vector<32x384xf32>
    %58 = arith.negf %57 : vector<32x384xf32>
    %59 = math.exp %58 : vector<32x384xf32>
    %cst_34 = arith.constant 1.000000e+00 : f32
    %60 = vector.broadcast %cst_34 : f32 to vector<32x384xf32>
    %61 = arith.addf %60, %59 : vector<32x384xf32>
    %62 = arith.divf %60, %61 : vector<32x384xf32>
    %63 = arith.mulf %56, %62 : vector<32x384xf32>
    %64 = arith.truncf %63 : vector<32x384xf32> to vector<32x384xbf16>
    %c0_35 = arith.constant 0 : index
    %c0_36 = arith.constant 0 : index
    %c0_37 = arith.constant 0 : index
    %65 = vector.load %arg12[%c0_35, %c0_36, %c0_37] : memref<3x64x32xbf16, #tpu.memory_space<vmem>>, vector<1x64x32xbf16>
    %66 = vector.shape_cast %65 : vector<1x64x32xbf16> to vector<64x32xbf16>
    %cst_38 = arith.constant dense<0.000000e+00> : vector<64x384xf32>
    %67 = tpu.matmul %66, %64, %cst_38 {dimension_numbers = #tpu.dot_dimension_numbers<[1], [0], [0], [1], [0, 0, 1, 1], [], []>} : vector<64x32xbf16>, vector<32x384xbf16>, vector<64x384xf32> -> vector<64x384xf32>
    %c0_39 = arith.constant 0 : index
    %c0_40 = arith.constant 0 : index
    %c0_41 = arith.constant 0 : index
    %68 = vector.load %arg13[%c0_39, %c0_40, %c0_41] : memref<3x64x1xf32, #tpu.memory_space<vmem>>, vector<1x64x1xf32>
    %69 = vector.shape_cast %68 : vector<1x64x1xf32> to vector<64x1xf32>
    %70 = vector.broadcast %69 : vector<64x1xf32> to vector<64x384xf32>
    %71 = arith.addf %67, %70 : vector<64x384xf32>
    %72 = vector.extract_strided_slice %71 {offsets = [0, 0], sizes = [32, 384], strides = [1, 1]} : vector<64x384xf32> to vector<32x384xf32>
    %73 = arith.addf %35, %72 : vector<32x384xf32>
    %74 = vector.extract_strided_slice %71 {offsets = [32, 0], sizes = [32, 384], strides = [1, 1]} : vector<64x384xf32> to vector<32x384xf32>
    %75 = arith.addf %36, %74 : vector<32x384xf32>
    %cst_42 = arith.constant 0.000000e+00 : f32
    %76 = vector.shape_cast %24 : vector<1x384xi1> to vector<1x384xi1>
    %77 = vector.broadcast %76 : vector<1x384xi1> to vector<32x384xi1>
    %78 = vector.broadcast %cst_42 : f32 to vector<32x384xf32>
    %79 = arith.select %77, %73, %78 : vector<32x384xi1>, vector<32x384xf32>
    %80 = arith.truncf %79 : vector<32x384xf32> to vector<32x384xbf16>
    %cst_43 = arith.constant 0.000000e+00 : bf16
    %81 = vector.broadcast %cst_43 : bf16 to vector<32x2xbf16>
    %82 = vector.extract_strided_slice %80 {offsets = [0, 0], sizes = [32, 382], strides = [1, 1]} : vector<32x384xbf16> to vector<32x382xbf16>
    %83 = tpu.concatenate %81, %82 in 1 : vector<32x2xbf16>, vector<32x382xbf16> -> vector<32x384xbf16>
    %84 = vector.extract_strided_slice %80 {offsets = [0, 2], sizes = [32, 382], strides = [1, 1]} : vector<32x384xbf16> to vector<32x382xbf16>
    %85 = tpu.concatenate %84, %81 in 1 : vector<32x382xbf16>, vector<32x2xbf16> -> vector<32x384xbf16>
    %86 = tpu.concatenate %83, %80, %85, %14 in 0 : vector<32x384xbf16>, vector<32x384xbf16>, vector<32x384xbf16>, vector<8x384xbf16> -> vector<104x384xbf16>
    %c1 = arith.constant 1 : index
    %c0_44 = arith.constant 0 : index
    %c0_45 = arith.constant 0 : index
    %87 = vector.load %arg11[%c1, %c0_44, %c0_45] : memref<3x64x104xbf16, #tpu.memory_space<vmem>>, vector<1x64x104xbf16>
    %88 = vector.shape_cast %87 : vector<1x64x104xbf16> to vector<64x104xbf16>
    %cst_46 = arith.constant dense<0.000000e+00> : vector<64x384xf32>
    %89 = tpu.matmul %88, %86, %cst_46 {dimension_numbers = #tpu.dot_dimension_numbers<[1], [0], [0], [1], [0, 0, 1, 1], [], []>} : vector<64x104xbf16>, vector<104x384xbf16>, vector<64x384xf32> -> vector<64x384xf32>
    %c1_47 = arith.constant 1 : index
    %c0_48 = arith.constant 0 : index
    %c0_49 = arith.constant 0 : index
    %90 = vector.load %arg10[%c1_47, %c0_48, %c0_49] : memref<3x64x1xf32, #tpu.memory_space<vmem>>, vector<1x64x1xf32>
    %91 = vector.shape_cast %90 : vector<1x64x1xf32> to vector<64x1xf32>
    %92 = vector.broadcast %91 : vector<64x1xf32> to vector<64x384xf32>
    %93 = arith.addf %89, %92 : vector<64x384xf32>
    %94 = vector.extract_strided_slice %93 {offsets = [0, 0], sizes = [32, 384], strides = [1, 1]} : vector<64x384xf32> to vector<32x384xf32>
    %95 = math.tanh %94 : vector<32x384xf32>
    %96 = vector.extract_strided_slice %93 {offsets = [32, 0], sizes = [32, 384], strides = [1, 1]} : vector<64x384xf32> to vector<32x384xf32>
    %97 = arith.negf %96 : vector<32x384xf32>
    %98 = math.exp %97 : vector<32x384xf32>
    %cst_50 = arith.constant 1.000000e+00 : f32
    %99 = vector.broadcast %cst_50 : f32 to vector<32x384xf32>
    %100 = arith.addf %99, %98 : vector<32x384xf32>
    %101 = arith.divf %99, %100 : vector<32x384xf32>
    %102 = arith.mulf %95, %101 : vector<32x384xf32>
    %103 = arith.truncf %102 : vector<32x384xf32> to vector<32x384xbf16>
    %c1_51 = arith.constant 1 : index
    %c0_52 = arith.constant 0 : index
    %c0_53 = arith.constant 0 : index
    %104 = vector.load %arg12[%c1_51, %c0_52, %c0_53] : memref<3x64x32xbf16, #tpu.memory_space<vmem>>, vector<1x64x32xbf16>
    %105 = vector.shape_cast %104 : vector<1x64x32xbf16> to vector<64x32xbf16>
    %cst_54 = arith.constant dense<0.000000e+00> : vector<64x384xf32>
    %106 = tpu.matmul %105, %103, %cst_54 {dimension_numbers = #tpu.dot_dimension_numbers<[1], [0], [0], [1], [0, 0, 1, 1], [], []>} : vector<64x32xbf16>, vector<32x384xbf16>, vector<64x384xf32> -> vector<64x384xf32>
    %c1_55 = arith.constant 1 : index
    %c0_56 = arith.constant 0 : index
    %c0_57 = arith.constant 0 : index
    %107 = vector.load %arg13[%c1_55, %c0_56, %c0_57] : memref<3x64x1xf32, #tpu.memory_space<vmem>>, vector<1x64x1xf32>
    %108 = vector.shape_cast %107 : vector<1x64x1xf32> to vector<64x1xf32>
    %109 = vector.broadcast %108 : vector<64x1xf32> to vector<64x384xf32>
    %110 = arith.addf %106, %109 : vector<64x384xf32>
    %111 = vector.extract_strided_slice %110 {offsets = [0, 0], sizes = [32, 384], strides = [1, 1]} : vector<64x384xf32> to vector<32x384xf32>
    %112 = arith.addf %73, %111 : vector<32x384xf32>
    %113 = vector.extract_strided_slice %110 {offsets = [32, 0], sizes = [32, 384], strides = [1, 1]} : vector<64x384xf32> to vector<32x384xf32>
    %114 = arith.addf %75, %113 : vector<32x384xf32>
    %cst_58 = arith.constant 0.000000e+00 : f32
    %115 = vector.shape_cast %24 : vector<1x384xi1> to vector<1x384xi1>
    %116 = vector.broadcast %115 : vector<1x384xi1> to vector<32x384xi1>
    %117 = vector.broadcast %cst_58 : f32 to vector<32x384xf32>
    %118 = arith.select %116, %112, %117 : vector<32x384xi1>, vector<32x384xf32>
    %119 = arith.truncf %118 : vector<32x384xf32> to vector<32x384xbf16>
    %cst_59 = arith.constant 0.000000e+00 : bf16
    %120 = vector.broadcast %cst_59 : bf16 to vector<32x4xbf16>
    %121 = vector.extract_strided_slice %119 {offsets = [0, 0], sizes = [32, 380], strides = [1, 1]} : vector<32x384xbf16> to vector<32x380xbf16>
    %122 = tpu.concatenate %120, %121 in 1 : vector<32x4xbf16>, vector<32x380xbf16> -> vector<32x384xbf16>
    %123 = vector.extract_strided_slice %119 {offsets = [0, 4], sizes = [32, 380], strides = [1, 1]} : vector<32x384xbf16> to vector<32x380xbf16>
    %124 = tpu.concatenate %123, %120 in 1 : vector<32x380xbf16>, vector<32x4xbf16> -> vector<32x384xbf16>
    %125 = tpu.concatenate %122, %119, %124, %14 in 0 : vector<32x384xbf16>, vector<32x384xbf16>, vector<32x384xbf16>, vector<8x384xbf16> -> vector<104x384xbf16>
    %c2 = arith.constant 2 : index
    %c0_60 = arith.constant 0 : index
    %c0_61 = arith.constant 0 : index
    %126 = vector.load %arg11[%c2, %c0_60, %c0_61] : memref<3x64x104xbf16, #tpu.memory_space<vmem>>, vector<1x64x104xbf16>
    %127 = vector.shape_cast %126 : vector<1x64x104xbf16> to vector<64x104xbf16>
    %cst_62 = arith.constant dense<0.000000e+00> : vector<64x384xf32>
    %128 = tpu.matmul %127, %125, %cst_62 {dimension_numbers = #tpu.dot_dimension_numbers<[1], [0], [0], [1], [0, 0, 1, 1], [], []>} : vector<64x104xbf16>, vector<104x384xbf16>, vector<64x384xf32> -> vector<64x384xf32>
    %c2_63 = arith.constant 2 : index
    %c0_64 = arith.constant 0 : index
    %c0_65 = arith.constant 0 : index
    %129 = vector.load %arg10[%c2_63, %c0_64, %c0_65] : memref<3x64x1xf32, #tpu.memory_space<vmem>>, vector<1x64x1xf32>
    %130 = vector.shape_cast %129 : vector<1x64x1xf32> to vector<64x1xf32>
    %131 = vector.broadcast %130 : vector<64x1xf32> to vector<64x384xf32>
    %132 = arith.addf %128, %131 : vector<64x384xf32>
    %133 = vector.extract_strided_slice %132 {offsets = [0, 0], sizes = [32, 384], strides = [1, 1]} : vector<64x384xf32> to vector<32x384xf32>
    %134 = math.tanh %133 : vector<32x384xf32>
    %135 = vector.extract_strided_slice %132 {offsets = [32, 0], sizes = [32, 384], strides = [1, 1]} : vector<64x384xf32> to vector<32x384xf32>
    %136 = arith.negf %135 : vector<32x384xf32>
    %137 = math.exp %136 : vector<32x384xf32>
    %cst_66 = arith.constant 1.000000e+00 : f32
    %138 = vector.broadcast %cst_66 : f32 to vector<32x384xf32>
    %139 = arith.addf %138, %137 : vector<32x384xf32>
    %140 = arith.divf %138, %139 : vector<32x384xf32>
    %141 = arith.mulf %134, %140 : vector<32x384xf32>
    %142 = arith.truncf %141 : vector<32x384xf32> to vector<32x384xbf16>
    %c2_67 = arith.constant 2 : index
    %c0_68 = arith.constant 0 : index
    %c0_69 = arith.constant 0 : index
    %143 = vector.load %arg12[%c2_67, %c0_68, %c0_69] : memref<3x64x32xbf16, #tpu.memory_space<vmem>>, vector<1x64x32xbf16>
    %144 = vector.shape_cast %143 : vector<1x64x32xbf16> to vector<64x32xbf16>
    %145 = vector.extract_strided_slice %144 {offsets = [32, 0], sizes = [32, 32], strides = [1, 1]} : vector<64x32xbf16> to vector<32x32xbf16>
    %cst_70 = arith.constant dense<0.000000e+00> : vector<32x384xf32>
    %146 = tpu.matmul %145, %142, %cst_70 {dimension_numbers = #tpu.dot_dimension_numbers<[1], [0], [0], [1], [0, 0, 1, 1], [], []>} : vector<32x32xbf16>, vector<32x384xbf16>, vector<32x384xf32> -> vector<32x384xf32>
    %c2_71 = arith.constant 2 : index
    %c0_72 = arith.constant 0 : index
    %c0_73 = arith.constant 0 : index
    %147 = vector.load %arg13[%c2_71, %c0_72, %c0_73] : memref<3x64x1xf32, #tpu.memory_space<vmem>>, vector<1x64x1xf32>
    %148 = vector.shape_cast %147 : vector<1x64x1xf32> to vector<64x1xf32>
    %149 = vector.extract_strided_slice %148 {offsets = [32, 0], sizes = [32, 1], strides = [1, 1]} : vector<64x1xf32> to vector<32x1xf32>
    %150 = vector.broadcast %149 : vector<32x1xf32> to vector<32x384xf32>
    %151 = arith.addf %146, %150 : vector<32x384xf32>
    %152 = arith.addf %114, %151 : vector<32x384xf32>
    %153 = vector.extract_strided_slice %152 {offsets = [0, 128], sizes = [32, 128], strides = [1, 1]} : vector<32x384xf32> to vector<32x128xf32>
    %154 = arith.truncf %153 : vector<32x128xf32> to vector<32x128xbf16>
    %c0_74 = arith.constant 0 : index
    %c0_75 = arith.constant 0 : index
    %155 = vector.load %arg14[%c0_74, %c0_75] : memref<8x32xbf16, #tpu.memory_space<vmem>>, vector<8x32xbf16>
    %cst_76 = arith.constant dense<0.000000e+00> : vector<8x128xf32>
    %156 = tpu.matmul %155, %154, %cst_76 {dimension_numbers = #tpu.dot_dimension_numbers<[1], [0], [0], [1], [0, 0, 1, 1], [], []>} : vector<8x32xbf16>, vector<32x128xbf16>, vector<8x128xf32> -> vector<8x128xf32>
    %c0_77 = arith.constant 0 : index
    %c0_78 = arith.constant 0 : index
    %157 = vector.load %arg15[%c0_77, %c0_78] : memref<8x1xf32, #tpu.memory_space<vmem>>, vector<8x1xf32>
    %158 = vector.broadcast %157 : vector<8x1xf32> to vector<8x128xf32>
    %159 = arith.addf %156, %158 : vector<8x128xf32>
    %160 = vector.extract_strided_slice %159 {offsets = [0, 0], sizes = [4, 128], strides = [1, 1]} : vector<8x128xf32> to vector<4x128xf32>
    %161 = vector.extract_strided_slice %159 {offsets = [4, 0], sizes = [4, 128], strides = [1, 1]} : vector<8x128xf32> to vector<4x128xf32>
    %162 = arith.subf %1, %160 : vector<4x128xf32>
    %cst_79 = arith.constant 0.000000e+00 : f32
    %163 = vector.broadcast %cst_79 : f32 to vector<4x128xf32>
    %164 = arith.subf %163, %161 : vector<4x128xf32>
    %165 = math.exp %164 : vector<4x128xf32>
    %166 = arith.mulf %162, %165 : vector<4x128xf32>
    %167 = arith.truncf %166 : vector<4x128xf32> to vector<4x128xbf16>
    %c0_80 = arith.constant 0 : index
    %c0_81 = arith.constant 0 : index
    %168 = vector.load %arg16[%c0_80, %c0_81] : memref<4x4xbf16, #tpu.memory_space<vmem>>, vector<4x4xbf16>
    %cst_82 = arith.constant dense<0.000000e+00> : vector<4x128xf32>
    %169 = tpu.matmul %168, %167, %cst_82 {dimension_numbers = #tpu.dot_dimension_numbers<[1], [0], [0], [1], [0, 0, 1, 1], [], []>} : vector<4x4xbf16>, vector<4x128xbf16>, vector<4x128xf32> -> vector<4x128xf32>
    %c0_83 = arith.constant 0 : index
    %c0_84 = arith.constant 0 : index
    %170 = vector.load %arg17[%c0_83, %c0_84] : memref<4x1xf32, #tpu.memory_space<vmem>>, vector<4x1xf32>
    %171 = vector.broadcast %170 : vector<4x1xf32> to vector<4x128xf32>
    %172 = arith.addf %169, %171 : vector<4x128xf32>
    %cst_85 = arith.constant 0.000000e+00 : f32
    %173 = vector.shape_cast %30 : vector<1x128xi1> to vector<1x128xi1>
    %174 = vector.broadcast %173 : vector<1x128xi1> to vector<4x128xi1>
    %175 = vector.broadcast %cst_85 : f32 to vector<4x128xf32>
    %176 = arith.select %174, %172, %175 : vector<4x128xi1>, vector<4x128xf32>
    %c0_86 = arith.constant 0 : index
    %c0_87 = arith.constant 0 : index
    %c0_88 = arith.constant 0 : index
    %177 = vector.load %arg18[%c0_86, %c0_87, %c0_88] : memref<1x4x128xf32, #tpu.memory_space<vmem>>, vector<1x4x128xf32>
    %178 = vector.shape_cast %177 : vector<1x4x128xf32> to vector<4x128xf32>
    %179 = vector.shape_cast %176 : vector<4x128xf32> to vector<1x4x128xf32>
    tpu.vector_store %arg18[%c0_86, %c0_87, %c0_88], %179 {strides = array<i32>} : memref<1x4x128xf32, #tpu.memory_space<vmem>>, vector<1x4x128xf32>,
    return
  }
  func.func @transform_0(%arg0: i32, %arg1: i32) -> (i32, i32, i32) {
    %c0_i32 = arith.constant 0 : i32
    %0 = arith.addi %arg1, %c0_i32 : i32
    %c0_i32_0 = arith.constant 0 : i32
    %c0_i32_1 = arith.constant 0 : i32
    return %arg0, %c0_i32_0, %0 : i32, i32, i32
  }
  func.func @transform_1(%arg0: i32, %arg1: i32) -> (i32, i32, i32) {
    %c1_i32 = arith.constant 1 : i32
    %0 = arith.addi %arg1, %c1_i32 : i32
    %c0_i32 = arith.constant 0 : i32
    %c0_i32_0 = arith.constant 0 : i32
    return %arg0, %c0_i32, %0 : i32, i32, i32
  }
  func.func @transform_2(%arg0: i32, %arg1: i32) -> (i32, i32, i32) {
    %c2_i32 = arith.constant 2 : i32
    %0 = arith.addi %arg1, %c2_i32 : i32
    %c0_i32 = arith.constant 0 : i32
    %c0_i32_0 = arith.constant 0 : i32
    return %arg0, %c0_i32, %0 : i32, i32, i32
  }
  func.func @transform_3(%arg0: i32, %arg1: i32) -> (i32, i32, i32) {
    %c0_i32 = arith.constant 0 : i32
    %0 = arith.addi %arg1, %c0_i32 : i32
    %c0_i32_0 = arith.constant 0 : i32
    %c0_i32_1 = arith.constant 0 : i32
    return %arg0, %c0_i32_0, %0 : i32, i32, i32
  }
  func.func @transform_4(%arg0: i32, %arg1: i32) -> (i32, i32, i32) {
    %c1_i32 = arith.constant 1 : i32
    %0 = arith.addi %arg1, %c1_i32 : i32
    %c0_i32 = arith.constant 0 : i32
    %c0_i32_0 = arith.constant 0 : i32
    return %arg0, %c0_i32, %0 : i32, i32, i32
  }
  func.func @transform_5(%arg0: i32, %arg1: i32) -> (i32, i32, i32) {
    %c2_i32 = arith.constant 2 : i32
    %0 = arith.addi %arg1, %c2_i32 : i32
    %c0_i32 = arith.constant 0 : i32
    %c0_i32_0 = arith.constant 0 : i32
    return %arg0, %c0_i32, %0 : i32, i32, i32
  }
  func.func @transform_6(%arg0: i32, %arg1: i32) -> (i32, i32) {
    %c0_i32 = arith.constant 0 : i32
    %c0_i32_0 = arith.constant 0 : i32
    %c0_i32_1 = arith.constant 0 : i32
    return %c0_i32, %c0_i32_0 : i32, i32
  }
  func.func @transform_7(%arg0: i32, %arg1: i32) -> (i32, i32) {
    %c0_i32 = arith.constant 0 : i32
    %c0_i32_0 = arith.constant 0 : i32
    %c0_i32_1 = arith.constant 0 : i32
    return %c0_i32, %c0_i32_0 : i32, i32
  }
  func.func @transform_8(%arg0: i32, %arg1: i32) -> (i32, i32, i32) {
    %c0_i32 = arith.constant 0 : i32
    %c0_i32_0 = arith.constant 0 : i32
    %c0_i32_1 = arith.constant 0 : i32
    %c0_i32_2 = arith.constant 0 : i32
    return %c0_i32, %c0_i32_0, %c0_i32_1 : i32, i32, i32
  }
  func.func @transform_9(%arg0: i32, %arg1: i32) -> (i32, i32, i32) {
    %c0_i32 = arith.constant 0 : i32
    %c0_i32_0 = arith.constant 0 : i32
    %c0_i32_1 = arith.constant 0 : i32
    %c0_i32_2 = arith.constant 0 : i32
    return %c0_i32, %c0_i32_0, %c0_i32_1 : i32, i32, i32
  }
  func.func @transform_10(%arg0: i32, %arg1: i32) -> (i32, i32, i32) {
    %c0_i32 = arith.constant 0 : i32
    %c0_i32_0 = arith.constant 0 : i32
    %c0_i32_1 = arith.constant 0 : i32
    %c0_i32_2 = arith.constant 0 : i32
    return %c0_i32, %c0_i32_0, %c0_i32_1 : i32, i32, i32
  }
  func.func @transform_11(%arg0: i32, %arg1: i32) -> (i32, i32, i32) {
    %c0_i32 = arith.constant 0 : i32
    %c0_i32_0 = arith.constant 0 : i32
    %c0_i32_1 = arith.constant 0 : i32
    %c0_i32_2 = arith.constant 0 : i32
    return %c0_i32, %c0_i32_0, %c0_i32_1 : i32, i32, i32
  }
  func.func @transform_12(%arg0: i32, %arg1: i32) -> (i32, i32) {
    %c0_i32 = arith.constant 0 : i32
    %c0_i32_0 = arith.constant 0 : i32
    %c0_i32_1 = arith.constant 0 : i32
    return %c0_i32, %c0_i32_0 : i32, i32
  }
  func.func @transform_13(%arg0: i32, %arg1: i32) -> (i32, i32) {
    %c0_i32 = arith.constant 0 : i32
    %c0_i32_0 = arith.constant 0 : i32
    %c0_i32_1 = arith.constant 0 : i32
    return %c0_i32, %c0_i32_0 : i32, i32
  }
  func.func @transform_14(%arg0: i32, %arg1: i32) -> (i32, i32) {
    %c0_i32 = arith.constant 0 : i32
    %c0_i32_0 = arith.constant 0 : i32
    %c0_i32_1 = arith.constant 0 : i32
    return %c0_i32, %c0_i32_0 : i32, i32
  }
  func.func @transform_15(%arg0: i32, %arg1: i32) -> (i32, i32) {
    %c0_i32 = arith.constant 0 : i32
    %c0_i32_0 = arith.constant 0 : i32
    %c0_i32_1 = arith.constant 0 : i32
    return %c0_i32, %c0_i32_0 : i32, i32
  }
  func.func @transform_16(%arg0: i32, %arg1: i32) -> (i32, i32, i32) {
    %c0_i32 = arith.constant 0 : i32
    %c0_i32_0 = arith.constant 0 : i32
    return %arg0, %c0_i32, %arg1 : i32, i32, i32
  }
}

</mosaic_0001>

<llo_original>
// kernel: affine_student_forward.2
$region0: #{affine_student_forward.2}
  #allocation0 [shape = 'u32[]', space=smem, size = 0x4, offset = 0x4, fixed_abs, tag = 'smem constant byte address 0x4 - core index']
  #allocation1 [shape = 'u32[144,128]{1,0:T(1,128)}', space=vmem, size = 0x12000, scoped, tag = 'internal scratch']
  %s0 = inlined_call_operand.hbm [shape: f32[2,4,384], index: 0, kind: input, shape index: {}, may-alias: {0,1,2}]
  %s1 = inlined_call_operand.hbm [shape: f32[2,4,384], index: 1, kind: input, shape index: {}, may-alias: {0,1,2}]
  %s2 = inlined_call_operand.hbm [shape: f32[2,4,384], index: 2, kind: input, shape index: {}, may-alias: {0,1,2}]
  %s3 = inlined_call_operand.hbm [shape: bf16[2,8,384], index: 3, kind: input, shape index: {}, may-alias: {3,4,5}]
  %s4 = inlined_call_operand.hbm [shape: bf16[2,8,384], index: 4, kind: input, shape index: {}, may-alias: {3,4,5}]
  %s5 = inlined_call_operand.hbm [shape: bf16[2,8,384], index: 5, kind: input, shape index: {}, may-alias: {3,4,5}]
  %s6 = inlined_call_operand.hbm [shape: bf16[32,4], index: 6, kind: input, shape index: {}]
  %s7 = inlined_call_operand.hbm [shape: f32[32,1], index: 7, kind: input, shape index: {}]
  %s8 = inlined_call_operand.hbm [shape: f32[3,64,1], index: 8, kind: input, shape index: {}]
  %s9 = inlined_call_operand.hbm [shape: bf16[3,64,104], index: 9, kind: input, shape index: {}]
  %s10 = inlined_call_operand.hbm [shape: bf16[3,64,32], index: 10, kind: input, shape index: {}]
  %s11 = inlined_call_operand.hbm [shape: f32[3,64,1], index: 11, kind: input, shape index: {}]
  %s12 = inlined_call_operand.hbm [shape: bf16[8,32], index: 12, kind: input, shape index: {}]
  %s13 = inlined_call_operand.hbm [shape: f32[8,1], index: 13, kind: input, shape index: {}]
  %s14 = inlined_call_operand.hbm [shape: bf16[4,4], index: 14, kind: input, shape index: {}]
  %s15 = inlined_call_operand.hbm [shape: f32[4,1], index: 15, kind: input, shape index: {}]
  %s16 = inlined_call_operand.hbm [shape: f32[2,4,128], index: 16, kind: output, shape index: {}]
  %s17 = sld [smem:[#allocation0]]
  $region161: #{affine_student_forward.2} parent=0
    _
  %s19 = ssub.s32 1, %s17
  %s20 = scalar_select 0, %s19, %s17
  $region1: #{affine_student_forward.2} parent=0
    #allocation2 [shape = 'u8[4096]{0}', space=vmem, size = 0x1000, scoped, tag = 'input window, operand 0']
    #allocation3 [shape = 's32[2]{0}', space=sflag, size = 0x8, scoped, tag = 'scoped memory for affine_student_forward.2']
    #allocation4 [shape = 's32[2]{0}', space=sflag, size = 0x8, scoped, tag = 'scoped memory for affine_student_forward.2']
    #allocation5 [shape = 'u8[4096]{0}', space=vmem, size = 0x1000, scoped, tag = 'input window, operand 1']
    #allocation6 [shape = 's32[2]{0}', space=sflag, size = 0x8, scoped, tag = 'scoped memory for affine_student_forward.2']
    #allocation7 [shape = 'u8[4096]{0}', space=vmem, size = 0x1000, scoped, tag = 'input window, operand 2']
    #allocation8 [shape = 'u8[4096]{0}', space=vmem, size = 0x1000, scoped, tag = 'input window, operand 3']
    #allocation9 [shape = 's32[2]{0}', space=sflag, size = 0x8, scoped, tag = 'scoped memory for affine_student_forward.2']
    #allocation10 [shape = 'u8[4096]{0}', space=vmem, size = 0x1000, scoped, tag = 'input window, operand 4']
    #allocation11 [shape = 'u8[4096]{0}', space=vmem, size = 0x1000, scoped, tag = 'input window, operand 5']
    #allocation12 [shape = 's32[2]{0}', space=sflag, size = 0x8, scoped, tag = 'scoped memory for affine_student_forward.2']
    #allocation13 [shape = 'u8[8192]{0}', space=vmem, size = 0x2000, scoped, tag = 'input window, operand 6, single buffered']
    #allocation14 [shape = 'u8[16384]{0}', space=vmem, size = 0x4000, scoped, tag = 'input window, operand 7, single buffered']
    #allocation15 [shape = 's32[1]{0}', space=sflag, size = 0x4, scoped, tag = 'scoped memory for affine_student_forward.2']
    #allocation16 [shape = 'u8[98304]{0}', space=vmem, size = 0x18000, scoped, tag = 'input window, operand 8, single buffered']
    #allocation17 [shape = 'u8[49152]{0}', space=vmem, size = 0xc000, scoped, tag = 'input window, operand 9, single buffered']
    #allocation18 [shape = 's32[1]{0}', space=sflag, size = 0x4, scoped, tag = 'scoped memory for affine_student_forward.2']
    #allocation19 [shape = 'u8[49152]{0}', space=vmem, size = 0xc000, scoped, tag = 'input window, operand 10, single buffered']
    #allocation20 [shape = 'u8[98304]{0}', space=vmem, size = 0x18000, scoped, tag = 'input window, operand 11, single buffered']
    #allocation21 [shape = 's32[1]{0}', space=sflag, size = 0x4, scoped, tag = 'scoped memory for affine_student_forward.2']
    #allocation22 [shape = 'u8[2048]{0}', space=vmem, size = 0x800, scoped, tag = 'input window, operand 12, single buffered']
    #allocation23 [shape = 'u8[4096]{0}', space=vmem, size = 0x1000, scoped, tag = 'input window, operand 13, single buffered']
    #allocation24 [shape = 's32[1]{0}', space=sflag, size = 0x4, scoped, tag = 'scoped memory for affine_student_forward.2']
    #allocation25 [shape = 'u8[1024]{0}', space=vmem, size = 0x400, scoped, tag = 'input window, operand 14, single buffered']
    #allocation26 [shape = 'u8[2048]{0}', space=vmem, size = 0x800, scoped, tag = 'input window, operand 15, single buffered']
    #allocation27 [shape = 's32[1]{0}', space=sflag, size = 0x4, scoped, tag = 'scoped memory for affine_student_forward.2']
    #allocation28 [shape = 'u8[4096]{0}', space=vmem, size = 0x1000, scoped, tag = 'output window, operand 0']
    %21 = vsyncpa [#allocation3], 0
    %s22 = scalar_lea.sflag [#allocation3], 1
    %23 = vsyncpa %s22, 0
    %24 = vsyncpa [#allocation6], 0
    %s25 = scalar_lea.sflag [#allocation6], 1
    %26 = vsyncpa %s25, 0
    %27 = vsyncpa [#allocation9], 0
    %s28 = scalar_lea.sflag [#allocation9], 1
    %29 = vsyncpa %s28, 0
    %30 = vsyncpa [#allocation12], 0
    %s31 = scalar_lea.sflag [#allocation12], 1
    %32 = vsyncpa %s31, 0
    %33 = vsyncpa [#allocation15], 0
    %34 = vsyncpa [#allocation18], 0
    %35 = vsyncpa [#allocation21], 0
    %36 = vsyncpa [#allocation24], 0
    %37 = vsyncpa [#allocation27], 0
    %38 = vsyncpa [#allocation4], 0
    %s39 = scalar_lea.sflag [#allocation4], 1
    %40 = vsyncpa %s39, 0
    loop: start=0, step=1, limit=4
    $region2: #{affine_student_forward.2} parent=1 // loop_pre_header
      _
    $region3: #{affine_student_forward.2} parent=1 // loop_header
      %s42 = sphi 0, %s46
      %p43 = scmp.ge.s32.totalorder %s42, 4
      %s49 = sphi 0, %s61
      %s50 = sphi 0, %s57
      %s51 = sphi 0, %s49
      %s52 = sphi 0, %s50
      %s53 = sphi 0, %s51
      %s54 = sphi 0, %s52
      %s66 = sphi 0, %s68
      %s69 = sphi 0, %s66
      %s70 = sphi 0, %s69
      %s86 = sphi 0, %s70
      %s96 = sphi 0, %s98
      %s99 = sphi 0, %s96
      %s100 = sphi 0, %s99
      %s116 = sphi 0, %s100
      %s126 = sphi 0, %s128
      %s129 = sphi 0, %s126
      %s130 = sphi 0, %s129
      %s146 = sphi 0, %s130
      %s154 = sphi 0, %s156
      %s157 = sphi 0, %s154
      %s158 = sphi 0, %s157
      %s174 = sphi 0, %s158
      %s184 = sphi 0, %s186
      %s187 = sphi 0, %s184
      %s188 = sphi 0, %s187
      %s204 = sphi 0, %s188
      %s214 = sphi 0, %s216
      %s217 = sphi 0, %s214
      %s218 = sphi 0, %s217
      %s234 = sphi 0, %s218
      %s238 = sphi 0, %s238
      %s240 = sphi 0, %s238
      %s241 = sphi 0, %s240
      %s255 = sphi 0, %s241
      %s259 = sphi 0, %s259
      %s261 = sphi 0, %s259
      %s262 = sphi 0, %s261
      %s276 = sphi 0, %s262
      %s280 = sphi 0, %s280
      %s282 = sphi 0, %s280
      %s283 = sphi 0, %s282
      %s297 = sphi 0, %s283
      %s301 = sphi 0, %s301
      %s303 = sphi 0, %s301
      %s304 = sphi 0, %s303
      %s318 = sphi 0, %s304
      %s322 = sphi 0, %s322
      %s324 = sphi 0, %s322
      %s325 = sphi 0, %s324
      %s339 = sphi 0, %s325
      %s343 = sphi 0, %s343
      %s345 = sphi 0, %s343
      %s346 = sphi 0, %s345
      %s360 = sphi 0, %s346
      %s364 = sphi 0, %s364
      %s366 = sphi 0, %s364
      %s367 = sphi 0, %s366
      %s381 = sphi 0, %s367
      %s385 = sphi 0, %s385
      %s387 = sphi 0, %s385
      %s388 = sphi 0, %s387
      %s402 = sphi 0, %s388
      %s406 = sphi 0, %s406
      %s408 = sphi 0, %s406
      %s409 = sphi 0, %s408
      %s423 = sphi 0, %s409
      %s427 = sphi 0, %s427
      %s429 = sphi 0, %s427
      %s430 = sphi 0, %s429
      %s444 = sphi 0, %s430
      %s452 = sphi 0, %s454
      %s455 = sphi 0, %s452
      %s456 = sphi 0, %s455
      %s472 = sphi 0, %s456
    $region4: #{affine_student_forward.2} parent=1 // loop_header_branch
      %45 = sbr.rel (%p43) target = $region8
    $region5: #{affine_student_forward.2} parent=1 // loop_body
      %s47 = ssub.s32 %s42, 1
      %s48 = ssub.s32 %s42, 2
      %s55 = sadd.s32 1, %s50
      %p56 = scmp.ge.s32.totalorder %s55, 1
      %s57 = scalar_select %p56, 0, %s55
      %s58 = sadd.s32 1, %s49
      %s59 = scalar_select %p56, %s58, %s49
      %p60 = scmp.ge.s32.totalorder %s59, 2
      %s61 = scalar_select %p60, 0, %s59
      %s62 = ssub.s32 %s49, %s61
      %s63 = ssub.s32 %s50, %s57
      %s64 = sor.u32 %s62, %s63
      %p65 = scmp.eq.s32.totalorder %s64, 0
      %s67 = sadd.s32 %s66, 1
      %s68 = scalar_select %p65, %s66, %s67
      %p71 = pneg %p65
      %p72 = scmp.eq.s32.totalorder %s42, 1
      %p73 = por %p71, %p72
      %p74 = scmp.ne.s32.totalorder %s66, %s69
      %p75 = scmp.eq.s32.totalorder %s42, 0
      %p76 = por %p74, %p75
      %p77 = scmp.ne.s32.totalorder %s66, %s69
      %p78 = scmp.eq.s32.totalorder %s47, 1
      %p79 = por %p77, %p78
      %p80 = scmp.ne.s32.totalorder %s69, %s70
      %p81 = scmp.eq.s32.totalorder %s47, 0
      %p82 = por %p80, %p81
      %p83 = scmp.ne.s32.totalorder %s69, %s70
      %p84 = scmp.eq.s32.totalorder %s48, 1
      %p85 = por %p83, %p84
      %p87 = scmp.ne.s32.totalorder %s70, %s86
      %p88 = scmp.eq.s32.totalorder %s48, 0
      %p89 = por %p87, %p88
      %s90 = sadd.s32 %s50, 1
      %s91 = sadd.s32 %s57, 1
      %s92 = ssub.s32 %s49, %s61
      %s93 = ssub.s32 %s90, %s91
      %s94 = sor.u32 %s92, %s93
      %p95 = scmp.eq.s32.totalorder %s94, 0
      %s97 = sadd.s32 %s96, 1
      %s98 = scalar_select %p95, %s96, %s97
      %p101 = pneg %p95
      %p102 = scmp.eq.s32.totalorder %s42, 1
      %p103 = por %p101, %p102
      %p104 = scmp.ne.s32.totalorder %s96, %s99
      %p105 = scmp.eq.s32.totalorder %s42, 0
      %p106 = por %p104, %p105
      %p107 = scmp.ne.s32.totalorder %s96, %s99
      %p108 = scmp.eq.s32.totalorder %s47, 1
      %p109 = por %p107, %p108
      %p110 = scmp.ne.s32.totalorder %s99, %s100
      %p111 = scmp.eq.s32.totalorder %s47, 0
      %p112 = por %p110, %p111
      %p113 = scmp.ne.s32.totalorder %s99, %s100
      %p114 = scmp.eq.s32.totalorder %s48, 1
      %p115 = por %p113, %p114
      %p117 = scmp.ne.s32.totalorder %s100, %s116
      %p118 = scmp.eq.s32.totalorder %s48, 0
      %p119 = por %p117, %p118
      %s120 = sadd.s32 %s50, 2
      %s121 = sadd.s32 %s57, 2
      %s122 = ssub.s32 %s49, %s61
      %s123 = ssub.s32 %s120, %s121
      %s124 = sor.u32 %s122, %s123
      %p125 = scmp.eq.s32.totalorder %s124, 0
      %s127 = sadd.s32 %s126, 1
      %s128 = scalar_select %p125, %s126, %s127
      %p131 = pneg %p125
      %p132 = scmp.eq.s32.totalorder %s42, 1
      %p133 = por %p131, %p132
      %p134 = scmp.ne.s32.totalorder %s126, %s129
      %p135 = scmp.eq.s32.totalorder %s42, 0
      %p136 = por %p134, %p135
      %p137 = scmp.ne.s32.totalorder %s126, %s129
      %p138 = scmp.eq.s32.totalorder %s47, 1
      %p139 = por %p137, %p138
      %p140 = scmp.ne.s32.totalorder %s129, %s130
      %p141 = scmp.eq.s32.totalorder %s47, 0
      %p142 = por %p140, %p141
      %p143 = scmp.ne.s32.totalorder %s129, %s130
      %p144 = scmp.eq.s32.totalorder %s48, 1
      %p145 = por %p143, %p144
      %p147 = scmp.ne.s32.totalorder %s130, %s146
      %p148 = scmp.eq.s32.totalorder %s48, 0
      %p149 = por %p147, %p148
      %s150 = ssub.s32 %s49, %s61
      %s151 = ssub.s32 %s50, %s57
      %s152 = sor.u32 %s150, %s151
      %p153 = scmp.eq.s32.totalorder %s152, 0
      %s155 = sadd.s32 %s154, 1
      %s156 = scalar_select %p153, %s154, %s155
      %p159 = pneg %p153
      %p160 = scmp.eq.s32.totalorder %s42, 1
      %p161 = por %p159, %p160
      %p162 = scmp.ne.s32.totalorder %s154, %s157
      %p163 = scmp.eq.s32.totalorder %s42, 0
      %p164 = por %p162, %p163
      %p165 = scmp.ne.s32.totalorder %s154, %s157
      %p166 = scmp.eq.s32.totalorder %s47, 1
      %p167 = por %p165, %p166
      %p168 = scmp.ne.s32.totalorder %s157, %s158
      %p169 = scmp.eq.s32.totalorder %s47, 0
      %p170 = por %p168, %p169
      %p171 = scmp.ne.s32.totalorder %s157, %s158
      %p172 = scmp.eq.s32.totalorder %s48, 1
      %p173 = por %p171, %p172
      %p175 = scmp.ne.s32.totalorder %s158, %s174
      %p176 = scmp.eq.s32.totalorder %s48, 0
      %p177 = por %p175, %p176
      %s178 = sadd.s32 %s50, 1
      %s179 = sadd.s32 %s57, 1
      %s180 = ssub.s32 %s49, %s61
      %s181 = ssub.s32 %s178, %s179
      %s182 = sor.u32 %s180, %s181
      %p183 = scmp.eq.s32.totalorder %s182, 0
      %s185 = sadd.s32 %s184, 1
      %s186 = scalar_select %p183, %s184, %s185
      %p189 = pneg %p183
      %p190 = scmp.eq.s32.totalorder %s42, 1
      %p191 = por %p189, %p190
      %p192 = scmp.ne.s32.totalorder %s184, %s187
      %p193 = scmp.eq.s32.totalorder %s42, 0
      %p194 = por %p192, %p193
      %p195 = scmp.ne.s32.totalorder %s184, %s187
      %p196 = scmp.eq.s32.totalorder %s47, 1
      %p197 = por %p195, %p196
      %p198 = scmp.ne.s32.totalorder %s187, %s188
      %p199 = scmp.eq.s32.totalorder %s47, 0
      %p200 = por %p198, %p199
      %p201 = scmp.ne.s32.totalorder %s187, %s188
      %p202 = scmp.eq.s32.totalorder %s48, 1
      %p203 = por %p201, %p202
      %p205 = scmp.ne.s32.totalorder %s188, %s204
      %p206 = scmp.eq.s32.totalorder %s48, 0
      %p207 = por %p205, %p206
      %s208 = sadd.s32 %s50, 2
      %s209 = sadd.s32 %s57, 2
      %s210 = ssub.s32 %s49, %s61
      %s211 = ssub.s32 %s208, %s209
      %s212 = sor.u32 %s210, %s211
      %p213 = scmp.eq.s32.totalorder %s212, 0
      %s215 = sadd.s32 %s214, 1
      %s216 = scalar_select %p213, %s214, %s215
      %p219 = pneg %p213
      %p220 = scmp.eq.s32.totalorder %s42, 1
      %p221 = por %p219, %p220
      %p222 = scmp.ne.s32.totalorder %s214, %s217
      %p223 = scmp.eq.s32.totalorder %s42, 0
      %p224 = por %p222, %p223
      %p225 = scmp.ne.s32.totalorder %s214, %s217
      %p226 = scmp.eq.s32.totalorder %s47, 1
      %p227 = por %p225, %p226
      %p228 = scmp.ne.s32.totalorder %s217, %s218
      %p229 = scmp.eq.s32.totalorder %s47, 0
      %p230 = por %p228, %p229
      %p231 = scmp.ne.s32.totalorder %s217, %s218
      %p232 = scmp.eq.s32.totalorder %s48, 1
      %p233 = por %p231, %p232
      %p235 = scmp.ne.s32.totalorder %s218, %s234
      %p236 = scmp.eq.s32.totalorder %s48, 0
      %p237 = por %p235, %p236
      %s239 = sadd.s32 %s238, 1
      %p242 = scmp.eq.s32.totalorder %s42, 1
      %p243 = scmp.ne.s32.totalorder %s238, %s240
      %p244 = scmp.eq.s32.totalorder %s42, 0
      %p245 = por %p243, %p244
      %p246 = scmp.ne.s32.totalorder %s238, %s240
      %p247 = scmp.eq.s32.totalorder %s47, 1
      %p248 = por %p246, %p247
      %p249 = scmp.ne.s32.totalorder %s240, %s241
      %p250 = scmp.eq.s32.totalorder %s47, 0
      %p251 = por %p249, %p250
      %p252 = scmp.ne.s32.totalorder %s240, %s241
      %p253 = scmp.eq.s32.totalorder %s48, 1
      %p254 = por %p252, %p253
      %p256 = scmp.ne.s32.totalorder %s241, %s255
      %p257 = scmp.eq.s32.totalorder %s48, 0
      %p258 = por %p256, %p257
      %s260 = sadd.s32 %s259, 1
      %p263 = scmp.eq.s32.totalorder %s42, 1
      %p264 = scmp.ne.s32.totalorder %s259, %s261
      %p265 = scmp.eq.s32.totalorder %s42, 0
      %p266 = por %p264, %p265
      %p267 = scmp.ne.s32.totalorder %s259, %s261
      %p268 = scmp.eq.s32.totalorder %s47, 1
      %p269 = por %p267, %p268
      %p270 = scmp.ne.s32.totalorder %s261, %s262
      %p271 = scmp.eq.s32.totalorder %s47, 0
      %p272 = por %p270, %p271
      %p273 = scmp.ne.s32.totalorder %s261, %s262
      %p274 = scmp.eq.s32.totalorder %s48, 1
      %p275 = por %p273, %p274
      %p277 = scmp.ne.s32.totalorder %s262, %s276
      %p278 = scmp.eq.s32.totalorder %s48, 0
      %p279 = por %p277, %p278
      %s281 = sadd.s32 %s280, 1
      %p284 = scmp.eq.s32.totalorder %s42, 1
      %p285 = scmp.ne.s32.totalorder %s280, %s282
      %p286 = scmp.eq.s32.totalorder %s42, 0
      %p287 = por %p285, %p286
      %p288 = scmp.ne.s32.totalorder %s280, %s282
      %p289 = scmp.eq.s32.totalorder %s47, 1
      %p290 = por %p288, %p289
      %p291 = scmp.ne.s32.totalorder %s282, %s283
      %p292 = scmp.eq.s32.totalorder %s47, 0
      %p293 = por %p291, %p292
      %p294 = scmp.ne.s32.totalorder %s282, %s283
      %p295 = scmp.eq.s32.totalorder %s48, 1
      %p296 = por %p294, %p295
      %p298 = scmp.ne.s32.totalorder %s283, %s297
      %p299 = scmp.eq.s32.totalorder %s48, 0
      %p300 = por %p298, %p299
      %s302 = sadd.s32 %s301, 1
      %p305 = scmp.eq.s32.totalorder %s42, 1
      %p306 = scmp.ne.s32.totalorder %s301, %s303
      %p307 = scmp.eq.s32.totalorder %s42, 0
      %p308 = por %p306, %p307
      %p309 = scmp.ne.s32.totalorder %s301, %s303
      %p310 = scmp.eq.s32.totalorder %s47, 1
      %p311 = por %p309, %p310
      %p312 = scmp.ne.s32.totalorder %s303, %s304
      %p313 = scmp.eq.s32.totalorder %s47, 0
      %p314 = por %p312, %p313
      %p315 = scmp.ne.s32.totalorder %s303, %s304
      %p316 = scmp.eq.s32.totalorder %s48, 1
      %p317 = por %p315, %p316
      %p319 = scmp.ne.s32.totalorder %s304, %s318
      %p320 = scmp.eq.s32.totalorder %s48, 0
      %p321 = por %p319, %p320
      %s323 = sadd.s32 %s322, 1
      %p326 = scmp.eq.s32.totalorder %s42, 1
      %p327 = scmp.ne.s32.totalorder %s322, %s324
      %p328 = scmp.eq.s32.totalorder %s42, 0
      %p329 = por %p327, %p328
      %p330 = scmp.ne.s32.totalorder %s322, %s324
      %p331 = scmp.eq.s32.totalorder %s47, 1
      %p332 = por %p330, %p331
      %p333 = scmp.ne.s32.totalorder %s324, %s325
      %p334 = scmp.eq.s32.totalorder %s47, 0
      %p335 = por %p333, %p334
      %p336 = scmp.ne.s32.totalorder %s324, %s325
      %p337 = scmp.eq.s32.totalorder %s48, 1
      %p338 = por %p336, %p337
      %p340 = scmp.ne.s32.totalorder %s325, %s339
      %p341 = scmp.eq.s32.totalorder %s48, 0
      %p342 = por %p340, %p341
      %s344 = sadd.s32 %s343, 1
      %p347 = scmp.eq.s32.totalorder %s42, 1
      %p348 = scmp.ne.s32.totalorder %s343, %s345
      %p349 = scmp.eq.s32.totalorder %s42, 0
      %p350 = por %p348, %p349
      %p351 = scmp.ne.s32.totalorder %s343, %s345
      %p352 = scmp.eq.s32.totalorder %s47, 1
      %p353 = por %p351, %p352
      %p354 = scmp.ne.s32.totalorder %s345, %s346
      %p355 = scmp.eq.s32.totalorder %s47, 0
      %p356 = por %p354, %p355
      %p357 = scmp.ne.s32.totalorder %s345, %s346
      %p358 = scmp.eq.s32.totalorder %s48, 1
      %p359 = por %p357, %p358
      %p361 = scmp.ne.s32.totalorder %s346, %s360
      %p362 = scmp.eq.s32.totalorder %s48, 0
      %p363 = por %p361, %p362
      %s365 = sadd.s32 %s364, 1
      %p368 = scmp.eq.s32.totalorder %s42, 1
      %p369 = scmp.ne.s32.totalorder %s364, %s366
      %p370 = scmp.eq.s32.totalorder %s42, 0
      %p371 = por %p369, %p370
      %p372 = scmp.ne.s32.totalorder %s364, %s366
      %p373 = scmp.eq.s32.totalorder %s47, 1
      %p374 = por %p372, %p373
      %p375 = scmp.ne.s32.totalorder %s366, %s367
      %p376 = scmp.eq.s32.totalorder %s47, 0
      %p377 = por %p375, %p376
      %p378 = scmp.ne.s32.totalorder %s366, %s367
      %p379 = scmp.eq.s32.totalorder %s48, 1
      %p380 = por %p378, %p379
      %p382 = scmp.ne.s32.totalorder %s367, %s381
      %p383 = scmp.eq.s32.totalorder %s48, 0
      %p384 = por %p382, %p383
      %s386 = sadd.s32 %s385, 1
      %p389 = scmp.eq.s32.totalorder %s42, 1
      %p390 = scmp.ne.s32.totalorder %s385, %s387
      %p391 = scmp.eq.s32.totalorder %s42, 0
      %p392 = por %p390, %p391
      %p393 = scmp.ne.s32.totalorder %s385, %s387
      %p394 = scmp.eq.s32.totalorder %s47, 1
      %p395 = por %p393, %p394
      %p396 = scmp.ne.s32.totalorder %s387, %s388
      %p397 = scmp.eq.s32.totalorder %s47, 0
      %p398 = por %p396, %p397
      %p399 = scmp.ne.s32.totalorder %s387, %s388
      %p400 = scmp.eq.s32.totalorder %s48, 1
      %p401 = por %p399, %p400
      %p403 = scmp.ne.s32.totalorder %s388, %s402
      %p404 = scmp.eq.s32.totalorder %s48, 0
      %p405 = por %p403, %p404
      %s407 = sadd.s32 %s406, 1
      %p410 = scmp.eq.s32.totalorder %s42, 1
      %p411 = scmp.ne.s32.totalorder %s406, %s408
      %p412 = scmp.eq.s32.totalorder %s42, 0
      %p413 = por %p411, %p412
      %p414 = scmp.ne.s32.totalorder %s406, %s408
      %p415 = scmp.eq.s32.totalorder %s47, 1
      %p416 = por %p414, %p415
      %p417 = scmp.ne.s32.totalorder %s408, %s409
      %p418 = scmp.eq.s32.totalorder %s47, 0
      %p419 = por %p417, %p418
      %p420 = scmp.ne.s32.totalorder %s408, %s409
      %p421 = scmp.eq.s32.totalorder %s48, 1
      %p422 = por %p420, %p421
      %p424 = scmp.ne.s32.totalorder %s409, %s423
      %p425 = scmp.eq.s32.totalorder %s48, 0
      %p426 = por %p424, %p425
      %s428 = sadd.s32 %s427, 1
      %p431 = scmp.eq.s32.totalorder %s42, 1
      %p432 = scmp.ne.s32.totalorder %s427, %s429
      %p433 = scmp.eq.s32.totalorder %s42, 0
      %p434 = por %p432, %p433
      %p435 = scmp.ne.s32.totalorder %s427, %s429
      %p436 = scmp.eq.s32.totalorder %s47, 1
      %p437 = por %p435, %p436
      %p438 = scmp.ne.s32.totalorder %s429, %s430
      %p439 = scmp.eq.s32.totalorder %s47, 0
      %p440 = por %p438, %p439
      %p441 = scmp.ne.s32.totalorder %s429, %s430
      %p442 = scmp.eq.s32.totalorder %s48, 1
      %p443 = por %p441, %p442
      %p445 = scmp.ne.s32.totalorder %s430, %s444
      %p446 = scmp.eq.s32.totalorder %s48, 0
      %p447 = por %p445, %p446
      %s448 = ssub.s32 %s49, %s61
      %s449 = ssub.s32 %s50, %s57
      %s450 = sor.u32 %s448, %s449
      %p451 = scmp.eq.s32.totalorder %s450, 0
      %s453 = sadd.s32 %s452, 1
      %s454 = scalar_select %p451, %s452, %s453
      %p457 = pneg %p451
      %p458 = scmp.eq.s32.totalorder %s42, 1
      %p459 = por %p457, %p458
      %p460 = scmp.ne.s32.totalorder %s452, %s455
      %p461 = scmp.eq.s32.totalorder %s42, 0
      %p462 = por %p460, %p461
      %p463 = scmp.ne.s32.totalorder %s452, %s455
      %p464 = scmp.eq.s32.totalorder %s47, 1
      %p465 = por %p463, %p464
      %p466 = scmp.ne.s32.totalorder %s455, %s456
      %p467 = scmp.eq.s32.totalorder %s47, 0
      %p468 = por %p466, %p467
      %p469 = scmp.ne.s32.totalorder %s455, %s456
      %p470 = scmp.eq.s32.totalorder %s48, 1
      %p471 = por %p469, %p470
      %p473 = scmp.ne.s32.totalorder %s456, %s472
      %p474 = scmp.eq.s32.totalorder %s48, 0
      %p475 = por %p473, %p474
      %p476 = scmp.le.s32.totalorder 1, %s42
      %p477 = scmp.lt.s32.totalorder %s42, 3
      %p478 = pnand %p476, %p477
      %p479 = pneg %p478
      // Predicated region
      $region9: #{affine_student_forward.2} parent=5 // pred_check
        _
      $region10: #{affine_student_forward.2} parent=5 // pred_check_branch
        %481 = sbr.rel (%p478) target = $region12
      $region11: #{affine_student_forward.2} parent=5 // pred_region
        %s482 = ssub.s32 %s42, 1
        // Predicated region
        $region13: #{affine_student_forward.2} parent=11 // pred_check
          %p483 = pneg %p251
        $region14: #{affine_student_forward.2} parent=11 // pred_check_branch
          %485 = sbr.rel (%p483) target = $region16
        $region15: #{affine_student_forward.2} parent=11 // pred_region
          %s487 = ssub.s32 256, 256
          %488 = vsyncadd [#allocation12], %s487
          %s489 = sshll.u32 [#allocation13], 4
          %s490 = int_to_ptr.vmem [resolvable:$true] %s489
          %495 = dma.hbm_to_vmem [thread:$0]  %s6, 256, %s490, [#allocation12], 64, 64, 4
        $region16: #{affine_student_forward.2} parent=11 // pred_fallthru
          _
        // Predicated region
        $region17: #{affine_student_forward.2} parent=11 // pred_check
          %p496 = pneg %p272
        $region18: #{affine_student_forward.2} parent=11 // pred_check_branch
          %498 = sbr.rel (%p496) target = $region20
        $region19: #{affine_student_forward.2} parent=11 // pred_region
          %s500 = ssub.s32 512, 512
          %501 = vsyncadd [#allocation15], %s500
          %s502 = sshll.u32 [#allocation14], 4
          %s503 = int_to_ptr.vmem [resolvable:$true] %s502
          %508 = dma.hbm_to_vmem [thread:$0]  %s7, 512, %s503, [#allocation15], 128, 128, 8
        $region20: #{affine_student_forward.2} parent=11 // pred_fallthru
          _
        // Predicated region
        $region21: #{affine_student_forward.2} parent=11 // pred_check
          %p509 = pneg %p293
        $region22: #{affine_student_forward.2} parent=11 // pred_check_branch
          %511 = sbr.rel (%p509) target = $region24
        $region23: #{affine_student_forward.2} parent=11 // pred_region
          %s513 = ssub.s32 3072, 3072
          %514 = vsyncadd [#allocation15], %s513
          %s515 = sshll.u32 [#allocation16], 4
          %s516 = int_to_ptr.vmem [resolvable:$true] %s515
          %521 = dma.hbm_to_vmem [thread:$0]  %s8, 3072, %s516, [#allocation15], 128, 128, 8
        $region24: #{affine_student_forward.2} parent=11 // pred_fallthru
          _
        // Predicated region
        $region25: #{affine_student_forward.2} parent=11 // pred_check
          %p522 = pneg %p314
        $region26: #{affine_student_forward.2} parent=11 // pred_check_branch
          %524 = sbr.rel (%p522) target = $region28
        $region27: #{affine_student_forward.2} parent=11 // pred_region
          %s526 = ssub.s32 1536, 1536
          %527 = vsyncadd [#allocation18], %s526
          %s528 = sshll.u32 [#allocation17], 4
          %s529 = int_to_ptr.vmem [resolvable:$true] %s528
          %534 = dma.hbm_to_vmem [thread:$0]  %s9, 1536, %s529, [#allocation18], 64, 64, 4
        $region28: #{affine_student_forward.2} parent=11 // pred_fallthru
          _
        // Predicated region
        $region29: #{affine_student_forward.2} parent=11 // pred_check
          %p535 = pneg %p335
        $region30: #{affine_student_forward.2} parent=11 // pred_check_branch
          %537 = sbr.rel (%p535) target = $region32
        $region31: #{affine_student_forward.2} parent=11 // pred_region
          %s539 = ssub.s32 1536, 1536
          %540 = vsyncadd [#allocation18], %s539
          %s541 = sshll.u32 [#allocation19], 4
          %s542 = int_to_ptr.vmem [resolvable:$true] %s541
          %547 = dma.hbm_to_vmem [thread:$0]  %s10, 1536, %s542, [#allocation18], 64, 64, 4
        $region32: #{affine_student_forward.2} parent=11 // pred_fallthru
          _
        // Predicated region
        $region33: #{affine_student_forward.2} parent=11 // pred_check
          %p548 = pneg %p356
        $region34: #{affine_student_forward.2} parent=11 // pred_check_branch
          %550 = sbr.rel (%p548) target = $region36
        $region35: #{affine_student_forward.2} parent=11 // pred_region
          %s552 = ssub.s32 3072, 3072
          %553 = vsyncadd [#allocation21], %s552
          %s554 = sshll.u32 [#allocation20], 4
          %s555 = int_to_ptr.vmem [resolvable:$true] %s554
          %560 = dma.hbm_to_vmem [thread:$0]  %s11, 3072, %s555, [#allocation21], 128, 128, 8
        $region36: #{affine_student_forward.2} parent=11 // pred_fallthru
          _
        // Predicated region
        $region37: #{affine_student_forward.2} parent=11 // pred_check
          %p561 = pneg %p377
        $region38: #{affine_student_forward.2} parent=11 // pred_check_branch
          %563 = sbr.rel (%p561) target = $region40
        $region39: #{affine_student_forward.2} parent=11 // pred_region
          %s565 = ssub.s32 64, 64
          %566 = vsyncadd [#allocation21], %s565
          %s568 = sshll.u32 [#allocation22], 4
          %s569 = int_to_ptr.vmem [resolvable:$true] %s568
          %571 = dma.hbm_to_vmem [thread:$0]  %s12, 64, %s569, [#allocation21]
        $region40: #{affine_student_forward.2} parent=11 // pred_fallthru
          _
        // Predicated region
        $region41: #{affine_student_forward.2} parent=11 // pred_check
          %p572 = pneg %p398
        $region42: #{affine_student_forward.2} parent=11 // pred_check_branch
          %574 = sbr.rel (%p572) target = $region44
        $region43: #{affine_student_forward.2} parent=11 // pred_region
          %s576 = ssub.s32 128, 128
          %577 = vsyncadd [#allocation24], %s576
          %s579 = sshll.u32 [#allocation23], 4
          %s580 = int_to_ptr.vmem [resolvable:$true] %s579
          %582 = dma.hbm_to_vmem [thread:$0]  %s13, 128, %s580, [#allocation24]
        $region44: #{affine_student_forward.2} parent=11 // pred_fallthru
          _
        // Predicated region
        $region45: #{affine_student_forward.2} parent=11 // pred_check
          %p583 = pneg %p419
        $region46: #{affine_student_forward.2} parent=11 // pred_check_branch
          %585 = sbr.rel (%p583) target = $region48
        $region47: #{affine_student_forward.2} parent=11 // pred_region
          %s587 = ssub.s32 32, 32
          %588 = vsyncadd [#allocation24], %s587
          %s590 = sshll.u32 [#allocation25], 4
          %s591 = int_to_ptr.vmem [resolvable:$true] %s590
          %593 = dma.hbm_to_vmem [thread:$0]  %s14, 32, %s591, [#allocation24]
        $region48: #{affine_student_forward.2} parent=11 // pred_fallthru
          _
        // Predicated region
        $region49: #{affine_student_forward.2} parent=11 // pred_check
          %p594 = pneg %p440
        $region50: #{affine_student_forward.2} parent=11 // pred_check_branch
          %596 = sbr.rel (%p594) target = $region52
        $region51: #{affine_student_forward.2} parent=11 // pred_region
          %s598 = ssub.s32 64, 64
          %599 = vsyncadd [#allocation27], %s598
          %s601 = sshll.u32 [#allocation26], 4
          %s602 = int_to_ptr.vmem [resolvable:$true] %s601
          %604 = dma.hbm_to_vmem [thread:$0]  %s15, 64, %s602, [#allocation27]
        $region52: #{affine_student_forward.2} parent=11 // pred_fallthru
          _
      $region12: #{affine_student_forward.2} parent=5 // pred_fallthru
        _
      %p605 = scmp.lt.s32.totalorder %s42, 2
      // Predicated region
      $region53: #{affine_student_forward.2} parent=5 // pred_check
        %p606 = pneg %p605
      $region54: #{affine_student_forward.2} parent=5 // pred_check_branch
        %608 = sbr.rel (%p606) target = $region56
      $region55: #{affine_student_forward.2} parent=5 // pred_region
        // Predicated region
        $region57: #{affine_student_forward.2} parent=55 // pred_check
          %p609 = pneg %p76
        $region58: #{affine_student_forward.2} parent=55 // pred_check_branch
          %611 = sbr.rel (%p609) target = $region60
        $region59: #{affine_student_forward.2} parent=55 // pred_region
          %s612 = sand.u32 %s66, 1
          %s613 = scalar_lea.sflag [#allocation3], %s612
          %s614 = sand.u32 %s66, 1
          %s615 = smul.addr %s614, 4
          %s616 = scalar_lea.vmem [#allocation2], %s615
          %s618 = ssub.s32 64, 64
          %619 = vsyncadd %s613, %s618
          %s620 = smul.addr %s49, 3
          %s621 = sadd.s32 %s50, %s620
          %s622 = smul.addr %s621, 64
          %s623 = scalar_lea.hbm %s0, %s622
          %s625 = sshll.u32 %s616, 4
          %s626 = int_to_ptr.vmem [resolvable:$true] %s625
          %628 = dma.hbm_to_vmem [thread:$0]  %s623, 64, %s626, %s613
        $region60: #{affine_student_forward.2} parent=55 // pred_fallthru
          _
        // Predicated region
        $region61: #{affine_student_forward.2} parent=55 // pred_check
          %p629 = pneg %p106
        $region62: #{affine_student_forward.2} parent=55 // pred_check_branch
          %631 = sbr.rel (%p629) target = $region64
        $region63: #{affine_student_forward.2} parent=55 // pred_region
          %s632 = sand.u32 %s42, 1
          %s633 = scalar_lea.sflag [#allocation6], %s632
          %s634 = sand.u32 %s96, 1
          %s635 = smul.addr %s634, 4
          %s636 = scalar_lea.vmem [#allocation5], %s635
          %s637 = sadd.s32 %s50, 1
          %s639 = ssub.s32 64, 64
          %640 = vsyncadd %s633, %s639
          %s641 = smul.addr %s49, 3
          %s642 = sadd.s32 %s637, %s641
          %s643 = smul.addr %s642, 64
          %s644 = scalar_lea.hbm %s1, %s643
          %s646 = sshll.u32 %s636, 4
          %s647 = int_to_ptr.vmem [resolvable:$true] %s646
          %649 = dma.hbm_to_vmem [thread:$0]  %s644, 64, %s647, %s633
        $region64: #{affine_student_forward.2} parent=55 // pred_fallthru
          _
        // Predicated region
        $region65: #{affine_student_forward.2} parent=55 // pred_check
          %p650 = pneg %p136
        $region66: #{affine_student_forward.2} parent=55 // pred_check_branch
          %652 = sbr.rel (%p650) target = $region68
        $region67: #{affine_student_forward.2} parent=55 // pred_region
          %s653 = sand.u32 %s42, 1
          %s654 = scalar_lea.sflag [#allocation6], %s653
          %s655 = sand.u32 %s126, 1
          %s656 = smul.addr %s655, 4
          %s657 = scalar_lea.vmem [#allocation7], %s656
          %s658 = sadd.s32 %s50, 2
          %s660 = ssub.s32 64, 64
          %661 = vsyncadd %s654, %s660
          %s662 = smul.addr %s49, 3
          %s663 = sadd.s32 %s658, %s662
          %s664 = smul.addr %s663, 64
          %s665 = scalar_lea.hbm %s2, %s664
          %s667 = sshll.u32 %s657, 4
          %s668 = int_to_ptr.vmem [resolvable:$true] %s667
          %670 = dma.hbm_to_vmem [thread:$0]  %s665, 64, %s668, %s654
        $region68: #{affine_student_forward.2} parent=55 // pred_fallthru
          _
        // Predicated region
        $region69: #{affine_student_forward.2} parent=55 // pred_check
          %p671 = pneg %p164
        $region70: #{affine_student_forward.2} parent=55 // pred_check_branch
          %673 = sbr.rel (%p671) target = $region72
        $region71: #{affine_student_forward.2} parent=55 // pred_region
          %s674 = sand.u32 %s42, 1
          %s675 = scalar_lea.sflag [#allocation9], %s674
          %s676 = sand.u32 %s154, 1
          %s677 = smul.addr %s676, 4
          %s678 = scalar_lea.vmem [#allocation8], %s677
          %s680 = ssub.s32 64, 64
          %681 = vsyncadd %s675, %s680
          %s682 = smul.addr %s49, 3
          %s683 = sadd.s32 %s50, %s682
          %s684 = smul.addr %s683, 64
          %s685 = scalar_lea.hbm %s3, %s684
          %s687 = sshll.u32 %s678, 4
          %s688 = int_to_ptr.vmem [resolvable:$true] %s687
          %690 = dma.hbm_to_vmem [thread:$0]  %s685, 64, %s688, %s675
        $region72: #{affine_student_forward.2} parent=55 // pred_fallthru
          _
        // Predicated region
        $region73: #{affine_student_forward.2} parent=55 // pred_check
          %p691 = pneg %p194
        $region74: #{affine_student_forward.2} parent=55 // pred_check_branch
          %693 = sbr.rel (%p691) target = $region76
        $region75: #{affine_student_forward.2} parent=55 // pred_region
          %s694 = sand.u32 %s42, 1
          %s695 = scalar_lea.sflag [#allocation9], %s694
          %s696 = sand.u32 %s184, 1
          %s697 = smul.addr %s696, 4
          %s698 = scalar_lea.vmem [#allocation10], %s697
          %s699 = sadd.s32 %s50, 1
          %s701 = ssub.s32 64, 64
          %702 = vsyncadd %s695, %s701
          %s703 = smul.addr %s49, 3
          %s704 = sadd.s32 %s699, %s703
          %s705 = smul.addr %s704, 64
          %s706 = scalar_lea.hbm %s4, %s705
          %s708 = sshll.u32 %s698, 4
          %s709 = int_to_ptr.vmem [resolvable:$true] %s708
          %711 = dma.hbm_to_vmem [thread:$0]  %s706, 64, %s709, %s695
        $region76: #{affine_student_forward.2} parent=55 // pred_fallthru
          _
        // Predicated region
        $region77: #{affine_student_forward.2} parent=55 // pred_check
          %p712 = pneg %p224
        $region78: #{affine_student_forward.2} parent=55 // pred_check_branch
          %714 = sbr.rel (%p712) target = $region80
        $region79: #{affine_student_forward.2} parent=55 // pred_region
          %s715 = sand.u32 %s42, 1
          %s716 = scalar_lea.sflag [#allocation12], %s715
          %s717 = sand.u32 %s214, 1
          %s718 = smul.addr %s717, 4
          %s719 = scalar_lea.vmem [#allocation11], %s718
          %s720 = sadd.s32 %s50, 2
          %s722 = ssub.s32 64, 64
          %723 = vsyncadd %s716, %s722
          %s724 = smul.addr %s49, 3
          %s725 = sadd.s32 %s720, %s724
          %s726 = smul.addr %s725, 64
          %s727 = scalar_lea.hbm %s5, %s726
          %s729 = sshll.u32 %s719, 4
          %s730 = int_to_ptr.vmem [resolvable:$true] %s729
          %732 = dma.hbm_to_vmem [thread:$0]  %s727, 64, %s730, %s716
        $region80: #{affine_student_forward.2} parent=55 // pred_fallthru
          _
      $region56: #{affine_student_forward.2} parent=5 // pred_fallthru
        _
      %p733 = scmp.le.s32.totalorder 1, %s42
      %p734 = scmp.lt.s32.totalorder %s42, 3
      %p735 = pnand %p733, %p734
      %p736 = pneg %p735
      // Predicated region
      $region81: #{affine_student_forward.2} parent=5 // pred_check
        _
      $region82: #{affine_student_forward.2} parent=5 // pred_check_branch
        %738 = sbr.rel (%p735) target = $region84
      $region83: #{affine_student_forward.2} parent=5 // pred_region
        %s739 = ssub.s32 %s42, 1
        %s740 = sand.u32 %s69, 1
        %s741 = scalar_lea.sflag [#allocation3], %s740
        %s742 = sand.u32 %s69, 1
        %s743 = smul.addr %s742, 4
        %s744 = scalar_lea.vmem [#allocation2], %s743
        // Predicated region
        $region85: #{affine_student_forward.2} parent=83 // pred_check
          %p745 = pneg %p82
        $region86: #{affine_student_forward.2} parent=83 // pred_check_branch
          %747 = sbr.rel (%p745) target = $region88
        $region87: #{affine_student_forward.2} parent=83 // pred_region
          %748 = dma.done %s741, 64
        $region88: #{affine_student_forward.2} parent=83 // pred_fallthru
          _
        %s749 = sand.u32 %s47, 1
        %s750 = scalar_lea.sflag [#allocation6], %s749
        %s751 = sand.u32 %s99, 1
        %s752 = smul.addr %s751, 4
        %s753 = scalar_lea.vmem [#allocation5], %s752
        // Predicated region
        $region89: #{affine_student_forward.2} parent=83 // pred_check
          %p754 = pneg %p112
        $region90: #{affine_student_forward.2} parent=83 // pred_check_branch
          %756 = sbr.rel (%p754) target = $region92
        $region91: #{affine_student_forward.2} parent=83 // pred_region
          %757 = dma.done %s750, 64
        $region92: #{affine_student_forward.2} parent=83 // pred_fallthru
          _
        %s758 = sand.u32 %s47, 1
        %s759 = scalar_lea.sflag [#allocation6], %s758
        %s760 = sand.u32 %s129, 1
        %s761 = smul.addr %s760, 4
        %s762 = scalar_lea.vmem [#allocation7], %s761
        // Predicated region
        $region93: #{affine_student_forward.2} parent=83 // pred_check
          %p763 = pneg %p142
        $region94: #{affine_student_forward.2} parent=83 // pred_check_branch
          %765 = sbr.rel (%p763) target = $region96
        $region95: #{affine_student_forward.2} parent=83 // pred_region
          %766 = dma.done %s759, 64
        $region96: #{affine_student_forward.2} parent=83 // pred_fallthru
          _
        %s767 = sand.u32 %s47, 1
        %s768 = scalar_lea.sflag [#allocation9], %s767
        %s769 = sand.u32 %s157, 1
        %s770 = smul.addr %s769, 4
        %s771 = scalar_lea.vmem [#allocation8], %s770
        // Predicated region
        $region97: #{affine_student_forward.2} parent=83 // pred_check
          %p772 = pneg %p170
        $region98: #{affine_student_forward.2} parent=83 // pred_check_branch
          %774 = sbr.rel (%p772) target = $region100
        $region99: #{affine_student_forward.2} parent=83 // pred_region
          %775 = dma.done %s768, 64
        $region100: #{affine_student_forward.2} parent=83 // pred_fallthru
          _
        %s776 = sand.u32 %s47, 1
        %s777 = scalar_lea.sflag [#allocation9], %s776
        %s778 = sand.u32 %s187, 1
        %s779 = smul.addr %s778, 4
        %s780 = scalar_lea.vmem [#allocation10], %s779
        // Predicated region
        $region101: #{affine_student_forward.2} parent=83 // pred_check
          %p781 = pneg %p200
        $region102: #{affine_student_forward.2} parent=83 // pred_check_branch
          %783 = sbr.rel (%p781) target = $region104
        $region103: #{affine_student_forward.2} parent=83 // pred_region
          %784 = dma.done %s777, 64
        $region104: #{affine_student_forward.2} parent=83 // pred_fallthru
          _
        %s785 = sand.u32 %s47, 1
        %s786 = scalar_lea.sflag [#allocation12], %s785
        %s787 = sand.u32 %s217, 1
        %s788 = smul.addr %s787, 4
        %s789 = scalar_lea.vmem [#allocation11], %s788
        // Predicated region
        $region105: #{affine_student_forward.2} parent=83 // pred_check
          %p790 = pneg %p230
        $region106: #{affine_student_forward.2} parent=83 // pred_check_branch
          %792 = sbr.rel (%p790) target = $region108
        $region107: #{affine_student_forward.2} parent=83 // pred_region
          %793 = dma.done %s786, 64
        $region108: #{affine_student_forward.2} parent=83 // pred_fallthru
          _
        // Predicated region
        $region109: #{affine_student_forward.2} parent=83 // pred_check
          %p794 = pneg %p251
        $region110: #{affine_student_forward.2} parent=83 // pred_check_branch
          %796 = sbr.rel (%p794) target = $region112
        $region111: #{affine_student_forward.2} parent=83 // pred_region
          %797 = dma.done [#allocation12], 256
        $region112: #{affine_student_forward.2} parent=83 // pred_fallthru
          _
        // Predicated region
        $region113: #{affine_student_forward.2} parent=83 // pred_check
          %p798 = pneg %p272
        $region114: #{affine_student_forward.2} parent=83 // pred_check_branch
          %800 = sbr.rel (%p798) target = $region116
        $region115: #{affine_student_forward.2} parent=83 // pred_region
          %801 = dma.done [#allocation15], 512
        $region116: #{affine_student_forward.2} parent=83 // pred_fallthru
          _
        // Predicated region
        $region117: #{affine_student_forward.2} parent=83 // pred_check
          %p802 = pneg %p293
        $region118: #{affine_student_forward.2} parent=83 // pred_check_branch
          %804 = sbr.rel (%p802) target = $region120
        $region119: #{affine_student_forward.2} parent=83 // pred_region
          %805 = dma.done [#allocation15], 3072
        $region120: #{affine_student_forward.2} parent=83 // pred_fallthru
          _
        // Predicated region
        $region121: #{affine_student_forward.2} parent=83 // pred_check
          %p806 = pneg %p314
        $region122: #{affine_student_forward.2} parent=83 // pred_check_branch
          %808 = sbr.rel (%p806) target = $region124
        $region123: #{affine_student_forward.2} parent=83 // pred_region
          %809 = dma.done [#allocation18], 1536
        $region124: #{affine_student_forward.2} parent=83 // pred_fallthru
          _
        // Predicated region
        $region125: #{affine_student_forward.2} parent=83 // pred_check
          %p810 = pneg %p335
        $region126: #{affine_student_forward.2} parent=83 // pred_check_branch
          %812 = sbr.rel (%p810) target = $region128
        $region127: #{affine_student_forward.2} parent=83 // pred_region
          %813 = dma.done [#allocation18], 1536
        $region128: #{affine_student_forward.2} parent=83 // pred_fallthru
          _
        // Predicated region
        $region129: #{affine_student_forward.2} parent=83 // pred_check
          %p814 = pneg %p356
        $region130: #{affine_student_forward.2} parent=83 // pred_check_branch
          %816 = sbr.rel (%p814) target = $region132
        $region131: #{affine_student_forward.2} parent=83 // pred_region
          %817 = dma.done [#allocation21], 3072
        $region132: #{affine_student_forward.2} parent=83 // pred_fallthru
          _
        // Predicated region
        $region133: #{affine_student_forward.2} parent=83 // pred_check
          %p818 = pneg %p377
        $region134: #{affine_student_forward.2} parent=83 // pred_check_branch
          %820 = sbr.rel (%p818) target = $region136
        $region135: #{affine_student_forward.2} parent=83 // pred_region
          %821 = dma.done [#allocation21], 64
        $region136: #{affine_student_forward.2} parent=83 // pred_fallthru
          _
        // Predicated region
        $region137: #{affine_student_forward.2} parent=83 // pred_check
          %p822 = pneg %p398
        $region138: #{affine_student_forward.2} parent=83 // pred_check_branch
          %824 = sbr.rel (%p822) target = $region140
        $region139: #{affine_student_forward.2} parent=83 // pred_region
          %825 = dma.done [#allocation24], 128
        $region140: #{affine_student_forward.2} parent=83 // pred_fallthru
          _
        // Predicated region
        $region141: #{affine_student_forward.2} parent=83 // pred_check
          %p826 = pneg %p419
        $region142: #{affine_student_forward.2} parent=83 // pred_check_branch
          %828 = sbr.rel (%p826) target = $region144
        $region143: #{affine_student_forward.2} parent=83 // pred_region
          %829 = dma.done [#allocation24], 32
        $region144: #{affine_student_forward.2} parent=83 // pred_fallthru
          _
        // Predicated region
        $region145: #{affine_student_forward.2} parent=83 // pred_check
          %p830 = pneg %p440
        $region146: #{affine_student_forward.2} parent=83 // pred_check_branch
          %832 = sbr.rel (%p830) target = $region148
        $region147: #{affine_student_forward.2} parent=83 // pred_region
          %833 = dma.done [#allocation27], 64
        $region148: #{affine_student_forward.2} parent=83 // pred_fallthru
          _
        %s834 = sand.u32 %s69, 1
        %s835 = scalar_lea.sflag [#allocation3], %s834
        %s836 = sand.u32 %s69, 1
        %s837 = smul.addr %s836, 4
        %s838 = scalar_lea.vmem [#allocation2], %s837
        %p839 = pneg %p82
        %p840 = pneg %p79
        %s841 = sand.u32 %s47, 1
        %s842 = scalar_lea.sflag [#allocation6], %s841
        %s843 = sand.u32 %s99, 1
        %s844 = smul.addr %s843, 4
        %s845 = scalar_lea.vmem [#allocation5], %s844
        %p846 = pneg %p112
        %p847 = pneg %p109
        %s848 = sand.u32 %s47, 1
        %s849 = scalar_lea.sflag [#allocation6], %s848
        %s850 = sand.u32 %s129, 1
        %s851 = smul.addr %s850, 4
        %s852 = scalar_lea.vmem [#allocation7], %s851
        %p853 = pneg %p142
        %p854 = pneg %p139
        %s855 = sand.u32 %s47, 1
        %s856 = scalar_lea.sflag [#allocation9], %s855
        %s857 = sand.u32 %s157, 1
        %s858 = smul.addr %s857, 4
        %s859 = scalar_lea.vmem [#allocation8], %s858
        %p860 = pneg %p170
        %p861 = pneg %p167
        %s862 = sand.u32 %s47, 1
        %s863 = scalar_lea.sflag [#allocation9], %s862
        %s864 = sand.u32 %s187, 1
        %s865 = smul.addr %s864, 4
        %s866 = scalar_lea.vmem [#allocation10], %s865
        %p867 = pneg %p200
        %p868 = pneg %p197
        %s869 = sand.u32 %s47, 1
        %s870 = scalar_lea.sflag [#allocation12], %s869
        %s871 = sand.u32 %s217, 1
        %s872 = smul.addr %s871, 4
        %s873 = scalar_lea.vmem [#allocation11], %s872
        %p874 = pneg %p230
        %p875 = pneg %p227
        %p876 = pneg %p251
        %p877 = pneg %p248
        %p878 = pneg %p272
        %p879 = pneg %p269
        %p880 = pneg %p293
        %p881 = pneg %p290
        %p882 = pneg %p314
        %p883 = pneg %p311
        %p884 = pneg %p335
        %p885 = pneg %p332
        %p886 = pneg %p356
        %p887 = pneg %p353
        %p888 = pneg %p377
        %p889 = pneg %p374
        %p890 = pneg %p398
        %p891 = pneg %p395
        %p892 = pneg %p419
        %p893 = pneg %p416
        %p894 = pneg %p440
        %p895 = pneg %p437
        %p896 = pneg %p468
        %p897 = pneg %p465
        %s898 = sand.u32 %s455, 1
        %s899 = scalar_lea.sflag [#allocation4], %s898
        %s900 = sand.u32 %s455, 1
        %s901 = smul.addr %s900, 4
        %s902 = scalar_lea.vmem [#allocation28], %s901
        %s903 = sadd.s32 %s52, 1
        %s904 = sadd.s32 %s52, 2
        %s905 = sadd.s32 %s52, 1
        %s906 = sadd.s32 %s52, 2
        %v908 = vld [vmem:[%s753] sm:$0xf]
        %v909 = vld [vmem:[%s744] sm:$0xf]
        %v910 = vld [vmem:[%s762] sm:$0xf]
        %v911 = vpack.c.bf16 %v909, %v909
        %v912 = vpack.c.bf16 %v908, %v908
        %v913 = vpack.c.bf16 %v910, %v910
        %v914 = vld [vmem:[%s771] sm:$0xf]
        %v915 = vld [vmem:[%s780] sm:$0xf]
        %v916 = vld [vmem:[%s789] sm:$0xf]
        %v917 = vlaneseq
        %v918 = vand.u32 %v917, 127
        %v919 = vadd.s32 %v918, 128
        %v920 = vadd.s32 %v918, 256
        %s921 = smul.u32 %s52, 128
        %s922 = ssub.s32 %s921, 128
        %v923 = vstv %s922
        %v924 = vadd.s32 %v918, %v923
        %v925 = vadd.s32 %v919, %v923
        %v926 = vadd.s32 %v920, %v923
        %vm927 = vcmp.ge.s32.totalorder %v924, 0
        %vm928 = vcmp.ge.s32.totalorder %v925, 0
        %vm929 = vcmp.ge.s32.totalorder %v926, 0
        %vm930 = vcmp.lt.s32.totalorder %v924, 16
        %vm931 = vcmp.lt.s32.totalorder %v925, 16
        %vm932 = vcmp.lt.s32.totalorder %v926, 16
        %vm933 = vmand %vm927, %vm930
        %vm934 = vmand %vm928, %vm931
        %vm935 = vmand %vm929, %vm932
        %v936 = vstv %s921
        %v937 = vadd.s32 %v918, %v936
        %vm938 = vcmp.lt.s32.totalorder %v937, 16
        %v939 = vld [vmem:[#allocation13] sm:$0xf]
        %v940 = vld [vmem:[#allocation13 + $0x4] sm:$0xf]
        %v941 = vld [vmem:[#allocation13 + $0x8] sm:$0xf]
        %v942 = vld [vmem:[#allocation13 + $0xc] sm:$0xf]
        %v943 = vld [vmem:[#allocation14] sm:$0xff]
        %v944 = vld [vmem:[#allocation14 + $0x8] sm:$0xff]
        %v945 = vld [vmem:[#allocation14 + $0x10] sm:$0xff]
        %v946 = vld [vmem:[#allocation14 + $0x18] sm:$0xff]
        %948 = vset.pattern.permute.xlu0 0
        %949 = vperm.xlu0 %948, %v943
        %v950 = vpop.permute.xlu0 %949
        %953 = vset.pattern.permute.xlu0 0
        %954 = vperm.xlu0 %953, %v944
        %v955 = vpop.permute.xlu0 %954
        %958 = vset.pattern.permute.xlu0 0
        %959 = vperm.xlu0 %958, %v945
        %v960 = vpop.permute.xlu0 %959
        %963 = vset.pattern.permute.xlu0 0
        %964 = vperm.xlu0 %963, %v946
        %v965 = vpop.permute.xlu0 %964
        %v971 = vunpack.c.l.b16 %v939
        %v972 = vunpack.c.l.b16 %v940
        %v973 = vunpack.c.l.b16 %v941
        %v974 = vunpack.c.l.b16 %v942
        %v975 = vpack.c.b16 %v972, %v971
        %v976 = vpack.c.b16 %v974, %v973
        %vm977 = vcmask 31744
        %v979 = vsel %vm977, %v975, 0
        %v982 = vsel %vm977, %v976, 0
        %vm984 = vcmask 1041408
        %v986 = vsel %vm984, %v911, 0
        %v989 = vsel %vm984, %v912, 0
        %v992 = vsel %vm984, %v913, 0
        %994 = vmatprep.subr.bf16.mxu0 %v989
        %995 = vmatpush1.bf16.msra.mxu0 %v986
        %996 = vmatprep.subr.bf16.mxu0 0
        %997 = vmatpush1.bf16.msra.mxu0 0
        %998 = vmatprep.subr.bf16.mxu0 0
        %999 = vmatpush1.bf16.msra.mxu0 0
        %1000 = vmatprep.subr.bf16.mxu0 0
        %1001 = vmatpush1.bf16.msra.mxu0 0
        %1002 = vmatprep.subr.bf16.mxu0 0
        %1003 = vmatpush1.bf16.msra.mxu0 0
        %1004 = vmatprep.subr.bf16.mxu0 0
        %1005 = vmatpush1.bf16.msra.mxu0 0
        %1006 = vmatprep.subr.bf16.mxu0 0
        %1007 = vmatpush1.bf16.msra.mxu0 0
        %1008 = vmatprep.subr.bf16.mxu0 0
        %1009 = vmatpush1.bf16.msra.mxu0 0
        %1010 = vmatprep.subr.bf16.mxu0 0
        %1011 = vmatpush1.bf16.msra.mxu0 0
        %1012 = vmatprep.subr.bf16.mxu0 0
        %1013 = vmatpush1.bf16.msra.mxu0 0
        %1014 = vmatprep.subr.bf16.mxu0 0
        %1015 = vmatpush1.bf16.msra.mxu0 0
        %1016 = vmatprep.subr.bf16.mxu0 0
        %1017 = vmatpush1.bf16.msra.mxu0 0
        %1018 = vmatprep.subr.bf16.mxu0 0
        %1019 = vmatpush1.bf16.msra.mxu0 0
        %1020 = vmatprep.subr.bf16.mxu0 0
        %1021 = vmatpush1.bf16.msra.mxu0 0
        %1022 = vmatprep.subr.bf16.mxu0 0
        %1023 = vmatpush1.bf16.msra.mxu0 0
        %1024 = vmatprep.subr.bf16.mxu0 0
        %1025 = vmatpush1.bf16.msra.mxu0 0
        %1026 = vmatprep.mubr.bf16.mxu0 0
        %1027 = vmatmul.mubr.bf16.gmra.mrb[0].mxu0 %v979
        %v1028 = vpop.f32.mrb[0].mxu0
        %v1029 = vadd.f32 %v950, %v1028
        %v1030 = vpop.f32.mrb[0].mxu0
        %v1031 = vadd.f32 %v950, %v1030
        %v1032 = vpop.f32.mrb[0].mxu0
        %v1033 = vadd.f32 %v955, %v1032
        %v1034 = vpop.f32.mrb[0].mxu0
        %v1035 = vadd.f32 %v955, %v1034
        %1036 = vmatprep.mubr.bf16.mxu0 0
        %1037 = vmatmul.mubr.bf16.gmra.mrb[0].mxu0 %v982
        %v1038 = vpop.f32.mrb[0].mxu0
        %v1039 = vadd.f32 %v960, %v1038
        %v1040 = vpop.f32.mrb[0].mxu0
        %v1041 = vadd.f32 %v960, %v1040
        %v1042 = vpop.f32.mrb[0].mxu0
        %v1043 = vadd.f32 %v965, %v1042
        %v1044 = vpop.f32.mrb[0].mxu0
        %v1045 = vadd.f32 %v965, %v1044
        %1046 = vdwg.mxu0
        %1047 = vmatprep.subr.bf16.mxu0 0
        %1048 = vmatpush1.bf16.msra.mxu0 %v992
        %1049 = vmatprep.subr.bf16.mxu0 0
        %1050 = vmatpush1.bf16.msra.mxu0 0
        %1051 = vmatprep.subr.bf16.mxu0 0
        %1052 = vmatpush1.bf16.msra.mxu0 0
        %1053 = vmatprep.subr.bf16.mxu0 0
        %1054 = vmatpush1.bf16.msra.mxu0 0
        %1055 = vmatprep.subr.bf16.mxu0 0
        %1056 = vmatpush1.bf16.msra.mxu0 0
        %1057 = vmatprep.subr.bf16.mxu0 0
        %1058 = vmatpush1.bf16.msra.mxu0 0
        %1059 = vmatprep.subr.bf16.mxu0 0
        %1060 = vmatpush1.bf16.msra.mxu0 0
        %1061 = vmatprep.subr.bf16.mxu0 0
        %1062 = vmatpush1.bf16.msra.mxu0 0
        %1063 = vmatprep.subr.bf16.mxu0 0
        %1064 = vmatpush1.bf16.msra.mxu0 0
        %1065 = vmatprep.subr.bf16.mxu0 0
        %1066 = vmatpush1.bf16.msra.mxu0 0
        %1067 = vmatprep.subr.bf16.mxu0 0
        %1068 = vmatpush1.bf16.msra.mxu0 0
        %1069 = vmatprep.subr.bf16.mxu0 0
        %1070 = vmatpush1.bf16.msra.mxu0 0
        %1071 = vmatprep.subr.bf16.mxu0 0
        %1072 = vmatpush1.bf16.msra.mxu0 0
        %1073 = vmatprep.subr.bf16.mxu0 0
        %1074 = vmatpush1.bf16.msra.mxu0 0
        %1075 = vmatprep.subr.bf16.mxu0 0
        %1076 = vmatpush1.bf16.msra.mxu0 0
        %1077 = vmatprep.subr.bf16.mxu0 0
        %1078 = vmatpush1.bf16.msra.mxu0 0
        %1079 = vmatprep.mubr.bf16.mxu0 0
        %1080 = vmatmul.mubr.bf16.gmra.mrb[0].mxu0 %v979
        %v1081 = vpop.f32.mrb[0].mxu0
        %v1082 = vadd.f32 %v950, %v1081
        %v1083 = vpop.f32.mrb[0].mxu0
        %v1084 = vpop.f32.mrb[0].mxu0
        %v1085 = vadd.f32 %v955, %v1084
        %v1086 = vpop.f32.mrb[0].mxu0
        %1087 = vmatprep.mubr.bf16.mxu0 0
        %1088 = vmatmul.mubr.bf16.gmra.mrb[0].mxu0 %v982
        %v1089 = vpop.f32.mrb[0].mxu0
        %v1090 = vadd.f32 %v960, %v1089
        %v1091 = vpop.f32.mrb[0].mxu0
        %v1092 = vpop.f32.mrb[0].mxu0
        %v1093 = vadd.f32 %v965, %v1092
        %v1094 = vpop.f32.mrb[0].mxu0
        %1095 = vdwg.mxu0
        %v1096 = vsel %vm933, 1, 0
        %v1097 = vsel %vm934, 1, 0
        %v1098 = vsel %vm935, 1, 0
        %vm1099 = vcmp.eq.s32.totalorder %v1096, 1
        %vm1100 = vcmp.eq.s32.totalorder %v1097, 1
        %vm1101 = vcmp.eq.s32.totalorder %v1098, 1
        %v1102 = vsel %vm1099, %v1029, 0.0
        %v1103 = vsel %vm1100, %v1031, 0.0
        %v1104 = vsel %vm1101, %v1082, 0.0
        %v1105 = vsel %vm1099, %v1033, 0.0
        %v1106 = vsel %vm1100, %v1035, 0.0
        %v1107 = vsel %vm1101, %v1085, 0.0
        %v1108 = vsel %vm1099, %v1039, 0.0
        %v1109 = vsel %vm1100, %v1041, 0.0
        %v1110 = vsel %vm1101, %v1090, 0.0
        %v1111 = vsel %vm1099, %v1043, 0.0
        %v1112 = vsel %vm1100, %v1045, 0.0
        %v1113 = vsel %vm1101, %v1093, 0.0
        %v1114 = vpack.c.bf16 %v1105, %v1102
        %v1115 = vpack.c.bf16 %v1106, %v1103
        %v1116 = vpack.c.bf16 %v1107, %v1104
        %v1117 = vpack.c.bf16 %v1111, %v1108
        %v1118 = vpack.c.bf16 %v1112, %v1109
        %v1119 = vpack.c.bf16 %v1113, %v1110
        %1126 = vrot.lane.b32.xlu0 %v1114, 1
        %v1127 = vpop.permute.xlu0 %1126
        %1128 = vrot.lane.b32.xlu0 %v1115, 1
        %v1129 = vpop.permute.xlu0 %1128
        %1130 = vrot.lane.b32.xlu0 %v1116, 1
        %v1131 = vpop.permute.xlu0 %1130
        %1132 = vrot.lane.b32.xlu0 %v1117, 1
        %v1133 = vpop.permute.xlu0 %1132
        %1134 = vrot.lane.b32.xlu0 %v1118, 1
        %v1135 = vpop.permute.xlu0 %1134
        %1136 = vrot.lane.b32.xlu0 %v1119, 1
        %v1137 = vpop.permute.xlu0 %1136
        %vm1138 = vcmask 7168
        %v1139 = vsel %vm1138, %v1127, %v1129
        %v1140 = vsel %vm1138, %v1129, %v1131
        %v1141 = vsel %vm1138, %v1133, %v1135
        %v1142 = vsel %vm1138, %v1135, %v1137
        %vm1147 = vcmask 7168
        %v1150 = vsel %vm1147, 0, %v1127
        %v1153 = vsel %vm1147, 0, %v1133
        %1155 = vrot.lane.b32.xlu0 %v1114, 127
        %v1156 = vpop.permute.xlu0 %1155
        %1157 = vrot.lane.b32.xlu0 %v1115, 127
        %v1158 = vpop.permute.xlu0 %1157
        %1159 = vrot.lane.b32.xlu0 %v1116, 127
        %v1160 = vpop.permute.xlu0 %1159
        %1161 = vrot.lane.b32.xlu0 %v1117, 127
        %v1162 = vpop.permute.xlu0 %1161
        %1163 = vrot.lane.b32.xlu0 %v1118, 127
        %v1164 = vpop.permute.xlu0 %1163
        %1165 = vrot.lane.b32.xlu0 %v1119, 127
        %v1166 = vpop.permute.xlu0 %1165
        %vm1167 = vcmask 1039360
        %v1168 = vsel %vm1167, %v1156, %v1158
        %v1169 = vsel %vm1167, %v1158, %v1160
        %v1170 = vsel %vm1167, %v1162, %v1164
        %v1171 = vsel %vm1167, %v1164, %v1166
        %vm1176 = vcmask 1039360
        %v1178 = vsel %vm1176, %v1160, 0
        %v1181 = vsel %vm1176, %v1166, 0
        %v1183 = vld [vmem:[#allocation17] sm:$0xf]
        %v1184 = vld [vmem:[#allocation17 + $0x4] sm:$0xf]
        %v1185 = vld [vmem:[#allocation17 + $0x8] sm:$0xf]
        %v1186 = vld [vmem:[#allocation17 + $0xc] sm:$0xf]
        %v1187 = vld [vmem:[#allocation17 + $0x10] sm:$0xf]
        %v1188 = vld [vmem:[#allocation17 + $0x14] sm:$0xf]
        %v1189 = vld [vmem:[#allocation17 + $0x18] sm:$0xf]
        %v1190 = vld [vmem:[#allocation17 + $0x1c] sm:$0xf]
        %v1191 = vld [vmem:[#allocation16] sm:$0xff]
        %v1192 = vld [vmem:[#allocation16 + $0x8] sm:$0xff]
        %v1193 = vld [vmem:[#allocation16 + $0x10] sm:$0xff]
        %v1194 = vld [vmem:[#allocation16 + $0x18] sm:$0xff]
        %v1195 = vld [vmem:[#allocation16 + $0x20] sm:$0xff]
        %v1196 = vld [vmem:[#allocation16 + $0x28] sm:$0xff]
        %v1197 = vld [vmem:[#allocation16 + $0x30] sm:$0xff]
        %v1198 = vld [vmem:[#allocation16 + $0x38] sm:$0xff]
        %1200 = vset.pattern.permute.xlu0 0
        %1201 = vperm.xlu0 %1200, %v1191
        %v1202 = vpop.permute.xlu0 %1201
        %1205 = vset.pattern.permute.xlu0 0
        %1206 = vperm.xlu0 %1205, %v1192
        %v1207 = vpop.permute.xlu0 %1206
        %1210 = vset.pattern.permute.xlu0 0
        %1211 = vperm.xlu0 %1210, %v1193
        %v1212 = vpop.permute.xlu0 %1211
        %1215 = vset.pattern.permute.xlu0 0
        %1216 = vperm.xlu0 %1215, %v1194
        %v1217 = vpop.permute.xlu0 %1216
        %1220 = vset.pattern.permute.xlu0 0
        %1221 = vperm.xlu0 %1220, %v1195
        %v1222 = vpop.permute.xlu0 %1221
        %1225 = vset.pattern.permute.xlu0 0
        %1226 = vperm.xlu0 %1225, %v1196
        %v1227 = vpop.permute.xlu0 %1226
        %1230 = vset.pattern.permute.xlu0 0
        %1231 = vperm.xlu0 %1230, %v1197
        %v1232 = vpop.permute.xlu0 %1231
        %1235 = vset.pattern.permute.xlu0 0
        %1236 = vperm.xlu0 %1235, %v1198
        %v1237 = vpop.permute.xlu0 %1236
        %v1247 = vunpack.c.l.b16 %v1183
        %v1248 = vunpack.c.l.b16 %v1184
        %v1249 = vunpack.c.l.b16 %v1185
        %v1250 = vunpack.c.l.b16 %v1186
        %v1251 = vunpack.c.l.b16 %v1187
        %v1252 = vunpack.c.l.b16 %v1188
        %v1253 = vunpack.c.l.b16 %v1189
        %v1254 = vunpack.c.l.b16 %v1190
        %v1255 = vpack.c.b16 %v1248, %v1247
        %v1256 = vpack.c.b16 %v1250, %v1249
        %v1257 = vpack.c.b16 %v1252, %v1251
        %v1258 = vpack.c.b16 %v1254, %v1253
        %vm1259 = vcmask 850944
        %v1261 = vsel %vm1259, %v1255, 0
        %v1264 = vsel %vm1259, %v1256, 0
        %v1267 = vsel %vm1259, %v1257, 0
        %v1270 = vsel %vm1259, %v1258, 0
        %vm1272 = vcmask 1043456
        %v1274 = vsel %vm1272, %v914, 0
        %v1277 = vsel %vm1272, %v915, 0
        %v1280 = vsel %vm1272, %v916, 0
        %1282 = vmatprep.subr.bf16.mxu0 %v1139
        %1283 = vmatpush1.bf16.msra.mxu0 %v1150
        %1284 = vmatprep.subr.bf16.mxu0 %v1141
        %1285 = vmatpush1.bf16.msra.mxu0 %v1153
        %1286 = vmatprep.subr.bf16.mxu0 %v1115
        %1287 = vmatpush1.bf16.msra.mxu0 %v1114
        %1288 = vmatprep.subr.bf16.mxu0 %v1118
        %1289 = vmatpush1.bf16.msra.mxu0 %v1117
        %1290 = vmatprep.subr.bf16.mxu0 %v1169
        %1291 = vmatpush1.bf16.msra.mxu0 %v1168
        %1292 = vmatprep.subr.bf16.mxu0 %v1171
        %1293 = vmatpush1.bf16.msra.mxu0 %v1170
        %1294 = vmatprep.subr.bf16.mxu0 %v1277
        %1295 = vmatpush1.bf16.msra.mxu0 %v1274
        %1296 = vmatprep.subr.bf16.mxu0 0
        %1297 = vmatpush1.bf16.msra.mxu0 0
        %1298 = vmatprep.subr.bf16.mxu0 0
        %1299 = vmatpush1.bf16.msra.mxu0 0
        %1300 = vmatprep.subr.bf16.mxu0 0
        %1301 = vmatpush1.bf16.msra.mxu0 0
        %1302 = vmatprep.subr.bf16.mxu0 0
        %1303 = vmatpush1.bf16.msra.mxu0 0
        %1304 = vmatprep.subr.bf16.mxu0 0
        %1305 = vmatpush1.bf16.msra.mxu0 0
        %1306 = vmatprep.subr.bf16.mxu0 0
        %1307 = vmatpush1.bf16.msra.mxu0 0
        %1308 = vmatprep.subr.bf16.mxu0 0
        %1309 = vmatpush1.bf16.msra.mxu0 0
        %1310 = vmatprep.subr.bf16.mxu0 0
        %1311 = vmatpush1.bf16.msra.mxu0 0
        %1312 = vmatprep.subr.bf16.mxu0 0
        %1313 = vmatpush1.bf16.msra.mxu0 0
        %1314 = vmatprep.mubr.bf16.mxu0 0
        %1315 = vmatmul.mubr.bf16.gmra.mrb[0].mxu0 %v1261
        %v1316 = vpop.f32.mrb[0].mxu0
        %v1317 = vadd.f32 %v1202, %v1316
        %v1318 = vpop.f32.mrb[0].mxu0
        %v1319 = vadd.f32 %v1202, %v1318
        %v1320 = vpop.f32.mrb[0].mxu0
        %v1321 = vadd.f32 %v1207, %v1320
        %v1322 = vpop.f32.mrb[0].mxu0
        %v1323 = vadd.f32 %v1207, %v1322
        %1324 = vmatprep.mubr.bf16.mxu0 0
        %1325 = vmatmul.mubr.bf16.gmra.mrb[0].mxu0 %v1264
        %v1326 = vpop.f32.mrb[0].mxu0
        %v1327 = vadd.f32 %v1212, %v1326
        %v1328 = vpop.f32.mrb[0].mxu0
        %v1329 = vadd.f32 %v1212, %v1328
        %v1330 = vpop.f32.mrb[0].mxu0
        %v1331 = vadd.f32 %v1217, %v1330
        %v1332 = vpop.f32.mrb[0].mxu0
        %v1333 = vadd.f32 %v1217, %v1332
        %1334 = vmatprep.mubr.bf16.mxu0 0
        %1335 = vmatmul.mubr.bf16.gmra.mrb[0].mxu0 %v1267
        %v1336 = vpop.f32.mrb[0].mxu0
        %v1337 = vadd.f32 %v1222, %v1336
        %v1338 = vpop.f32.mrb[0].mxu0
        %v1339 = vadd.f32 %v1222, %v1338
        %v1340 = vpop.f32.mrb[0].mxu0
        %v1341 = vadd.f32 %v1227, %v1340
        %v1342 = vpop.f32.mrb[0].mxu0
        %v1343 = vadd.f32 %v1227, %v1342
        %1344 = vmatprep.mubr.bf16.mxu0 0
        %1345 = vmatmul.mubr.bf16.gmra.mrb[0].mxu0 %v1270
        %v1346 = vpop.f32.mrb[0].mxu0
        %v1347 = vadd.f32 %v1232, %v1346
        %v1348 = vpop.f32.mrb[0].mxu0
        %v1349 = vadd.f32 %v1232, %v1348
        %v1350 = vpop.f32.mrb[0].mxu0
        %v1351 = vadd.f32 %v1237, %v1350
        %v1352 = vpop.f32.mrb[0].mxu0
        %v1353 = vadd.f32 %v1237, %v1352
        %1354 = vdwg.mxu0
        %1355 = vmatprep.subr.bf16.mxu0 0
        %1356 = vmatpush1.bf16.msra.mxu0 %v1140
        %1357 = vmatprep.subr.bf16.mxu0 0
        %1358 = vmatpush1.bf16.msra.mxu0 %v1142
        %1359 = vmatprep.subr.bf16.mxu0 0
        %1360 = vmatpush1.bf16.msra.mxu0 %v1116
        %1361 = vmatprep.subr.bf16.mxu0 0
        %1362 = vmatpush1.bf16.msra.mxu0 %v1119
        %1363 = vmatprep.subr.bf16.mxu0 0
        %1364 = vmatpush1.bf16.msra.mxu0 %v1178
        %1365 = vmatprep.subr.bf16.mxu0 0
        %1366 = vmatpush1.bf16.msra.mxu0 %v1181
        %1367 = vmatprep.subr.bf16.mxu0 0
        %1368 = vmatpush1.bf16.msra.mxu0 %v1280
        %1369 = vmatprep.subr.bf16.mxu0 0
        %1370 = vmatpush1.bf16.msra.mxu0 0
        %1371 = vmatprep.subr.bf16.mxu0 0
        %1372 = vmatpush1.bf16.msra.mxu0 0
        %1373 = vmatprep.subr.bf16.mxu0 0
        %1374 = vmatpush1.bf16.msra.mxu0 0
        %1375 = vmatprep.subr.bf16.mxu0 0
        %1376 = vmatpush1.bf16.msra.mxu0 0
        %1377 = vmatprep.subr.bf16.mxu0 0
        %1378 = vmatpush1.bf16.msra.mxu0 0
        %1379 = vmatprep.subr.bf16.mxu0 0
        %1380 = vmatpush1.bf16.msra.mxu0 0
        %1381 = vmatprep.subr.bf16.mxu0 0
        %1382 = vmatpush1.bf16.msra.mxu0 0
        %1383 = vmatprep.subr.bf16.mxu0 0
        %1384 = vmatpush1.bf16.msra.mxu0 0
        %1385 = vmatprep.subr.bf16.mxu0 0
        %1386 = vmatpush1.bf16.msra.mxu0 0
        %1387 = vmatprep.mubr.bf16.mxu0 0
        %1388 = vmatmul.mubr.bf16.gmra.mrb[0].mxu0 %v1261
        %v1389 = vpop.f32.mrb[0].mxu0
        %v1390 = vadd.f32 %v1202, %v1389
        %v1391 = vpop.f32.mrb[0].mxu0
        %v1392 = vpop.f32.mrb[0].mxu0
        %v1393 = vadd.f32 %v1207, %v1392
        %v1394 = vpop.f32.mrb[0].mxu0
        %1395 = vmatprep.mubr.bf16.mxu0 0
        %1396 = vmatmul.mubr.bf16.gmra.mrb[0].mxu0 %v1264
        %v1397 = vpop.f32.mrb[0].mxu0
        %v1398 = vadd.f32 %v1212, %v1397
        %v1399 = vpop.f32.mrb[0].mxu0
        %v1400 = vpop.f32.mrb[0].mxu0
        %v1401 = vadd.f32 %v1217, %v1400
        %v1402 = vpop.f32.mrb[0].mxu0
        %1403 = vmatprep.mubr.bf16.mxu0 0
        %1404 = vmatmul.mubr.bf16.gmra.mrb[0].mxu0 %v1267
        %v1405 = vpop.f32.mrb[0].mxu0
        %v1406 = vadd.f32 %v1222, %v1405
        %v1407 = vpop.f32.mrb[0].mxu0
        %v1408 = vpop.f32.mrb[0].mxu0
        %v1409 = vadd.f32 %v1227, %v1408
        %v1410 = vpop.f32.mrb[0].mxu0
        %1411 = vmatprep.mubr.bf16.mxu0 0
        %1412 = vmatmul.mubr.bf16.gmra.mrb[0].mxu0 %v1270
        %v1413 = vpop.f32.mrb[0].mxu0
        %v1414 = vadd.f32 %v1232, %v1413
        %v1415 = vpop.f32.mrb[0].mxu0
        %v1416 = vpop.f32.mrb[0].mxu0
        %v1417 = vadd.f32 %v1237, %v1416
        %v1418 = vpop.f32.mrb[0].mxu0
        %1419 = vdwg.mxu0
        %v1420 = vtanh.pop %v1317
        %v1421 = vtanh.pop %v1319
        %v1422 = vtanh.pop %v1390
        %v1423 = vtanh.pop %v1321
        %v1424 = vtanh.pop %v1323
        %v1425 = vtanh.pop %v1393
        %v1426 = vtanh.pop %v1327
        %v1427 = vtanh.pop %v1329
        %v1428 = vtanh.pop %v1398
        %v1429 = vtanh.pop %v1331
        %v1430 = vtanh.pop %v1333
        %v1431 = vtanh.pop %v1401
        %v1432 = vxor.u32 %v1337, 2147483648
        %v1433 = vxor.u32 %v1339, 2147483648
        %v1434 = vxor.u32 %v1406, 2147483648
        %v1435 = vxor.u32 %v1341, 2147483648
        %v1436 = vxor.u32 %v1343, 2147483648
        %v1437 = vxor.u32 %v1409, 2147483648
        %v1438 = vxor.u32 %v1347, 2147483648
        %v1439 = vxor.u32 %v1349, 2147483648
        %v1440 = vxor.u32 %v1414, 2147483648
        %v1441 = vxor.u32 %v1351, 2147483648
        %v1442 = vxor.u32 %v1353, 2147483648
        %v1443 = vxor.u32 %v1417, 2147483648
        %v1444 = vmul.f32 %v1432, 1.442695
        %v1445 = vpow.pop %v1444
        %v1446 = vmul.f32 %v1433, 1.442695
        %v1447 = vpow.pop %v1446
        %v1448 = vmul.f32 %v1434, 1.442695
        %v1449 = vpow.pop %v1448
        %v1450 = vmul.f32 %v1435, 1.442695
        %v1451 = vpow.pop %v1450
        %v1452 = vmul.f32 %v1436, 1.442695
        %v1453 = vpow.pop %v1452
        %v1454 = vmul.f32 %v1437, 1.442695
        %v1455 = vpow.pop %v1454
        %v1456 = vmul.f32 %v1438, 1.442695
        %v1457 = vpow.pop %v1456
        %v1458 = vmul.f32 %v1439, 1.442695
        %v1459 = vpow.pop %v1458
        %v1460 = vmul.f32 %v1440, 1.442695
        %v1461 = vpow.pop %v1460
        %v1462 = vmul.f32 %v1441, 1.442695
        %v1463 = vpow.pop %v1462
        %v1464 = vmul.f32 %v1442, 1.442695
        %v1465 = vpow.pop %v1464
        %v1466 = vmul.f32 %v1443, 1.442695
        %v1467 = vpow.pop %v1466
        %v1468 = vadd.f32 %v1445, 1.0
        %v1469 = vadd.f32 %v1447, 1.0
        %v1470 = vadd.f32 %v1449, 1.0
        %v1471 = vadd.f32 %v1451, 1.0
        %v1472 = vadd.f32 %v1453, 1.0
        %v1473 = vadd.f32 %v1455, 1.0
        %v1474 = vadd.f32 %v1457, 1.0
        %v1475 = vadd.f32 %v1459, 1.0
        %v1476 = vadd.f32 %v1461, 1.0
        %v1477 = vadd.f32 %v1463, 1.0
        %v1478 = vadd.f32 %v1465, 1.0
        %v1479 = vadd.f32 %v1467, 1.0
        %v1480 = vrcp.pop %v1468
        %v1481 = vmul.f32 1.0, %v1480
        %v1482 = vrcp.pop %v1469
        %v1483 = vmul.f32 1.0, %v1482
        %v1484 = vrcp.pop %v1470
        %v1485 = vmul.f32 1.0, %v1484
        %v1486 = vrcp.pop %v1471
        %v1487 = vmul.f32 1.0, %v1486
        %v1488 = vrcp.pop %v1472
        %v1489 = vmul.f32 1.0, %v1488
        %v1490 = vrcp.pop %v1473
        %v1491 = vmul.f32 1.0, %v1490
        %v1492 = vrcp.pop %v1474
        %v1493 = vmul.f32 1.0, %v1492
        %v1494 = vrcp.pop %v1475
        %v1495 = vmul.f32 1.0, %v1494
        %v1496 = vrcp.pop %v1476
        %v1497 = vmul.f32 1.0, %v1496
        %v1498 = vrcp.pop %v1477
        %v1499 = vmul.f32 1.0, %v1498
        %v1500 = vrcp.pop %v1478
        %v1501 = vmul.f32 1.0, %v1500
        %v1502 = vrcp.pop %v1479
        %v1503 = vmul.f32 1.0, %v1502
        %v1504 = vmul.f32 %v1420, %v1481
        %v1505 = vmul.f32 %v1421, %v1483
        %v1506 = vmul.f32 %v1422, %v1485
        %v1507 = vmul.f32 %v1423, %v1487
        %v1508 = vmul.f32 %v1424, %v1489
        %v1509 = vmul.f32 %v1425, %v1491
        %v1510 = vmul.f32 %v1426, %v1493
        %v1511 = vmul.f32 %v1427, %v1495
        %v1512 = vmul.f32 %v1428, %v1497
        %v1513 = vmul.f32 %v1429, %v1499
        %v1514 = vmul.f32 %v1430, %v1501
        %v1515 = vmul.f32 %v1431, %v1503
        %v1516 = vpack.c.bf16 %v1507, %v1504
        %v1517 = vpack.c.bf16 %v1508, %v1505
        %v1518 = vpack.c.bf16 %v1509, %v1506
        %v1519 = vpack.c.bf16 %v1513, %v1510
        %v1520 = vpack.c.bf16 %v1514, %v1511
        %v1521 = vpack.c.bf16 %v1515, %v1512
        %v1522 = vld [vmem:[#allocation19] sm:$0xf]
        %v1523 = vld [vmem:[#allocation19 + $0x4] sm:$0xf]
        %v1524 = vld [vmem:[#allocation19 + $0x8] sm:$0xf]
        %v1525 = vld [vmem:[#allocation19 + $0xc] sm:$0xf]
        %v1526 = vld [vmem:[#allocation19 + $0x10] sm:$0xf]
        %v1527 = vld [vmem:[#allocation19 + $0x14] sm:$0xf]
        %v1528 = vld [vmem:[#allocation19 + $0x18] sm:$0xf]
        %v1529 = vld [vmem:[#allocation19 + $0x1c] sm:$0xf]
        %v1530 = vld [vmem:[#allocation20] sm:$0xff]
        %v1531 = vld [vmem:[#allocation20 + $0x8] sm:$0xff]
        %v1532 = vld [vmem:[#allocation20 + $0x10] sm:$0xff]
        %v1533 = vld [vmem:[#allocation20 + $0x18] sm:$0xff]
        %v1534 = vld [vmem:[#allocation20 + $0x20] sm:$0xff]
        %v1535 = vld [vmem:[#allocation20 + $0x28] sm:$0xff]
        %v1536 = vld [vmem:[#allocation20 + $0x30] sm:$0xff]
        %v1537 = vld [vmem:[#allocation20 + $0x38] sm:$0xff]
        %1539 = vset.pattern.permute.xlu0 0
        %1540 = vperm.xlu0 %1539, %v1530
        %v1541 = vpop.permute.xlu0 %1540
        %1544 = vset.pattern.permute.xlu0 0
        %1545 = vperm.xlu0 %1544, %v1531
        %v1546 = vpop.permute.xlu0 %1545
        %1549 = vset.pattern.permute.xlu0 0
        %1550 = vperm.xlu0 %1549, %v1532
        %v1551 = vpop.permute.xlu0 %1550
        %1554 = vset.pattern.permute.xlu0 0
        %1555 = vperm.xlu0 %1554, %v1533
        %v1556 = vpop.permute.xlu0 %1555
        %1559 = vset.pattern.permute.xlu0 0
        %1560 = vperm.xlu0 %1559, %v1534
        %v1561 = vpop.permute.xlu0 %1560
        %1564 = vset.pattern.permute.xlu0 0
        %1565 = vperm.xlu0 %1564, %v1535
        %v1566 = vpop.permute.xlu0 %1565
        %1569 = vset.pattern.permute.xlu0 0
        %1570 = vperm.xlu0 %1569, %v1536
        %v1571 = vpop.permute.xlu0 %1570
        %1574 = vset.pattern.permute.xlu0 0
        %1575 = vperm.xlu0 %1574, %v1537
        %v1576 = vpop.permute.xlu0 %1575
        %v1586 = vunpack.c.l.b16 %v1522
        %v1587 = vunpack.c.l.b16 %v1523
        %v1588 = vunpack.c.l.b16 %v1524
        %v1589 = vunpack.c.l.b16 %v1525
        %v1590 = vunpack.c.l.b16 %v1526
        %v1591 = vunpack.c.l.b16 %v1527
        %v1592 = vunpack.c.l.b16 %v1528
        %v1593 = vunpack.c.l.b16 %v1529
        %v1594 = vpack.c.b16 %v1587, %v1586
        %v1595 = vpack.c.b16 %v1589, %v1588
        %v1596 = vpack.c.b16 %v1591, %v1590
        %v1597 = vpack.c.b16 %v1593, %v1592
        %vm1598 = vcmask 261120
        %v1600 = vsel %vm1598, %v1594, 0
        %v1603 = vsel %vm1598, %v1595, 0
        %v1606 = vsel %vm1598, %v1596, 0
        %v1609 = vsel %vm1598, %v1597, 0
        %1611 = vmatprep.subr.bf16.mxu0 %v1517
        %1612 = vmatpush1.bf16.msra.mxu0 %v1516
        %1613 = vmatprep.subr.bf16.mxu0 %v1520
        %1614 = vmatpush1.bf16.msra.mxu0 %v1519
        %1615 = vmatprep.subr.bf16.mxu0 0
        %1616 = vmatpush1.bf16.msra.mxu0 0
        %1617 = vmatprep.subr.bf16.mxu0 0
        %1618 = vmatpush1.bf16.msra.mxu0 0
        %1619 = vmatprep.subr.bf16.mxu0 0
        %1620 = vmatpush1.bf16.msra.mxu0 0
        %1621 = vmatprep.subr.bf16.mxu0 0
        %1622 = vmatpush1.bf16.msra.mxu0 0
        %1623 = vmatprep.subr.bf16.mxu0 0
        %1624 = vmatpush1.bf16.msra.mxu0 0
        %1625 = vmatprep.subr.bf16.mxu0 0
        %1626 = vmatpush1.bf16.msra.mxu0 0
        %1627 = vmatprep.subr.bf16.mxu0 0
        %1628 = vmatpush1.bf16.msra.mxu0 0
        %1629 = vmatprep.subr.bf16.mxu0 0
        %1630 = vmatpush1.bf16.msra.mxu0 0
        %1631 = vmatprep.subr.bf16.mxu0 0
        %1632 = vmatpush1.bf16.msra.mxu0 0
        %1633 = vmatprep.subr.bf16.mxu0 0
        %1634 = vmatpush1.bf16.msra.mxu0 0
        %1635 = vmatprep.subr.bf16.mxu0 0
        %1636 = vmatpush1.bf16.msra.mxu0 0
        %1637 = vmatprep.subr.bf16.mxu0 0
        %1638 = vmatpush1.bf16.msra.mxu0 0
        %1639 = vmatprep.subr.bf16.mxu0 0
        %1640 = vmatpush1.bf16.msra.mxu0 0
        %1641 = vmatprep.subr.bf16.mxu0 0
        %1642 = vmatpush1.bf16.msra.mxu0 0
        %1643 = vmatprep.mubr.bf16.mxu0 0
        %1644 = vmatmul.mubr.bf16.gmra.mrb[0].mxu0 %v1600
        %v1645 = vpop.f32.mrb[0].mxu0
        %v1646 = vadd.f32 %v1541, %v1645
        %v1647 = vpop.f32.mrb[0].mxu0
        %v1648 = vadd.f32 %v1541, %v1647
        %v1649 = vpop.f32.mrb[0].mxu0
        %v1650 = vadd.f32 %v1546, %v1649
        %v1651 = vpop.f32.mrb[0].mxu0
        %v1652 = vadd.f32 %v1546, %v1651
        %1653 = vmatprep.mubr.bf16.mxu0 0
        %1654 = vmatmul.mubr.bf16.gmra.mrb[0].mxu0 %v1603
        %v1655 = vpop.f32.mrb[0].mxu0
        %v1656 = vadd.f32 %v1551, %v1655
        %v1657 = vpop.f32.mrb[0].mxu0
        %v1658 = vadd.f32 %v1551, %v1657
        %v1659 = vpop.f32.mrb[0].mxu0
        %v1660 = vadd.f32 %v1556, %v1659
        %v1661 = vpop.f32.mrb[0].mxu0
        %v1662 = vadd.f32 %v1556, %v1661
        %1663 = vmatprep.mubr.bf16.mxu0 0
        %1664 = vmatmul.mubr.bf16.gmra.mrb[0].mxu0 %v1606
        %v1665 = vpop.f32.mrb[0].mxu0
        %v1666 = vpop.f32.mrb[0].mxu0
        %v1667 = vadd.f32 %v1561, %v1666
        %v1668 = vpop.f32.mrb[0].mxu0
        %v1669 = vpop.f32.mrb[0].mxu0
        %v1670 = vadd.f32 %v1566, %v1669
        %1671 = vmatprep.mubr.bf16.mxu0 0
        %1672 = vmatmul.mubr.bf16.gmra.mrb[0].mxu0 %v1609
        %v1673 = vpop.f32.mrb[0].mxu0
        %v1674 = vpop.f32.mrb[0].mxu0
        %v1675 = vadd.f32 %v1571, %v1674
        %v1676 = vpop.f32.mrb[0].mxu0
        %v1677 = vpop.f32.mrb[0].mxu0
        %v1678 = vadd.f32 %v1576, %v1677
        %1679 = vdwg.mxu0
        %1680 = vmatprep.subr.bf16.mxu0 0
        %1681 = vmatpush1.bf16.msra.mxu0 %v1518
        %1682 = vmatprep.subr.bf16.mxu0 0
        %1683 = vmatpush1.bf16.msra.mxu0 %v1521
        %1684 = vmatprep.subr.bf16.mxu0 0
        %1685 = vmatpush1.bf16.msra.mxu0 0
        %1686 = vmatprep.subr.bf16.mxu0 0
        %1687 = vmatpush1.bf16.msra.mxu0 0
        %1688 = vmatprep.subr.bf16.mxu0 0
        %1689 = vmatpush1.bf16.msra.mxu0 0
        %1690 = vmatprep.subr.bf16.mxu0 0
        %1691 = vmatpush1.bf16.msra.mxu0 0
        %1692 = vmatprep.subr.bf16.mxu0 0
        %1693 = vmatpush1.bf16.msra.mxu0 0
        %1694 = vmatprep.subr.bf16.mxu0 0
        %1695 = vmatpush1.bf16.msra.mxu0 0
        %1696 = vmatprep.subr.bf16.mxu0 0
        %1697 = vmatpush1.bf16.msra.mxu0 0
        %1698 = vmatprep.subr.bf16.mxu0 0
        %1699 = vmatpush1.bf16.msra.mxu0 0
        %1700 = vmatprep.subr.bf16.mxu0 0
        %1701 = vmatpush1.bf16.msra.mxu0 0
        %1702 = vmatprep.subr.bf16.mxu0 0
        %1703 = vmatpush1.bf16.msra.mxu0 0
        %1704 = vmatprep.subr.bf16.mxu0 0
        %1705 = vmatpush1.bf16.msra.mxu0 0
        %1706 = vmatprep.subr.bf16.mxu0 0
        %1707 = vmatpush1.bf16.msra.mxu0 0
        %1708 = vmatprep.subr.bf16.mxu0 0
        %1709 = vmatpush1.bf16.msra.mxu0 0
        %1710 = vmatprep.subr.bf16.mxu0 0
        %1711 = vmatpush1.bf16.msra.mxu0 0
        %1712 = vmatprep.mubr.bf16.mxu0 0
        %1713 = vmatmul.mubr.bf16.gmra.mrb[0].mxu0 %v1600
        %v1714 = vpop.f32.mrb[0].mxu0
        %v1715 = vadd.f32 %v1541, %v1714
        %v1716 = vpop.f32.mrb[0].mxu0
        %v1717 = vpop.f32.mrb[0].mxu0
        %v1718 = vadd.f32 %v1546, %v1717
        %v1719 = vpop.f32.mrb[0].mxu0
        %1720 = vmatprep.mubr.bf16.mxu0 0
        %1721 = vmatmul.mubr.bf16.gmra.mrb[0].mxu0 %v1603
        %v1722 = vpop.f32.mrb[0].mxu0
        %v1723 = vadd.f32 %v1551, %v1722
        %v1724 = vpop.f32.mrb[0].mxu0
        %v1725 = vpop.f32.mrb[0].mxu0
        %v1726 = vadd.f32 %v1556, %v1725
        %v1727 = vpop.f32.mrb[0].mxu0
        %1728 = vmatprep.mubr.bf16.mxu0 0
        %1729 = vmatmul.mubr.bf16.gmra.mrb[0].mxu0 %v1606
        %v1730 = vpop.f32.mrb[0].mxu0
        %v1731 = vpop.f32.mrb[0].mxu0
        %v1732 = vpop.f32.mrb[0].mxu0
        %v1733 = vpop.f32.mrb[0].mxu0
        %1734 = vmatprep.mubr.bf16.mxu0 0
        %1735 = vmatmul.mubr.bf16.gmra.mrb[0].mxu0 %v1609
        %v1736 = vpop.f32.mrb[0].mxu0
        %v1737 = vpop.f32.mrb[0].mxu0
        %v1738 = vpop.f32.mrb[0].mxu0
        %v1739 = vpop.f32.mrb[0].mxu0
        %1740 = vdwg.mxu0
        %v1741 = vadd.f32 %v1029, %v1646
        %v1742 = vadd.f32 %v1031, %v1648
        %v1743 = vadd.f32 %v1082, %v1715
        %v1744 = vadd.f32 %v1033, %v1650
        %v1745 = vadd.f32 %v1035, %v1652
        %v1746 = vadd.f32 %v1085, %v1718
        %v1747 = vadd.f32 %v1039, %v1656
        %v1748 = vadd.f32 %v1041, %v1658
        %v1749 = vadd.f32 %v1090, %v1723
        %v1750 = vadd.f32 %v1043, %v1660
        %v1751 = vadd.f32 %v1045, %v1662
        %v1752 = vadd.f32 %v1093, %v1726
        %v1753 = vadd.f32 %v1667, 0.0
        %v1754 = vadd.f32 %v1670, 0.0
        %v1755 = vadd.f32 %v1675, 0.0
        %v1756 = vadd.f32 %v1678, 0.0
        %v1757 = vsel %vm1099, %v1741, 0.0
        %v1758 = vsel %vm1100, %v1742, 0.0
        %v1759 = vsel %vm1101, %v1743, 0.0
        %v1760 = vsel %vm1099, %v1744, 0.0
        %v1761 = vsel %vm1100, %v1745, 0.0
        %v1762 = vsel %vm1101, %v1746, 0.0
        %v1763 = vsel %vm1099, %v1747, 0.0
        %v1764 = vsel %vm1100, %v1748, 0.0
        %v1765 = vsel %vm1101, %v1749, 0.0
        %v1766 = vsel %vm1099, %v1750, 0.0
        %v1767 = vsel %vm1100, %v1751, 0.0
        %v1768 = vsel %vm1101, %v1752, 0.0
        %v1769 = vpack.c.bf16 %v1760, %v1757
        %v1770 = vpack.c.bf16 %v1761, %v1758
        %v1771 = vpack.c.bf16 %v1762, %v1759
        %v1772 = vpack.c.bf16 %v1766, %v1763
        %v1773 = vpack.c.bf16 %v1767, %v1764
        %v1774 = vpack.c.bf16 %v1768, %v1765
        %1781 = vrot.lane.b32.xlu0 %v1769, 2
        %v1782 = vpop.permute.xlu0 %1781
        %1783 = vrot.lane.b32.xlu0 %v1770, 2
        %v1784 = vpop.permute.xlu0 %1783
        %1785 = vrot.lane.b32.xlu0 %v1771, 2
        %v1786 = vpop.permute.xlu0 %1785
        %1787 = vrot.lane.b32.xlu0 %v1772, 2
        %v1788 = vpop.permute.xlu0 %1787
        %1789 = vrot.lane.b32.xlu0 %v1773, 2
        %v1790 = vpop.permute.xlu0 %1789
        %1791 = vrot.lane.b32.xlu0 %v1774, 2
        %v1792 = vpop.permute.xlu0 %1791
        %vm1793 = vcmask 15360
        %v1794 = vsel %vm1793, %v1782, %v1784
        %v1795 = vsel %vm1793, %v1784, %v1786
        %v1796 = vsel %vm1793, %v1788, %v1790
        %v1797 = vsel %vm1793, %v1790, %v1792
        %vm1802 = vcmask 15360
        %v1804 = vsel %vm1802, 0, %v1782
        %v1807 = vsel %vm1802, 0, %v1788
        %1809 = vrot.lane.b32.xlu0 %v1769, 126
        %v1810 = vpop.permute.xlu0 %1809
        %1811 = vrot.lane.b32.xlu0 %v1770, 126
        %v1812 = vpop.permute.xlu0 %1811
        %1813 = vrot.lane.b32.xlu0 %v1771, 126
        %v1814 = vpop.permute.xlu0 %1813
        %1815 = vrot.lane.b32.xlu0 %v1772, 126
        %v1816 = vpop.permute.xlu0 %1815
        %1817 = vrot.lane.b32.xlu0 %v1773, 126
        %v1818 = vpop.permute.xlu0 %1817
        %1819 = vrot.lane.b32.xlu0 %v1774, 126
        %v1820 = vpop.permute.xlu0 %1819
        %vm1821 = vcmask 1031168
        %v1822 = vsel %vm1821, %v1810, %v1812
        %v1823 = vsel %vm1821, %v1812, %v1814
        %v1824 = vsel %vm1821, %v1816, %v1818
        %v1825 = vsel %vm1821, %v1818, %v1820
        %vm1830 = vcmask 1031168
        %v1832 = vsel %vm1830, %v1814, 0
        %v1835 = vsel %vm1830, %v1820, 0
        %s1837 = scalar_lea.vmem [#allocation17], 32
        %v1838 = vld [vmem:[%s1837] sm:$0xf]
        %v1839 = vld [vmem:[%s1837 + $0x4] sm:$0xf]
        %v1840 = vld [vmem:[%s1837 + $0x8] sm:$0xf]
        %v1841 = vld [vmem:[%s1837 + $0xc] sm:$0xf]
        %v1842 = vld [vmem:[%s1837 + $0x10] sm:$0xf]
        %v1843 = vld [vmem:[%s1837 + $0x14] sm:$0xf]
        %v1844 = vld [vmem:[%s1837 + $0x18] sm:$0xf]
        %v1845 = vld [vmem:[%s1837 + $0x1c] sm:$0xf]
        %s1846 = scalar_lea.vmem [#allocation16], 64
        %v1847 = vld [vmem:[%s1846] sm:$0xff]
        %v1848 = vld [vmem:[%s1846 + $0x8] sm:$0xff]
        %v1849 = vld [vmem:[%s1846 + $0x10] sm:$0xff]
        %v1850 = vld [vmem:[%s1846 + $0x18] sm:$0xff]
        %v1851 = vld [vmem:[%s1846 + $0x20] sm:$0xff]
        %v1852 = vld [vmem:[%s1846 + $0x28] sm:$0xff]
        %v1853 = vld [vmem:[%s1846 + $0x30] sm:$0xff]
        %v1854 = vld [vmem:[%s1846 + $0x38] sm:$0xff]
        %1856 = vset.pattern.permute.xlu0 0
        %1857 = vperm.xlu0 %1856, %v1847
        %v1858 = vpop.permute.xlu0 %1857
        %1861 = vset.pattern.permute.xlu0 0
        %1862 = vperm.xlu0 %1861, %v1848
        %v1863 = vpop.permute.xlu0 %1862
        %1866 = vset.pattern.permute.xlu0 0
        %1867 = vperm.xlu0 %1866, %v1849
        %v1868 = vpop.permute.xlu0 %1867
        %1871 = vset.pattern.permute.xlu0 0
        %1872 = vperm.xlu0 %1871, %v1850
        %v1873 = vpop.permute.xlu0 %1872
        %1876 = vset.pattern.permute.xlu0 0
        %1877 = vperm.xlu0 %1876, %v1851
        %v1878 = vpop.permute.xlu0 %1877
        %1881 = vset.pattern.permute.xlu0 0
        %1882 = vperm.xlu0 %1881, %v1852
        %v1883 = vpop.permute.xlu0 %1882
        %1886 = vset.pattern.permute.xlu0 0
        %1887 = vperm.xlu0 %1886, %v1853
        %v1888 = vpop.permute.xlu0 %1887
        %1891 = vset.pattern.permute.xlu0 0
        %1892 = vperm.xlu0 %1891, %v1854
        %v1893 = vpop.permute.xlu0 %1892
        %v1903 = vunpack.c.l.b16 %v1838
        %v1904 = vunpack.c.l.b16 %v1839
        %v1905 = vunpack.c.l.b16 %v1840
        %v1906 = vunpack.c.l.b16 %v1841
        %v1907 = vunpack.c.l.b16 %v1842
        %v1908 = vunpack.c.l.b16 %v1843
        %v1909 = vunpack.c.l.b16 %v1844
        %v1910 = vunpack.c.l.b16 %v1845
        %v1911 = vpack.c.b16 %v1904, %v1903
        %v1912 = vpack.c.b16 %v1906, %v1905
        %v1913 = vpack.c.b16 %v1908, %v1907
        %v1914 = vpack.c.b16 %v1910, %v1909
        %v1916 = vsel %vm1259, %v1911, 0
        %v1919 = vsel %vm1259, %v1912, 0
        %v1922 = vsel %vm1259, %v1913, 0
        %v1925 = vsel %vm1259, %v1914, 0
        %1927 = vmatprep.subr.bf16.mxu0 %v1794
        %1928 = vmatpush1.bf16.msra.mxu0 %v1804
        %1929 = vmatprep.subr.bf16.mxu0 %v1796
        %1930 = vmatpush1.bf16.msra.mxu0 %v1807
        %1931 = vmatprep.subr.bf16.mxu0 %v1770
        %1932 = vmatpush1.bf16.msra.mxu0 %v1769
        %1933 = vmatprep.subr.bf16.mxu0 %v1773
        %1934 = vmatpush1.bf16.msra.mxu0 %v1772
        %1935 = vmatprep.subr.bf16.mxu0 %v1823
        %1936 = vmatpush1.bf16.msra.mxu0 %v1822
        %1937 = vmatprep.subr.bf16.mxu0 %v1825
        %1938 = vmatpush1.bf16.msra.mxu0 %v1824
        %1939 = vmatprep.subr.bf16.mxu0 %v1277
        %1940 = vmatpush1.bf16.msra.mxu0 %v1274
        %1941 = vmatprep.subr.bf16.mxu0 0
        %1942 = vmatpush1.bf16.msra.mxu0 0
        %1943 = vmatprep.subr.bf16.mxu0 0
        %1944 = vmatpush1.bf16.msra.mxu0 0
        %1945 = vmatprep.subr.bf16.mxu0 0
        %1946 = vmatpush1.bf16.msra.mxu0 0
        %1947 = vmatprep.subr.bf16.mxu0 0
        %1948 = vmatpush1.bf16.msra.mxu0 0
        %1949 = vmatprep.subr.bf16.mxu0 0
        %1950 = vmatpush1.bf16.msra.mxu0 0
        %1951 = vmatprep.subr.bf16.mxu0 0
        %1952 = vmatpush1.bf16.msra.mxu0 0
        %1953 = vmatprep.subr.bf16.mxu0 0
        %1954 = vmatpush1.bf16.msra.mxu0 0
        %1955 = vmatprep.subr.bf16.mxu0 0
        %1956 = vmatpush1.bf16.msra.mxu0 0
        %1957 = vmatprep.subr.bf16.mxu0 0
        %1958 = vmatpush1.bf16.msra.mxu0 0
        %1959 = vmatprep.mubr.bf16.mxu0 0
        %1960 = vmatmul.mubr.bf16.gmra.mrb[0].mxu0 %v1916
        %v1961 = vpop.f32.mrb[0].mxu0
        %v1962 = vadd.f32 %v1858, %v1961
        %v1963 = vpop.f32.mrb[0].mxu0
        %v1964 = vadd.f32 %v1858, %v1963
        %v1965 = vpop.f32.mrb[0].mxu0
        %v1966 = vadd.f32 %v1863, %v1965
        %v1967 = vpop.f32.mrb[0].mxu0
        %v1968 = vadd.f32 %v1863, %v1967
        %1969 = vmatprep.mubr.bf16.mxu0 0
        %1970 = vmatmul.mubr.bf16.gmra.mrb[0].mxu0 %v1919
        %v1971 = vpop.f32.mrb[0].mxu0
        %v1972 = vadd.f32 %v1868, %v1971
        %v1973 = vpop.f32.mrb[0].mxu0
        %v1974 = vadd.f32 %v1868, %v1973
        %v1975 = vpop.f32.mrb[0].mxu0
        %v1976 = vadd.f32 %v1873, %v1975
        %v1977 = vpop.f32.mrb[0].mxu0
        %v1978 = vadd.f32 %v1873, %v1977
        %1979 = vmatprep.mubr.bf16.mxu0 0
        %1980 = vmatmul.mubr.bf16.gmra.mrb[0].mxu0 %v1922
        %v1981 = vpop.f32.mrb[0].mxu0
        %v1982 = vadd.f32 %v1878, %v1981
        %v1983 = vpop.f32.mrb[0].mxu0
        %v1984 = vadd.f32 %v1878, %v1983
        %v1985 = vpop.f32.mrb[0].mxu0
        %v1986 = vadd.f32 %v1883, %v1985
        %v1987 = vpop.f32.mrb[0].mxu0
        %v1988 = vadd.f32 %v1883, %v1987
        %1989 = vmatprep.mubr.bf16.mxu0 0
        %1990 = vmatmul.mubr.bf16.gmra.mrb[0].mxu0 %v1925
        %v1991 = vpop.f32.mrb[0].mxu0
        %v1992 = vadd.f32 %v1888, %v1991
        %v1993 = vpop.f32.mrb[0].mxu0
        %v1994 = vadd.f32 %v1888, %v1993
        %v1995 = vpop.f32.mrb[0].mxu0
        %v1996 = vadd.f32 %v1893, %v1995
        %v1997 = vpop.f32.mrb[0].mxu0
        %v1998 = vadd.f32 %v1893, %v1997
        %1999 = vdwg.mxu0
        %2000 = vmatprep.subr.bf16.mxu0 0
        %2001 = vmatpush1.bf16.msra.mxu0 %v1795
        %2002 = vmatprep.subr.bf16.mxu0 0
        %2003 = vmatpush1.bf16.msra.mxu0 %v1797
        %2004 = vmatprep.subr.bf16.mxu0 0
        %2005 = vmatpush1.bf16.msra.mxu0 %v1771
        %2006 = vmatprep.subr.bf16.mxu0 0
        %2007 = vmatpush1.bf16.msra.mxu0 %v1774
        %2008 = vmatprep.subr.bf16.mxu0 0
        %2009 = vmatpush1.bf16.msra.mxu0 %v1832
        %2010 = vmatprep.subr.bf16.mxu0 0
        %2011 = vmatpush1.bf16.msra.mxu0 %v1835
        %2012 = vmatprep.subr.bf16.mxu0 0
        %2013 = vmatpush1.bf16.msra.mxu0 %v1280
        %2014 = vmatprep.subr.bf16.mxu0 0
        %2015 = vmatpush1.bf16.msra.mxu0 0
        %2016 = vmatprep.subr.bf16.mxu0 0
        %2017 = vmatpush1.bf16.msra.mxu0 0
        %2018 = vmatprep.subr.bf16.mxu0 0
        %2019 = vmatpush1.bf16.msra.mxu0 0
        %2020 = vmatprep.subr.bf16.mxu0 0
        %2021 = vmatpush1.bf16.msra.mxu0 0
        %2022 = vmatprep.subr.bf16.mxu0 0
        %2023 = vmatpush1.bf16.msra.mxu0 0
        %2024 = vmatprep.subr.bf16.mxu0 0
        %2025 = vmatpush1.bf16.msra.mxu0 0
        %2026 = vmatprep.subr.bf16.mxu0 0
        %2027 = vmatpush1.bf16.msra.mxu0 0
        %2028 = vmatprep.subr.bf16.mxu0 0
        %2029 = vmatpush1.bf16.msra.mxu0 0
        %2030 = vmatprep.subr.bf16.mxu0 0
        %2031 = vmatpush1.bf16.msra.mxu0 0
        %2032 = vmatprep.mubr.bf16.mxu0 0
        %2033 = vmatmul.mubr.bf16.gmra.mrb[0].mxu0 %v1916
        %v2034 = vpop.f32.mrb[0].mxu0
        %v2035 = vadd.f32 %v1858, %v2034
        %v2036 = vpop.f32.mrb[0].mxu0
        %v2037 = vpop.f32.mrb[0].mxu0
        %v2038 = vadd.f32 %v1863, %v2037
        %v2039 = vpop.f32.mrb[0].mxu0
        %2040 = vmatprep.mubr.bf16.mxu0 0
        %2041 = vmatmul.mubr.bf16.gmra.mrb[0].mxu0 %v1919
        %v2042 = vpop.f32.mrb[0].mxu0
        %v2043 = vadd.f32 %v1868, %v2042
        %v2044 = vpop.f32.mrb[0].mxu0
        %v2045 = vpop.f32.mrb[0].mxu0
        %v2046 = vadd.f32 %v1873, %v2045
        %v2047 = vpop.f32.mrb[0].mxu0
        %2048 = vmatprep.mubr.bf16.mxu0 0
        %2049 = vmatmul.mubr.bf16.gmra.mrb[0].mxu0 %v1922
        %v2050 = vpop.f32.mrb[0].mxu0
        %v2051 = vadd.f32 %v1878, %v2050
        %v2052 = vpop.f32.mrb[0].mxu0
        %v2053 = vpop.f32.mrb[0].mxu0
        %v2054 = vadd.f32 %v1883, %v2053
        %v2055 = vpop.f32.mrb[0].mxu0
        %2056 = vmatprep.mubr.bf16.mxu0 0
        %2057 = vmatmul.mubr.bf16.gmra.mrb[0].mxu0 %v1925
        %v2058 = vpop.f32.mrb[0].mxu0
        %v2059 = vadd.f32 %v1888, %v2058
        %v2060 = vpop.f32.mrb[0].mxu0
        %v2061 = vpop.f32.mrb[0].mxu0
        %v2062 = vadd.f32 %v1893, %v2061
        %v2063 = vpop.f32.mrb[0].mxu0
        %2064 = vdwg.mxu0
        %v2065 = vtanh.pop %v1962
        %v2066 = vtanh.pop %v1964
        %v2067 = vtanh.pop %v2035
        %v2068 = vtanh.pop %v1966
        %v2069 = vtanh.pop %v1968
        %v2070 = vtanh.pop %v2038
        %v2071 = vtanh.pop %v1972
        %v2072 = vtanh.pop %v1974
        %v2073 = vtanh.pop %v2043
        %v2074 = vtanh.pop %v1976
        %v2075 = vtanh.pop %v1978
        %v2076 = vtanh.pop %v2046
        %v2077 = vxor.u32 %v1982, 2147483648
        %v2078 = vxor.u32 %v1984, 2147483648
        %v2079 = vxor.u32 %v2051, 2147483648
        %v2080 = vxor.u32 %v1986, 2147483648
        %v2081 = vxor.u32 %v1988, 2147483648
        %v2082 = vxor.u32 %v2054, 2147483648
        %v2083 = vxor.u32 %v1992, 2147483648
        %v2084 = vxor.u32 %v1994, 2147483648
        %v2085 = vxor.u32 %v2059, 2147483648
        %v2086 = vxor.u32 %v1996, 2147483648
        %v2087 = vxor.u32 %v1998, 2147483648
        %v2088 = vxor.u32 %v2062, 2147483648
        %v2089 = vmul.f32 %v2077, 1.442695
        %v2090 = vpow.pop %v2089
        %v2091 = vmul.f32 %v2078, 1.442695
        %v2092 = vpow.pop %v2091
        %v2093 = vmul.f32 %v2079, 1.442695
        %v2094 = vpow.pop %v2093
        %v2095 = vmul.f32 %v2080, 1.442695
        %v2096 = vpow.pop %v2095
        %v2097 = vmul.f32 %v2081, 1.442695
        %v2098 = vpow.pop %v2097
        %v2099 = vmul.f32 %v2082, 1.442695
        %v2100 = vpow.pop %v2099
        %v2101 = vmul.f32 %v2083, 1.442695
        %v2102 = vpow.pop %v2101
        %v2103 = vmul.f32 %v2084, 1.442695
        %v2104 = vpow.pop %v2103
        %v2105 = vmul.f32 %v2085, 1.442695
        %v2106 = vpow.pop %v2105
        %v2107 = vmul.f32 %v2086, 1.442695
        %v2108 = vpow.pop %v2107
        %v2109 = vmul.f32 %v2087, 1.442695
        %v2110 = vpow.pop %v2109
        %v2111 = vmul.f32 %v2088, 1.442695
        %v2112 = vpow.pop %v2111
        %v2113 = vadd.f32 %v2090, 1.0
        %v2114 = vadd.f32 %v2092, 1.0
        %v2115 = vadd.f32 %v2094, 1.0
        %v2116 = vadd.f32 %v2096, 1.0
        %v2117 = vadd.f32 %v2098, 1.0
        %v2118 = vadd.f32 %v2100, 1.0
        %v2119 = vadd.f32 %v2102, 1.0
        %v2120 = vadd.f32 %v2104, 1.0
        %v2121 = vadd.f32 %v2106, 1.0
        %v2122 = vadd.f32 %v2108, 1.0
        %v2123 = vadd.f32 %v2110, 1.0
        %v2124 = vadd.f32 %v2112, 1.0
        %v2125 = vrcp.pop %v2113
        %v2126 = vmul.f32 1.0, %v2125
        %v2127 = vrcp.pop %v2114
        %v2128 = vmul.f32 1.0, %v2127
        %v2129 = vrcp.pop %v2115
        %v2130 = vmul.f32 1.0, %v2129
        %v2131 = vrcp.pop %v2116
        %v2132 = vmul.f32 1.0, %v2131
        %v2133 = vrcp.pop %v2117
        %v2134 = vmul.f32 1.0, %v2133
        %v2135 = vrcp.pop %v2118
        %v2136 = vmul.f32 1.0, %v2135
        %v2137 = vrcp.pop %v2119
        %v2138 = vmul.f32 1.0, %v2137
        %v2139 = vrcp.pop %v2120
        %v2140 = vmul.f32 1.0, %v2139
        %v2141 = vrcp.pop %v2121
        %v2142 = vmul.f32 1.0, %v2141
        %v2143 = vrcp.pop %v2122
        %v2144 = vmul.f32 1.0, %v2143
        %v2145 = vrcp.pop %v2123
        %v2146 = vmul.f32 1.0, %v2145
        %v2147 = vrcp.pop %v2124
        %v2148 = vmul.f32 1.0, %v2147
        %v2149 = vmul.f32 %v2065, %v2126
        %v2150 = vmul.f32 %v2066, %v2128
        %v2151 = vmul.f32 %v2067, %v2130
        %v2152 = vmul.f32 %v2068, %v2132
        %v2153 = vmul.f32 %v2069, %v2134
        %v2154 = vmul.f32 %v2070, %v2136
        %v2155 = vmul.f32 %v2071, %v2138
        %v2156 = vmul.f32 %v2072, %v2140
        %v2157 = vmul.f32 %v2073, %v2142
        %v2158 = vmul.f32 %v2074, %v2144
        %v2159 = vmul.f32 %v2075, %v2146
        %v2160 = vmul.f32 %v2076, %v2148
        %v2161 = vpack.c.bf16 %v2152, %v2149
        %v2162 = vpack.c.bf16 %v2153, %v2150
        %v2163 = vpack.c.bf16 %v2154, %v2151
        %v2164 = vpack.c.bf16 %v2158, %v2155
        %v2165 = vpack.c.bf16 %v2159, %v2156
        %v2166 = vpack.c.bf16 %v2160, %v2157
        %s2167 = scalar_lea.vmem [#allocation19], 32
        %v2168 = vld [vmem:[%s2167] sm:$0xf]
        %v2169 = vld [vmem:[%s2167 + $0x4] sm:$0xf]
        %v2170 = vld [vmem:[%s2167 + $0x8] sm:$0xf]
        %v2171 = vld [vmem:[%s2167 + $0xc] sm:$0xf]
        %v2172 = vld [vmem:[%s2167 + $0x10] sm:$0xf]
        %v2173 = vld [vmem:[%s2167 + $0x14] sm:$0xf]
        %v2174 = vld [vmem:[%s2167 + $0x18] sm:$0xf]
        %v2175 = vld [vmem:[%s2167 + $0x1c] sm:$0xf]
        %s2176 = scalar_lea.vmem [#allocation20], 64
        %v2177 = vld [vmem:[%s2176] sm:$0xff]
        %v2178 = vld [vmem:[%s2176 + $0x8] sm:$0xff]
        %v2179 = vld [vmem:[%s2176 + $0x10] sm:$0xff]
        %v2180 = vld [vmem:[%s2176 + $0x18] sm:$0xff]
        %v2181 = vld [vmem:[%s2176 + $0x20] sm:$0xff]
        %v2182 = vld [vmem:[%s2176 + $0x28] sm:$0xff]
        %v2183 = vld [vmem:[%s2176 + $0x30] sm:$0xff]
        %v2184 = vld [vmem:[%s2176 + $0x38] sm:$0xff]
        %2186 = vset.pattern.permute.xlu0 0
        %2187 = vperm.xlu0 %2186, %v2177
        %v2188 = vpop.permute.xlu0 %2187
        %2191 = vset.pattern.permute.xlu0 0
        %2192 = vperm.xlu0 %2191, %v2178
        %v2193 = vpop.permute.xlu0 %2192
        %2196 = vset.pattern.permute.xlu0 0
        %2197 = vperm.xlu0 %2196, %v2179
        %v2198 = vpop.permute.xlu0 %2197
        %2201 = vset.pattern.permute.xlu0 0
        %2202 = vperm.xlu0 %2201, %v2180
        %v2203 = vpop.permute.xlu0 %2202
        %2206 = vset.pattern.permute.xlu0 0
        %2207 = vperm.xlu0 %2206, %v2181
        %v2208 = vpop.permute.xlu0 %2207
        %2211 = vset.pattern.permute.xlu0 0
        %2212 = vperm.xlu0 %2211, %v2182
        %v2213 = vpop.permute.xlu0 %2212
        %2216 = vset.pattern.permute.xlu0 0
        %2217 = vperm.xlu0 %2216, %v2183
        %v2218 = vpop.permute.xlu0 %2217
        %2221 = vset.pattern.permute.xlu0 0
        %2222 = vperm.xlu0 %2221, %v2184
        %v2223 = vpop.permute.xlu0 %2222
        %v2233 = vunpack.c.l.b16 %v2168
        %v2234 = vunpack.c.l.b16 %v2169
        %v2235 = vunpack.c.l.b16 %v2170
        %v2236 = vunpack.c.l.b16 %v2171
        %v2237 = vunpack.c.l.b16 %v2172
        %v2238 = vunpack.c.l.b16 %v2173
        %v2239 = vunpack.c.l.b16 %v2174
        %v2240 = vunpack.c.l.b16 %v2175
        %v2241 = vpack.c.b16 %v2234, %v2233
        %v2242 = vpack.c.b16 %v2236, %v2235
        %v2243 = vpack.c.b16 %v2238, %v2237
        %v2244 = vpack.c.b16 %v2240, %v2239
        %v2246 = vsel %vm1598, %v2241, 0
        %v2249 = vsel %vm1598, %v2242, 0
        %v2252 = vsel %vm1598, %v2243, 0
        %v2255 = vsel %vm1598, %v2244, 0
        %2257 = vmatprep.subr.bf16.mxu0 %v2162
        %2258 = vmatpush1.bf16.msra.mxu0 %v2161
        %2259 = vmatprep.subr.bf16.mxu0 %v2165
        %2260 = vmatpush1.bf16.msra.mxu0 %v2164
        %2261 = vmatprep.subr.bf16.mxu0 0
        %2262 = vmatpush1.bf16.msra.mxu0 0
        %2263 = vmatprep.subr.bf16.mxu0 0
        %2264 = vmatpush1.bf16.msra.mxu0 0
        %2265 = vmatprep.subr.bf16.mxu0 0
        %2266 = vmatpush1.bf16.msra.mxu0 0
        %2267 = vmatprep.subr.bf16.mxu0 0
        %2268 = vmatpush1.bf16.msra.mxu0 0
        %2269 = vmatprep.subr.bf16.mxu0 0
        %2270 = vmatpush1.bf16.msra.mxu0 0
        %2271 = vmatprep.subr.bf16.mxu0 0
        %2272 = vmatpush1.bf16.msra.mxu0 0
        %2273 = vmatprep.subr.bf16.mxu0 0
        %2274 = vmatpush1.bf16.msra.mxu0 0
        %2275 = vmatprep.subr.bf16.mxu0 0
        %2276 = vmatpush1.bf16.msra.mxu0 0
        %2277 = vmatprep.subr.bf16.mxu0 0
        %2278 = vmatpush1.bf16.msra.mxu0 0
        %2279 = vmatprep.subr.bf16.mxu0 0
        %2280 = vmatpush1.bf16.msra.mxu0 0
        %2281 = vmatprep.subr.bf16.mxu0 0
        %2282 = vmatpush1.bf16.msra.mxu0 0
        %2283 = vmatprep.subr.bf16.mxu0 0
        %2284 = vmatpush1.bf16.msra.mxu0 0
        %2285 = vmatprep.subr.bf16.mxu0 0
        %2286 = vmatpush1.bf16.msra.mxu0 0
        %2287 = vmatprep.subr.bf16.mxu0 0
        %2288 = vmatpush1.bf16.msra.mxu0 0
        %2289 = vmatprep.mubr.bf16.mxu0 0
        %2290 = vmatmul.mubr.bf16.gmra.mrb[0].mxu0 %v2246
        %v2291 = vpop.f32.mrb[0].mxu0
        %v2292 = vadd.f32 %v2188, %v2291
        %v2293 = vpop.f32.mrb[0].mxu0
        %v2294 = vadd.f32 %v2188, %v2293
        %v2295 = vpop.f32.mrb[0].mxu0
        %v2296 = vadd.f32 %v2193, %v2295
        %v2297 = vpop.f32.mrb[0].mxu0
        %v2298 = vadd.f32 %v2193, %v2297
        %2299 = vmatprep.mubr.bf16.mxu0 0
        %2300 = vmatmul.mubr.bf16.gmra.mrb[0].mxu0 %v2249
        %v2301 = vpop.f32.mrb[0].mxu0
        %v2302 = vadd.f32 %v2198, %v2301
        %v2303 = vpop.f32.mrb[0].mxu0
        %v2304 = vadd.f32 %v2198, %v2303
        %v2305 = vpop.f32.mrb[0].mxu0
        %v2306 = vadd.f32 %v2203, %v2305
        %v2307 = vpop.f32.mrb[0].mxu0
        %v2308 = vadd.f32 %v2203, %v2307
        %2309 = vmatprep.mubr.bf16.mxu0 0
        %2310 = vmatmul.mubr.bf16.gmra.mrb[0].mxu0 %v2252
        %v2311 = vpop.f32.mrb[0].mxu0
        %v2312 = vpop.f32.mrb[0].mxu0
        %v2313 = vadd.f32 %v2208, %v2312
        %v2314 = vpop.f32.mrb[0].mxu0
        %v2315 = vpop.f32.mrb[0].mxu0
        %v2316 = vadd.f32 %v2213, %v2315
        %2317 = vmatprep.mubr.bf16.mxu0 0
        %2318 = vmatmul.mubr.bf16.gmra.mrb[0].mxu0 %v2255
        %v2319 = vpop.f32.mrb[0].mxu0
        %v2320 = vpop.f32.mrb[0].mxu0
        %v2321 = vadd.f32 %v2218, %v2320
        %v2322 = vpop.f32.mrb[0].mxu0
        %v2323 = vpop.f32.mrb[0].mxu0
        %v2324 = vadd.f32 %v2223, %v2323
        %2325 = vdwg.mxu0
        %2326 = vmatprep.subr.bf16.mxu0 0
        %2327 = vmatpush1.bf16.msra.mxu0 %v2163
        %2328 = vmatprep.subr.bf16.mxu0 0
        %2329 = vmatpush1.bf16.msra.mxu0 %v2166
        %2330 = vmatprep.subr.bf16.mxu0 0
        %2331 = vmatpush1.bf16.msra.mxu0 0
        %2332 = vmatprep.subr.bf16.mxu0 0
        %2333 = vmatpush1.bf16.msra.mxu0 0
        %2334 = vmatprep.subr.bf16.mxu0 0
        %2335 = vmatpush1.bf16.msra.mxu0 0
        %2336 = vmatprep.subr.bf16.mxu0 0
        %2337 = vmatpush1.bf16.msra.mxu0 0
        %2338 = vmatprep.subr.bf16.mxu0 0
        %2339 = vmatpush1.bf16.msra.mxu0 0
        %2340 = vmatprep.subr.bf16.mxu0 0
        %2341 = vmatpush1.bf16.msra.mxu0 0
        %2342 = vmatprep.subr.bf16.mxu0 0
        %2343 = vmatpush1.bf16.msra.mxu0 0
        %2344 = vmatprep.subr.bf16.mxu0 0
        %2345 = vmatpush1.bf16.msra.mxu0 0
        %2346 = vmatprep.subr.bf16.mxu0 0
        %2347 = vmatpush1.bf16.msra.mxu0 0
        %2348 = vmatprep.subr.bf16.mxu0 0
        %2349 = vmatpush1.bf16.msra.mxu0 0
        %2350 = vmatprep.subr.bf16.mxu0 0
        %2351 = vmatpush1.bf16.msra.mxu0 0
        %2352 = vmatprep.subr.bf16.mxu0 0
        %2353 = vmatpush1.bf16.msra.mxu0 0
        %2354 = vmatprep.subr.bf16.mxu0 0
        %2355 = vmatpush1.bf16.msra.mxu0 0
        %2356 = vmatprep.subr.bf16.mxu0 0
        %2357 = vmatpush1.bf16.msra.mxu0 0
        %2358 = vmatprep.mubr.bf16.mxu0 0
        %2359 = vmatmul.mubr.bf16.gmra.mrb[0].mxu0 %v2246
        %v2360 = vpop.f32.mrb[0].mxu0
        %v2361 = vadd.f32 %v2188, %v2360
        %v2362 = vpop.f32.mrb[0].mxu0
        %v2363 = vpop.f32.mrb[0].mxu0
        %v2364 = vadd.f32 %v2193, %v2363
        %v2365 = vpop.f32.mrb[0].mxu0
        %2366 = vmatprep.mubr.bf16.mxu0 0
        %2367 = vmatmul.mubr.bf16.gmra.mrb[0].mxu0 %v2249
        %v2368 = vpop.f32.mrb[0].mxu0
        %v2369 = vadd.f32 %v2198, %v2368
        %v2370 = vpop.f32.mrb[0].mxu0
        %v2371 = vpop.f32.mrb[0].mxu0
        %v2372 = vadd.f32 %v2203, %v2371
        %v2373 = vpop.f32.mrb[0].mxu0
        %2374 = vmatprep.mubr.bf16.mxu0 0
        %2375 = vmatmul.mubr.bf16.gmra.mrb[0].mxu0 %v2252
        %v2376 = vpop.f32.mrb[0].mxu0
        %v2377 = vpop.f32.mrb[0].mxu0
        %v2378 = vpop.f32.mrb[0].mxu0
        %v2379 = vpop.f32.mrb[0].mxu0
        %2380 = vmatprep.mubr.bf16.mxu0 0
        %2381 = vmatmul.mubr.bf16.gmra.mrb[0].mxu0 %v2255
        %v2382 = vpop.f32.mrb[0].mxu0
        %v2383 = vpop.f32.mrb[0].mxu0
        %v2384 = vpop.f32.mrb[0].mxu0
        %v2385 = vpop.f32.mrb[0].mxu0
        %2386 = vdwg.mxu0
        %v2387 = vadd.f32 %v1741, %v2292
        %v2388 = vadd.f32 %v1742, %v2294
        %v2389 = vadd.f32 %v1743, %v2361
        %v2390 = vadd.f32 %v1744, %v2296
        %v2391 = vadd.f32 %v1745, %v2298
        %v2392 = vadd.f32 %v1746, %v2364
        %v2393 = vadd.f32 %v1747, %v2302
        %v2394 = vadd.f32 %v1748, %v2304
        %v2395 = vadd.f32 %v1749, %v2369
        %v2396 = vadd.f32 %v1750, %v2306
        %v2397 = vadd.f32 %v1751, %v2308
        %v2398 = vadd.f32 %v1752, %v2372
        %v2399 = vadd.f32 %v1753, %v2313
        %v2400 = vadd.f32 %v1754, %v2316
        %v2401 = vadd.f32 %v1755, %v2321
        %v2402 = vadd.f32 %v1756, %v2324
        %v2403 = vsel %vm1099, %v2387, 0.0
        %v2404 = vsel %vm1100, %v2388, 0.0
        %v2405 = vsel %vm1101, %v2389, 0.0
        %v2406 = vsel %vm1099, %v2390, 0.0
        %v2407 = vsel %vm1100, %v2391, 0.0
        %v2408 = vsel %vm1101, %v2392, 0.0
        %v2409 = vsel %vm1099, %v2393, 0.0
        %v2410 = vsel %vm1100, %v2394, 0.0
        %v2411 = vsel %vm1101, %v2395, 0.0
        %v2412 = vsel %vm1099, %v2396, 0.0
        %v2413 = vsel %vm1100, %v2397, 0.0
        %v2414 = vsel %vm1101, %v2398, 0.0
        %v2415 = vpack.c.bf16 %v2406, %v2403
        %v2416 = vpack.c.bf16 %v2407, %v2404
        %v2417 = vpack.c.bf16 %v2408, %v2405
        %v2418 = vpack.c.bf16 %v2412, %v2409
        %v2419 = vpack.c.bf16 %v2413, %v2410
        %v2420 = vpack.c.bf16 %v2414, %v2411
        %2425 = vrot.lane.b32.xlu0 %v2415, 4
        %v2426 = vpop.permute.xlu0 %2425
        %2427 = vrot.lane.b32.xlu0 %v2416, 4
        %v2428 = vpop.permute.xlu0 %2427
        %2429 = vrot.lane.b32.xlu0 %v2418, 4
        %v2430 = vpop.permute.xlu0 %2429
        %2431 = vrot.lane.b32.xlu0 %v2419, 4
        %v2432 = vpop.permute.xlu0 %2431
        %vm2433 = vcmask 31744
        %v2434 = vsel %vm2433, %v2426, %v2428
        %v2435 = vsel %vm2433, %v2430, %v2432
        %v2439 = vsel %vm977, 0, %v2426
        %v2442 = vsel %vm977, 0, %v2430
        %2446 = vrot.lane.b32.xlu0 %v2415, 124
        %v2447 = vpop.permute.xlu0 %2446
        %2448 = vrot.lane.b32.xlu0 %v2416, 124
        %v2449 = vpop.permute.xlu0 %2448
        %2450 = vrot.lane.b32.xlu0 %v2417, 124
        %v2451 = vpop.permute.xlu0 %2450
        %2452 = vrot.lane.b32.xlu0 %v2418, 124
        %v2453 = vpop.permute.xlu0 %2452
        %2454 = vrot.lane.b32.xlu0 %v2419, 124
        %v2455 = vpop.permute.xlu0 %2454
        %2456 = vrot.lane.b32.xlu0 %v2420, 124
        %v2457 = vpop.permute.xlu0 %2456
        %vm2458 = vcmask 1014784
        %v2459 = vsel %vm2458, %v2447, %v2449
        %v2460 = vsel %vm2458, %v2449, %v2451
        %v2461 = vsel %vm2458, %v2453, %v2455
        %v2462 = vsel %vm2458, %v2455, %v2457
        %s2467 = scalar_lea.vmem [#allocation17], 64
        %v2468 = vld [vmem:[%s2467] sm:$0xf]
        %v2469 = vld [vmem:[%s2467 + $0x4] sm:$0xf]
        %v2470 = vld [vmem:[%s2467 + $0x8] sm:$0xf]
        %v2471 = vld [vmem:[%s2467 + $0xc] sm:$0xf]
        %v2472 = vld [vmem:[%s2467 + $0x10] sm:$0xf]
        %v2473 = vld [vmem:[%s2467 + $0x14] sm:$0xf]
        %v2474 = vld [vmem:[%s2467 + $0x18] sm:$0xf]
        %v2475 = vld [vmem:[%s2467 + $0x1c] sm:$0xf]
        %s2476 = scalar_lea.vmem [#allocation16], 128
        %v2477 = vld [vmem:[%s2476] sm:$0xff]
        %v2478 = vld [vmem:[%s2476 + $0x8] sm:$0xff]
        %v2479 = vld [vmem:[%s2476 + $0x10] sm:$0xff]
        %v2480 = vld [vmem:[%s2476 + $0x18] sm:$0xff]
        %v2481 = vld [vmem:[%s2476 + $0x20] sm:$0xff]
        %v2482 = vld [vmem:[%s2476 + $0x28] sm:$0xff]
        %v2483 = vld [vmem:[%s2476 + $0x30] sm:$0xff]
        %v2484 = vld [vmem:[%s2476 + $0x38] sm:$0xff]
        %2486 = vset.pattern.permute.xlu0 0
        %2487 = vperm.xlu0 %2486, %v2477
        %v2488 = vpop.permute.xlu0 %2487
        %2491 = vset.pattern.permute.xlu0 0
        %2492 = vperm.xlu0 %2491, %v2478
        %v2493 = vpop.permute.xlu0 %2492
        %2496 = vset.pattern.permute.xlu0 0
        %2497 = vperm.xlu0 %2496, %v2479
        %v2498 = vpop.permute.xlu0 %2497
        %2501 = vset.pattern.permute.xlu0 0
        %2502 = vperm.xlu0 %2501, %v2480
        %v2503 = vpop.permute.xlu0 %2502
        %2506 = vset.pattern.permute.xlu0 0
        %2507 = vperm.xlu0 %2506, %v2481
        %v2508 = vpop.permute.xlu0 %2507
        %2511 = vset.pattern.permute.xlu0 0
        %2512 = vperm.xlu0 %2511, %v2482
        %v2513 = vpop.permute.xlu0 %2512
        %2516 = vset.pattern.permute.xlu0 0
        %2517 = vperm.xlu0 %2516, %v2483
        %v2518 = vpop.permute.xlu0 %2517
        %2521 = vset.pattern.permute.xlu0 0
        %2522 = vperm.xlu0 %2521, %v2484
        %v2523 = vpop.permute.xlu0 %2522
        %v2533 = vunpack.c.l.b16 %v2468
        %v2534 = vunpack.c.l.b16 %v2469
        %v2535 = vunpack.c.l.b16 %v2470
        %v2536 = vunpack.c.l.b16 %v2471
        %v2537 = vunpack.c.l.b16 %v2472
        %v2538 = vunpack.c.l.b16 %v2473
        %v2539 = vunpack.c.l.b16 %v2474
        %v2540 = vunpack.c.l.b16 %v2475
        %v2541 = vpack.c.b16 %v2534, %v2533
        %v2542 = vpack.c.b16 %v2536, %v2535
        %v2543 = vpack.c.b16 %v2538, %v2537
        %v2544 = vpack.c.b16 %v2540, %v2539
        %v2546 = vsel %vm1259, %v2541, 0
        %v2549 = vsel %vm1259, %v2542, 0
        %v2552 = vsel %vm1259, %v2543, 0
        %v2555 = vsel %vm1259, %v2544, 0
        %2557 = vmatprep.subr.bf16.mxu0 %v2434
        %2558 = vmatpush1.bf16.msra.mxu0 %v2439
        %2559 = vmatprep.subr.bf16.mxu0 %v2435
        %2560 = vmatpush1.bf16.msra.mxu0 %v2442
        %2561 = vmatprep.subr.bf16.mxu0 %v2416
        %2562 = vmatpush1.bf16.msra.mxu0 %v2415
        %2563 = vmatprep.subr.bf16.mxu0 %v2419
        %2564 = vmatpush1.bf16.msra.mxu0 %v2418
        %2565 = vmatprep.subr.bf16.mxu0 %v2460
        %2566 = vmatpush1.bf16.msra.mxu0 %v2459
        %2567 = vmatprep.subr.bf16.mxu0 %v2462
        %2568 = vmatpush1.bf16.msra.mxu0 %v2461
        %2569 = vmatprep.subr.bf16.mxu0 %v1277
        %2570 = vmatpush1.bf16.msra.mxu0 %v1274
        %2571 = vmatprep.subr.bf16.mxu0 0
        %2572 = vmatpush1.bf16.msra.mxu0 0
        %2573 = vmatprep.subr.bf16.mxu0 0
        %2574 = vmatpush1.bf16.msra.mxu0 0
        %2575 = vmatprep.subr.bf16.mxu0 0
        %2576 = vmatpush1.bf16.msra.mxu0 0
        %2577 = vmatprep.subr.bf16.mxu0 0
        %2578 = vmatpush1.bf16.msra.mxu0 0
        %2579 = vmatprep.subr.bf16.mxu0 0
        %2580 = vmatpush1.bf16.msra.mxu0 0
        %2581 = vmatprep.subr.bf16.mxu0 0
        %2582 = vmatpush1.bf16.msra.mxu0 0
        %2583 = vmatprep.subr.bf16.mxu0 0
        %2584 = vmatpush1.bf16.msra.mxu0 0
        %2585 = vmatprep.subr.bf16.mxu0 0
        %2586 = vmatpush1.bf16.msra.mxu0 0
        %2587 = vmatprep.subr.bf16.mxu0 0
        %2588 = vmatpush1.bf16.msra.mxu0 0
        %2589 = vmatprep.mubr.bf16.mxu0 0
        %2590 = vmatmul.mubr.bf16.gmra.mrb[0].mxu0 %v2546
        %v2591 = vpop.f32.mrb[0].mxu0
        %v2592 = vadd.f32 %v2488, %v2591
        %v2593 = vpop.f32.mrb[0].mxu0
        %v2594 = vadd.f32 %v2488, %v2593
        %v2595 = vpop.f32.mrb[0].mxu0
        %v2596 = vadd.f32 %v2493, %v2595
        %v2597 = vpop.f32.mrb[0].mxu0
        %v2598 = vadd.f32 %v2493, %v2597
        %2599 = vmatprep.mubr.bf16.mxu0 0
        %2600 = vmatmul.mubr.bf16.gmra.mrb[0].mxu0 %v2549
        %v2601 = vpop.f32.mrb[0].mxu0
        %v2602 = vadd.f32 %v2498, %v2601
        %v2603 = vpop.f32.mrb[0].mxu0
        %v2604 = vadd.f32 %v2498, %v2603
        %v2605 = vpop.f32.mrb[0].mxu0
        %v2606 = vadd.f32 %v2503, %v2605
        %v2607 = vpop.f32.mrb[0].mxu0
        %v2608 = vadd.f32 %v2503, %v2607
        %2609 = vmatprep.mubr.bf16.mxu0 0
        %2610 = vmatmul.mubr.bf16.gmra.mrb[0].mxu0 %v2552
        %v2611 = vpop.f32.mrb[0].mxu0
        %v2612 = vadd.f32 %v2508, %v2611
        %v2613 = vpop.f32.mrb[0].mxu0
        %v2614 = vadd.f32 %v2508, %v2613
        %v2615 = vpop.f32.mrb[0].mxu0
        %v2616 = vadd.f32 %v2513, %v2615
        %v2617 = vpop.f32.mrb[0].mxu0
        %v2618 = vadd.f32 %v2513, %v2617
        %2619 = vmatprep.mubr.bf16.mxu0 0
        %2620 = vmatmul.mubr.bf16.gmra.mrb[0].mxu0 %v2555
        %v2621 = vpop.f32.mrb[0].mxu0
        %v2622 = vadd.f32 %v2518, %v2621
        %v2623 = vpop.f32.mrb[0].mxu0
        %v2624 = vadd.f32 %v2518, %v2623
        %v2625 = vpop.f32.mrb[0].mxu0
        %v2626 = vadd.f32 %v2523, %v2625
        %v2627 = vpop.f32.mrb[0].mxu0
        %v2628 = vadd.f32 %v2523, %v2627
        %2629 = vdwg.mxu0
        %v2630 = vtanh.pop %v2592
        %v2631 = vtanh.pop %v2594
        %v2632 = vtanh.pop %v2596
        %v2633 = vtanh.pop %v2598
        %v2634 = vtanh.pop %v2602
        %v2635 = vtanh.pop %v2604
        %v2636 = vtanh.pop %v2606
        %v2637 = vtanh.pop %v2608
        %v2638 = vxor.u32 %v2612, 2147483648
        %v2639 = vxor.u32 %v2614, 2147483648
        %v2640 = vxor.u32 %v2616, 2147483648
        %v2641 = vxor.u32 %v2618, 2147483648
        %v2642 = vxor.u32 %v2622, 2147483648
        %v2643 = vxor.u32 %v2624, 2147483648
        %v2644 = vxor.u32 %v2626, 2147483648
        %v2645 = vxor.u32 %v2628, 2147483648
        %v2646 = vmul.f32 %v2638, 1.442695
        %v2647 = vpow.pop %v2646
        %v2648 = vmul.f32 %v2639, 1.442695
        %v2649 = vpow.pop %v2648
        %v2650 = vmul.f32 %v2640, 1.442695
        %v2651 = vpow.pop %v2650
        %v2652 = vmul.f32 %v2641, 1.442695
        %v2653 = vpow.pop %v2652
        %v2654 = vmul.f32 %v2642, 1.442695
        %v2655 = vpow.pop %v2654
        %v2656 = vmul.f32 %v2643, 1.442695
        %v2657 = vpow.pop %v2656
        %v2658 = vmul.f32 %v2644, 1.442695
        %v2659 = vpow.pop %v2658
        %v2660 = vmul.f32 %v2645, 1.442695
        %v2661 = vpow.pop %v2660
        %v2662 = vadd.f32 %v2647, 1.0
        %v2663 = vadd.f32 %v2649, 1.0
        %v2664 = vadd.f32 %v2651, 1.0
        %v2665 = vadd.f32 %v2653, 1.0
        %v2666 = vadd.f32 %v2655, 1.0
        %v2667 = vadd.f32 %v2657, 1.0
        %v2668 = vadd.f32 %v2659, 1.0
        %v2669 = vadd.f32 %v2661, 1.0
        %v2670 = vrcp.pop %v2662
        %v2671 = vmul.f32 1.0, %v2670
        %v2672 = vrcp.pop %v2663
        %v2673 = vmul.f32 1.0, %v2672
        %v2674 = vrcp.pop %v2664
        %v2675 = vmul.f32 1.0, %v2674
        %v2676 = vrcp.pop %v2665
        %v2677 = vmul.f32 1.0, %v2676
        %v2678 = vrcp.pop %v2666
        %v2679 = vmul.f32 1.0, %v2678
        %v2680 = vrcp.pop %v2667
        %v2681 = vmul.f32 1.0, %v2680
        %v2682 = vrcp.pop %v2668
        %v2683 = vmul.f32 1.0, %v2682
        %v2684 = vrcp.pop %v2669
        %v2685 = vmul.f32 1.0, %v2684
        %v2686 = vmul.f32 %v2630, %v2671
        %v2687 = vmul.f32 %v2631, %v2673
        %v2688 = vmul.f32 %v2632, %v2675
        %v2689 = vmul.f32 %v2633, %v2677
        %v2690 = vmul.f32 %v2634, %v2679
        %v2691 = vmul.f32 %v2635, %v2681
        %v2692 = vmul.f32 %v2636, %v2683
        %v2693 = vmul.f32 %v2637, %v2685
        %v2694 = vpack.c.bf16 %v2688, %v2686
        %v2695 = vpack.c.bf16 %v2689, %v2687
        %v2696 = vpack.c.bf16 %v2692, %v2690
        %v2697 = vpack.c.bf16 %v2693, %v2691
        %s2698 = scalar_lea.vmem [#allocation19], 64
        %v2699 = vld [vmem:[%s2698 + $0x10] sm:$0xf]
        %v2700 = vld [vmem:[%s2698 + $0x14] sm:$0xf]
        %v2701 = vld [vmem:[%s2698 + $0x18] sm:$0xf]
        %v2702 = vld [vmem:[%s2698 + $0x1c] sm:$0xf]
        %s2703 = scalar_lea.vmem [#allocation20], 128
        %v2704 = vld [vmem:[%s2703 + $0x20] sm:$0xff]
        %v2705 = vld [vmem:[%s2703 + $0x28] sm:$0xff]
        %v2706 = vld [vmem:[%s2703 + $0x30] sm:$0xff]
        %v2707 = vld [vmem:[%s2703 + $0x38] sm:$0xff]
        %2709 = vset.pattern.permute.xlu0 0
        %2710 = vperm.xlu0 %2709, %v2704
        %v2711 = vpop.permute.xlu0 %2710
        %2714 = vset.pattern.permute.xlu0 0
        %2715 = vperm.xlu0 %2714, %v2705
        %v2716 = vpop.permute.xlu0 %2715
        %2719 = vset.pattern.permute.xlu0 0
        %2720 = vperm.xlu0 %2719, %v2706
        %v2721 = vpop.permute.xlu0 %2720
        %2724 = vset.pattern.permute.xlu0 0
        %2725 = vperm.xlu0 %2724, %v2707
        %v2726 = vpop.permute.xlu0 %2725
        %v2732 = vunpack.c.l.b16 %v2699
        %v2733 = vunpack.c.l.b16 %v2700
        %v2734 = vunpack.c.l.b16 %v2701
        %v2735 = vunpack.c.l.b16 %v2702
        %v2736 = vpack.c.b16 %v2733, %v2732
        %v2737 = vpack.c.b16 %v2735, %v2734
        %v2739 = vsel %vm1598, %v2736, 0
        %v2742 = vsel %vm1598, %v2737, 0
        %2744 = vmatprep.subr.bf16.mxu0 %v2695
        %2745 = vmatpush1.bf16.msra.mxu0 %v2694
        %2746 = vmatprep.subr.bf16.mxu0 %v2697
        %2747 = vmatpush1.bf16.msra.mxu0 %v2696
        %2748 = vmatprep.subr.bf16.mxu0 0
        %2749 = vmatpush1.bf16.msra.mxu0 0
        %2750 = vmatprep.subr.bf16.mxu0 0
        %2751 = vmatpush1.bf16.msra.mxu0 0
        %2752 = vmatprep.subr.bf16.mxu0 0
        %2753 = vmatpush1.bf16.msra.mxu0 0
        %2754 = vmatprep.subr.bf16.mxu0 0
        %2755 = vmatpush1.bf16.msra.mxu0 0
        %2756 = vmatprep.subr.bf16.mxu0 0
        %2757 = vmatpush1.bf16.msra.mxu0 0
        %2758 = vmatprep.subr.bf16.mxu0 0
        %2759 = vmatpush1.bf16.msra.mxu0 0
        %2760 = vmatprep.subr.bf16.mxu0 0
        %2761 = vmatpush1.bf16.msra.mxu0 0
        %2762 = vmatprep.subr.bf16.mxu0 0
        %2763 = vmatpush1.bf16.msra.mxu0 0
        %2764 = vmatprep.subr.bf16.mxu0 0
        %2765 = vmatpush1.bf16.msra.mxu0 0
        %2766 = vmatprep.subr.bf16.mxu0 0
        %2767 = vmatpush1.bf16.msra.mxu0 0
        %2768 = vmatprep.subr.bf16.mxu0 0
        %2769 = vmatpush1.bf16.msra.mxu0 0
        %2770 = vmatprep.subr.bf16.mxu0 0
        %2771 = vmatpush1.bf16.msra.mxu0 0
        %2772 = vmatprep.subr.bf16.mxu0 0
        %2773 = vmatpush1.bf16.msra.mxu0 0
        %2774 = vmatprep.subr.bf16.mxu0 0
        %2775 = vmatpush1.bf16.msra.mxu0 0
        %2776 = vmatprep.mubr.bf16.mxu0 0
        %2777 = vmatmul.mubr.bf16.gmra.mrb[0].mxu0 %v2739
        %v2778 = vpop.f32.mrb[0].mxu0
        %v2779 = vpop.f32.mrb[0].mxu0
        %v2780 = vadd.f32 %v2711, %v2779
        %v2781 = vpop.f32.mrb[0].mxu0
        %v2782 = vpop.f32.mrb[0].mxu0
        %v2783 = vadd.f32 %v2716, %v2782
        %2784 = vmatprep.mubr.bf16.mxu0 0
        %2785 = vmatmul.mubr.bf16.gmra.mrb[0].mxu0 %v2742
        %v2786 = vpop.f32.mrb[0].mxu0
        %v2787 = vpop.f32.mrb[0].mxu0
        %v2788 = vadd.f32 %v2721, %v2787
        %v2789 = vpop.f32.mrb[0].mxu0
        %v2790 = vpop.f32.mrb[0].mxu0
        %v2791 = vadd.f32 %v2726, %v2790
        %2792 = vdwg.mxu0
        %v2793 = vadd.f32 %v2399, %v2780
        %v2794 = vadd.f32 %v2400, %v2783
        %v2795 = vadd.f32 %v2401, %v2788
        %v2796 = vadd.f32 %v2402, %v2791
        %v2797 = vpack.c.bf16 %v2794, %v2793
        %v2798 = vpack.c.bf16 %v2796, %v2795
        %v2799 = vld [vmem:[#allocation22] sm:$0xf]
        %v2800 = vld [vmem:[#allocation23] sm:$0xff]
        %2802 = vset.pattern.permute.xlu0 0
        %2803 = vperm.xlu0 %2802, %v2800
        %v2804 = vpop.permute.xlu0 %2803
        %v2807 = vsel %vm1598, %v2799, 0
        %2809 = vmatprep.subr.bf16.mxu0 0
        %2810 = vmatpush1.bf16.msra.mxu0 %v2797
        %2811 = vmatprep.subr.bf16.mxu0 0
        %2812 = vmatpush1.bf16.msra.mxu0 %v2798
        %2813 = vmatprep.subr.bf16.mxu0 0
        %2814 = vmatpush1.bf16.msra.mxu0 0
        %2815 = vmatprep.subr.bf16.mxu0 0
        %2816 = vmatpush1.bf16.msra.mxu0 0
        %2817 = vmatprep.subr.bf16.mxu0 0
        %2818 = vmatpush1.bf16.msra.mxu0 0
        %2819 = vmatprep.subr.bf16.mxu0 0
        %2820 = vmatpush1.bf16.msra.mxu0 0
        %2821 = vmatprep.subr.bf16.mxu0 0
        %2822 = vmatpush1.bf16.msra.mxu0 0
        %2823 = vmatprep.subr.bf16.mxu0 0
        %2824 = vmatpush1.bf16.msra.mxu0 0
        %2825 = vmatprep.subr.bf16.mxu0 0
        %2826 = vmatpush1.bf16.msra.mxu0 0
        %2827 = vmatprep.subr.bf16.mxu0 0
        %2828 = vmatpush1.bf16.msra.mxu0 0
        %2829 = vmatprep.subr.bf16.mxu0 0
        %2830 = vmatpush1.bf16.msra.mxu0 0
        %2831 = vmatprep.subr.bf16.mxu0 0
        %2832 = vmatpush1.bf16.msra.mxu0 0
        %2833 = vmatprep.subr.bf16.mxu0 0
        %2834 = vmatpush1.bf16.msra.mxu0 0
        %2835 = vmatprep.subr.bf16.mxu0 0
        %2836 = vmatpush1.bf16.msra.mxu0 0
        %2837 = vmatprep.subr.bf16.mxu0 0
        %2838 = vmatpush1.bf16.msra.mxu0 0
        %2839 = vmatprep.subr.bf16.mxu0 0
        %2840 = vmatpush1.bf16.msra.mxu0 0
        %2841 = vmatprep.mubr.bf16.mxu0 0
        %2842 = vmatmul.mubr.bf16.gmra.mrb[0].mxu0 %v2807
        %v2843 = vpop.f32.mrb[0].mxu0
        %v2844 = vadd.f32 %v2804, %v2843
        %v2845 = vpop.f32.mrb[0].mxu0
        %v2846 = vpop.f32.mrb[0].mxu0
        %v2847 = vpop.f32.mrb[0].mxu0
        %2848 = vdwg.mxu0
        %v2849 = vsub.f32 %v908, %v2844
        %v2850 = vsub.f32 0.0, %v2844
        %v2851 = vmul.f32 %v2850, 1.442695
        %v2852 = vpow.pop %v2851
        %v2854 = vrot.slane %v2852, 4
        %v2856 = vmul.f32 %v2849, %v2854
        %v2857 = vpack.c.bf16 %v2856, %v2856
        %v2858 = vld [vmem:[#allocation25] sm:$0x3]
        %v2859 = vld [vmem:[#allocation26] sm:$0xf]
        %2861 = vset.pattern.permute.xlu0 0
        %2862 = vperm.xlu0 %2861, %v2859
        %v2863 = vpop.permute.xlu0 %2862
        %v2866 = vsel %vm977, %v2858, 0
        %v2869 = vsel %vm984, %v2857, 0
        %2871 = vmatprep.subr.bf16.mxu0 0
        %2872 = vmatpush1.bf16.msra.mxu0 %v2869
        %2873 = vmatprep.subr.bf16.mxu0 0
        %2874 = vmatpush1.bf16.msra.mxu0 0
        %2875 = vmatprep.subr.bf16.mxu0 0
        %2876 = vmatpush1.bf16.msra.mxu0 0
        %2877 = vmatprep.subr.bf16.mxu0 0
        %2878 = vmatpush1.bf16.msra.mxu0 0
        %2879 = vmatprep.subr.bf16.mxu0 0
        %2880 = vmatpush1.bf16.msra.mxu0 0
        %2881 = vmatprep.subr.bf16.mxu0 0
        %2882 = vmatpush1.bf16.msra.mxu0 0
        %2883 = vmatprep.subr.bf16.mxu0 0
        %2884 = vmatpush1.bf16.msra.mxu0 0
        %2885 = vmatprep.subr.bf16.mxu0 0
        %2886 = vmatpush1.bf16.msra.mxu0 0
        %2887 = vmatprep.subr.bf16.mxu0 0
        %2888 = vmatpush1.bf16.msra.mxu0 0
        %2889 = vmatprep.subr.bf16.mxu0 0
        %2890 = vmatpush1.bf16.msra.mxu0 0
        %2891 = vmatprep.subr.bf16.mxu0 0
        %2892 = vmatpush1.bf16.msra.mxu0 0
        %2893 = vmatprep.subr.bf16.mxu0 0
        %2894 = vmatpush1.bf16.msra.mxu0 0
        %2895 = vmatprep.subr.bf16.mxu0 0
        %2896 = vmatpush1.bf16.msra.mxu0 0
        %2897 = vmatprep.subr.bf16.mxu0 0
        %2898 = vmatpush1.bf16.msra.mxu0 0
        %2899 = vmatprep.subr.bf16.mxu0 0
        %2900 = vmatpush1.bf16.msra.mxu0 0
        %2901 = vmatprep.subr.bf16.mxu0 0
        %2902 = vmatpush1.bf16.msra.mxu0 0
        %2903 = vmatprep.mubr.bf16.mxu0 0
        %2904 = vmatmul.mubr.bf16.gmra.mrb[0].mxu0 %v2866
        %v2905 = vpop.f32.mrb[0].mxu0
        %v2906 = vadd.f32 %v2863, %v2905
        %v2907 = vpop.f32.mrb[0].mxu0
        %v2908 = vpop.f32.mrb[0].mxu0
        %v2909 = vpop.f32.mrb[0].mxu0
        %2910 = vdwg.mxu0
        %v2911 = vsel %vm938, 1, 0
        %vm2912 = vcmp.eq.s32.totalorder %v2911, 1
        %v2913 = vsel %vm2912, %v2906, 0.0
        %2914 = vst [vmem:[%s902] sm:$0xf] %v2913
        %s2915 = sand.u32 %s455, 1
        %s2916 = scalar_lea.sflag [#allocation4], %s2915
        %s2917 = sand.u32 %s455, 1
        %s2918 = smul.addr %s2917, 4
        %s2919 = scalar_lea.vmem [#allocation28], %s2918
        // Predicated region
        $region149: #{affine_student_forward.2} parent=83 // pred_check
          %p2920 = pneg %p465
        $region150: #{affine_student_forward.2} parent=83 // pred_check_branch
          %2922 = sbr.rel (%p2920) target = $region152
        $region151: #{affine_student_forward.2} parent=83 // pred_region
          %s2924 = ssub.s32 64, 64
          %2925 = vsyncadd %s2916, %s2924
          %s2926 = sadd.s32 %s52, %s51
          %s2927 = smul.addr %s2926, 64
          %s2928 = scalar_lea.hbm %s16, %s2927
          %s2930 = sshll.u32 %s2919, 4
          %s2931 = int_to_ptr.vmem [resolvable:$true] %s2930
          %2933 = dma.vmem_to_hbm [thread:$0]  %s2931, 64, %s2928, %s2916
        $region152: #{affine_student_forward.2} parent=83 // pred_fallthru
          _
      $region84: #{affine_student_forward.2} parent=5 // pred_fallthru
        _
      %p2934 = scmp.le.s32.totalorder 2, %s42
      // Predicated region
      $region153: #{affine_student_forward.2} parent=5 // pred_check
        %p2935 = pneg %p2934
      $region154: #{affine_student_forward.2} parent=5 // pred_check_branch
        %2937 = sbr.rel (%p2935) target = $region156
      $region155: #{affine_student_forward.2} parent=5 // pred_region
        %s2938 = ssub.s32 %s42, 2
        // Predicated region
        $region157: #{affine_student_forward.2} parent=155 // pred_check
          %p2939 = pneg %p471
        $region158: #{affine_student_forward.2} parent=155 // pred_check_branch
          %2941 = sbr.rel (%p2939) target = $region160
        $region159: #{affine_student_forward.2} parent=155 // pred_region
          %s2942 = sand.u32 %s456, 1
          %s2943 = scalar_lea.sflag [#allocation4], %s2942
          %s2944 = sand.u32 %s456, 1
          %s2945 = smul.addr %s2944, 4
          %s2946 = scalar_lea.vmem [#allocation28], %s2945
          %2947 = dma.done %s2943, 64
        $region160: #{affine_student_forward.2} parent=155 // pred_fallthru
          _
      $region156: #{affine_student_forward.2} parent=5 // pred_fallthru
        _
    $region6: #{affine_student_forward.2} parent=1 // loop_footer
      %s46 = sadd.s32 1, %s42
    $region7: #{affine_student_forward.2} parent=1 // loop_footer_branch
      %41 = sbr.rel target = $region3
    $region8: #{affine_student_forward.2} parent=1 // loop_exit
      _
    %2948 = vsyncpa [#allocation3], 1
    %s2949 = scalar_lea.sflag [#allocation3], 1
    %2950 = vsyncpa %s2949, 1
    %2951 = vsyncpa [#allocation6], 1
    %s2952 = scalar_lea.sflag [#allocation6], 1
    %2953 = vsyncpa %s2952, 1
    %2954 = vsyncpa [#allocation9], 1
    %s2955 = scalar_lea.sflag [#allocation9], 1
    %2956 = vsyncpa %s2955, 1
    %2957 = vsyncpa [#allocation12], 1
    %s2958 = scalar_lea.sflag [#allocation12], 1
    %2959 = vsyncpa %s2958, 1
    %2960 = vsyncpa [#allocation15], 1
    %2961 = vsyncpa [#allocation18], 1
    %2962 = vsyncpa [#allocation21], 1
    %2963 = vsyncpa [#allocation24], 1
    %2964 = vsyncpa [#allocation27], 1
    %2965 = vsyncpa [#allocation4], 1
    %s2966 = scalar_lea.sflag [#allocation4], 1
    %2967 = vsyncpa %s2966, 1

// kernel: affine_student_forward.2
$region0: #{affine_student_forward.2}
  #allocation0 [shape = 'u32[]', space=smem, size = 0x4, offset = 0x4, fixed_abs, tag = 'smem constant byte address 0x4 - core index']
  #allocation1 [shape = 'u32[144,128]{1,0:T(1,128)}', space=vmem, size = 0x12000, scoped, tag = 'internal scratch']
  %s0 = inlined_call_operand.hbm [shape: f32[2,4,384], index: 0, kind: input, shape index: {}, may-alias: {0,1,2}]
  %s1 = inlined_call_operand.hbm [shape: f32[2,4,384], index: 1, kind: input, shape index: {}, may-alias: {0,1,2}]
  %s2 = inlined_call_operand.hbm [shape: f32[2,4,384], index: 2, kind: input, shape index: {}, may-alias: {0,1,2}]
  %s3 = inlined_call_operand.hbm [shape: bf16[2,8,384], index: 3, kind: input, shape index: {}, may-alias: {3,4,5}]
  %s4 = inlined_call_operand.hbm [shape: bf16[2,8,384], index: 4, kind: input, shape index: {}, may-alias: {3,4,5}]
  %s5 = inlined_call_operand.hbm [shape: bf16[2,8,384], index: 5, kind: input, shape index: {}, may-alias: {3,4,5}]
  %s6 = inlined_call_operand.hbm [shape: bf16[32,4], index: 6, kind: input, shape index: {}]
  %s7 = inlined_call_operand.hbm [shape: f32[32,1], index: 7, kind: input, shape index: {}]
  %s8 = inlined_call_operand.hbm [shape: f32[3,64,1], index: 8, kind: input, shape index: {}]
  %s9 = inlined_call_operand.hbm [shape: bf16[3,64,104], index: 9, kind: input, shape index: {}]
  %s10 = inlined_call_operand.hbm [shape: bf16[3,64,32], index: 10, kind: input, shape index: {}]
  %s11 = inlined_call_operand.hbm [shape: f32[3,64,1], index: 11, kind: input, shape index: {}]
  %s12 = inlined_call_operand.hbm [shape: bf16[8,32], index: 12, kind: input, shape index: {}]
  %s13 = inlined_call_operand.hbm [shape: f32[8,1], index: 13, kind: input, shape index: {}]
  %s14 = inlined_call_operand.hbm [shape: bf16[4,4], index: 14, kind: input, shape index: {}]
  %s15 = inlined_call_operand.hbm [shape: f32[4,1], index: 15, kind: input, shape index: {}]
  %s16 = inlined_call_operand.hbm [shape: f32[2,4,128], index: 16, kind: output, shape index: {}]
  %s17 = sld [smem:[#allocation0]]
  $region161: #{affine_student_forward.2} parent=0
    _
  %s19 = ssub.s32 1, %s17
  %s20 = scalar_select 0, %s19, %s17
  $region1: #{affine_student_forward.2} parent=0
    #allocation2 [shape = 'u8[4096]{0}', space=vmem, size = 0x1000, scoped, tag = 'input window, operand 0']
    #allocation3 [shape = 's32[2]{0}', space=sflag, size = 0x8, scoped, tag = 'scoped memory for affine_student_forward.2']
    #allocation4 [shape = 's32[2]{0}', space=sflag, size = 0x8, scoped, tag = 'scoped memory for affine_student_forward.2']
    #allocation5 [shape = 'u8[4096]{0}', space=vmem, size = 0x1000, scoped, tag = 'input window, operand 1']
    #allocation6 [shape = 's32[2]{0}', space=sflag, size = 0x8, scoped, tag = 'scoped memory for affine_student_forward.2']
    #allocation7 [shape = 'u8[4096]{0}', space=vmem, size = 0x1000, scoped, tag = 'input window, operand 2']
    #allocation8 [shape = 'u8[4096]{0}', space=vmem, size = 0x1000, scoped, tag = 'input window, operand 3']
    #allocation9 [shape = 's32[2]{0}', space=sflag, size = 0x8, scoped, tag = 'scoped memory for affine_student_forward.2']
    #allocation10 [shape = 'u8[4096]{0}', space=vmem, size = 0x1000, scoped, tag = 'input window, operand 4']
    #allocation11 [shape = 'u8[4096]{0}', space=vmem, size = 0x1000, scoped, tag = 'input window, operand 5']
    #allocation12 [shape = 's32[2]{0}', space=sflag, size = 0x8, scoped, tag = 'scoped memory for affine_student_forward.2']
    #allocation13 [shape = 'u8[8192]{0}', space=vmem, size = 0x2000, scoped, tag = 'input window, operand 6, single buffered']
    #allocation14 [shape = 'u8[16384]{0}', space=vmem, size = 0x4000, scoped, tag = 'input window, operand 7, single buffered']
    #allocation15 [shape = 's32[1]{0}', space=sflag, size = 0x4, scoped, tag = 'scoped memory for affine_student_forward.2']
    #allocation16 [shape = 'u8[98304]{0}', space=vmem, size = 0x18000, scoped, tag = 'input window, operand 8, single buffered']
    #allocation17 [shape = 'u8[49152]{0}', space=vmem, size = 0xc000, scoped, tag = 'input window, operand 9, single buffered']
    #allocation18 [shape = 's32[1]{0}', space=sflag, size = 0x4, scoped, tag = 'scoped memory for affine_student_forward.2']
    #allocation19 [shape = 'u8[49152]{0}', space=vmem, size = 0xc000, scoped, tag = 'input window, operand 10, single buffered']
    #allocation20 [shape = 'u8[98304]{0}', space=vmem, size = 0x18000, scoped, tag = 'input window, operand 11, single buffered']
    #allocation21 [shape = 's32[1]{0}', space=sflag, size = 0x4, scoped, tag = 'scoped memory for affine_student_forward.2']
    #allocation22 [shape = 'u8[2048]{0}', space=vmem, size = 0x800, scoped, tag = 'input window, operand 12, single buffered']
    #allocation23 [shape = 'u8[4096]{0}', space=vmem, size = 0x1000, scoped, tag = 'input window, operand 13, single buffered']
    #allocation24 [shape = 's32[1]{0}', space=sflag, size = 0x4, scoped, tag = 'scoped memory for affine_student_forward.2']
    #allocation25 [shape = 'u8[1024]{0}', space=vmem, size = 0x400, scoped, tag = 'input window, operand 14, single buffered']
    #allocation26 [shape = 'u8[2048]{0}', space=vmem, size = 0x800, scoped, tag = 'input window, operand 15, single buffered']
    #allocation27 [shape = 's32[1]{0}', space=sflag, size = 0x4, scoped, tag = 'scoped memory for affine_student_forward.2']
    #allocation28 [shape = 'u8[4096]{0}', space=vmem, size = 0x1000, scoped, tag = 'output window, operand 0']
    %21 = vsyncpa [#allocation3], 0
    %s22 = scalar_lea.sflag [#allocation3], 1
    %23 = vsyncpa %s22, 0
    %24 = vsyncpa [#allocation6], 0
    %s25 = scalar_lea.sflag [#allocation6], 1
    %26 = vsyncpa %s25, 0
    %27 = vsyncpa [#allocation9], 0
    %s28 = scalar_lea.sflag [#allocation9], 1
    %29 = vsyncpa %s28, 0
    %30 = vsyncpa [#allocation12], 0
    %s31 = scalar_lea.sflag [#allocation12], 1
    %32 = vsyncpa %s31, 0
    %33 = vsyncpa [#allocation15], 0
    %34 = vsyncpa [#allocation18], 0
    %35 = vsyncpa [#allocation21], 0
    %36 = vsyncpa [#allocation24], 0
    %37 = vsyncpa [#allocation27], 0
    %38 = vsyncpa [#allocation4], 0
    %s39 = scalar_lea.sflag [#allocation4], 1
    %40 = vsyncpa %s39, 0
    loop: start=0, step=1, limit=4
    $region2: #{affine_student_forward.2} parent=1 // loop_pre_header
      _
    $region3: #{affine_student_forward.2} parent=1 // loop_header
      %s42 = sphi 0, %s46
      %p43 = scmp.ge.s32.totalorder %s42, 4
      %s49 = sphi 0, %s61
      %s50 = sphi 0, %s57
      %s51 = sphi 0, %s49
      %s52 = sphi 0, %s50
      %s53 = sphi 0, %s51
      %s54 = sphi 0, %s52
      %s66 = sphi 0, %s68
      %s69 = sphi 0, %s66
      %s70 = sphi 0, %s69
      %s86 = sphi 0, %s70
      %s96 = sphi 0, %s98
      %s99 = sphi 0, %s96
      %s100 = sphi 0, %s99
      %s116 = sphi 0, %s100
      %s126 = sphi 0, %s128
      %s129 = sphi 0, %s126
      %s130 = sphi 0, %s129
      %s146 = sphi 0, %s130
      %s154 = sphi 0, %s156
      %s157 = sphi 0, %s154
      %s158 = sphi 0, %s157
      %s174 = sphi 0, %s158
      %s184 = sphi 0, %s186
      %s187 = sphi 0, %s184
      %s188 = sphi 0, %s187
      %s204 = sphi 0, %s188
      %s214 = sphi 0, %s216
      %s217 = sphi 0, %s214
      %s218 = sphi 0, %s217
      %s234 = sphi 0, %s218
      %s238 = sphi 0, %s238
      %s240 = sphi 0, %s238
      %s241 = sphi 0, %s240
      %s255 = sphi 0, %s241
      %s259 = sphi 0, %s259
      %s261 = sphi 0, %s259
      %s262 = sphi 0, %s261
      %s276 = sphi 0, %s262
      %s280 = sphi 0, %s280
      %s282 = sphi 0, %s280
      %s283 = sphi 0, %s282
      %s297 = sphi 0, %s283
      %s301 = sphi 0, %s301
      %s303 = sphi 0, %s301
      %s304 = sphi 0, %s303
      %s318 = sphi 0, %s304
      %s322 = sphi 0, %s322
      %s324 = sphi 0, %s322
      %s325 = sphi 0, %s324
      %s339 = sphi 0, %s325
      %s343 = sphi 0, %s343
      %s345 = sphi 0, %s343
      %s346 = sphi 0, %s345
      %s360 = sphi 0, %s346
      %s364 = sphi 0, %s364
      %s366 = sphi 0, %s364
      %s367 = sphi 0, %s366
      %s381 = sphi 0, %s367
      %s385 = sphi 0, %s385
      %s387 = sphi 0, %s385
      %s388 = sphi 0, %s387
      %s402 = sphi 0, %s388
      %s406 = sphi 0, %s406
      %s408 = sphi 0, %s406
      %s409 = sphi 0, %s408
      %s423 = sphi 0, %s409
      %s427 = sphi 0, %s427
      %s429 = sphi 0, %s427
      %s430 = sphi 0, %s429
      %s444 = sphi 0, %s430
      %s452 = sphi 0, %s454
      %s455 = sphi 0, %s452
      %s456 = sphi 0, %s455
      %s472 = sphi 0, %s456
    $region4: #{affine_student_forward.2} parent=1 // loop_header_branch
      %45 = sbr.rel (%p43) target = $region8
    $region5: #{affine_student_forward.2} parent=1 // loop_body
      %s47 = ssub.s32 %s42, 1
      %s48 = ssub.s32 %s42, 2
      %s55 = sadd.s32 1, %s50
      %p56 = scmp.ge.s32.totalorder %s55, 1
      %s57 = scalar_select %p56, 0, %s55
      %s58 = sadd.s32 1, %s49
      %s59 = scalar_select %p56, %s58, %s49
      %p60 = scmp.ge.s32.totalorder %s59, 2
      %s61 = scalar_select %p60, 0, %s59
      %s62 = ssub.s32 %s49, %s61
      %s63 = ssub.s32 %s50, %s57
      %s64 = sor.u32 %s62, %s63
      %p65 = scmp.eq.s32.totalorder %s64, 0
      %s67 = sadd.s32 %s66, 1
      %s68 = scalar_select %p65, %s66, %s67
      %p71 = pneg %p65
      %p72 = scmp.eq.s32.totalorder %s42, 1
      %p73 = por %p71, %p72
      %p74 = scmp.ne.s32.totalorder %s66, %s69
      %p75 = scmp.eq.s32.totalorder %s42, 0
      %p76 = por %p74, %p75
      %p77 = scmp.ne.s32.totalorder %s66, %s69
      %p78 = scmp.eq.s32.totalorder %s47, 1
      %p79 = por %p77, %p78
      %p80 = scmp.ne.s32.totalorder %s69, %s70
      %p81 = scmp.eq.s32.totalorder %s47, 0
      %p82 = por %p80, %p81
      %p83 = scmp.ne.s32.totalorder %s69, %s70
      %p84 = scmp.eq.s32.totalorder %s48, 1
      %p85 = por %p83, %p84
      %p87 = scmp.ne.s32.totalorder %s70, %s86
      %p88 = scmp.eq.s32.totalorder %s48, 0
      %p89 = por %p87, %p88
      %s90 = sadd.s32 %s50, 1
      %s91 = sadd.s32 %s57, 1
      %s92 = ssub.s32 %s49, %s61
      %s93 = ssub.s32 %s90, %s91
      %s94 = sor.u32 %s92, %s93
      %p95 = scmp.eq.s32.totalorder %s94, 0
      %s97 = sadd.s32 %s96, 1
      %s98 = scalar_select %p95, %s96, %s97
      %p101 = pneg %p95
      %p102 = scmp.eq.s32.totalorder %s42, 1
      %p103 = por %p101, %p102
      %p104 = scmp.ne.s32.totalorder %s96, %s99
      %p105 = scmp.eq.s32.totalorder %s42, 0
      %p106 = por %p104, %p105
      %p107 = scmp.ne.s32.totalorder %s96, %s99
      %p108 = scmp.eq.s32.totalorder %s47, 1
      %p109 = por %p107, %p108
      %p110 = scmp.ne.s32.totalorder %s99, %s100
      %p111 = scmp.eq.s32.totalorder %s47, 0
      %p112 = por %p110, %p111
      %p113 = scmp.ne.s32.totalorder %s99, %s100
      %p114 = scmp.eq.s32.totalorder %s48, 1
      %p115 = por %p113, %p114
      %p117 = scmp.ne.s32.totalorder %s100, %s116
      %p118 = scmp.eq.s32.totalorder %s48, 0
      %p119 = por %p117, %p118
      %s120 = sadd.s32 %s50, 2
      %s121 = sadd.s32 %s57, 2
      %s122 = ssub.s32 %s49, %s61
      %s123 = ssub.s32 %s120, %s121
      %s124 = sor.u32 %s122, %s123
      %p125 = scmp.eq.s32.totalorder %s124, 0
      %s127 = sadd.s32 %s126, 1
      %s128 = scalar_select %p125, %s126, %s127
      %p131 = pneg %p125
      %p132 = scmp.eq.s32.totalorder %s42, 1
      %p133 = por %p131, %p132
      %p134 = scmp.ne.s32.totalorder %s126, %s129
      %p135 = scmp.eq.s32.totalorder %s42, 0
      %p136 = por %p134, %p135
      %p137 = scmp.ne.s32.totalorder %s126, %s129
      %p138 = scmp.eq.s32.totalorder %s47, 1
      %p139 = por %p137, %p138
      %p140 = scmp.ne.s32.totalorder %s129, %s130
      %p141 = scmp.eq.s32.totalorder %s47, 0
      %p142 = por %p140, %p141
      %p143 = scmp.ne.s32.totalorder %s129, %s130
      %p144 = scmp.eq.s32.totalorder %s48, 1
      %p145 = por %p143, %p144
      %p147 = scmp.ne.s32.totalorder %s130, %s146
      %p148 = scmp.eq.s32.totalorder %s48, 0
      %p149 = por %p147, %p148
      %s150 = ssub.s32 %s49, %s61
      %s151 = ssub.s32 %s50, %s57
      %s152 = sor.u32 %s150, %s151
      %p153 = scmp.eq.s32.totalorder %s152, 0
      %s155 = sadd.s32 %s154, 1
      %s156 = scalar_select %p153, %s154, %s155
      %p159 = pneg %p153
      %p160 = scmp.eq.s32.totalorder %s42, 1
      %p161 = por %p159, %p160
      %p162 = scmp.ne.s32.totalorder %s154, %s157
      %p163 = scmp.eq.s32.totalorder %s42, 0
      %p164 = por %p162, %p163
      %p165 = scmp.ne.s32.totalorder %s154, %s157
      %p166 = scmp.eq.s32.totalorder %s47, 1
      %p167 = por %p165, %p166
      %p168 = scmp.ne.s32.totalorder %s157, %s158
      %p169 = scmp.eq.s32.totalorder %s47, 0
      %p170 = por %p168, %p169
      %p171 = scmp.ne.s32.totalorder %s157, %s158
      %p172 = scmp.eq.s32.totalorder %s48, 1
      %p173 = por %p171, %p172
      %p175 = scmp.ne.s32.totalorder %s158, %s174
      %p176 = scmp.eq.s32.totalorder %s48, 0
      %p177 = por %p175, %p176
      %s178 = sadd.s32 %s50, 1
      %s179 = sadd.s32 %s57, 1
      %s180 = ssub.s32 %s49, %s61
      %s181 = ssub.s32 %s178, %s179
      %s182 = sor.u32 %s180, %s181
      %p183 = scmp.eq.s32.totalorder %s182, 0
      %s185 = sadd.s32 %s184, 1
      %s186 = scalar_select %p183, %s184, %s185
      %p189 = pneg %p183
      %p190 = scmp.eq.s32.totalorder %s42, 1
      %p191 = por %p189, %p190
      %p192 = scmp.ne.s32.totalorder %s184, %s187
      %p193 = scmp.eq.s32.totalorder %s42, 0
      %p194 = por %p192, %p193
      %p195 = scmp.ne.s32.totalorder %s184, %s187
      %p196 = scmp.eq.s32.totalorder %s47, 1
      %p197 = por %p195, %p196
      %p198 = scmp.ne.s32.totalorder %s187, %s188
      %p199 = scmp.eq.s32.totalorder %s47, 0
      %p200 = por %p198, %p199
      %p201 = scmp.ne.s32.totalorder %s187, %s188
      %p202 = scmp.eq.s32.totalorder %s48, 1
      %p203 = por %p201, %p202
      %p205 = scmp.ne.s32.totalorder %s188, %s204
      %p206 = scmp.eq.s32.totalorder %s48, 0
      %p207 = por %p205, %p206
      %s208 = sadd.s32 %s50, 2
      %s209 = sadd.s32 %s57, 2
      %s210 = ssub.s32 %s49, %s61
      %s211 = ssub.s32 %s208, %s209
      %s212 = sor.u32 %s210, %s211
      %p213 = scmp.eq.s32.totalorder %s212, 0
      %s215 = sadd.s32 %s214, 1
      %s216 = scalar_select %p213, %s214, %s215
      %p219 = pneg %p213
      %p220 = scmp.eq.s32.totalorder %s42, 1
      %p221 = por %p219, %p220
      %p222 = scmp.ne.s32.totalorder %s214, %s217
      %p223 = scmp.eq.s32.totalorder %s42, 0
      %p224 = por %p222, %p223
      %p225 = scmp.ne.s32.totalorder %s214, %s217
      %p226 = scmp.eq.s32.totalorder %s47, 1
      %p227 = por %p225, %p226
      %p228 = scmp.ne.s32.totalorder %s217, %s218
      %p229 = scmp.eq.s32.totalorder %s47, 0
      %p230 = por %p228, %p229
      %p231 = scmp.ne.s32.totalorder %s217, %s218
      %p232 = scmp.eq.s32.totalorder %s48, 1
      %p233 = por %p231, %p232
      %p235 = scmp.ne.s32.totalorder %s218, %s234
      %p236 = scmp.eq.s32.totalorder %s48, 0
      %p237 = por %p235, %p236
      %s239 = sadd.s32 %s238, 1
      %p242 = scmp.eq.s32.totalorder %s42, 1
      %p243 = scmp.ne.s32.totalorder %s238, %s240
      %p244 = scmp.eq.s32.totalorder %s42, 0
      %p245 = por %p243, %p244
      %p246 = scmp.ne.s32.totalorder %s238, %s240
      %p247 = scmp.eq.s32.totalorder %s47, 1
      %p248 = por %p246, %p247
      %p249 = scmp.ne.s32.totalorder %s240, %s241
      %p250 = scmp.eq.s32.totalorder %s47, 0
      %p251 = por %p249, %p250
      %p252 = scmp.ne.s32.totalorder %s240, %s241
      %p253 = scmp.eq.s32.totalorder %s48, 1
      %p254 = por %p252, %p253
      %p256 = scmp.ne.s32.totalorder %s241, %s255
      %p257 = scmp.eq.s32.totalorder %s48, 0
      %p258 = por %p256, %p257
      %s260 = sadd.s32 %s259, 1
      %p263 = scmp.eq.s32.totalorder %s42, 1
      %p264 = scmp.ne.s32.totalorder %s259, %s261
      %p265 = scmp.eq.s32.totalorder %s42, 0
      %p266 = por %p264, %p265
      %p267 = scmp.ne.s32.totalorder %s259, %s261
      %p268 = scmp.eq.s32.totalorder %s47, 1
      %p269 = por %p267, %p268
      %p270 = scmp.ne.s32.totalorder %s261, %s262
      %p271 = scmp.eq.s32.totalorder %s47, 0
      %p272 = por %p270, %p271
      %p273 = scmp.ne.s32.totalorder %s261, %s262
      %p274 = scmp.eq.s32.totalorder %s48, 1
      %p275 = por %p273, %p274
      %p277 = scmp.ne.s32.totalorder %s262, %s276
      %p278 = scmp.eq.s32.totalorder %s48, 0
      %p279 = por %p277, %p278
      %s281 = sadd.s32 %s280, 1
      %p284 = scmp.eq.s32.totalorder %s42, 1
      %p285 = scmp.ne.s32.totalorder %s280, %s282
      %p286 = scmp.eq.s32.totalorder %s42, 0
      %p287 = por %p285, %p286
      %p288 = scmp.ne.s32.totalorder %s280, %s282
      %p289 = scmp.eq.s32.totalorder %s47, 1
      %p290 = por %p288, %p289
      %p291 = scmp.ne.s32.totalorder %s282, %s283
      %p292 = scmp.eq.s32.totalorder %s47, 0
      %p293 = por %p291, %p292
      %p294 = scmp.ne.s32.totalorder %s282, %s283
      %p295 = scmp.eq.s32.totalorder %s48, 1
      %p296 = por %p294, %p295
      %p298 = scmp.ne.s32.totalorder %s283, %s297
      %p299 = scmp.eq.s32.totalorder %s48, 0
      %p300 = por %p298, %p299
      %s302 = sadd.s32 %s301, 1
      %p305 = scmp.eq.s32.totalorder %s42, 1
      %p306 = scmp.ne.s32.totalorder %s301, %s303
      %p307 = scmp.eq.s32.totalorder %s42, 0
      %p308 = por %p306, %p307
      %p309 = scmp.ne.s32.totalorder %s301, %s303
      %p310 = scmp.eq.s32.totalorder %s47, 1
      %p311 = por %p309, %p310
      %p312 = scmp.ne.s32.totalorder %s303, %s304
      %p313 = scmp.eq.s32.totalorder %s47, 0
      %p314 = por %p312, %p313
      %p315 = scmp.ne.s32.totalorder %s303, %s304
      %p316 = scmp.eq.s32.totalorder %s48, 1
      %p317 = por %p315, %p316
      %p319 = scmp.ne.s32.totalorder %s304, %s318
      %p320 = scmp.eq.s32.totalorder %s48, 0
      %p321 = por %p319, %p320
      %s323 = sadd.s32 %s322, 1
      %p326 = scmp.eq.s32.totalorder %s42, 1
      %p327 = scmp.ne.s32.totalorder %s322, %s324
      %p328 = scmp.eq.s32.totalorder %s42, 0
      %p329 = por %p327, %p328
      %p330 = scmp.ne.s32.totalorder %s322, %s324
      %p331 = scmp.eq.s32.totalorder %s47, 1
      %p332 = por %p330, %p331
      %p333 = scmp.ne.s32.totalorder %s324, %s325
      %p334 = scmp.eq.s32.totalorder %s47, 0
      %p335 = por %p333, %p334
      %p336 = scmp.ne.s32.totalorder %s324, %s325
      %p337 = scmp.eq.s32.totalorder %s48, 1
      %p338 = por %p336, %p337
      %p340 = scmp.ne.s32.totalorder %s325, %s339
      %p341 = scmp.eq.s32.totalorder %s48, 0
      %p342 = por %p340, %p341
      %s344 = sadd.s32 %s343, 1
      %p347 = scmp.eq.s32.totalorder %s42, 1
      %p348 = scmp.ne.s32.totalorder %s343, %s345
      %p349 = scmp.eq.s32.totalorder %s42, 0
      %p350 = por %p348, %p349
      %p351 = scmp.ne.s32.totalorder %s343, %s345
      %p352 = scmp.eq.s32.totalorder %s47, 1
      %p353 = por %p351, %p352
      %p354 = scmp.ne.s32.totalorder %s345, %s346
      %p355 = scmp.eq.s32.totalorder %s47, 0
      %p356 = por %p354, %p355
      %p357 = scmp.ne.s32.totalorder %s345, %s346
      %p358 = scmp.eq.s32.totalorder %s48, 1
      %p359 = por %p357, %p358
      %p361 = scmp.ne.s32.totalorder %s346, %s360
      %p362 = scmp.eq.s32.totalorder %s48, 0
      %p363 = por %p361, %p362
      %s365 = sadd.s32 %s364, 1
      %p368 = scmp.eq.s32.totalorder %s42, 1
      %p369 = scmp.ne.s32.totalorder %s364, %s366
      %p370 = scmp.eq.s32.totalorder %s42, 0
      %p371 = por %p369, %p370
      %p372 = scmp.ne.s32.totalorder %s364, %s366
      %p373 = scmp.eq.s32.totalorder %s47, 1
      %p374 = por %p372, %p373
      %p375 = scmp.ne.s32.totalorder %s366, %s367
      %p376 = scmp.eq.s32.totalorder %s47, 0
      %p377 = por %p375, %p376
      %p378 = scmp.ne.s32.totalorder %s366, %s367
      %p379 = scmp.eq.s32.totalorder %s48, 1
      %p380 = por %p378, %p379
      %p382 = scmp.ne.s32.totalorder %s367, %s381
      %p383 = scmp.eq.s32.totalorder %s48, 0
      %p384 = por %p382, %p383
      %s386 = sadd.s32 %s385, 1
      %p389 = scmp.eq.s32.totalorder %s42, 1
      %p390 = scmp.ne.s32.totalorder %s385, %s387
      %p391 = scmp.eq.s32.totalorder %s42, 0
      %p392 = por %p390, %p391
      %p393 = scmp.ne.s32.totalorder %s385, %s387
      %p394 = scmp.eq.s32.totalorder %s47, 1
      %p395 = por %p393, %p394
      %p396 = scmp.ne.s32.totalorder %s387, %s388
      %p397 = scmp.eq.s32.totalorder %s47, 0
      %p398 = por %p396, %p397
      %p399 = scmp.ne.s32.totalorder %s387, %s388
      %p400 = scmp.eq.s32.totalorder %s48, 1
      %p401 = por %p399, %p400
      %p403 = scmp.ne.s32.totalorder %s388, %s402
      %p404 = scmp.eq.s32.totalorder %s48, 0
      %p405 = por %p403, %p404
      %s407 = sadd.s32 %s406, 1
      %p410 = scmp.eq.s32.totalorder %s42, 1
      %p411 = scmp.ne.s32.totalorder %s406, %s408
      %p412 = scmp.eq.s32.totalorder %s42, 0
      %p413 = por %p411, %p412
      %p414 = scmp.ne.s32.totalorder %s406, %s408
      %p415 = scmp.eq.s32.totalorder %s47, 1
      %p416 = por %p414, %p415
      %p417 = scmp.ne.s32.totalorder %s408, %s409
      %p418 = scmp.eq.s32.totalorder %s47, 0
      %p419 = por %p417, %p418
      %p420 = scmp.ne.s32.totalorder %s408, %s409
      %p421 = scmp.eq.s32.totalorder %s48, 1
      %p422 = por %p420, %p421
      %p424 = scmp.ne.s32.totalorder %s409, %s423
      %p425 = scmp.eq.s32.totalorder %s48, 0
      %p426 = por %p424, %p425
      %s428 = sadd.s32 %s427, 1
      %p431 = scmp.eq.s32.totalorder %s42, 1
      %p432 = scmp.ne.s32.totalorder %s427, %s429
      %p433 = scmp.eq.s32.totalorder %s42, 0
      %p434 = por %p432, %p433
      %p435 = scmp.ne.s32.totalorder %s427, %s429
      %p436 = scmp.eq.s32.totalorder %s47, 1
      %p437 = por %p435, %p436
      %p438 = scmp.ne.s32.totalorder %s429, %s430
      %p439 = scmp.eq.s32.totalorder %s47, 0
      %p440 = por %p438, %p439
      %p441 = scmp.ne.s32.totalorder %s429, %s430
      %p442 = scmp.eq.s32.totalorder %s48, 1
      %p443 = por %p441, %p442
      %p445 = scmp.ne.s32.totalorder %s430, %s444
      %p446 = scmp.eq.s32.totalorder %s48, 0
      %p447 = por %p445, %p446
      %s448 = ssub.s32 %s49, %s61
      %s449 = ssub.s32 %s50, %s57
      %s450 = sor.u32 %s448, %s449
      %p451 = scmp.eq.s32.totalorder %s450, 0
      %s453 = sadd.s32 %s452, 1
      %s454 = scalar_select %p451, %s452, %s453
      %p457 = pneg %p451
      %p458 = scmp.eq.s32.totalorder %s42, 1
      %p459 = por %p457, %p458
      %p460 = scmp.ne.s32.totalorder %s452, %s455
      %p461 = scmp.eq.s32.totalorder %s42, 0
      %p462 = por %p460, %p461
      %p463 = scmp.ne.s32.totalorder %s452, %s455
      %p464 = scmp.eq.s32.totalorder %s47, 1
      %p465 = por %p463, %p464
      %p466 = scmp.ne.s32.totalorder %s455, %s456
      %p467 = scmp.eq.s32.totalorder %s47, 0
      %p468 = por %p466, %p467
      %p469 = scmp.ne.s32.totalorder %s455, %s456
      %p470 = scmp.eq.s32.totalorder %s48, 1
      %p471 = por %p469, %p470
      %p473 = scmp.ne.s32.totalorder %s456, %s472
      %p474 = scmp.eq.s32.totalorder %s48, 0
      %p475 = por %p473, %p474
      %p476 = scmp.le.s32.totalorder 1, %s42
      %p477 = scmp.lt.s32.totalorder %s42, 3
      %p478 = pnand %p476, %p477
      %p479 = pneg %p478
      // Predicated region
      $region9: #{affine_student_forward.2} parent=5 // pred_check
        _
      $region10: #{affine_student_forward.2} parent=5 // pred_check_branch
        %481 = sbr.rel (%p478) target = $region12
      $region11: #{affine_student_forward.2} parent=5 // pred_region
        %s482 = ssub.s32 %s42, 1
        // Predicated region
        $region13: #{affine_student_forward.2} parent=11 // pred_check
          %p483 = pneg %p251
        $region14: #{affine_student_forward.2} parent=11 // pred_check_branch
          %485 = sbr.rel (%p483) target = $region16
        $region15: #{affine_student_forward.2} parent=11 // pred_region
          %s487 = ssub.s32 256, 256
          %488 = vsyncadd [#allocation12], %s487
          %s489 = sshll.u32 [#allocation13], 4
          %s490 = int_to_ptr.vmem [resolvable:$true] %s489
          %495 = dma.hbm_to_vmem [thread:$0]  %s6, 256, %s490, [#allocation12], 64, 64, 4
        $region16: #{affine_student_forward.2} parent=11 // pred_fallthru
          _
        // Predicated region
        $region17: #{affine_student_forward.2} parent=11 // pred_check
          %p496 = pneg %p272
        $region18: #{affine_student_forward.2} parent=11 // pred_check_branch
          %498 = sbr.rel (%p496) target = $region20
        $region19: #{affine_student_forward.2} parent=11 // pred_region
          %s500 = ssub.s32 512, 512
          %501 = vsyncadd [#allocation15], %s500
          %s502 = sshll.u32 [#allocation14], 4
          %s503 = int_to_ptr.vmem [resolvable:$true] %s502
          %508 = dma.hbm_to_vmem [thread:$0]  %s7, 512, %s503, [#allocation15], 128, 128, 8
        $region20: #{affine_student_forward.2} parent=11 // pred_fallthru
          _
        // Predicated region
        $region21: #{affine_student_forward.2} parent=11 // pred_check
          %p509 = pneg %p293
        $region22: #{affine_student_forward.2} parent=11 // pred_check_branch
          %511 = sbr.rel (%p509) target = $region24
        $region23: #{affine_student_forward.2} parent=11 // pred_region
          %s513 = ssub.s32 3072, 3072
          %514 = vsyncadd [#allocation15], %s513
          %s515 = sshll.u32 [#allocation16], 4
          %s516 = int_to_ptr.vmem [resolvable:$true] %s515
          %521 = dma.hbm_to_vmem [thread:$0]  %s8, 3072, %s516, [#allocation15], 128, 128, 8
        $region24: #{affine_student_forward.2} parent=11 // pred_fallthru
          _
        // Predicated region
        $region25: #{affine_student_forward.2} parent=11 // pred_check
          %p522 = pneg %p314
        $region26: #{affine_student_forward.2} parent=11 // pred_check_branch
          %524 = sbr.rel (%p522) target = $region28
        $region27: #{affine_student_forward.2} parent=11 // pred_region
          %s526 = ssub.s32 1536, 1536
          %527 = vsyncadd [#allocation18], %s526
          %s528 = sshll.u32 [#allocation17], 4
          %s529 = int_to_ptr.vmem [resolvable:$true] %s528
          %534 = dma.hbm_to_vmem [thread:$0]  %s9, 1536, %s529, [#allocation18], 64, 64, 4
        $region28: #{affine_student_forward.2} parent=11 // pred_fallthru
          _
        // Predicated region
        $region29: #{affine_student_forward.2} parent=11 // pred_check
          %p535 = pneg %p335
        $region30: #{affine_student_forward.2} parent=11 // pred_check_branch
          %537 = sbr.rel (%p535) target = $region32
        $region31: #{affine_student_forward.2} parent=11 // pred_region
          %s539 = ssub.s32 1536, 1536
          %540 = vsyncadd [#allocation18], %s539
          %s541 = sshll.u32 [#allocation19], 4
          %s542 = int_to_ptr.vmem [resolvable:$true] %s541
          %547 = dma.hbm_to_vmem [thread:$0]  %s10, 1536, %s542, [#allocation18], 64, 64, 4
        $region32: #{affine_student_forward.2} parent=11 // pred_fallthru
          _
        // Predicated region
        $region33: #{affine_student_forward.2} parent=11 // pred_check
          %p548 = pneg %p356
        $region34: #{affine_student_forward.2} parent=11 // pred_check_branch
          %550 = sbr.rel (%p548) target = $region36
        $region35: #{affine_student_forward.2} parent=11 // pred_region
          %s552 = ssub.s32 3072, 3072
          %553 = vsyncadd [#allocation21], %s552
          %s554 = sshll.u32 [#allocation20], 4
          %s555 = int_to_ptr.vmem [resolvable:$true] %s554
          %560 = dma.hbm_to_vmem [thread:$0]  %s11, 3072, %s555, [#allocation21], 128, 128, 8
        $region36: #{affine_student_forward.2} parent=11 // pred_fallthru
          _
        // Predicated region
        $region37: #{affine_student_forward.2} parent=11 // pred_check
          %p561 = pneg %p377
        $region38: #{affine_student_forward.2} parent=11 // pred_check_branch
          %563 = sbr.rel (%p561) target = $region40
        $region39: #{affine_student_forward.2} parent=11 // pred_region
          %s565 = ssub.s32 64, 64
          %566 = vsyncadd [#allocation21], %s565
          %s568 = sshll.u32 [#allocation22], 4
          %s569 = int_to_ptr.vmem [resolvable:$true] %s568
          %571 = dma.hbm_to_vmem [thread:$0]  %s12, 64, %s569, [#allocation21]
        $region40: #{affine_student_forward.2} parent=11 // pred_fallthru
          _
        // Predicated region
        $region41: #{affine_student_forward.2} parent=11 // pred_check
          %p572 = pneg %p398
        $region42: #{affine_student_forward.2} parent=11 // pred_check_branch
          %574 = sbr.rel (%p572) target = $region44
        $region43: #{affine_student_forward.2} parent=11 // pred_region
          %s576 = ssub.s32 128, 128
          %577 = vsyncadd [#allocation24], %s576
          %s579 = sshll.u32 [#allocation23], 4
          %s580 = int_to_ptr.vmem [resolvable:$true] %s579
          %582 = dma.hbm_to_vmem [thread:$0]  %s13, 128, %s580, [#allocation24]
        $region44: #{affine_student_forward.2} parent=11 // pred_fallthru
          _
        // Predicated region
        $region45: #{affine_student_forward.2} parent=11 // pred_check
          %p583 = pneg %p419
        $region46: #{affine_student_forward.2} parent=11 // pred_check_branch
          %585 = sbr.rel (%p583) target = $region48
        $region47: #{affine_student_forward.2} parent=11 // pred_region
          %s587 = ssub.s32 32, 32
          %588 = vsyncadd [#allocation24], %s587
          %s590 = sshll.u32 [#allocation25], 4
          %s591 = int_to_ptr.vmem [resolvable:$true] %s590
          %593 = dma.hbm_to_vmem [thread:$0]  %s14, 32, %s591, [#allocation24]
        $region48: #{affine_student_forward.2} parent=11 // pred_fallthru
          _
        // Predicated region
        $region49: #{affine_student_forward.2} parent=11 // pred_check
          %p594 = pneg %p440
        $region50: #{affine_student_forward.2} parent=11 // pred_check_branch
          %596 = sbr.rel (%p594) target = $region52
        $region51: #{affine_student_forward.2} parent=11 // pred_region
          %s598 = ssub.s32 64, 64
          %599 = vsyncadd [#allocation27], %s598
          %s601 = sshll.u32 [#allocation26], 4
          %s602 = int_to_ptr.vmem [resolvable:$true] %s601
          %604 = dma.hbm_to_vmem [thread:$0]  %s15, 64, %s602, [#allocation27]
        $region52: #{affine_student_forward.2} parent=11 // pred_fallthru
          _
      $region12: #{affine_student_forward.2} parent=5 // pred_fallthru
        _
      %p605 = scmp.lt.s32.totalorder %s42, 2
      // Predicated region
      $region53: #{affine_student_forward.2} parent=5 // pred_check
        %p606 = pneg %p605
      $region54: #{affine_student_forward.2} parent=5 // pred_check_branch
        %608 = sbr.rel (%p606) target = $region56
      $region55: #{affine_student_forward.2} parent=5 // pred_region
        // Predicated region
        $region57: #{affine_student_forward.2} parent=55 // pred_check
          %p609 = pneg %p76
        $region58: #{affine_student_forward.2} parent=55 // pred_check_branch
          %611 = sbr.rel (%p609) target = $region60
        $region59: #{affine_student_forward.2} parent=55 // pred_region
          %s612 = sand.u32 %s66, 1
          %s613 = scalar_lea.sflag [#allocation3], %s612
          %s614 = sand.u32 %s66, 1
          %s615 = smul.addr %s614, 4
          %s616 = scalar_lea.vmem [#allocation2], %s615
          %s618 = ssub.s32 64, 64
          %619 = vsyncadd %s613, %s618
          %s620 = smul.addr %s49, 3
          %s621 = sadd.s32 %s50, %s620
          %s622 = smul.addr %s621, 64
          %s623 = scalar_lea.hbm %s0, %s622
          %s625 = sshll.u32 %s616, 4
          %s626 = int_to_ptr.vmem [resolvable:$true] %s625
          %628 = dma.hbm_to_vmem [thread:$0]  %s623, 64, %s626, %s613
        $region60: #{affine_student_forward.2} parent=55 // pred_fallthru
          _
        // Predicated region
        $region61: #{affine_student_forward.2} parent=55 // pred_check
          %p629 = pneg %p106
        $region62: #{affine_student_forward.2} parent=55 // pred_check_branch
          %631 = sbr.rel (%p629) target = $region64
        $region63: #{affine_student_forward.2} parent=55 // pred_region
          %s632 = sand.u32 %s42, 1
          %s633 = scalar_lea.sflag [#allocation6], %s632
          %s634 = sand.u32 %s96, 1
          %s635 = smul.addr %s634, 4
          %s636 = scalar_lea.vmem [#allocation5], %s635
          %s637 = sadd.s32 %s50, 1
          %s639 = ssub.s32 64, 64
          %640 = vsyncadd %s633, %s639
          %s641 = smul.addr %s49, 3
          %s642 = sadd.s32 %s637, %s641
          %s643 = smul.addr %s642, 64
          %s644 = scalar_lea.hbm %s1, %s643
          %s646 = sshll.u32 %s636, 4
          %s647 = int_to_ptr.vmem [resolvable:$true] %s646
          %649 = dma.hbm_to_vmem [thread:$0]  %s644, 64, %s647, %s633
        $region64: #{affine_student_forward.2} parent=55 // pred_fallthru
          _
        // Predicated region
        $region65: #{affine_student_forward.2} parent=55 // pred_check
          %p650 = pneg %p136
        $region66: #{affine_student_forward.2} parent=55 // pred_check_branch
          %652 = sbr.rel (%p650) target = $region68
        $region67: #{affine_student_forward.2} parent=55 // pred_region
          %s653 = sand.u32 %s42, 1
          %s654 = scalar_lea.sflag [#allocation6], %s653
          %s655 = sand.u32 %s126, 1
          %s656 = smul.addr %s655, 4
          %s657 = scalar_lea.vmem [#allocation7], %s656
          %s658 = sadd.s32 %s50, 2
          %s660 = ssub.s32 64, 64
          %661 = vsyncadd %s654, %s660
          %s662 = smul.addr %s49, 3
          %s663 = sadd.s32 %s658, %s662
          %s664 = smul.addr %s663, 64
          %s665 = scalar_lea.hbm %s2, %s664
          %s667 = sshll.u32 %s657, 4
          %s668 = int_to_ptr.vmem [resolvable:$true] %s667
          %670 = dma.hbm_to_vmem [thread:$0]  %s665, 64, %s668, %s654
        $region68: #{affine_student_forward.2} parent=55 // pred_fallthru
          _
        // Predicated region
        $region69: #{affine_student_forward.2} parent=55 // pred_check
          %p671 = pneg %p164
        $region70: #{affine_student_forward.2} parent=55 // pred_check_branch
          %673 = sbr.rel (%p671) target = $region72
        $region71: #{affine_student_forward.2} parent=55 // pred_region
          %s674 = sand.u32 %s42, 1
          %s675 = scalar_lea.sflag [#allocation9], %s674
          %s676 = sand.u32 %s154, 1
          %s677 = smul.addr %s676, 4
          %s678 = scalar_lea.vmem [#allocation8], %s677
          %s680 = ssub.s32 64, 64
          %681 = vsyncadd %s675, %s680
          %s682 = smul.addr %s49, 3
          %s683 = sadd.s32 %s50, %s682
          %s684 = smul.addr %s683, 64
          %s685 = scalar_lea.hbm %s3, %s684
          %s687 = sshll.u32 %s678, 4
          %s688 = int_to_ptr.vmem [resolvable:$true] %s687
          %690 = dma.hbm_to_vmem [thread:$0]  %s685, 64, %s688, %s675
        $region72: #{affine_student_forward.2} parent=55 // pred_fallthru
          _
        // Predicated region
        $region73: #{affine_student_forward.2} parent=55 // pred_check
          %p691 = pneg %p194
        $region74: #{affine_student_forward.2} parent=55 // pred_check_branch
          %693 = sbr.rel (%p691) target = $region76
        $region75: #{affine_student_forward.2} parent=55 // pred_region
          %s694 = sand.u32 %s42, 1
          %s695 = scalar_lea.sflag [#allocation9], %s694
          %s696 = sand.u32 %s184, 1
          %s697 = smul.addr %s696, 4
          %s698 = scalar_lea.vmem [#allocation10], %s697
          %s699 = sadd.s32 %s50, 1
          %s701 = ssub.s32 64, 64
          %702 = vsyncadd %s695, %s701
          %s703 = smul.addr %s49, 3
          %s704 = sadd.s32 %s699, %s703
          %s705 = smul.addr %s704, 64
          %s706 = scalar_lea.hbm %s4, %s705
          %s708 = sshll.u32 %s698, 4
          %s709 = int_to_ptr.vmem [resolvable:$true] %s708
          %711 = dma.hbm_to_vmem [thread:$0]  %s706, 64, %s709, %s695
        $region76: #{affine_student_forward.2} parent=55 // pred_fallthru
          _
        // Predicated region
        $region77: #{affine_student_forward.2} parent=55 // pred_check
          %p712 = pneg %p224
        $region78: #{affine_student_forward.2} parent=55 // pred_check_branch
          %714 = sbr.rel (%p712) target = $region80
        $region79: #{affine_student_forward.2} parent=55 // pred_region
          %s715 = sand.u32 %s42, 1
          %s716 = scalar_lea.sflag [#allocation12], %s715
          %s717 = sand.u32 %s214, 1
          %s718 = smul.addr %s717, 4
          %s719 = scalar_lea.vmem [#allocation11], %s718
          %s720 = sadd.s32 %s50, 2
          %s722 = ssub.s32 64, 64
          %723 = vsyncadd %s716, %s722
          %s724 = smul.addr %s49, 3
          %s725 = sadd.s32 %s720, %s724
          %s726 = smul.addr %s725, 64
          %s727 = scalar_lea.hbm %s5, %s726
          %s729 = sshll.u32 %s719, 4
          %s730 = int_to_ptr.vmem [resolvable:$true] %s729
          %732 = dma.hbm_to_vmem [thread:$0]  %s727, 64, %s730, %s716
        $region80: #{affine_student_forward.2} parent=55 // pred_fallthru
          _
      $region56: #{affine_student_forward.2} parent=5 // pred_fallthru
        _
      %p733 = scmp.le.s32.totalorder 1, %s42
      %p734 = scmp.lt.s32.totalorder %s42, 3
      %p735 = pnand %p733, %p734
      %p736 = pneg %p735
      // Predicated region
      $region81: #{affine_student_forward.2} parent=5 // pred_check
        _
      $region82: #{affine_student_forward.2} parent=5 // pred_check_branch
        %738 = sbr.rel (%p735) target = $region84
      $region83: #{affine_student_forward.2} parent=5 // pred_region
        %s739 = ssub.s32 %s42, 1
        %s740 = sand.u32 %s69, 1
        %s741 = scalar_lea.sflag [#allocation3], %s740
        %s742 = sand.u32 %s69, 1
        %s743 = smul.addr %s742, 4
        %s744 = scalar_lea.vmem [#allocation2], %s743
        // Predicated region
        $region85: #{affine_student_forward.2} parent=83 // pred_check
          %p745 = pneg %p82
        $region86: #{affine_student_forward.2} parent=83 // pred_check_branch
          %747 = sbr.rel (%p745) target = $region88
        $region87: #{affine_student_forward.2} parent=83 // pred_region
          %748 = dma.done %s741, 64
        $region88: #{affine_student_forward.2} parent=83 // pred_fallthru
          _
        %s749 = sand.u32 %s47, 1
        %s750 = scalar_lea.sflag [#allocation6], %s749
        %s751 = sand.u32 %s99, 1
        %s752 = smul.addr %s751, 4
        %s753 = scalar_lea.vmem [#allocation5], %s752
        // Predicated region
        $region89: #{affine_student_forward.2} parent=83 // pred_check
          %p754 = pneg %p112
        $region90: #{affine_student_forward.2} parent=83 // pred_check_branch
          %756 = sbr.rel (%p754) target = $region92
        $region91: #{affine_student_forward.2} parent=83 // pred_region
          %757 = dma.done %s750, 64
        $region92: #{affine_student_forward.2} parent=83 // pred_fallthru
          _
        %s758 = sand.u32 %s47, 1
        %s759 = scalar_lea.sflag [#allocation6], %s758
        %s760 = sand.u32 %s129, 1
        %s761 = smul.addr %s760, 4
        %s762 = scalar_lea.vmem [#allocation7], %s761
        // Predicated region
        $region93: #{affine_student_forward.2} parent=83 // pred_check
          %p763 = pneg %p142
        $region94: #{affine_student_forward.2} parent=83 // pred_check_branch
          %765 = sbr.rel (%p763) target = $region96
        $region95: #{affine_student_forward.2} parent=83 // pred_region
          %766 = dma.done %s759, 64
        $region96: #{affine_student_forward.2} parent=83 // pred_fallthru
          _
        %s767 = sand.u32 %s47, 1
        %s768 = scalar_lea.sflag [#allocation9], %s767
        %s769 = sand.u32 %s157, 1
        %s770 = smul.addr %s769, 4
        %s771 = scalar_lea.vmem [#allocation8], %s770
        // Predicated region
        $region97: #{affine_student_forward.2} parent=83 // pred_check
          %p772 = pneg %p170
        $region98: #{affine_student_forward.2} parent=83 // pred_check_branch
          %774 = sbr.rel (%p772) target = $region100
        $region99: #{affine_student_forward.2} parent=83 // pred_region
          %775 = dma.done %s768, 64
        $region100: #{affine_student_forward.2} parent=83 // pred_fallthru
          _
        %s776 = sand.u32 %s47, 1
        %s777 = scalar_lea.sflag [#allocation9], %s776
        %s778 = sand.u32 %s187, 1
        %s779 = smul.addr %s778, 4
        %s780 = scalar_lea.vmem [#allocation10], %s779
        // Predicated region
        $region101: #{affine_student_forward.2} parent=83 // pred_check
          %p781 = pneg %p200
        $region102: #{affine_student_forward.2} parent=83 // pred_check_branch
          %783 = sbr.rel (%p781) target = $region104
        $region103: #{affine_student_forward.2} parent=83 // pred_region
          %784 = dma.done %s777, 64
        $region104: #{affine_student_forward.2} parent=83 // pred_fallthru
          _
        %s785 = sand.u32 %s47, 1
        %s786 = scalar_lea.sflag [#allocation12], %s785
        %s787 = sand.u32 %s217, 1
        %s788 = smul.addr %s787, 4
        %s789 = scalar_lea.vmem [#allocation11], %s788
        // Predicated region
        $region105: #{affine_student_forward.2} parent=83 // pred_check
          %p790 = pneg %p230
        $region106: #{affine_student_forward.2} parent=83 // pred_check_branch
          %792 = sbr.rel (%p790) target = $region108
        $region107: #{affine_student_forward.2} parent=83 // pred_region
          %793 = dma.done %s786, 64
        $region108: #{affine_student_forward.2} parent=83 // pred_fallthru
          _
        // Predicated region
        $region109: #{affine_student_forward.2} parent=83 // pred_check
          %p794 = pneg %p251
        $region110: #{affine_student_forward.2} parent=83 // pred_check_branch
          %796 = sbr.rel (%p794) target = $region112
        $region111: #{affine_student_forward.2} parent=83 // pred_region
          %797 = dma.done [#allocation12], 256
        $region112: #{affine_student_forward.2} parent=83 // pred_fallthru
          _
        // Predicated region
        $region113: #{affine_student_forward.2} parent=83 // pred_check
          %p798 = pneg %p272
        $region114: #{affine_student_forward.2} parent=83 // pred_check_branch
          %800 = sbr.rel (%p798) target = $region116
        $region115: #{affine_student_forward.2} parent=83 // pred_region
          %801 = dma.done [#allocation15], 512
        $region116: #{affine_student_forward.2} parent=83 // pred_fallthru
          _
        // Predicated region
        $region117: #{affine_student_forward.2} parent=83 // pred_check
          %p802 = pneg %p293
        $region118: #{affine_student_forward.2} parent=83 // pred_check_branch
          %804 = sbr.rel (%p802) target = $region120
        $region119: #{affine_student_forward.2} parent=83 // pred_region
          %805 = dma.done [#allocation15], 3072
        $region120: #{affine_student_forward.2} parent=83 // pred_fallthru
          _
        // Predicated region
        $region121: #{affine_student_forward.2} parent=83 // pred_check
          %p806 = pneg %p314
        $region122: #{affine_student_forward.2} parent=83 // pred_check_branch
          %808 = sbr.rel (%p806) target = $region124
        $region123: #{affine_student_forward.2} parent=83 // pred_region
          %809 = dma.done [#allocation18], 1536
        $region124: #{affine_student_forward.2} parent=83 // pred_fallthru
          _
        // Predicated region
        $region125: #{affine_student_forward.2} parent=83 // pred_check
          %p810 = pneg %p335
        $region126: #{affine_student_forward.2} parent=83 // pred_check_branch
          %812 = sbr.rel (%p810) target = $region128
        $region127: #{affine_student_forward.2} parent=83 // pred_region
          %813 = dma.done [#allocation18], 1536
        $region128: #{affine_student_forward.2} parent=83 // pred_fallthru
          _
        // Predicated region
        $region129: #{affine_student_forward.2} parent=83 // pred_check
          %p814 = pneg %p356
        $region130: #{affine_student_forward.2} parent=83 // pred_check_branch
          %816 = sbr.rel (%p814) target = $region132
        $region131: #{affine_student_forward.2} parent=83 // pred_region
          %817 = dma.done [#allocation21], 3072
        $region132: #{affine_student_forward.2} parent=83 // pred_fallthru
          _
        // Predicated region
        $region133: #{affine_student_forward.2} parent=83 // pred_check
          %p818 = pneg %p377
        $region134: #{affine_student_forward.2} parent=83 // pred_check_branch
          %820 = sbr.rel (%p818) target = $region136
        $region135: #{affine_student_forward.2} parent=83 // pred_region
          %821 = dma.done [#allocation21], 64
        $region136: #{affine_student_forward.2} parent=83 // pred_fallthru
          _
        // Predicated region
        $region137: #{affine_student_forward.2} parent=83 // pred_check
          %p822 = pneg %p398
        $region138: #{affine_student_forward.2} parent=83 // pred_check_branch
          %824 = sbr.rel (%p822) target = $region140
        $region139: #{affine_student_forward.2} parent=83 // pred_region
          %825 = dma.done [#allocation24], 128
        $region140: #{affine_student_forward.2} parent=83 // pred_fallthru
          _
        // Predicated region
        $region141: #{affine_student_forward.2} parent=83 // pred_check
          %p826 = pneg %p419
        $region142: #{affine_student_forward.2} parent=83 // pred_check_branch
          %828 = sbr.rel (%p826) target = $region144
        $region143: #{affine_student_forward.2} parent=83 // pred_region
          %829 = dma.done [#allocation24], 32
        $region144: #{affine_student_forward.2} parent=83 // pred_fallthru
          _
        // Predicated region
        $region145: #{affine_student_forward.2} parent=83 // pred_check
          %p830 = pneg %p440
        $region146: #{affine_student_forward.2} parent=83 // pred_check_branch
          %832 = sbr.rel (%p830) target = $region148
        $region147: #{affine_student_forward.2} parent=83 // pred_region
          %833 = dma.done [#allocation27], 64
        $region148: #{affine_student_forward.2} parent=83 // pred_fallthru
          _
        %s834 = sand.u32 %s69, 1
        %s835 = scalar_lea.sflag [#allocation3], %s834
        %s836 = sand.u32 %s69, 1
        %s837 = smul.addr %s836, 4
        %s838 = scalar_lea.vmem [#allocation2], %s837
        %p839 = pneg %p82
        %p840 = pneg %p79
        %s841 = sand.u32 %s47, 1
        %s842 = scalar_lea.sflag [#allocation6], %s841
        %s843 = sand.u32 %s99, 1
        %s844 = smul.addr %s843, 4
        %s845 = scalar_lea.vmem [#allocation5], %s844
        %p846 = pneg %p112
        %p847 = pneg %p109
        %s848 = sand.u32 %s47, 1
        %s849 = scalar_lea.sflag [#allocation6], %s848
        %s850 = sand.u32 %s129, 1
        %s851 = smul.addr %s850, 4
        %s852 = scalar_lea.vmem [#allocation7], %s851
        %p853 = pneg %p142
        %p854 = pneg %p139
        %s855 = sand.u32 %s47, 1
        %s856 = scalar_lea.sflag [#allocation9], %s855
        %s857 = sand.u32 %s157, 1
        %s858 = smul.addr %s857, 4
        %s859 = scalar_lea.vmem [#allocation8], %s858
        %p860 = pneg %p170
        %p861 = pneg %p167
        %s862 = sand.u32 %s47, 1
        %s863 = scalar_lea.sflag [#allocation9], %s862
        %s864 = sand.u32 %s187, 1
        %s865 = smul.addr %s864, 4
        %s866 = scalar_lea.vmem [#allocation10], %s865
        %p867 = pneg %p200
        %p868 = pneg %p197
        %s869 = sand.u32 %s47, 1
        %s870 = scalar_lea.sflag [#allocation12], %s869
        %s871 = sand.u32 %s217, 1
        %s872 = smul.addr %s871, 4
        %s873 = scalar_lea.vmem [#allocation11], %s872
        %p874 = pneg %p230
        %p875 = pneg %p227
        %p876 = pneg %p251
        %p877 = pneg %p248
        %p878 = pneg %p272
        %p879 = pneg %p269
        %p880 = pneg %p293
        %p881 = pneg %p290
        %p882 = pneg %p314
        %p883 = pneg %p311
        %p884 = pneg %p335
        %p885 = pneg %p332
        %p886 = pneg %p356
        %p887 = pneg %p353
        %p888 = pneg %p377
        %p889 = pneg %p374
        %p890 = pneg %p398
        %p891 = pneg %p395
        %p892 = pneg %p419
        %p893 = pneg %p416
        %p894 = pneg %p440
        %p895 = pneg %p437
        %p896 = pneg %p468
        %p897 = pneg %p465
        %s898 = sand.u32 %s455, 1
        %s899 = scalar_lea.sflag [#allocation4], %s898
        %s900 = sand.u32 %s455, 1
        %s901 = smul.addr %s900, 4
        %s902 = scalar_lea.vmem [#allocation28], %s901
        %s903 = sadd.s32 %s52, 1
        %s904 = sadd.s32 %s52, 2
        %s905 = sadd.s32 %s52, 1
        %s906 = sadd.s32 %s52, 2
        %v908 = vld [vmem:[%s753] sm:$0xf]
        %v909 = vld [vmem:[%s744] sm:$0xf]
        %v910 = vld [vmem:[%s762] sm:$0xf]
        %v911 = vpack.c.bf16 %v909, %v909
        %v912 = vpack.c.bf16 %v908, %v908
        %v913 = vpack.c.bf16 %v910, %v910
        %v914 = vld [vmem:[%s771] sm:$0xf]
        %v915 = vld [vmem:[%s780] sm:$0xf]
        %v916 = vld [vmem:[%s789] sm:$0xf]
        %v917 = vlaneseq
        %v918 = vand.u32 %v917, 127
        %v919 = vadd.s32 %v918, 128
        %v920 = vadd.s32 %v918, 256
        %s921 = smul.u32 %s52, 128
        %s922 = ssub.s32 %s921, 128
        %v923 = vstv %s922
        %v924 = vadd.s32 %v918, %v923
        %v925 = vadd.s32 %v919, %v923
        %v926 = vadd.s32 %v920, %v923
        %vm927 = vcmp.ge.s32.totalorder %v924, 0
        %vm928 = vcmp.ge.s32.totalorder %v925, 0
        %vm929 = vcmp.ge.s32.totalorder %v926, 0
        %vm930 = vcmp.lt.s32.totalorder %v924, 16
        %vm931 = vcmp.lt.s32.totalorder %v925, 16
        %vm932 = vcmp.lt.s32.totalorder %v926, 16
        %vm933 = vmand %vm927, %vm930
        %vm934 = vmand %vm928, %vm931
        %vm935 = vmand %vm929, %vm932
        %v936 = vstv %s921
        %v937 = vadd.s32 %v918, %v936
        %vm938 = vcmp.lt.s32.totalorder %v937, 16
        %v939 = vld [vmem:[#allocation13] sm:$0xf]
        %v940 = vld [vmem:[#allocation13 + $0x4] sm:$0xf]
        %v941 = vld [vmem:[#allocation13 + $0x8] sm:$0xf]
        %v942 = vld [vmem:[#allocation13 + $0xc] sm:$0xf]
        %v943 = vld [vmem:[#allocation14] sm:$0xff]
        %v944 = vld [vmem:[#allocation14 + $0x8] sm:$0xff]
        %v945 = vld [vmem:[#allocation14 + $0x10] sm:$0xff]
        %v946 = vld [vmem:[#allocation14 + $0x18] sm:$0xff]
        %948 = vset.pattern.permute.xlu0 0
        %949 = vperm.xlu0 %948, %v943
        %v950 = vpop.permute.xlu0 %949
        %953 = vset.pattern.permute.xlu0 0
        %954 = vperm.xlu0 %953, %v944
        %v955 = vpop.permute.xlu0 %954
        %958 = vset.pattern.permute.xlu0 0
        %959 = vperm.xlu0 %958, %v945
        %v960 = vpop.permute.xlu0 %959
        %963 = vset.pattern.permute.xlu0 0
        %964 = vperm.xlu0 %963, %v946
        %v965 = vpop.permute.xlu0 %964
        %v971 = vunpack.c.l.b16 %v939
        %v972 = vunpack.c.l.b16 %v940
        %v973 = vunpack.c.l.b16 %v941
        %v974 = vunpack.c.l.b16 %v942
        %v975 = vpack.c.b16 %v972, %v971
        %v976 = vpack.c.b16 %v974, %v973
        %vm977 = vcmask 31744
        %v979 = vsel %vm977, %v975, 0
        %v982 = vsel %vm977, %v976, 0
        %vm984 = vcmask 1041408
        %v986 = vsel %vm984, %v911, 0
        %v989 = vsel %vm984, %v912, 0
        %v992 = vsel %vm984, %v913, 0
        %994 = vmatprep.subr.bf16.mxu0 %v989
        %995 = vmatpush1.bf16.msra.mxu0 %v986
        %996 = vmatprep.subr.bf16.mxu0 0
        %997 = vmatpush1.bf16.msra.mxu0 0
        %998 = vmatprep.subr.bf16.mxu0 0
        %999 = vmatpush1.bf16.msra.mxu0 0
        %1000 = vmatprep.subr.bf16.mxu0 0
        %1001 = vmatpush1.bf16.msra.mxu0 0
        %1002 = vmatprep.subr.bf16.mxu0 0
        %1003 = vmatpush1.bf16.msra.mxu0 0
        %1004 = vmatprep.subr.bf16.mxu0 0
        %1005 = vmatpush1.bf16.msra.mxu0 0
        %1006 = vmatprep.subr.bf16.mxu0 0
        %1007 = vmatpush1.bf16.msra.mxu0 0
        %1008 = vmatprep.subr.bf16.mxu0 0
        %1009 = vmatpush1.bf16.msra.mxu0 0
        %1010 = vmatprep.subr.bf16.mxu0 0
        %1011 = vmatpush1.bf16.msra.mxu0 0
        %1012 = vmatprep.subr.bf16.mxu0 0
        %1013 = vmatpush1.bf16.msra.mxu0 0
        %1014 = vmatprep.subr.bf16.mxu0 0
        %1015 = vmatpush1.bf16.msra.mxu0 0
        %1016 = vmatprep.subr.bf16.mxu0 0
        %1017 = vmatpush1.bf16.msra.mxu0 0
        %1018 = vmatprep.subr.bf16.mxu0 0
        %1019 = vmatpush1.bf16.msra.mxu0 0
        %1020 = vmatprep.subr.bf16.mxu0 0
        %1021 = vmatpush1.bf16.msra.mxu0 0
        %1022 = vmatprep.subr.bf16.mxu0 0
        %1023 = vmatpush1.bf16.msra.mxu0 0
        %1024 = vmatprep.subr.bf16.mxu0 0
        %1025 = vmatpush1.bf16.msra.mxu0 0
        %1026 = vmatprep.mubr.bf16.mxu0 0
        %1027 = vmatmul.mubr.bf16.gmra.mrb[0].mxu0 %v979
        %v1028 = vpop.f32.mrb[0].mxu0
        %v1029 = vadd.f32 %v950, %v1028
        %v1030 = vpop.f32.mrb[0].mxu0
        %v1031 = vadd.f32 %v950, %v1030
        %v1032 = vpop.f32.mrb[0].mxu0
        %v1033 = vadd.f32 %v955, %v1032
        %v1034 = vpop.f32.mrb[0].mxu0
        %v1035 = vadd.f32 %v955, %v1034
        %1036 = vmatprep.mubr.bf16.mxu0 0
        %1037 = vmatmul.mubr.bf16.gmra.mrb[0].mxu0 %v982
        %v1038 = vpop.f32.mrb[0].mxu0
        %v1039 = vadd.f32 %v960, %v1038
        %v1040 = vpop.f32.mrb[0].mxu0
        %v1041 = vadd.f32 %v960, %v1040
        %v1042 = vpop.f32.mrb[0].mxu0
        %v1043 = vadd.f32 %v965, %v1042
        %v1044 = vpop.f32.mrb[0].mxu0
        %v1045 = vadd.f32 %v965, %v1044
        %1046 = vdwg.mxu0
        %1047 = vmatprep.subr.bf16.mxu0 0
        %1048 = vmatpush1.bf16.msra.mxu0 %v992
        %1049 = vmatprep.subr.bf16.mxu0 0
        %1050 = vmatpush1.bf16.msra.mxu0 0
        %1051 = vmatprep.subr.bf16.mxu0 0
        %1052 = vmatpush1.bf16.msra.mxu0 0
        %1053 = vmatprep.subr.bf16.mxu0 0
        %1054 = vmatpush1.bf16.msra.mxu0 0
        %1055 = vmatprep.subr.bf16.mxu0 0
        %1056 = vmatpush1.bf16.msra.mxu0 0
        %1057 = vmatprep.subr.bf16.mxu0 0
        %1058 = vmatpush1.bf16.msra.mxu0 0
        %1059 = vmatprep.subr.bf16.mxu0 0
        %1060 = vmatpush1.bf16.msra.mxu0 0
        %1061 = vmatprep.subr.bf16.mxu0 0
        %1062 = vmatpush1.bf16.msra.mxu0 0
        %1063 = vmatprep.subr.bf16.mxu0 0
        %1064 = vmatpush1.bf16.msra.mxu0 0
        %1065 = vmatprep.subr.bf16.mxu0 0
        %1066 = vmatpush1.bf16.msra.mxu0 0
        %1067 = vmatprep.subr.bf16.mxu0 0
        %1068 = vmatpush1.bf16.msra.mxu0 0
        %1069 = vmatprep.subr.bf16.mxu0 0
        %1070 = vmatpush1.bf16.msra.mxu0 0
        %1071 = vmatprep.subr.bf16.mxu0 0
        %1072 = vmatpush1.bf16.msra.mxu0 0
        %1073 = vmatprep.subr.bf16.mxu0 0
        %1074 = vmatpush1.bf16.msra.mxu0 0
        %1075 = vmatprep.subr.bf16.mxu0 0
        %1076 = vmatpush1.bf16.msra.mxu0 0
        %1077 = vmatprep.subr.bf16.mxu0 0
        %1078 = vmatpush1.bf16.msra.mxu0 0
        %1079 = vmatprep.mubr.bf16.mxu0 0
        %1080 = vmatmul.mubr.bf16.gmra.mrb[0].mxu0 %v979
        %v1081 = vpop.f32.mrb[0].mxu0
        %v1082 = vadd.f32 %v950, %v1081
        %v1083 = vpop.f32.mrb[0].mxu0
        %v1084 = vpop.f32.mrb[0].mxu0
        %v1085 = vadd.f32 %v955, %v1084
        %v1086 = vpop.f32.mrb[0].mxu0
        %1087 = vmatprep.mubr.bf16.mxu0 0
        %1088 = vmatmul.mubr.bf16.gmra.mrb[0].mxu0 %v982
        %v1089 = vpop.f32.mrb[0].mxu0
        %v1090 = vadd.f32 %v960, %v1089
        %v1091 = vpop.f32.mrb[0].mxu0
        %v1092 = vpop.f32.mrb[0].mxu0
        %v1093 = vadd.f32 %v965, %v1092
        %v1094 = vpop.f32.mrb[0].mxu0
        %1095 = vdwg.mxu0
        %v1096 = vsel %vm933, 1, 0
        %v1097 = vsel %vm934, 1, 0
        %v1098 = vsel %vm935, 1, 0
        %vm1099 = vcmp.eq.s32.totalorder %v1096, 1
        %vm1100 = vcmp.eq.s32.totalorder %v1097, 1
        %vm1101 = vcmp.eq.s32.totalorder %v1098, 1
        %v1102 = vsel %vm1099, %v1029, 0.0
        %v1103 = vsel %vm1100, %v1031, 0.0
        %v1104 = vsel %vm1101, %v1082, 0.0
        %v1105 = vsel %vm1099, %v1033, 0.0
        %v1106 = vsel %vm1100, %v1035, 0.0
        %v1107 = vsel %vm1101, %v1085, 0.0
        %v1108 = vsel %vm1099, %v1039, 0.0
        %v1109 = vsel %vm1100, %v1041, 0.0
        %v1110 = vsel %vm1101, %v1090, 0.0
        %v1111 = vsel %vm1099, %v1043, 0.0
        %v1112 = vsel %vm1100, %v1045, 0.0
        %v1113 = vsel %vm1101, %v1093, 0.0
        %v1114 = vpack.c.bf16 %v1105, %v1102
        %v1115 = vpack.c.bf16 %v1106, %v1103
        %v1116 = vpack.c.bf16 %v1107, %v1104
        %v1117 = vpack.c.bf16 %v1111, %v1108
        %v1118 = vpack.c.bf16 %v1112, %v1109
        %v1119 = vpack.c.bf16 %v1113, %v1110
        %1126 = vrot.lane.b32.xlu0 %v1114, 1
        %v1127 = vpop.permute.xlu0 %1126
        %1128 = vrot.lane.b32.xlu0 %v1115, 1
        %v1129 = vpop.permute.xlu0 %1128
        %1130 = vrot.lane.b32.xlu0 %v1116, 1
        %v1131 = vpop.permute.xlu0 %1130
        %1132 = vrot.lane.b32.xlu0 %v1117, 1
        %v1133 = vpop.permute.xlu0 %1132
        %1134 = vrot.lane.b32.xlu0 %v1118, 1
        %v1135 = vpop.permute.xlu0 %1134
        %1136 = vrot.lane.b32.xlu0 %v1119, 1
        %v1137 = vpop.permute.xlu0 %1136
        %vm1138 = vcmask 7168
        %v1139 = vsel %vm1138, %v1127, %v1129
        %v1140 = vsel %vm1138, %v1129, %v1131
        %v1141 = vsel %vm1138, %v1133, %v1135
        %v1142 = vsel %vm1138, %v1135, %v1137
        %vm1147 = vcmask 7168
        %v1150 = vsel %vm1147, 0, %v1127
        %v1153 = vsel %vm1147, 0, %v1133
        %1155 = vrot.lane.b32.xlu0 %v1114, 127
        %v1156 = vpop.permute.xlu0 %1155
        %1157 = vrot.lane.b32.xlu0 %v1115, 127
        %v1158 = vpop.permute.xlu0 %1157
        %1159 = vrot.lane.b32.xlu0 %v1116, 127
        %v1160 = vpop.permute.xlu0 %1159
        %1161 = vrot.lane.b32.xlu0 %v1117, 127
        %v1162 = vpop.permute.xlu0 %1161
        %1163 = vrot.lane.b32.xlu0 %v1118, 127
        %v1164 = vpop.permute.xlu0 %1163
        %1165 = vrot.lane.b32.xlu0 %v1119, 127
        %v1166 = vpop.permute.xlu0 %1165
        %vm1167 = vcmask 1039360
        %v1168 = vsel %vm1167, %v1156, %v1158
        %v1169 = vsel %vm1167, %v1158, %v1160
        %v1170 = vsel %vm1167, %v1162, %v1164
        %v1171 = vsel %vm1167, %v1164, %v1166
        %vm1176 = vcmask 1039360
        %v1178 = vsel %vm1176, %v1160, 0
        %v1181 = vsel %vm1176, %v1166, 0
        %v1183 = vld [vmem:[#allocation17] sm:$0xf]
        %v1184 = vld [vmem:[#allocation17 + $0x4] sm:$0xf]
        %v1185 = vld [vmem:[#allocation17 + $0x8] sm:$0xf]
        %v1186 = vld [vmem:[#allocation17 + $0xc] sm:$0xf]
        %v1187 = vld [vmem:[#allocation17 + $0x10] sm:$0xf]
        %v1188 = vld [vmem:[#allocation17 + $0x14] sm:$0xf]
        %v1189 = vld [vmem:[#allocation17 + $0x18] sm:$0xf]
        %v1190 = vld [vmem:[#allocation17 + $0x1c] sm:$0xf]
        %v1191 = vld [vmem:[#allocation16] sm:$0xff]
        %v1192 = vld [vmem:[#allocation16 + $0x8] sm:$0xff]
        %v1193 = vld [vmem:[#allocation16 + $0x10] sm:$0xff]
        %v1194 = vld [vmem:[#allocation16 + $0x18] sm:$0xff]
        %v1195 = vld [vmem:[#allocation16 + $0x20] sm:$0xff]
        %v1196 = vld [vmem:[#allocation16 + $0x28] sm:$0xff]
        %v1197 = vld [vmem:[#allocation16 + $0x30] sm:$0xff]
        %v1198 = vld [vmem:[#allocation16 + $0x38] sm:$0xff]
        %1200 = vset.pattern.permute.xlu0 0
        %1201 = vperm.xlu0 %1200, %v1191
        %v1202 = vpop.permute.xlu0 %1201
        %1205 = vset.pattern.permute.xlu0 0
        %1206 = vperm.xlu0 %1205, %v1192
        %v1207 = vpop.permute.xlu0 %1206
        %1210 = vset.pattern.permute.xlu0 0
        %1211 = vperm.xlu0 %1210, %v1193
        %v1212 = vpop.permute.xlu0 %1211
        %1215 = vset.pattern.permute.xlu0 0
        %1216 = vperm.xlu0 %1215, %v1194
        %v1217 = vpop.permute.xlu0 %1216
        %1220 = vset.pattern.permute.xlu0 0
        %1221 = vperm.xlu0 %1220, %v1195
        %v1222 = vpop.permute.xlu0 %1221
        %1225 = vset.pattern.permute.xlu0 0
        %1226 = vperm.xlu0 %1225, %v1196
        %v1227 = vpop.permute.xlu0 %1226
        %1230 = vset.pattern.permute.xlu0 0
        %1231 = vperm.xlu0 %1230, %v1197
        %v1232 = vpop.permute.xlu0 %1231
        %1235 = vset.pattern.permute.xlu0 0
        %1236 = vperm.xlu0 %1235, %v1198
        %v1237 = vpop.permute.xlu0 %1236
        %v1247 = vunpack.c.l.b16 %v1183
        %v1248 = vunpack.c.l.b16 %v1184
        %v1249 = vunpack.c.l.b16 %v1185
        %v1250 = vunpack.c.l.b16 %v1186
        %v1251 = vunpack.c.l.b16 %v1187
        %v1252 = vunpack.c.l.b16 %v1188
        %v1253 = vunpack.c.l.b16 %v1189
        %v1254 = vunpack.c.l.b16 %v1190
        %v1255 = vpack.c.b16 %v1248, %v1247
        %v1256 = vpack.c.b16 %v1250, %v1249
        %v1257 = vpack.c.b16 %v1252, %v1251
        %v1258 = vpack.c.b16 %v1254, %v1253
        %vm1259 = vcmask 850944
        %v1261 = vsel %vm1259, %v1255, 0
        %v1264 = vsel %vm1259, %v1256, 0
        %v1267 = vsel %vm1259, %v1257, 0
        %v1270 = vsel %vm1259, %v1258, 0
        %vm1272 = vcmask 1043456
        %v1274 = vsel %vm1272, %v914, 0
        %v1277 = vsel %vm1272, %v915, 0
        %v1280 = vsel %vm1272, %v916, 0
        %1282 = vmatprep.subr.bf16.mxu0 %v1139
        %1283 = vmatpush1.bf16.msra.mxu0 %v1150
        %1284 = vmatprep.subr.bf16.mxu0 %v1141
        %1285 = vmatpush1.bf16.msra.mxu0 %v1153
        %1286 = vmatprep.subr.bf16.mxu0 %v1115
        %1287 = vmatpush1.bf16.msra.mxu0 %v1114
        %1288 = vmatprep.subr.bf16.mxu0 %v1118
        %1289 = vmatpush1.bf16.msra.mxu0 %v1117
        %1290 = vmatprep.subr.bf16.mxu0 %v1169
        %1291 = vmatpush1.bf16.msra.mxu0 %v1168
        %1292 = vmatprep.subr.bf16.mxu0 %v1171
        %1293 = vmatpush1.bf16.msra.mxu0 %v1170
        %1294 = vmatprep.subr.bf16.mxu0 %v1277
        %1295 = vmatpush1.bf16.msra.mxu0 %v1274
        %1296 = vmatprep.subr.bf16.mxu0 0
        %1297 = vmatpush1.bf16.msra.mxu0 0
        %1298 = vmatprep.subr.bf16.mxu0 0
        %1299 = vmatpush1.bf16.msra.mxu0 0
        %1300 = vmatprep.subr.bf16.mxu0 0
        %1301 = vmatpush1.bf16.msra.mxu0 0
        %1302 = vmatprep.subr.bf16.mxu0 0
        %1303 = vmatpush1.bf16.msra.mxu0 0
        %1304 = vmatprep.subr.bf16.mxu0 0
        %1305 = vmatpush1.bf16.msra.mxu0 0
        %1306 = vmatprep.subr.bf16.mxu0 0
        %1307 = vmatpush1.bf16.msra.mxu0 0
        %1308 = vmatprep.subr.bf16.mxu0 0
        %1309 = vmatpush1.bf16.msra.mxu0 0
        %1310 = vmatprep.subr.bf16.mxu0 0
        %1311 = vmatpush1.bf16.msra.mxu0 0
        %1312 = vmatprep.subr.bf16.mxu0 0
        %1313 = vmatpush1.bf16.msra.mxu0 0
        %1314 = vmatprep.mubr.bf16.mxu0 0
        %1315 = vmatmul.mubr.bf16.gmra.mrb[0].mxu0 %v1261
        %v1316 = vpop.f32.mrb[0].mxu0
        %v1317 = vadd.f32 %v1202, %v1316
        %v1318 = vpop.f32.mrb[0].mxu0
        %v1319 = vadd.f32 %v1202, %v1318
        %v1320 = vpop.f32.mrb[0].mxu0
        %v1321 = vadd.f32 %v1207, %v1320
        %v1322 = vpop.f32.mrb[0].mxu0
        %v1323 = vadd.f32 %v1207, %v1322
        %1324 = vmatprep.mubr.bf16.mxu0 0
        %1325 = vmatmul.mubr.bf16.gmra.mrb[0].mxu0 %v1264
        %v1326 = vpop.f32.mrb[0].mxu0
        %v1327 = vadd.f32 %v1212, %v1326
        %v1328 = vpop.f32.mrb[0].mxu0
        %v1329 = vadd.f32 %v1212, %v1328
        %v1330 = vpop.f32.mrb[0].mxu0
        %v1331 = vadd.f32 %v1217, %v1330
        %v1332 = vpop.f32.mrb[0].mxu0
        %v1333 = vadd.f32 %v1217, %v1332
        %1334 = vmatprep.mubr.bf16.mxu0 0
        %1335 = vmatmul.mubr.bf16.gmra.mrb[0].mxu0 %v1267
        %v1336 = vpop.f32.mrb[0].mxu0
        %v1337 = vadd.f32 %v1222, %v1336
        %v1338 = vpop.f32.mrb[0].mxu0
        %v1339 = vadd.f32 %v1222, %v1338
        %v1340 = vpop.f32.mrb[0].mxu0
        %v1341 = vadd.f32 %v1227, %v1340
        %v1342 = vpop.f32.mrb[0].mxu0
        %v1343 = vadd.f32 %v1227, %v1342
        %1344 = vmatprep.mubr.bf16.mxu0 0
        %1345 = vmatmul.mubr.bf16.gmra.mrb[0].mxu0 %v1270
        %v1346 = vpop.f32.mrb[0].mxu0
        %v1347 = vadd.f32 %v1232, %v1346
        %v1348 = vpop.f32.mrb[0].mxu0
        %v1349 = vadd.f32 %v1232, %v1348
        %v1350 = vpop.f32.mrb[0].mxu0
        %v1351 = vadd.f32 %v1237, %v1350
        %v1352 = vpop.f32.mrb[0].mxu0
        %v1353 = vadd.f32 %v1237, %v1352
        %1354 = vdwg.mxu0
        %1355 = vmatprep.subr.bf16.mxu0 0
        %1356 = vmatpush1.bf16.msra.mxu0 %v1140
        %1357 = vmatprep.subr.bf16.mxu0 0
        %1358 = vmatpush1.bf16.msra.mxu0 %v1142
        %1359 = vmatprep.subr.bf16.mxu0 0
        %1360 = vmatpush1.bf16.msra.mxu0 %v1116
        %1361 = vmatprep.subr.bf16.mxu0 0
        %1362 = vmatpush1.bf16.msra.mxu0 %v1119
        %1363 = vmatprep.subr.bf16.mxu0 0
        %1364 = vmatpush1.bf16.msra.mxu0 %v1178
        %1365 = vmatprep.subr.bf16.mxu0 0
        %1366 = vmatpush1.bf16.msra.mxu0 %v1181
        %1367 = vmatprep.subr.bf16.mxu0 0
        %1368 = vmatpush1.bf16.msra.mxu0 %v1280
        %1369 = vmatprep.subr.bf16.mxu0 0
        %1370 = vmatpush1.bf16.msra.mxu0 0
        %1371 = vmatprep.subr.bf16.mxu0 0
        %1372 = vmatpush1.bf16.msra.mxu0 0
        %1373 = vmatprep.subr.bf16.mxu0 0
        %1374 = vmatpush1.bf16.msra.mxu0 0
        %1375 = vmatprep.subr.bf16.mxu0 0
        %1376 = vmatpush1.bf16.msra.mxu0 0
        %1377 = vmatprep.subr.bf16.mxu0 0
        %1378 = vmatpush1.bf16.msra.mxu0 0
        %1379 = vmatprep.subr.bf16.mxu0 0
        %1380 = vmatpush1.bf16.msra.mxu0 0
        %1381 = vmatprep.subr.bf16.mxu0 0
        %1382 = vmatpush1.bf16.msra.mxu0 0
        %1383 = vmatprep.subr.bf16.mxu0 0
        %1384 = vmatpush1.bf16.msra.mxu0 0
        %1385 = vmatprep.subr.bf16.mxu0 0
        %1386 = vmatpush1.bf16.msra.mxu0 0
        %1387 = vmatprep.mubr.bf16.mxu0 0
        %1388 = vmatmul.mubr.bf16.gmra.mrb[0].mxu0 %v1261
        %v1389 = vpop.f32.mrb[0].mxu0
        %v1390 = vadd.f32 %v1202, %v1389
        %v1391 = vpop.f32.mrb[0].mxu0
        %v1392 = vpop.f32.mrb[0].mxu0
        %v1393 = vadd.f32 %v1207, %v1392
        %v1394 = vpop.f32.mrb[0].mxu0
        %1395 = vmatprep.mubr.bf16.mxu0 0
        %1396 = vmatmul.mubr.bf16.gmra.mrb[0].mxu0 %v1264
        %v1397 = vpop.f32.mrb[0].mxu0
        %v1398 = vadd.f32 %v1212, %v1397
        %v1399 = vpop.f32.mrb[0].mxu0
        %v1400 = vpop.f32.mrb[0].mxu0
        %v1401 = vadd.f32 %v1217, %v1400
        %v1402 = vpop.f32.mrb[0].mxu0
        %1403 = vmatprep.mubr.bf16.mxu0 0
        %1404 = vmatmul.mubr.bf16.gmra.mrb[0].mxu0 %v1267
        %v1405 = vpop.f32.mrb[0].mxu0
        %v1406 = vadd.f32 %v1222, %v1405
        %v1407 = vpop.f32.mrb[0].mxu0
        %v1408 = vpop.f32.mrb[0].mxu0
        %v1409 = vadd.f32 %v1227, %v1408
        %v1410 = vpop.f32.mrb[0].mxu0
        %1411 = vmatprep.mubr.bf16.mxu0 0
        %1412 = vmatmul.mubr.bf16.gmra.mrb[0].mxu0 %v1270
        %v1413 = vpop.f32.mrb[0].mxu0
        %v1414 = vadd.f32 %v1232, %v1413
        %v1415 = vpop.f32.mrb[0].mxu0
        %v1416 = vpop.f32.mrb[0].mxu0
        %v1417 = vadd.f32 %v1237, %v1416
        %v1418 = vpop.f32.mrb[0].mxu0
        %1419 = vdwg.mxu0
        %v1420 = vtanh.pop %v1317
        %v1421 = vtanh.pop %v1319
        %v1422 = vtanh.pop %v1390
        %v1423 = vtanh.pop %v1321
        %v1424 = vtanh.pop %v1323
        %v1425 = vtanh.pop %v1393
        %v1426 = vtanh.pop %v1327
        %v1427 = vtanh.pop %v1329
        %v1428 = vtanh.pop %v1398
        %v1429 = vtanh.pop %v1331
        %v1430 = vtanh.pop %v1333
        %v1431 = vtanh.pop %v1401
        %v1432 = vxor.u32 %v1337, 2147483648
        %v1433 = vxor.u32 %v1339, 2147483648
        %v1434 = vxor.u32 %v1406, 2147483648
        %v1435 = vxor.u32 %v1341, 2147483648
        %v1436 = vxor.u32 %v1343, 2147483648
        %v1437 = vxor.u32 %v1409, 2147483648
        %v1438 = vxor.u32 %v1347, 2147483648
        %v1439 = vxor.u32 %v1349, 2147483648
        %v1440 = vxor.u32 %v1414, 2147483648
        %v1441 = vxor.u32 %v1351, 2147483648
        %v1442 = vxor.u32 %v1353, 2147483648
        %v1443 = vxor.u32 %v1417, 2147483648
        %v1444 = vmul.f32 %v1432, 1.442695
        %v1445 = vpow.pop %v1444
        %v1446 = vmul.f32 %v1433, 1.442695
        %v1447 = vpow.pop %v1446
        %v1448 = vmul.f32 %v1434, 1.442695
        %v1449 = vpow.pop %v1448
        %v1450 = vmul.f32 %v1435, 1.442695
        %v1451 = vpow.pop %v1450
        %v1452 = vmul.f32 %v1436, 1.442695
        %v1453 = vpow.pop %v1452
        %v1454 = vmul.f32 %v1437, 1.442695
        %v1455 = vpow.pop %v1454
        %v1456 = vmul.f32 %v1438, 1.442695
        %v1457 = vpow.pop %v1456
        %v1458 = vmul.f32 %v1439, 1.442695
        %v1459 = vpow.pop %v1458
        %v1460 = vmul.f32 %v1440, 1.442695
        %v1461 = vpow.pop %v1460
        %v1462 = vmul.f32 %v1441, 1.442695
        %v1463 = vpow.pop %v1462
        %v1464 = vmul.f32 %v1442, 1.442695
        %v1465 = vpow.pop %v1464
        %v1466 = vmul.f32 %v1443, 1.442695
        %v1467 = vpow.pop %v1466
        %v1468 = vadd.f32 %v1445, 1.0
        %v1469 = vadd.f32 %v1447, 1.0
        %v1470 = vadd.f32 %v1449, 1.0
        %v1471 = vadd.f32 %v1451, 1.0
        %v1472 = vadd.f32 %v1453, 1.0
        %v1473 = vadd.f32 %v1455, 1.0
        %v1474 = vadd.f32 %v1457, 1.0
        %v1475 = vadd.f32 %v1459, 1.0
        %v1476 = vadd.f32 %v1461, 1.0
        %v1477 = vadd.f32 %v1463, 1.0
        %v1478 = vadd.f32 %v1465, 1.0
        %v1479 = vadd.f32 %v1467, 1.0
        %v1480 = vrcp.pop %v1468
        %v1481 = vmul.f32 1.0, %v1480
        %v1482 = vrcp.pop %v1469
        %v1483 = vmul.f32 1.0, %v1482
        %v1484 = vrcp.pop %v1470
        %v1485 = vmul.f32 1.0, %v1484
        %v1486 = vrcp.pop %v1471
        %v1487 = vmul.f32 1.0, %v1486
        %v1488 = vrcp.pop %v1472
        %v1489 = vmul.f32 1.0, %v1488
        %v1490 = vrcp.pop %v1473
        %v1491 = vmul.f32 1.0, %v1490
        %v1492 = vrcp.pop %v1474
        %v1493 = vmul.f32 1.0, %v1492
        %v1494 = vrcp.pop %v1475
        %v1495 = vmul.f32 1.0, %v1494
        %v1496 = vrcp.pop %v1476
        %v1497 = vmul.f32 1.0, %v1496
        %v1498 = vrcp.pop %v1477
        %v1499 = vmul.f32 1.0, %v1498
        %v1500 = vrcp.pop %v1478
        %v1501 = vmul.f32 1.0, %v1500
        %v1502 = vrcp.pop %v1479
        %v1503 = vmul.f32 1.0, %v1502
        %v1504 = vmul.f32 %v1420, %v1481
        %v1505 = vmul.f32 %v1421, %v1483
        %v1506 = vmul.f32 %v1422, %v1485
        %v1507 = vmul.f32 %v1423, %v1487
        %v1508 = vmul.f32 %v1424, %v1489
        %v1509 = vmul.f32 %v1425, %v1491
        %v1510 = vmul.f32 %v1426, %v1493
        %v1511 = vmul.f32 %v1427, %v1495
        %v1512 = vmul.f32 %v1428, %v1497
        %v1513 = vmul.f32 %v1429, %v1499
        %v1514 = vmul.f32 %v1430, %v1501
        %v1515 = vmul.f32 %v1431, %v1503
        %v1516 = vpack.c.bf16 %v1507, %v1504
        %v1517 = vpack.c.bf16 %v1508, %v1505
        %v1518 = vpack.c.bf16 %v1509, %v1506
        %v1519 = vpack.c.bf16 %v1513, %v1510
        %v1520 = vpack.c.bf16 %v1514, %v1511
        %v1521 = vpack.c.bf16 %v1515, %v1512
        %v1522 = vld [vmem:[#allocation19] sm:$0xf]
        %v1523 = vld [vmem:[#allocation19 + $0x4] sm:$0xf]
        %v1524 = vld [vmem:[#allocation19 + $0x8] sm:$0xf]
        %v1525 = vld [vmem:[#allocation19 + $0xc] sm:$0xf]
        %v1526 = vld [vmem:[#allocation19 + $0x10] sm:$0xf]
        %v1527 = vld [vmem:[#allocation19 + $0x14] sm:$0xf]
        %v1528 = vld [vmem:[#allocation19 + $0x18] sm:$0xf]
        %v1529 = vld [vmem:[#allocation19 + $0x1c] sm:$0xf]
        %v1530 = vld [vmem:[#allocation20] sm:$0xff]
        %v1531 = vld [vmem:[#allocation20 + $0x8] sm:$0xff]
        %v1532 = vld [vmem:[#allocation20 + $0x10] sm:$0xff]
        %v1533 = vld [vmem:[#allocation20 + $0x18] sm:$0xff]
        %v1534 = vld [vmem:[#allocation20 + $0x20] sm:$0xff]
        %v1535 = vld [vmem:[#allocation20 + $0x28] sm:$0xff]
        %v1536 = vld [vmem:[#allocation20 + $0x30] sm:$0xff]
        %v1537 = vld [vmem:[#allocation20 + $0x38] sm:$0xff]
        %1539 = vset.pattern.permute.xlu0 0
        %1540 = vperm.xlu0 %1539, %v1530
        %v1541 = vpop.permute.xlu0 %1540
        %1544 = vset.pattern.permute.xlu0 0
        %1545 = vperm.xlu0 %1544, %v1531
        %v1546 = vpop.permute.xlu0 %1545
        %1549 = vset.pattern.permute.xlu0 0
        %1550 = vperm.xlu0 %1549, %v1532
        %v1551 = vpop.permute.xlu0 %1550
        %1554 = vset.pattern.permute.xlu0 0
        %1555 = vperm.xlu0 %1554, %v1533
        %v1556 = vpop.permute.xlu0 %1555
        %1559 = vset.pattern.permute.xlu0 0
        %1560 = vperm.xlu0 %1559, %v1534
        %v1561 = vpop.permute.xlu0 %1560
        %1564 = vset.pattern.permute.xlu0 0
        %1565 = vperm.xlu0 %1564, %v1535
        %v1566 = vpop.permute.xlu0 %1565
        %1569 = vset.pattern.permute.xlu0 0
        %1570 = vperm.xlu0 %1569, %v1536
        %v1571 = vpop.permute.xlu0 %1570
        %1574 = vset.pattern.permute.xlu0 0
        %1575 = vperm.xlu0 %1574, %v1537
        %v1576 = vpop.permute.xlu0 %1575
        %v1586 = vunpack.c.l.b16 %v1522
        %v1587 = vunpack.c.l.b16 %v1523
        %v1588 = vunpack.c.l.b16 %v1524
        %v1589 = vunpack.c.l.b16 %v1525
        %v1590 = vunpack.c.l.b16 %v1526
        %v1591 = vunpack.c.l.b16 %v1527
        %v1592 = vunpack.c.l.b16 %v1528
        %v1593 = vunpack.c.l.b16 %v1529
        %v1594 = vpack.c.b16 %v1587, %v1586
        %v1595 = vpack.c.b16 %v1589, %v1588
        %v1596 = vpack.c.b16 %v1591, %v1590
        %v1597 = vpack.c.b16 %v1593, %v1592
        %vm1598 = vcmask 261120
        %v1600 = vsel %vm1598, %v1594, 0
        %v1603 = vsel %vm1598, %v1595, 0
        %v1606 = vsel %vm1598, %v1596, 0
        %v1609 = vsel %vm1598, %v1597, 0
        %1611 = vmatprep.subr.bf16.mxu0 %v1517
        %1612 = vmatpush1.bf16.msra.mxu0 %v1516
        %1613 = vmatprep.subr.bf16.mxu0 %v1520
        %1614 = vmatpush1.bf16.msra.mxu0 %v1519
        %1615 = vmatprep.subr.bf16.mxu0 0
        %1616 = vmatpush1.bf16.msra.mxu0 0
        %1617 = vmatprep.subr.bf16.mxu0 0
        %1618 = vmatpush1.bf16.msra.mxu0 0
        %1619 = vmatprep.subr.bf16.mxu0 0
        %1620 = vmatpush1.bf16.msra.mxu0 0
        %1621 = vmatprep.subr.bf16.mxu0 0
        %1622 = vmatpush1.bf16.msra.mxu0 0
        %1623 = vmatprep.subr.bf16.mxu0 0
        %1624 = vmatpush1.bf16.msra.mxu0 0
        %1625 = vmatprep.subr.bf16.mxu0 0
        %1626 = vmatpush1.bf16.msra.mxu0 0
        %1627 = vmatprep.subr.bf16.mxu0 0
        %1628 = vmatpush1.bf16.msra.mxu0 0
        %1629 = vmatprep.subr.bf16.mxu0 0
        %1630 = vmatpush1.bf16.msra.mxu0 0
        %1631 = vmatprep.subr.bf16.mxu0 0
        %1632 = vmatpush1.bf16.msra.mxu0 0
        %1633 = vmatprep.subr.bf16.mxu0 0
        %1634 = vmatpush1.bf16.msra.mxu0 0
        %1635 = vmatprep.subr.bf16.mxu0 0
        %1636 = vmatpush1.bf16.msra.mxu0 0
        %1637 = vmatprep.subr.bf16.mxu0 0
        %1638 = vmatpush1.bf16.msra.mxu0 0
        %1639 = vmatprep.subr.bf16.mxu0 0
        %1640 = vmatpush1.bf16.msra.mxu0 0
        %1641 = vmatprep.subr.bf16.mxu0 0
        %1642 = vmatpush1.bf16.msra.mxu0 0
        %1643 = vmatprep.mubr.bf16.mxu0 0
        %1644 = vmatmul.mubr.bf16.gmra.mrb[0].mxu0 %v1600
        %v1645 = vpop.f32.mrb[0].mxu0
        %v1646 = vadd.f32 %v1541, %v1645
        %v1647 = vpop.f32.mrb[0].mxu0
        %v1648 = vadd.f32 %v1541, %v1647
        %v1649 = vpop.f32.mrb[0].mxu0
        %v1650 = vadd.f32 %v1546, %v1649
        %v1651 = vpop.f32.mrb[0].mxu0
        %v1652 = vadd.f32 %v1546, %v1651
        %1653 = vmatprep.mubr.bf16.mxu0 0
        %1654 = vmatmul.mubr.bf16.gmra.mrb[0].mxu0 %v1603
        %v1655 = vpop.f32.mrb[0].mxu0
        %v1656 = vadd.f32 %v1551, %v1655
        %v1657 = vpop.f32.mrb[0].mxu0
        %v1658 = vadd.f32 %v1551, %v1657
        %v1659 = vpop.f32.mrb[0].mxu0
        %v1660 = vadd.f32 %v1556, %v1659
        %v1661 = vpop.f32.mrb[0].mxu0
        %v1662 = vadd.f32 %v1556, %v1661
        %1663 = vmatprep.mubr.bf16.mxu0 0
        %1664 = vmatmul.mubr.bf16.gmra.mrb[0].mxu0 %v1606
        %v1665 = vpop.f32.mrb[0].mxu0
        %v1666 = vpop.f32.mrb[0].mxu0
        %v1667 = vadd.f32 %v1561, %v1666
        %v1668 = vpop.f32.mrb[0].mxu0
        %v1669 = vpop.f32.mrb[0].mxu0
        %v1670 = vadd.f32 %v1566, %v1669
        %1671 = vmatprep.mubr.bf16.mxu0 0
        %1672 = vmatmul.mubr.bf16.gmra.mrb[0].mxu0 %v1609
        %v1673 = vpop.f32.mrb[0].mxu0
        %v1674 = vpop.f32.mrb[0].mxu0
        %v1675 = vadd.f32 %v1571, %v1674
        %v1676 = vpop.f32.mrb[0].mxu0
        %v1677 = vpop.f32.mrb[0].mxu0
        %v1678 = vadd.f32 %v1576, %v1677
        %1679 = vdwg.mxu0
        %1680 = vmatprep.subr.bf16.mxu0 0
        %1681 = vmatpush1.bf16.msra.mxu0 %v1518
        %1682 = vmatprep.subr.bf16.mxu0 0
        %1683 = vmatpush1.bf16.msra.mxu0 %v1521
        %1684 = vmatprep.subr.bf16.mxu0 0
        %1685 = vmatpush1.bf16.msra.mxu0 0
        %1686 = vmatprep.subr.bf16.mxu0 0
        %1687 = vmatpush1.bf16.msra.mxu0 0
        %1688 = vmatprep.subr.bf16.mxu0 0
        %1689 = vmatpush1.bf16.msra.mxu0 0
        %1690 = vmatprep.subr.bf16.mxu0 0
        %1691 = vmatpush1.bf16.msra.mxu0 0
        %1692 = vmatprep.subr.bf16.mxu0 0
        %1693 = vmatpush1.bf16.msra.mxu0 0
        %1694 = vmatprep.subr.bf16.mxu0 0
        %1695 = vmatpush1.bf16.msra.mxu0 0
        %1696 = vmatprep.subr.bf16.mxu0 0
        %1697 = vmatpush1.bf16.msra.mxu0 0
        %1698 = vmatprep.subr.bf16.mxu0 0
        %1699 = vmatpush1.bf16.msra.mxu0 0
        %1700 = vmatprep.subr.bf16.mxu0 0
        %1701 = vmatpush1.bf16.msra.mxu0 0
        %1702 = vmatprep.subr.bf16.mxu0 0
        %1703 = vmatpush1.bf16.msra.mxu0 0
        %1704 = vmatprep.subr.bf16.mxu0 0
        %1705 = vmatpush1.bf16.msra.mxu0 0
        %1706 = vmatprep.subr.bf16.mxu0 0
        %1707 = vmatpush1.bf16.msra.mxu0 0
        %1708 = vmatprep.subr.bf16.mxu0 0
        %1709 = vmatpush1.bf16.msra.mxu0 0
        %1710 = vmatprep.subr.bf16.mxu0 0
        %1711 = vmatpush1.bf16.msra.mxu0 0
        %1712 = vmatprep.mubr.bf16.mxu0 0
        %1713 = vmatmul.mubr.bf16.gmra.mrb[0].mxu0 %v1600
        %v1714 = vpop.f32.mrb[0].mxu0
        %v1715 = vadd.f32 %v1541, %v1714
        %v1716 = vpop.f32.mrb[0].mxu0
        %v1717 = vpop.f32.mrb[0].mxu0
        %v1718 = vadd.f32 %v1546, %v1717
        %v1719 = vpop.f32.mrb[0].mxu0
        %1720 = vmatprep.mubr.bf16.mxu0 0
        %1721 = vmatmul.mubr.bf16.gmra.mrb[0].mxu0 %v1603
        %v1722 = vpop.f32.mrb[0].mxu0
        %v1723 = vadd.f32 %v1551, %v1722
        %v1724 = vpop.f32.mrb[0].mxu0
        %v1725 = vpop.f32.mrb[0].mxu0
        %v1726 = vadd.f32 %v1556, %v1725
        %v1727 = vpop.f32.mrb[0].mxu0
        %1728 = vmatprep.mubr.bf16.mxu0 0
        %1729 = vmatmul.mubr.bf16.gmra.mrb[0].mxu0 %v1606
        %v1730 = vpop.f32.mrb[0].mxu0
        %v1731 = vpop.f32.mrb[0].mxu0
        %v1732 = vpop.f32.mrb[0].mxu0
        %v1733 = vpop.f32.mrb[0].mxu0
        %1734 = vmatprep.mubr.bf16.mxu0 0
        %1735 = vmatmul.mubr.bf16.gmra.mrb[0].mxu0 %v1609
        %v1736 = vpop.f32.mrb[0].mxu0
        %v1737 = vpop.f32.mrb[0].mxu0
        %v1738 = vpop.f32.mrb[0].mxu0
        %v1739 = vpop.f32.mrb[0].mxu0
        %1740 = vdwg.mxu0
        %v1741 = vadd.f32 %v1029, %v1646
        %v1742 = vadd.f32 %v1031, %v1648
        %v1743 = vadd.f32 %v1082, %v1715
        %v1744 = vadd.f32 %v1033, %v1650
        %v1745 = vadd.f32 %v1035, %v1652
        %v1746 = vadd.f32 %v1085, %v1718
        %v1747 = vadd.f32 %v1039, %v1656
        %v1748 = vadd.f32 %v1041, %v1658
        %v1749 = vadd.f32 %v1090, %v1723
        %v1750 = vadd.f32 %v1043, %v1660
        %v1751 = vadd.f32 %v1045, %v1662
        %v1752 = vadd.f32 %v1093, %v1726
        %v1753 = vadd.f32 %v1667, 0.0
        %v1754 = vadd.f32 %v1670, 0.0
        %v1755 = vadd.f32 %v1675, 0.0
        %v1756 = vadd.f32 %v1678, 0.0
        %v1757 = vsel %vm1099, %v1741, 0.0
        %v1758 = vsel %vm1100, %v1742, 0.0
        %v1759 = vsel %vm1101, %v1743, 0.0
        %v1760 = vsel %vm1099, %v1744, 0.0
        %v1761 = vsel %vm1100, %v1745, 0.0
        %v1762 = vsel %vm1101, %v1746, 0.0
        %v1763 = vsel %vm1099, %v1747, 0.0
        %v1764 = vsel %vm1100, %v1748, 0.0
        %v1765 = vsel %vm1101, %v1749, 0.0
        %v1766 = vsel %vm1099, %v1750, 0.0
        %v1767 = vsel %vm1100, %v1751, 0.0
        %v1768 = vsel %vm1101, %v1752, 0.0
        %v1769 = vpack.c.bf16 %v1760, %v1757
        %v1770 = vpack.c.bf16 %v1761, %v1758
        %v1771 = vpack.c.bf16 %v1762, %v1759
        %v1772 = vpack.c.bf16 %v1766, %v1763
        %v1773 = vpack.c.bf16 %v1767, %v1764
        %v1774 = vpack.c.bf16 %v1768, %v1765
        %1781 = vrot.lane.b32.xlu0 %v1769, 2
        %v1782 = vpop.permute.xlu0 %1781
        %1783 = vrot.lane.b32.xlu0 %v1770, 2
        %v1784 = vpop.permute.xlu0 %1783
        %1785 = vrot.lane.b32.xlu0 %v1771, 2
        %v1786 = vpop.permute.xlu0 %1785
        %1787 = vrot.lane.b32.xlu0 %v1772, 2
        %v1788 = vpop.permute.xlu0 %1787
        %1789 = vrot.lane.b32.xlu0 %v1773, 2
        %v1790 = vpop.permute.xlu0 %1789
        %1791 = vrot.lane.b32.xlu0 %v1774, 2
        %v1792 = vpop.permute.xlu0 %1791
        %vm1793 = vcmask 15360
        %v1794 = vsel %vm1793, %v1782, %v1784
        %v1795 = vsel %vm1793, %v1784, %v1786
        %v1796 = vsel %vm1793, %v1788, %v1790
        %v1797 = vsel %vm1793, %v1790, %v1792
        %vm1802 = vcmask 15360
        %v1804 = vsel %vm1802, 0, %v1782
        %v1807 = vsel %vm1802, 0, %v1788
        %1809 = vrot.lane.b32.xlu0 %v1769, 126
        %v1810 = vpop.permute.xlu0 %1809
        %1811 = vrot.lane.b32.xlu0 %v1770, 126
        %v1812 = vpop.permute.xlu0 %1811
        %1813 = vrot.lane.b32.xlu0 %v1771, 126
        %v1814 = vpop.permute.xlu0 %1813
        %1815 = vrot.lane.b32.xlu0 %v1772, 126
        %v1816 = vpop.permute.xlu0 %1815
        %1817 = vrot.lane.b32.xlu0 %v1773, 126
        %v1818 = vpop.permute.xlu0 %1817
        %1819 = vrot.lane.b32.xlu0 %v1774, 126
        %v1820 = vpop.permute.xlu0 %1819
        %vm1821 = vcmask 1031168
        %v1822 = vsel %vm1821, %v1810, %v1812
        %v1823 = vsel %vm1821, %v1812, %v1814
        %v1824 = vsel %vm1821, %v1816, %v1818
        %v1825 = vsel %vm1821, %v1818, %v1820
        %vm1830 = vcmask 1031168
        %v1832 = vsel %vm1830, %v1814, 0
        %v1835 = vsel %vm1830, %v1820, 0
        %s1837 = scalar_lea.vmem [#allocation17], 32
        %v1838 = vld [vmem:[%s1837] sm:$0xf]
        %v1839 = vld [vmem:[%s1837 + $0x4] sm:$0xf]
        %v1840 = vld [vmem:[%s1837 + $0x8] sm:$0xf]
        %v1841 = vld [vmem:[%s1837 + $0xc] sm:$0xf]
        %v1842 = vld [vmem:[%s1837 + $0x10] sm:$0xf]
        %v1843 = vld [vmem:[%s1837 + $0x14] sm:$0xf]
        %v1844 = vld [vmem:[%s1837 + $0x18] sm:$0xf]
        %v1845 = vld [vmem:[%s1837 + $0x1c] sm:$0xf]
        %s1846 = scalar_lea.vmem [#allocation16], 64
        %v1847 = vld [vmem:[%s1846] sm:$0xff]
        %v1848 = vld [vmem:[%s1846 + $0x8] sm:$0xff]
        %v1849 = vld [vmem:[%s1846 + $0x10] sm:$0xff]
        %v1850 = vld [vmem:[%s1846 + $0x18] sm:$0xff]
        %v1851 = vld [vmem:[%s1846 + $0x20] sm:$0xff]
        %v1852 = vld [vmem:[%s1846 + $0x28] sm:$0xff]
        %v1853 = vld [vmem:[%s1846 + $0x30] sm:$0xff]
        %v1854 = vld [vmem:[%s1846 + $0x38] sm:$0xff]
        %1856 = vset.pattern.permute.xlu0 0
        %1857 = vperm.xlu0 %1856, %v1847
        %v1858 = vpop.permute.xlu0 %1857
        %1861 = vset.pattern.permute.xlu0 0
        %1862 = vperm.xlu0 %1861, %v1848
        %v1863 = vpop.permute.xlu0 %1862
        %1866 = vset.pattern.permute.xlu0 0
        %1867 = vperm.xlu0 %1866, %v1849
        %v1868 = vpop.permute.xlu0 %1867
        %1871 = vset.pattern.permute.xlu0 0
        %1872 = vperm.xlu0 %1871, %v1850
        %v1873 = vpop.permute.xlu0 %1872
        %1876 = vset.pattern.permute.xlu0 0
        %1877 = vperm.xlu0 %1876, %v1851
        %v1878 = vpop.permute.xlu0 %1877
        %1881 = vset.pattern.permute.xlu0 0
        %1882 = vperm.xlu0 %1881, %v1852
        %v1883 = vpop.permute.xlu0 %1882
        %1886 = vset.pattern.permute.xlu0 0
        %1887 = vperm.xlu0 %1886, %v1853
        %v1888 = vpop.permute.xlu0 %1887
        %1891 = vset.pattern.permute.xlu0 0
        %1892 = vperm.xlu0 %1891, %v1854
        %v1893 = vpop.permute.xlu0 %1892
        %v1903 = vunpack.c.l.b16 %v1838
        %v1904 = vunpack.c.l.b16 %v1839
        %v1905 = vunpack.c.l.b16 %v1840
        %v1906 = vunpack.c.l.b16 %v1841
        %v1907 = vunpack.c.l.b16 %v1842
        %v1908 = vunpack.c.l.b16 %v1843
        %v1909 = vunpack.c.l.b16 %v1844
        %v1910 = vunpack.c.l.b16 %v1845
        %v1911 = vpack.c.b16 %v1904, %v1903
        %v1912 = vpack.c.b16 %v1906, %v1905
        %v1913 = vpack.c.b16 %v1908, %v1907
        %v1914 = vpack.c.b16 %v1910, %v1909
        %v1916 = vsel %vm1259, %v1911, 0
        %v1919 = vsel %vm1259, %v1912, 0
        %v1922 = vsel %vm1259, %v1913, 0
        %v1925 = vsel %vm1259, %v1914, 0
        %1927 = vmatprep.subr.bf16.mxu0 %v1794
        %1928 = vmatpush1.bf16.msra.mxu0 %v1804
        %1929 = vmatprep.subr.bf16.mxu0 %v1796
        %1930 = vmatpush1.bf16.msra.mxu0 %v1807
        %1931 = vmatprep.subr.bf16.mxu0 %v1770
        %1932 = vmatpush1.bf16.msra.mxu0 %v1769
        %1933 = vmatprep.subr.bf16.mxu0 %v1773
        %1934 = vmatpush1.bf16.msra.mxu0 %v1772
        %1935 = vmatprep.subr.bf16.mxu0 %v1823
        %1936 = vmatpush1.bf16.msra.mxu0 %v1822
        %1937 = vmatprep.subr.bf16.mxu0 %v1825
        %1938 = vmatpush1.bf16.msra.mxu0 %v1824
        %1939 = vmatprep.subr.bf16.mxu0 %v1277
        %1940 = vmatpush1.bf16.msra.mxu0 %v1274
        %1941 = vmatprep.subr.bf16.mxu0 0
        %1942 = vmatpush1.bf16.msra.mxu0 0
        %1943 = vmatprep.subr.bf16.mxu0 0
        %1944 = vmatpush1.bf16.msra.mxu0 0
        %1945 = vmatprep.subr.bf16.mxu0 0
        %1946 = vmatpush1.bf16.msra.mxu0 0
        %1947 = vmatprep.subr.bf16.mxu0 0
        %1948 = vmatpush1.bf16.msra.mxu0 0
        %1949 = vmatprep.subr.bf16.mxu0 0
        %1950 = vmatpush1.bf16.msra.mxu0 0
        %1951 = vmatprep.subr.bf16.mxu0 0
        %1952 = vmatpush1.bf16.msra.mxu0 0
        %1953 = vmatprep.subr.bf16.mxu0 0
        %1954 = vmatpush1.bf16.msra.mxu0 0
        %1955 = vmatprep.subr.bf16.mxu0 0
        %1956 = vmatpush1.bf16.msra.mxu0 0
        %1957 = vmatprep.subr.bf16.mxu0 0
        %1958 = vmatpush1.bf16.msra.mxu0 0
        %1959 = vmatprep.mubr.bf16.mxu0 0
        %1960 = vmatmul.mubr.bf16.gmra.mrb[0].mxu0 %v1916
        %v1961 = vpop.f32.mrb[0].mxu0
        %v1962 = vadd.f32 %v1858, %v1961
        %v1963 = vpop.f32.mrb[0].mxu0
        %v1964 = vadd.f32 %v1858, %v1963
        %v1965 = vpop.f32.mrb[0].mxu0
        %v1966 = vadd.f32 %v1863, %v1965
        %v1967 = vpop.f32.mrb[0].mxu0
        %v1968 = vadd.f32 %v1863, %v1967
        %1969 = vmatprep.mubr.bf16.mxu0 0
        %1970 = vmatmul.mubr.bf16.gmra.mrb[0].mxu0 %v1919
        %v1971 = vpop.f32.mrb[0].mxu0
        %v1972 = vadd.f32 %v1868, %v1971
        %v1973 = vpop.f32.mrb[0].mxu0
        %v1974 = vadd.f32 %v1868, %v1973
        %v1975 = vpop.f32.mrb[0].mxu0
        %v1976 = vadd.f32 %v1873, %v1975
        %v1977 = vpop.f32.mrb[0].mxu0
        %v1978 = vadd.f32 %v1873, %v1977
        %1979 = vmatprep.mubr.bf16.mxu0 0
        %1980 = vmatmul.mubr.bf16.gmra.mrb[0].mxu0 %v1922
        %v1981 = vpop.f32.mrb[0].mxu0
        %v1982 = vadd.f32 %v1878, %v1981
        %v1983 = vpop.f32.mrb[0].mxu0
        %v1984 = vadd.f32 %v1878, %v1983
        %v1985 = vpop.f32.mrb[0].mxu0
        %v1986 = vadd.f32 %v1883, %v1985
        %v1987 = vpop.f32.mrb[0].mxu0
        %v1988 = vadd.f32 %v1883, %v1987
        %1989 = vmatprep.mubr.bf16.mxu0 0
        %1990 = vmatmul.mubr.bf16.gmra.mrb[0].mxu0 %v1925
        %v1991 = vpop.f32.mrb[0].mxu0
        %v1992 = vadd.f32 %v1888, %v1991
        %v1993 = vpop.f32.mrb[0].mxu0
        %v1994 = vadd.f32 %v1888, %v1993
        %v1995 = vpop.f32.mrb[0].mxu0
        %v1996 = vadd.f32 %v1893, %v1995
        %v1997 = vpop.f32.mrb[0].mxu0
        %v1998 = vadd.f32 %v1893, %v1997
        %1999 = vdwg.mxu0
        %2000 = vmatprep.subr.bf16.mxu0 0
        %2001 = vmatpush1.bf16.msra.mxu0 %v1795
        %2002 = vmatprep.subr.bf16.mxu0 0
        %2003 = vmatpush1.bf16.msra.mxu0 %v1797
        %2004 = vmatprep.subr.bf16.mxu0 0
        %2005 = vmatpush1.bf16.msra.mxu0 %v1771
        %2006 = vmatprep.subr.bf16.mxu0 0
        %2007 = vmatpush1.bf16.msra.mxu0 %v1774
        %2008 = vmatprep.subr.bf16.mxu0 0
        %2009 = vmatpush1.bf16.msra.mxu0 %v1832
        %2010 = vmatprep.subr.bf16.mxu0 0
        %2011 = vmatpush1.bf16.msra.mxu0 %v1835
        %2012 = vmatprep.subr.bf16.mxu0 0
        %2013 = vmatpush1.bf16.msra.mxu0 %v1280
        %2014 = vmatprep.subr.bf16.mxu0 0
        %2015 = vmatpush1.bf16.msra.mxu0 0
        %2016 = vmatprep.subr.bf16.mxu0 0
        %2017 = vmatpush1.bf16.msra.mxu0 0
        %2018 = vmatprep.subr.bf16.mxu0 0
        %2019 = vmatpush1.bf16.msra.mxu0 0
        %2020 = vmatprep.subr.bf16.mxu0 0
        %2021 = vmatpush1.bf16.msra.mxu0 0
        %2022 = vmatprep.subr.bf16.mxu0 0
        %2023 = vmatpush1.bf16.msra.mxu0 0
        %2024 = vmatprep.subr.bf16.mxu0 0
        %2025 = vmatpush1.bf16.msra.mxu0 0
        %2026 = vmatprep.subr.bf16.mxu0 0
        %2027 = vmatpush1.bf16.msra.mxu0 0
        %2028 = vmatprep.subr.bf16.mxu0 0
        %2029 = vmatpush1.bf16.msra.mxu0 0
        %2030 = vmatprep.subr.bf16.mxu0 0
        %2031 = vmatpush1.bf16.msra.mxu0 0
        %2032 = vmatprep.mubr.bf16.mxu0 0
        %2033 = vmatmul.mubr.bf16.gmra.mrb[0].mxu0 %v1916
        %v2034 = vpop.f32.mrb[0].mxu0
        %v2035 = vadd.f32 %v1858, %v2034
        %v2036 = vpop.f32.mrb[0].mxu0
        %v2037 = vpop.f32.mrb[0].mxu0
        %v2038 = vadd.f32 %v1863, %v2037
        %v2039 = vpop.f32.mrb[0].mxu0
        %2040 = vmatprep.mubr.bf16.mxu0 0
        %2041 = vmatmul.mubr.bf16.gmra.mrb[0].mxu0 %v1919
        %v2042 = vpop.f32.mrb[0].mxu0
        %v2043 = vadd.f32 %v1868, %v2042
        %v2044 = vpop.f32.mrb[0].mxu0
        %v2045 = vpop.f32.mrb[0].mxu0
        %v2046 = vadd.f32 %v1873, %v2045
        %v2047 = vpop.f32.mrb[0].mxu0
        %2048 = vmatprep.mubr.bf16.mxu0 0
        %2049 = vmatmul.mubr.bf16.gmra.mrb[0].mxu0 %v1922
        %v2050 = vpop.f32.mrb[0].mxu0
        %v2051 = vadd.f32 %v1878, %v2050
        %v2052 = vpop.f32.mrb[0].mxu0
        %v2053 = vpop.f32.mrb[0].mxu0
        %v2054 = vadd.f32 %v1883, %v2053
        %v2055 = vpop.f32.mrb[0].mxu0
        %2056 = vmatprep.mubr.bf16.mxu0 0
        %2057 = vmatmul.mubr.bf16.gmra.mrb[0].mxu0 %v1925
        %v2058 = vpop.f32.mrb[0].mxu0
        %v2059 = vadd.f32 %v1888, %v2058
        %v2060 = vpop.f32.mrb[0].mxu0
        %v2061 = vpop.f32.mrb[0].mxu0
        %v2062 = vadd.f32 %v1893, %v2061
        %v2063 = vpop.f32.mrb[0].mxu0
        %2064 = vdwg.mxu0
        %v2065 = vtanh.pop %v1962
        %v2066 = vtanh.pop %v1964
        %v2067 = vtanh.pop %v2035
        %v2068 = vtanh.pop %v1966
        %v2069 = vtanh.pop %v1968
        %v2070 = vtanh.pop %v2038
        %v2071 = vtanh.pop %v1972
        %v2072 = vtanh.pop %v1974
        %v2073 = vtanh.pop %v2043
        %v2074 = vtanh.pop %v1976
        %v2075 = vtanh.pop %v1978
        %v2076 = vtanh.pop %v2046
        %v2077 = vxor.u32 %v1982, 2147483648
        %v2078 = vxor.u32 %v1984, 2147483648
        %v2079 = vxor.u32 %v2051, 2147483648
        %v2080 = vxor.u32 %v1986, 2147483648
        %v2081 = vxor.u32 %v1988, 2147483648
        %v2082 = vxor.u32 %v2054, 2147483648
        %v2083 = vxor.u32 %v1992, 2147483648
        %v2084 = vxor.u32 %v1994, 2147483648
        %v2085 = vxor.u32 %v2059, 2147483648
        %v2086 = vxor.u32 %v1996, 2147483648
        %v2087 = vxor.u32 %v1998, 2147483648
        %v2088 = vxor.u32 %v2062, 2147483648
        %v2089 = vmul.f32 %v2077, 1.442695
        %v2090 = vpow.pop %v2089
        %v2091 = vmul.f32 %v2078, 1.442695
        %v2092 = vpow.pop %v2091
        %v2093 = vmul.f32 %v2079, 1.442695
        %v2094 = vpow.pop %v2093
        %v2095 = vmul.f32 %v2080, 1.442695
        %v2096 = vpow.pop %v2095
        %v2097 = vmul.f32 %v2081, 1.442695
        %v2098 = vpow.pop %v2097
        %v2099 = vmul.f32 %v2082, 1.442695
        %v2100 = vpow.pop %v2099
        %v2101 = vmul.f32 %v2083, 1.442695
        %v2102 = vpow.pop %v2101
        %v2103 = vmul.f32 %v2084, 1.442695
        %v2104 = vpow.pop %v2103
        %v2105 = vmul.f32 %v2085, 1.442695
        %v2106 = vpow.pop %v2105
        %v2107 = vmul.f32 %v2086, 1.442695
        %v2108 = vpow.pop %v2107
        %v2109 = vmul.f32 %v2087, 1.442695
        %v2110 = vpow.pop %v2109
        %v2111 = vmul.f32 %v2088, 1.442695
        %v2112 = vpow.pop %v2111
        %v2113 = vadd.f32 %v2090, 1.0
        %v2114 = vadd.f32 %v2092, 1.0
        %v2115 = vadd.f32 %v2094, 1.0
        %v2116 = vadd.f32 %v2096, 1.0
        %v2117 = vadd.f32 %v2098, 1.0
        %v2118 = vadd.f32 %v2100, 1.0
        %v2119 = vadd.f32 %v2102, 1.0
        %v2120 = vadd.f32 %v2104, 1.0
        %v2121 = vadd.f32 %v2106, 1.0
        %v2122 = vadd.f32 %v2108, 1.0
        %v2123 = vadd.f32 %v2110, 1.0
        %v2124 = vadd.f32 %v2112, 1.0
        %v2125 = vrcp.pop %v2113
        %v2126 = vmul.f32 1.0, %v2125
        %v2127 = vrcp.pop %v2114
        %v2128 = vmul.f32 1.0, %v2127
        %v2129 = vrcp.pop %v2115
        %v2130 = vmul.f32 1.0, %v2129
        %v2131 = vrcp.pop %v2116
        %v2132 = vmul.f32 1.0, %v2131
        %v2133 = vrcp.pop %v2117
        %v2134 = vmul.f32 1.0, %v2133
        %v2135 = vrcp.pop %v2118
        %v2136 = vmul.f32 1.0, %v2135
        %v2137 = vrcp.pop %v2119
        %v2138 = vmul.f32 1.0, %v2137
        %v2139 = vrcp.pop %v2120
        %v2140 = vmul.f32 1.0, %v2139
        %v2141 = vrcp.pop %v2121
        %v2142 = vmul.f32 1.0, %v2141
        %v2143 = vrcp.pop %v2122
        %v2144 = vmul.f32 1.0, %v2143
        %v2145 = vrcp.pop %v2123
        %v2146 = vmul.f32 1.0, %v2145
        %v2147 = vrcp.pop %v2124
        %v2148 = vmul.f32 1.0, %v2147
        %v2149 = vmul.f32 %v2065, %v2126
        %v2150 = vmul.f32 %v2066, %v2128
        %v2151 = vmul.f32 %v2067, %v2130
        %v2152 = vmul.f32 %v2068, %v2132
        %v2153 = vmul.f32 %v2069, %v2134
        %v2154 = vmul.f32 %v2070, %v2136
        %v2155 = vmul.f32 %v2071, %v2138
        %v2156 = vmul.f32 %v2072, %v2140
        %v2157 = vmul.f32 %v2073, %v2142
        %v2158 = vmul.f32 %v2074, %v2144
        %v2159 = vmul.f32 %v2075, %v2146
        %v2160 = vmul.f32 %v2076, %v2148
        %v2161 = vpack.c.bf16 %v2152, %v2149
        %v2162 = vpack.c.bf16 %v2153, %v2150
        %v2163 = vpack.c.bf16 %v2154, %v2151
        %v2164 = vpack.c.bf16 %v2158, %v2155
        %v2165 = vpack.c.bf16 %v2159, %v2156
        %v2166 = vpack.c.bf16 %v2160, %v2157
        %s2167 = scalar_lea.vmem [#allocation19], 32
        %v2168 = vld [vmem:[%s2167] sm:$0xf]
        %v2169 = vld [vmem:[%s2167 + $0x4] sm:$0xf]
        %v2170 = vld [vmem:[%s2167 + $0x8] sm:$0xf]
        %v2171 = vld [vmem:[%s2167 + $0xc] sm:$0xf]
        %v2172 = vld [vmem:[%s2167 + $0x10] sm:$0xf]
        %v2173 = vld [vmem:[%s2167 + $0x14] sm:$0xf]
        %v2174 = vld [vmem:[%s2167 + $0x18] sm:$0xf]
        %v2175 = vld [vmem:[%s2167 + $0x1c] sm:$0xf]
        %s2176 = scalar_lea.vmem [#allocation20], 64
        %v2177 = vld [vmem:[%s2176] sm:$0xff]
        %v2178 = vld [vmem:[%s2176 + $0x8] sm:$0xff]
        %v2179 = vld [vmem:[%s2176 + $0x10] sm:$0xff]
        %v2180 = vld [vmem:[%s2176 + $0x18] sm:$0xff]
        %v2181 = vld [vmem:[%s2176 + $0x20] sm:$0xff]
        %v2182 = vld [vmem:[%s2176 + $0x28] sm:$0xff]
        %v2183 = vld [vmem:[%s2176 + $0x30] sm:$0xff]
        %v2184 = vld [vmem:[%s2176 + $0x38] sm:$0xff]
        %2186 = vset.pattern.permute.xlu0 0
        %2187 = vperm.xlu0 %2186, %v2177
        %v2188 = vpop.permute.xlu0 %2187
        %2191 = vset.pattern.permute.xlu0 0
        %2192 = vperm.xlu0 %2191, %v2178
        %v2193 = vpop.permute.xlu0 %2192
        %2196 = vset.pattern.permute.xlu0 0
        %2197 = vperm.xlu0 %2196, %v2179
        %v2198 = vpop.permute.xlu0 %2197
        %2201 = vset.pattern.permute.xlu0 0
        %2202 = vperm.xlu0 %2201, %v2180
        %v2203 = vpop.permute.xlu0 %2202
        %2206 = vset.pattern.permute.xlu0 0
        %2207 = vperm.xlu0 %2206, %v2181
        %v2208 = vpop.permute.xlu0 %2207
        %2211 = vset.pattern.permute.xlu0 0
        %2212 = vperm.xlu0 %2211, %v2182
        %v2213 = vpop.permute.xlu0 %2212
        %2216 = vset.pattern.permute.xlu0 0
        %2217 = vperm.xlu0 %2216, %v2183
        %v2218 = vpop.permute.xlu0 %2217
        %2221 = vset.pattern.permute.xlu0 0
        %2222 = vperm.xlu0 %2221, %v2184
        %v2223 = vpop.permute.xlu0 %2222
        %v2233 = vunpack.c.l.b16 %v2168
        %v2234 = vunpack.c.l.b16 %v2169
        %v2235 = vunpack.c.l.b16 %v2170
        %v2236 = vunpack.c.l.b16 %v2171
        %v2237 = vunpack.c.l.b16 %v2172
        %v2238 = vunpack.c.l.b16 %v2173
        %v2239 = vunpack.c.l.b16 %v2174
        %v2240 = vunpack.c.l.b16 %v2175
        %v2241 = vpack.c.b16 %v2234, %v2233
        %v2242 = vpack.c.b16 %v2236, %v2235
        %v2243 = vpack.c.b16 %v2238, %v2237
        %v2244 = vpack.c.b16 %v2240, %v2239
        %v2246 = vsel %vm1598, %v2241, 0
        %v2249 = vsel %vm1598, %v2242, 0
        %v2252 = vsel %vm1598, %v2243, 0
        %v2255 = vsel %vm1598, %v2244, 0
        %2257 = vmatprep.subr.bf16.mxu0 %v2162
        %2258 = vmatpush1.bf16.msra.mxu0 %v2161
        %2259 = vmatprep.subr.bf16.mxu0 %v2165
        %2260 = vmatpush1.bf16.msra.mxu0 %v2164
        %2261 = vmatprep.subr.bf16.mxu0 0
        %2262 = vmatpush1.bf16.msra.mxu0 0
        %2263 = vmatprep.subr.bf16.mxu0 0
        %2264 = vmatpush1.bf16.msra.mxu0 0
        %2265 = vmatprep.subr.bf16.mxu0 0
        %2266 = vmatpush1.bf16.msra.mxu0 0
        %2267 = vmatprep.subr.bf16.mxu0 0
        %2268 = vmatpush1.bf16.msra.mxu0 0
        %2269 = vmatprep.subr.bf16.mxu0 0
        %2270 = vmatpush1.bf16.msra.mxu0 0
        %2271 = vmatprep.subr.bf16.mxu0 0
        %2272 = vmatpush1.bf16.msra.mxu0 0
        %2273 = vmatprep.subr.bf16.mxu0 0
        %2274 = vmatpush1.bf16.msra.mxu0 0
        %2275 = vmatprep.subr.bf16.mxu0 0
        %2276 = vmatpush1.bf16.msra.mxu0 0
        %2277 = vmatprep.subr.bf16.mxu0 0
        %2278 = vmatpush1.bf16.msra.mxu0 0
        %2279 = vmatprep.subr.bf16.mxu0 0
        %2280 = vmatpush1.bf16.msra.mxu0 0
        %2281 = vmatprep.subr.bf16.mxu0 0
        %2282 = vmatpush1.bf16.msra.mxu0 0
        %2283 = vmatprep.subr.bf16.mxu0 0
        %2284 = vmatpush1.bf16.msra.mxu0 0
        %2285 = vmatprep.subr.bf16.mxu0 0
        %2286 = vmatpush1.bf16.msra.mxu0 0
        %2287 = vmatprep.subr.bf16.mxu0 0
        %2288 = vmatpush1.bf16.msra.mxu0 0
        %2289 = vmatprep.mubr.bf16.mxu0 0
        %2290 = vmatmul.mubr.bf16.gmra.mrb[0].mxu0 %v2246
        %v2291 = vpop.f32.mrb[0].mxu0
        %v2292 = vadd.f32 %v2188, %v2291
        %v2293 = vpop.f32.mrb[0].mxu0
        %v2294 = vadd.f32 %v2188, %v2293
        %v2295 = vpop.f32.mrb[0].mxu0
        %v2296 = vadd.f32 %v2193, %v2295
        %v2297 = vpop.f32.mrb[0].mxu0
        %v2298 = vadd.f32 %v2193, %v2297
        %2299 = vmatprep.mubr.bf16.mxu0 0
        %2300 = vmatmul.mubr.bf16.gmra.mrb[0].mxu0 %v2249
        %v2301 = vpop.f32.mrb[0].mxu0
        %v2302 = vadd.f32 %v2198, %v2301
        %v2303 = vpop.f32.mrb[0].mxu0
        %v2304 = vadd.f32 %v2198, %v2303
        %v2305 = vpop.f32.mrb[0].mxu0
        %v2306 = vadd.f32 %v2203, %v2305
        %v2307 = vpop.f32.mrb[0].mxu0
        %v2308 = vadd.f32 %v2203, %v2307
        %2309 = vmatprep.mubr.bf16.mxu0 0
        %2310 = vmatmul.mubr.bf16.gmra.mrb[0].mxu0 %v2252
        %v2311 = vpop.f32.mrb[0].mxu0
        %v2312 = vpop.f32.mrb[0].mxu0
        %v2313 = vadd.f32 %v2208, %v2312
        %v2314 = vpop.f32.mrb[0].mxu0
        %v2315 = vpop.f32.mrb[0].mxu0
        %v2316 = vadd.f32 %v2213, %v2315
        %2317 = vmatprep.mubr.bf16.mxu0 0
        %2318 = vmatmul.mubr.bf16.gmra.mrb[0].mxu0 %v2255
        %v2319 = vpop.f32.mrb[0].mxu0
        %v2320 = vpop.f32.mrb[0].mxu0
        %v2321 = vadd.f32 %v2218, %v2320
        %v2322 = vpop.f32.mrb[0].mxu0
        %v2323 = vpop.f32.mrb[0].mxu0
        %v2324 = vadd.f32 %v2223, %v2323
        %2325 = vdwg.mxu0
        %2326 = vmatprep.subr.bf16.mxu0 0
        %2327 = vmatpush1.bf16.msra.mxu0 %v2163
        %2328 = vmatprep.subr.bf16.mxu0 0
        %2329 = vmatpush1.bf16.msra.mxu0 %v2166
        %2330 = vmatprep.subr.bf16.mxu0 0
        %2331 = vmatpush1.bf16.msra.mxu0 0
        %2332 = vmatprep.subr.bf16.mxu0 0
        %2333 = vmatpush1.bf16.msra.mxu0 0
        %2334 = vmatprep.subr.bf16.mxu0 0
        %2335 = vmatpush1.bf16.msra.mxu0 0
        %2336 = vmatprep.subr.bf16.mxu0 0
        %2337 = vmatpush1.bf16.msra.mxu0 0
        %2338 = vmatprep.subr.bf16.mxu0 0
        %2339 = vmatpush1.bf16.msra.mxu0 0
        %2340 = vmatprep.subr.bf16.mxu0 0
        %2341 = vmatpush1.bf16.msra.mxu0 0
        %2342 = vmatprep.subr.bf16.mxu0 0
        %2343 = vmatpush1.bf16.msra.mxu0 0
        %2344 = vmatprep.subr.bf16.mxu0 0
        %2345 = vmatpush1.bf16.msra.mxu0 0
        %2346 = vmatprep.subr.bf16.mxu0 0
        %2347 = vmatpush1.bf16.msra.mxu0 0
        %2348 = vmatprep.subr.bf16.mxu0 0
        %2349 = vmatpush1.bf16.msra.mxu0 0
        %2350 = vmatprep.subr.bf16.mxu0 0
        %2351 = vmatpush1.bf16.msra.mxu0 0
        %2352 = vmatprep.subr.bf16.mxu0 0
        %2353 = vmatpush1.bf16.msra.mxu0 0
        %2354 = vmatprep.subr.bf16.mxu0 0
        %2355 = vmatpush1.bf16.msra.mxu0 0
        %2356 = vmatprep.subr.bf16.mxu0 0
        %2357 = vmatpush1.bf16.msra.mxu0 0
        %2358 = vmatprep.mubr.bf16.mxu0 0
        %2359 = vmatmul.mubr.bf16.gmra.mrb[0].mxu0 %v2246
        %v2360 = vpop.f32.mrb[0].mxu0
        %v2361 = vadd.f32 %v2188, %v2360
        %v2362 = vpop.f32.mrb[0].mxu0
        %v2363 = vpop.f32.mrb[0].mxu0
        %v2364 = vadd.f32 %v2193, %v2363
        %v2365 = vpop.f32.mrb[0].mxu0
        %2366 = vmatprep.mubr.bf16.mxu0 0
        %2367 = vmatmul.mubr.bf16.gmra.mrb[0].mxu0 %v2249
        %v2368 = vpop.f32.mrb[0].mxu0
        %v2369 = vadd.f32 %v2198, %v2368
        %v2370 = vpop.f32.mrb[0].mxu0
        %v2371 = vpop.f32.mrb[0].mxu0
        %v2372 = vadd.f32 %v2203, %v2371
        %v2373 = vpop.f32.mrb[0].mxu0
        %2374 = vmatprep.mubr.bf16.mxu0 0
        %2375 = vmatmul.mubr.bf16.gmra.mrb[0].mxu0 %v2252
        %v2376 = vpop.f32.mrb[0].mxu0
        %v2377 = vpop.f32.mrb[0].mxu0
        %v2378 = vpop.f32.mrb[0].mxu0
        %v2379 = vpop.f32.mrb[0].mxu0
        %2380 = vmatprep.mubr.bf16.mxu0 0
        %2381 = vmatmul.mubr.bf16.gmra.mrb[0].mxu0 %v2255
        %v2382 = vpop.f32.mrb[0].mxu0
        %v2383 = vpop.f32.mrb[0].mxu0
        %v2384 = vpop.f32.mrb[0].mxu0
        %v2385 = vpop.f32.mrb[0].mxu0
        %2386 = vdwg.mxu0
        %v2387 = vadd.f32 %v1741, %v2292
        %v2388 = vadd.f32 %v1742, %v2294
        %v2389 = vadd.f32 %v1743, %v2361
        %v2390 = vadd.f32 %v1744, %v2296
        %v2391 = vadd.f32 %v1745, %v2298
        %v2392 = vadd.f32 %v1746, %v2364
        %v2393 = vadd.f32 %v1747, %v2302
        %v2394 = vadd.f32 %v1748, %v2304
        %v2395 = vadd.f32 %v1749, %v2369
        %v2396 = vadd.f32 %v1750, %v2306
        %v2397 = vadd.f32 %v1751, %v2308
        %v2398 = vadd.f32 %v1752, %v2372
        %v2399 = vadd.f32 %v1753, %v2313
        %v2400 = vadd.f32 %v1754, %v2316
        %v2401 = vadd.f32 %v1755, %v2321
        %v2402 = vadd.f32 %v1756, %v2324
        %v2403 = vsel %vm1099, %v2387, 0.0
        %v2404 = vsel %vm1100, %v2388, 0.0
        %v2405 = vsel %vm1101, %v2389, 0.0
        %v2406 = vsel %vm1099, %v2390, 0.0
        %v2407 = vsel %vm1100, %v2391, 0.0
        %v2408 = vsel %vm1101, %v2392, 0.0
        %v2409 = vsel %vm1099, %v2393, 0.0
        %v2410 = vsel %vm1100, %v2394, 0.0
        %v2411 = vsel %vm1101, %v2395, 0.0
        %v2412 = vsel %vm1099, %v2396, 0.0
        %v2413 = vsel %vm1100, %v2397, 0.0
        %v2414 = vsel %vm1101, %v2398, 0.0
        %v2415 = vpack.c.bf16 %v2406, %v2403
        %v2416 = vpack.c.bf16 %v2407, %v2404
        %v2417 = vpack.c.bf16 %v2408, %v2405
        %v2418 = vpack.c.bf16 %v2412, %v2409
        %v2419 = vpack.c.bf16 %v2413, %v2410
        %v2420 = vpack.c.bf16 %v2414, %v2411
        %2425 = vrot.lane.b32.xlu0 %v2415, 4
        %v2426 = vpop.permute.xlu0 %2425
        %2427 = vrot.lane.b32.xlu0 %v2416, 4
        %v2428 = vpop.permute.xlu0 %2427
        %2429 = vrot.lane.b32.xlu0 %v2418, 4
        %v2430 = vpop.permute.xlu0 %2429
        %2431 = vrot.lane.b32.xlu0 %v2419, 4
        %v2432 = vpop.permute.xlu0 %2431
        %vm2433 = vcmask 31744
        %v2434 = vsel %vm2433, %v2426, %v2428
        %v2435 = vsel %vm2433, %v2430, %v2432
        %v2439 = vsel %vm977, 0, %v2426
        %v2442 = vsel %vm977, 0, %v2430
        %2446 = vrot.lane.b32.xlu0 %v2415, 124
        %v2447 = vpop.permute.xlu0 %2446
        %2448 = vrot.lane.b32.xlu0 %v2416, 124
        %v2449 = vpop.permute.xlu0 %2448
        %2450 = vrot.lane.b32.xlu0 %v2417, 124
        %v2451 = vpop.permute.xlu0 %2450
        %2452 = vrot.lane.b32.xlu0 %v2418, 124
        %v2453 = vpop.permute.xlu0 %2452
        %2454 = vrot.lane.b32.xlu0 %v2419, 124
        %v2455 = vpop.permute.xlu0 %2454
        %2456 = vrot.lane.b32.xlu0 %v2420, 124
        %v2457 = vpop.permute.xlu0 %2456
        %vm2458 = vcmask 1014784
        %v2459 = vsel %vm2458, %v2447, %v2449
        %v2460 = vsel %vm2458, %v2449, %v2451
        %v2461 = vsel %vm2458, %v2453, %v2455
        %v2462 = vsel %vm2458, %v2455, %v2457
        %s2467 = scalar_lea.vmem [#allocation17], 64
        %v2468 = vld [vmem:[%s2467] sm:$0xf]
        %v2469 = vld [vmem:[%s2467 + $0x4] sm:$0xf]
        %v2470 = vld [vmem:[%s2467 + $0x8] sm:$0xf]
        %v2471 = vld [vmem:[%s2467 + $0xc] sm:$0xf]
        %v2472 = vld [vmem:[%s2467 + $0x10] sm:$0xf]
        %v2473 = vld [vmem:[%s2467 + $0x14] sm:$0xf]
        %v2474 = vld [vmem:[%s2467 + $0x18] sm:$0xf]
        %v2475 = vld [vmem:[%s2467 + $0x1c] sm:$0xf]
        %s2476 = scalar_lea.vmem [#allocation16], 128
        %v2477 = vld [vmem:[%s2476] sm:$0xff]
        %v2478 = vld [vmem:[%s2476 + $0x8] sm:$0xff]
        %v2479 = vld [vmem:[%s2476 + $0x10] sm:$0xff]
        %v2480 = vld [vmem:[%s2476 + $0x18] sm:$0xff]
        %v2481 = vld [vmem:[%s2476 + $0x20] sm:$0xff]
        %v2482 = vld [vmem:[%s2476 + $0x28] sm:$0xff]
        %v2483 = vld [vmem:[%s2476 + $0x30] sm:$0xff]
        %v2484 = vld [vmem:[%s2476 + $0x38] sm:$0xff]
        %2486 = vset.pattern.permute.xlu0 0
        %2487 = vperm.xlu0 %2486, %v2477
        %v2488 = vpop.permute.xlu0 %2487
        %2491 = vset.pattern.permute.xlu0 0
        %2492 = vperm.xlu0 %2491, %v2478
        %v2493 = vpop.permute.xlu0 %2492
        %2496 = vset.pattern.permute.xlu0 0
        %2497 = vperm.xlu0 %2496, %v2479
        %v2498 = vpop.permute.xlu0 %2497
        %2501 = vset.pattern.permute.xlu0 0
        %2502 = vperm.xlu0 %2501, %v2480
        %v2503 = vpop.permute.xlu0 %2502
        %2506 = vset.pattern.permute.xlu0 0
        %2507 = vperm.xlu0 %2506, %v2481
        %v2508 = vpop.permute.xlu0 %2507
        %2511 = vset.pattern.permute.xlu0 0
        %2512 = vperm.xlu0 %2511, %v2482
        %v2513 = vpop.permute.xlu0 %2512
        %2516 = vset.pattern.permute.xlu0 0
        %2517 = vperm.xlu0 %2516, %v2483
        %v2518 = vpop.permute.xlu0 %2517
        %2521 = vset.pattern.permute.xlu0 0
        %2522 = vperm.xlu0 %2521, %v2484
        %v2523 = vpop.permute.xlu0 %2522
        %v2533 = vunpack.c.l.b16 %v2468
        %v2534 = vunpack.c.l.b16 %v2469
        %v2535 = vunpack.c.l.b16 %v2470
        %v2536 = vunpack.c.l.b16 %v2471
        %v2537 = vunpack.c.l.b16 %v2472
        %v2538 = vunpack.c.l.b16 %v2473
        %v2539 = vunpack.c.l.b16 %v2474
        %v2540 = vunpack.c.l.b16 %v2475
        %v2541 = vpack.c.b16 %v2534, %v2533
        %v2542 = vpack.c.b16 %v2536, %v2535
        %v2543 = vpack.c.b16 %v2538, %v2537
        %v2544 = vpack.c.b16 %v2540, %v2539
        %v2546 = vsel %vm1259, %v2541, 0
        %v2549 = vsel %vm1259, %v2542, 0
        %v2552 = vsel %vm1259, %v2543, 0
        %v2555 = vsel %vm1259, %v2544, 0
        %2557 = vmatprep.subr.bf16.mxu0 %v2434
        %2558 = vmatpush1.bf16.msra.mxu0 %v2439
        %2559 = vmatprep.subr.bf16.mxu0 %v2435
        %2560 = vmatpush1.bf16.msra.mxu0 %v2442
        %2561 = vmatprep.subr.bf16.mxu0 %v2416
        %2562 = vmatpush1.bf16.msra.mxu0 %v2415
        %2563 = vmatprep.subr.bf16.mxu0 %v2419
        %2564 = vmatpush1.bf16.msra.mxu0 %v2418
        %2565 = vmatprep.subr.bf16.mxu0 %v2460
        %2566 = vmatpush1.bf16.msra.mxu0 %v2459
        %2567 = vmatprep.subr.bf16.mxu0 %v2462
        %2568 = vmatpush1.bf16.msra.mxu0 %v2461
        %2569 = vmatprep.subr.bf16.mxu0 %v1277
        %2570 = vmatpush1.bf16.msra.mxu0 %v1274
        %2571 = vmatprep.subr.bf16.mxu0 0
        %2572 = vmatpush1.bf16.msra.mxu0 0
        %2573 = vmatprep.subr.bf16.mxu0 0
        %2574 = vmatpush1.bf16.msra.mxu0 0
        %2575 = vmatprep.subr.bf16.mxu0 0
        %2576 = vmatpush1.bf16.msra.mxu0 0
        %2577 = vmatprep.subr.bf16.mxu0 0
        %2578 = vmatpush1.bf16.msra.mxu0 0
        %2579 = vmatprep.subr.bf16.mxu0 0
        %2580 = vmatpush1.bf16.msra.mxu0 0
        %2581 = vmatprep.subr.bf16.mxu0 0
        %2582 = vmatpush1.bf16.msra.mxu0 0
        %2583 = vmatprep.subr.bf16.mxu0 0
        %2584 = vmatpush1.bf16.msra.mxu0 0
        %2585 = vmatprep.subr.bf16.mxu0 0
        %2586 = vmatpush1.bf16.msra.mxu0 0
        %2587 = vmatprep.subr.bf16.mxu0 0
        %2588 = vmatpush1.bf16.msra.mxu0 0
        %2589 = vmatprep.mubr.bf16.mxu0 0
        %2590 = vmatmul.mubr.bf16.gmra.mrb[0].mxu0 %v2546
        %v2591 = vpop.f32.mrb[0].mxu0
        %v2592 = vadd.f32 %v2488, %v2591
        %v2593 = vpop.f32.mrb[0].mxu0
        %v2594 = vadd.f32 %v2488, %v2593
        %v2595 = vpop.f32.mrb[0].mxu0
        %v2596 = vadd.f32 %v2493, %v2595
        %v2597 = vpop.f32.mrb[0].mxu0
        %v2598 = vadd.f32 %v2493, %v2597
        %2599 = vmatprep.mubr.bf16.mxu0 0
        %2600 = vmatmul.mubr.bf16.gmra.mrb[0].mxu0 %v2549
        %v2601 = vpop.f32.mrb[0].mxu0
        %v2602 = vadd.f32 %v2498, %v2601
        %v2603 = vpop.f32.mrb[0].mxu0
        %v2604 = vadd.f32 %v2498, %v2603
        %v2605 = vpop.f32.mrb[0].mxu0
        %v2606 = vadd.f32 %v2503, %v2605
        %v2607 = vpop.f32.mrb[0].mxu0
        %v2608 = vadd.f32 %v2503, %v2607
        %2609 = vmatprep.mubr.bf16.mxu0 0
        %2610 = vmatmul.mubr.bf16.gmra.mrb[0].mxu0 %v2552
        %v2611 = vpop.f32.mrb[0].mxu0
        %v2612 = vadd.f32 %v2508, %v2611
        %v2613 = vpop.f32.mrb[0].mxu0
        %v2614 = vadd.f32 %v2508, %v2613
        %v2615 = vpop.f32.mrb[0].mxu0
        %v2616 = vadd.f32 %v2513, %v2615
        %v2617 = vpop.f32.mrb[0].mxu0
        %v2618 = vadd.f32 %v2513, %v2617
        %2619 = vmatprep.mubr.bf16.mxu0 0
        %2620 = vmatmul.mubr.bf16.gmra.mrb[0].mxu0 %v2555
        %v2621 = vpop.f32.mrb[0].mxu0
        %v2622 = vadd.f32 %v2518, %v2621
        %v2623 = vpop.f32.mrb[0].mxu0
        %v2624 = vadd.f32 %v2518, %v2623
        %v2625 = vpop.f32.mrb[0].mxu0
        %v2626 = vadd.f32 %v2523, %v2625
        %v2627 = vpop.f32.mrb[0].mxu0
        %v2628 = vadd.f32 %v2523, %v2627
        %2629 = vdwg.mxu0
        %v2630 = vtanh.pop %v2592
        %v2631 = vtanh.pop %v2594
        %v2632 = vtanh.pop %v2596
        %v2633 = vtanh.pop %v2598
        %v2634 = vtanh.pop %v2602
        %v2635 = vtanh.pop %v2604
        %v2636 = vtanh.pop %v2606
        %v2637 = vtanh.pop %v2608
        %v2638 = vxor.u32 %v2612, 2147483648
        %v2639 = vxor.u32 %v2614, 2147483648
        %v2640 = vxor.u32 %v2616, 2147483648
        %v2641 = vxor.u32 %v2618, 2147483648
        %v2642 = vxor.u32 %v2622, 2147483648
        %v2643 = vxor.u32 %v2624, 2147483648
        %v2644 = vxor.u32 %v2626, 2147483648
        %v2645 = vxor.u32 %v2628, 2147483648
        %v2646 = vmul.f32 %v2638, 1.442695
        %v2647 = vpow.pop %v2646
        %v2648 = vmul.f32 %v2639, 1.442695
        %v2649 = vpow.pop %v2648
        %v2650 = vmul.f32 %v2640, 1.442695
        %v2651 = vpow.pop %v2650
        %v2652 = vmul.f32 %v2641, 1.442695
        %v2653 = vpow.pop %v2652
        %v2654 = vmul.f32 %v2642, 1.442695
        %v2655 = vpow.pop %v2654
        %v2656 = vmul.f32 %v2643, 1.442695
        %v2657 = vpow.pop %v2656
        %v2658 = vmul.f32 %v2644, 1.442695
        %v2659 = vpow.pop %v2658
        %v2660 = vmul.f32 %v2645, 1.442695
        %v2661 = vpow.pop %v2660
        %v2662 = vadd.f32 %v2647, 1.0
        %v2663 = vadd.f32 %v2649, 1.0
        %v2664 = vadd.f32 %v2651, 1.0
        %v2665 = vadd.f32 %v2653, 1.0
        %v2666 = vadd.f32 %v2655, 1.0
        %v2667 = vadd.f32 %v2657, 1.0
        %v2668 = vadd.f32 %v2659, 1.0
        %v2669 = vadd.f32 %v2661, 1.0
        %v2670 = vrcp.pop %v2662
        %v2671 = vmul.f32 1.0, %v2670
        %v2672 = vrcp.pop %v2663
        %v2673 = vmul.f32 1.0, %v2672
        %v2674 = vrcp.pop %v2664
        %v2675 = vmul.f32 1.0, %v2674
        %v2676 = vrcp.pop %v2665
        %v2677 = vmul.f32 1.0, %v2676
        %v2678 = vrcp.pop %v2666
        %v2679 = vmul.f32 1.0, %v2678
        %v2680 = vrcp.pop %v2667
        %v2681 = vmul.f32 1.0, %v2680
        %v2682 = vrcp.pop %v2668
        %v2683 = vmul.f32 1.0, %v2682
        %v2684 = vrcp.pop %v2669
        %v2685 = vmul.f32 1.0, %v2684
        %v2686 = vmul.f32 %v2630, %v2671
        %v2687 = vmul.f32 %v2631, %v2673
        %v2688 = vmul.f32 %v2632, %v2675
        %v2689 = vmul.f32 %v2633, %v2677
        %v2690 = vmul.f32 %v2634, %v2679
        %v2691 = vmul.f32 %v2635, %v2681
        %v2692 = vmul.f32 %v2636, %v2683
        %v2693 = vmul.f32 %v2637, %v2685
        %v2694 = vpack.c.bf16 %v2688, %v2686
        %v2695 = vpack.c.bf16 %v2689, %v2687
        %v2696 = vpack.c.bf16 %v2692, %v2690
        %v2697 = vpack.c.bf16 %v2693, %v2691
        %s2698 = scalar_lea.vmem [#allocation19], 64
        %v2699 = vld [vmem:[%s2698 + $0x10] sm:$0xf]
        %v2700 = vld [vmem:[%s2698 + $0x14] sm:$0xf]
        %v2701 = vld [vmem:[%s2698 + $0x18] sm:$0xf]
        %v2702 = vld [vmem:[%s2698 + $0x1c] sm:$0xf]
        %s2703 = scalar_lea.vmem [#allocation20], 128
        %v2704 = vld [vmem:[%s2703 + $0x20] sm:$0xff]
        %v2705 = vld [vmem:[%s2703 + $0x28] sm:$0xff]
        %v2706 = vld [vmem:[%s2703 + $0x30] sm:$0xff]
        %v2707 = vld [vmem:[%s2703 + $0x38] sm:$0xff]
        %2709 = vset.pattern.permute.xlu0 0
        %2710 = vperm.xlu0 %2709, %v2704
        %v2711 = vpop.permute.xlu0 %2710
        %2714 = vset.pattern.permute.xlu0 0
        %2715 = vperm.xlu0 %2714, %v2705
        %v2716 = vpop.permute.xlu0 %2715
        %2719 = vset.pattern.permute.xlu0 0
        %2720 = vperm.xlu0 %2719, %v2706
        %v2721 = vpop.permute.xlu0 %2720
        %2724 = vset.pattern.permute.xlu0 0
        %2725 = vperm.xlu0 %2724, %v2707
        %v2726 = vpop.permute.xlu0 %2725
        %v2732 = vunpack.c.l.b16 %v2699
        %v2733 = vunpack.c.l.b16 %v2700
        %v2734 = vunpack.c.l.b16 %v2701
        %v2735 = vunpack.c.l.b16 %v2702
        %v2736 = vpack.c.b16 %v2733, %v2732
        %v2737 = vpack.c.b16 %v2735, %v2734
        %v2739 = vsel %vm1598, %v2736, 0
        %v2742 = vsel %vm1598, %v2737, 0
        %2744 = vmatprep.subr.bf16.mxu0 %v2695
        %2745 = vmatpush1.bf16.msra.mxu0 %v2694
        %2746 = vmatprep.subr.bf16.mxu0 %v2697
        %2747 = vmatpush1.bf16.msra.mxu0 %v2696
        %2748 = vmatprep.subr.bf16.mxu0 0
        %2749 = vmatpush1.bf16.msra.mxu0 0
        %2750 = vmatprep.subr.bf16.mxu0 0
        %2751 = vmatpush1.bf16.msra.mxu0 0
        %2752 = vmatprep.subr.bf16.mxu0 0
        %2753 = vmatpush1.bf16.msra.mxu0 0
        %2754 = vmatprep.subr.bf16.mxu0 0
        %2755 = vmatpush1.bf16.msra.mxu0 0
        %2756 = vmatprep.subr.bf16.mxu0 0
        %2757 = vmatpush1.bf16.msra.mxu0 0
        %2758 = vmatprep.subr.bf16.mxu0 0
        %2759 = vmatpush1.bf16.msra.mxu0 0
        %2760 = vmatprep.subr.bf16.mxu0 0
        %2761 = vmatpush1.bf16.msra.mxu0 0
        %2762 = vmatprep.subr.bf16.mxu0 0
        %2763 = vmatpush1.bf16.msra.mxu0 0
        %2764 = vmatprep.subr.bf16.mxu0 0
        %2765 = vmatpush1.bf16.msra.mxu0 0
        %2766 = vmatprep.subr.bf16.mxu0 0
        %2767 = vmatpush1.bf16.msra.mxu0 0
        %2768 = vmatprep.subr.bf16.mxu0 0
        %2769 = vmatpush1.bf16.msra.mxu0 0
        %2770 = vmatprep.subr.bf16.mxu0 0
        %2771 = vmatpush1.bf16.msra.mxu0 0
        %2772 = vmatprep.subr.bf16.mxu0 0
        %2773 = vmatpush1.bf16.msra.mxu0 0
        %2774 = vmatprep.subr.bf16.mxu0 0
        %2775 = vmatpush1.bf16.msra.mxu0 0
        %2776 = vmatprep.mubr.bf16.mxu0 0
        %2777 = vmatmul.mubr.bf16.gmra.mrb[0].mxu0 %v2739
        %v2778 = vpop.f32.mrb[0].mxu0
        %v2779 = vpop.f32.mrb[0].mxu0
        %v2780 = vadd.f32 %v2711, %v2779
        %v2781 = vpop.f32.mrb[0].mxu0
        %v2782 = vpop.f32.mrb[0].mxu0
        %v2783 = vadd.f32 %v2716, %v2782
        %2784 = vmatprep.mubr.bf16.mxu0 0
        %2785 = vmatmul.mubr.bf16.gmra.mrb[0].mxu0 %v2742
        %v2786 = vpop.f32.mrb[0].mxu0
        %v2787 = vpop.f32.mrb[0].mxu0
        %v2788 = vadd.f32 %v2721, %v2787
        %v2789 = vpop.f32.mrb[0].mxu0
        %v2790 = vpop.f32.mrb[0].mxu0
        %v2791 = vadd.f32 %v2726, %v2790
        %2792 = vdwg.mxu0
        %v2793 = vadd.f32 %v2399, %v2780
        %v2794 = vadd.f32 %v2400, %v2783
        %v2795 = vadd.f32 %v2401, %v2788
        %v2796 = vadd.f32 %v2402, %v2791
        %v2797 = vpack.c.bf16 %v2794, %v2793
        %v2798 = vpack.c.bf16 %v2796, %v2795
        %v2799 = vld [vmem:[#allocation22] sm:$0xf]
        %v2800 = vld [vmem:[#allocation23] sm:$0xff]
        %2802 = vset.pattern.permute.xlu0 0
        %2803 = vperm.xlu0 %2802, %v2800
        %v2804 = vpop.permute.xlu0 %2803
        %v2807 = vsel %vm1598, %v2799, 0
        %2809 = vmatprep.subr.bf16.mxu0 0
        %2810 = vmatpush1.bf16.msra.mxu0 %v2797
        %2811 = vmatprep.subr.bf16.mxu0 0
        %2812 = vmatpush1.bf16.msra.mxu0 %v2798
        %2813 = vmatprep.subr.bf16.mxu0 0
        %2814 = vmatpush1.bf16.msra.mxu0 0
        %2815 = vmatprep.subr.bf16.mxu0 0
        %2816 = vmatpush1.bf16.msra.mxu0 0
        %2817 = vmatprep.subr.bf16.mxu0 0
        %2818 = vmatpush1.bf16.msra.mxu0 0
        %2819 = vmatprep.subr.bf16.mxu0 0
        %2820 = vmatpush1.bf16.msra.mxu0 0
        %2821 = vmatprep.subr.bf16.mxu0 0
        %2822 = vmatpush1.bf16.msra.mxu0 0
        %2823 = vmatprep.subr.bf16.mxu0 0
        %2824 = vmatpush1.bf16.msra.mxu0 0
        %2825 = vmatprep.subr.bf16.mxu0 0
        %2826 = vmatpush1.bf16.msra.mxu0 0
        %2827 = vmatprep.subr.bf16.mxu0 0
        %2828 = vmatpush1.bf16.msra.mxu0 0
        %2829 = vmatprep.subr.bf16.mxu0 0
        %2830 = vmatpush1.bf16.msra.mxu0 0
        %2831 = vmatprep.subr.bf16.mxu0 0
        %2832 = vmatpush1.bf16.msra.mxu0 0
        %2833 = vmatprep.subr.bf16.mxu0 0
        %2834 = vmatpush1.bf16.msra.mxu0 0
        %2835 = vmatprep.subr.bf16.mxu0 0
        %2836 = vmatpush1.bf16.msra.mxu0 0
        %2837 = vmatprep.subr.bf16.mxu0 0
        %2838 = vmatpush1.bf16.msra.mxu0 0
        %2839 = vmatprep.subr.bf16.mxu0 0
        %2840 = vmatpush1.bf16.msra.mxu0 0
        %2841 = vmatprep.mubr.bf16.mxu0 0
        %2842 = vmatmul.mubr.bf16.gmra.mrb[0].mxu0 %v2807
        %v2843 = vpop.f32.mrb[0].mxu0
        %v2844 = vadd.f32 %v2804, %v2843
        %v2845 = vpop.f32.mrb[0].mxu0
        %v2846 = vpop.f32.mrb[0].mxu0
        %v2847 = vpop.f32.mrb[0].mxu0
        %2848 = vdwg.mxu0
        %v2849 = vsub.f32 %v908, %v2844
        %v2850 = vsub.f32 0.0, %v2844
        %v2851 = vmul.f32 %v2850, 1.442695
        %v2852 = vpow.pop %v2851
        %v2854 = vrot.slane %v2852, 4
        %v2856 = vmul.f32 %v2849, %v2854
        %v2857 = vpack.c.bf16 %v2856, %v2856
        %v2858 = vld [vmem:[#allocation25] sm:$0x3]
        %v2859 = vld [vmem:[#allocation26] sm:$0xf]
        %2861 = vset.pattern.permute.xlu0 0
        %2862 = vperm.xlu0 %2861, %v2859
        %v2863 = vpop.permute.xlu0 %2862
        %v2866 = vsel %vm977, %v2858, 0
        %v2869 = vsel %vm984, %v2857, 0
        %2871 = vmatprep.subr.bf16.mxu0 0
        %2872 = vmatpush1.bf16.msra.mxu0 %v2869
        %2873 = vmatprep.subr.bf16.mxu0 0
        %2874 = vmatpush1.bf16.msra.mxu0 0
        %2875 = vmatprep.subr.bf16.mxu0 0
        %2876 = vmatpush1.bf16.msra.mxu0 0
        %2877 = vmatprep.subr.bf16.mxu0 0
        %2878 = vmatpush1.bf16.msra.mxu0 0
        %2879 = vmatprep.subr.bf16.mxu0 0
        %2880 = vmatpush1.bf16.msra.mxu0 0
        %2881 = vmatprep.subr.bf16.mxu0 0
        %2882 = vmatpush1.bf16.msra.mxu0 0
        %2883 = vmatprep.subr.bf16.mxu0 0
        %2884 = vmatpush1.bf16.msra.mxu0 0
        %2885 = vmatprep.subr.bf16.mxu0 0
        %2886 = vmatpush1.bf16.msra.mxu0 0
        %2887 = vmatprep.subr.bf16.mxu0 0
        %2888 = vmatpush1.bf16.msra.mxu0 0
        %2889 = vmatprep.subr.bf16.mxu0 0
        %2890 = vmatpush1.bf16.msra.mxu0 0
        %2891 = vmatprep.subr.bf16.mxu0 0
        %2892 = vmatpush1.bf16.msra.mxu0 0
        %2893 = vmatprep.subr.bf16.mxu0 0
        %2894 = vmatpush1.bf16.msra.mxu0 0
        %2895 = vmatprep.subr.bf16.mxu0 0
        %2896 = vmatpush1.bf16.msra.mxu0 0
        %2897 = vmatprep.subr.bf16.mxu0 0
        %2898 = vmatpush1.bf16.msra.mxu0 0
        %2899 = vmatprep.subr.bf16.mxu0 0
        %2900 = vmatpush1.bf16.msra.mxu0 0
        %2901 = vmatprep.subr.bf16.mxu0 0
        %2902 = vmatpush1.bf16.msra.mxu0 0
        %2903 = vmatprep.mubr.bf16.mxu0 0
        %2904 = vmatmul.mubr.bf16.gmra.mrb[0].mxu0 %v2866
        %v2905 = vpop.f32.mrb[0].mxu0
        %v2906 = vadd.f32 %v2863, %v2905
        %v2907 = vpop.f32.mrb[0].mxu0
        %v2908 = vpop.f32.mrb[0].mxu0
        %v2909 = vpop.f32.mrb[0].mxu0
        %2910 = vdwg.mxu0
        %v2911 = vsel %vm938, 1, 0
        %vm2912 = vcmp.eq.s32.totalorder %v2911, 1
        %v2913 = vsel %vm2912, %v2906, 0.0
        %2914 = vst [vmem:[%s902] sm:$0xf] %v2913
        %s2915 = sand.u32 %s455, 1
        %s2916 = scalar_lea.sflag [#allocation4], %s2915
        %s2917 = sand.u32 %s455, 1
        %s2918 = smul.addr %s2917, 4
        %s2919 = scalar_lea.vmem [#allocation28], %s2918
        // Predicated region
        $region149: #{affine_student_forward.2} parent=83 // pred_check
          %p2920 = pneg %p465
        $region150: #{affine_student_forward.2} parent=83 // pred_check_branch
          %2922 = sbr.rel (%p2920) target = $region152
        $region151: #{affine_student_forward.2} parent=83 // pred_region
          %s2924 = ssub.s32 64, 64
          %2925 = vsyncadd %s2916, %s2924
          %s2926 = sadd.s32 %s52, %s51
          %s2927 = smul.addr %s2926, 64
          %s2928 = scalar_lea.hbm %s16, %s2927
          %s2930 = sshll.u32 %s2919, 4
          %s2931 = int_to_ptr.vmem [resolvable:$true] %s2930
          %2933 = dma.vmem_to_hbm [thread:$0]  %s2931, 64, %s2928, %s2916
        $region152: #{affine_student_forward.2} parent=83 // pred_fallthru
          _
      $region84: #{affine_student_forward.2} parent=5 // pred_fallthru
        _
      %p2934 = scmp.le.s32.totalorder 2, %s42
      // Predicated region
      $region153: #{affine_student_forward.2} parent=5 // pred_check
        %p2935 = pneg %p2934
      $region154: #{affine_student_forward.2} parent=5 // pred_check_branch
        %2937 = sbr.rel (%p2935) target = $region156
      $region155: #{affine_student_forward.2} parent=5 // pred_region
        %s2938 = ssub.s32 %s42, 2
        // Predicated region
        $region157: #{affine_student_forward.2} parent=155 // pred_check
          %p2939 = pneg %p471
        $region158: #{affine_student_forward.2} parent=155 // pred_check_branch
          %2941 = sbr.rel (%p2939) target = $region160
        $region159: #{affine_student_forward.2} parent=155 // pred_region
          %s2942 = sand.u32 %s456, 1
          %s2943 = scalar_lea.sflag [#allocation4], %s2942
          %s2944 = sand.u32 %s456, 1
          %s2945 = smul.addr %s2944, 4
          %s2946 = scalar_lea.vmem [#allocation28], %s2945
          %2947 = dma.done %s2943, 64
        $region160: #{affine_student_forward.2} parent=155 // pred_fallthru
          _
      $region156: #{affine_student_forward.2} parent=5 // pred_fallthru
        _
    $region6: #{affine_student_forward.2} parent=1 // loop_footer
      %s46 = sadd.s32 1, %s42
    $region7: #{affine_student_forward.2} parent=1 // loop_footer_branch
      %41 = sbr.rel target = $region3
    $region8: #{affine_student_forward.2} parent=1 // loop_exit
      _
    %2948 = vsyncpa [#allocation3], 1
    %s2949 = scalar_lea.sflag [#allocation3], 1
    %2950 = vsyncpa %s2949, 1
    %2951 = vsyncpa [#allocation6], 1
    %s2952 = scalar_lea.sflag [#allocation6], 1
    %2953 = vsyncpa %s2952, 1
    %2954 = vsyncpa [#allocation9], 1
    %s2955 = scalar_lea.sflag [#allocation9], 1
    %2956 = vsyncpa %s2955, 1
    %2957 = vsyncpa [#allocation12], 1
    %s2958 = scalar_lea.sflag [#allocation12], 1
    %2959 = vsyncpa %s2958, 1
    %2960 = vsyncpa [#allocation15], 1
    %2961 = vsyncpa [#allocation18], 1
    %2962 = vsyncpa [#allocation21], 1
    %2963 = vsyncpa [#allocation24], 1
    %2964 = vsyncpa [#allocation27], 1
    %2965 = vsyncpa [#allocation4], 1
    %s2966 = scalar_lea.sflag [#allocation4], 1
    %2967 = vsyncpa %s2966, 1

</llo_original>
